<compile_context>
chip_gen: v7x
topology: tpu7x:2x2x1
jax: 0.10.0
libtpu: 0.0.40
codegen_flags: <defaults>
</compile_context>

<pallas_src>
import functools

import jax
import jax.numpy as jnp
import numpy as np
from jax.experimental import pallas as pl
from jax.experimental.pallas import tpu as pltpu

LN_EPS = 1e-5              # torch.nn.LayerNorm default
VOCAB_SIZE = 49408         # ClipEmbeddings defaults
MAX_SEQ = 77


# ---------------------------------------------------------------------------
# helpers shared by the kernel body and the pure-JAX reference
# ---------------------------------------------------------------------------
def _layer_norm(x, gamma, beta):
    mean = jnp.mean(x, axis=-1, keepdims=True)
    var = jnp.mean((x - mean) ** 2, axis=-1, keepdims=True)
    return (x - mean) * jax.lax.rsqrt(var + LN_EPS) * gamma + beta


def _quick_gelu(x):
    return x * jax.nn.sigmoid(1.702 * x)


def _gelu(x):
    return jax.nn.gelu(x, approximate=False)


def _act_fn(name):
    return _quick_gelu if name == "quick_gelu" else _gelu


# ---------------------------------------------------------------------------
# fused encoder kernel: one grid step = (batch tile bt, layer l)
# ---------------------------------------------------------------------------
def _make_encoder_kernel(num_heads, act_name, inter_idx, ln_intermediate,
                         want_inter):
    act = _act_fn(act_name)

    def kernel(x_ref, mask_ref,
               ln1_g, ln1_b, w_qkv, b_qkv, w_o, b_o,
               ln2_g, ln2_b, w_fc1, b_fc1, w_fc2, b_fc2,
               lnf_g, lnf_b, *outs_and_scratch):
        if want_inter:
            out_ref, inter_ref, x_scr, ctx_scr = outs_and_scratch
        else:
            out_ref, x_scr, ctx_scr = outs_and_scratch
            inter_ref = None

        l = pl.program_id(1)
        last = pl.num_programs(1) - 1

        Bt, S, D = x_ref.shape
        BtS = Bt * S
        hd = D // num_heads
        bf16 = jnp.bfloat16

        @pl.when(l == 0)
        def _load_x():
            x_scr[...] = x_ref[...].reshape(BtS, D)

        x = x_scr[...]                                   # (Bt*S, D) f32
        mask_bias = mask_ref[...]                        # (S, S) f32 additive

        # ---- self-attention block (pre-LN), fused QKV projection ----------
        h = _layer_norm(x, ln1_g[0], ln1_b[0]).astype(bf16)
        # 1/sqrt(hd) is folded into the Q columns of w_qkv/b_qkv at pack time.
        qkv = (jnp.dot(h, w_qkv[0], preferred_element_type=jnp.float32)
               + b_qkv[0]).astype(bf16)                  # (Bt*S, 3D) bf16

        # per-element, per-head attention; contexts gathered into a bf16
        # scratch so one wide K=D out-projection follows the head loop.
        for b in range(Bt):                              # static unroll (small)
            base = b * S
            for hh in range(num_heads):                  # static unroll
                lo = hh * hd
                qh = qkv[base:base + S, lo:lo + hd]
                kh = qkv[base:base + S, D + lo:D + lo + hd]
                vh = qkv[base:base + S, 2 * D + lo:2 * D + lo + hd]
                s = jax.lax.dot_general(qh, kh, (((1,), (1,)), ((), ())),
                                        preferred_element_type=jnp.float32)
                s = s + mask_bias
                s = s - jnp.max(s, axis=-1, keepdims=True)
                p = jnp.exp(s)
                p = p * pl.reciprocal(jnp.sum(p, axis=-1, keepdims=True),
                                      approx=True)
                ctx = jnp.dot(p.astype(bf16), vh,
                              preferred_element_type=jnp.float32)   # (S, hd)
                ctx_scr[base:base + S, lo:lo + hd] = ctx.astype(bf16)

        attn = jnp.dot(ctx_scr[...], w_o[0],
                       preferred_element_type=jnp.float32) + b_o[0]  # (Bt*S,D)
        x = x + attn

        # ---- MLP block (pre-LN), flattened (Bt*S, D) matmuls ---------------
        h = _layer_norm(x, ln2_g[0], ln2_b[0]).astype(bf16)
        h = jnp.dot(h, w_fc1[0], preferred_element_type=jnp.float32) + b_fc1[0]
        h = act(h)
        h = jnp.dot(h.astype(bf16), w_fc2[0],
                    preferred_element_type=jnp.float32) + b_fc2[0]
        x = x + h

        x_scr[...] = x

        if want_inter:
            @pl.when(l == inter_idx)
            def _write_inter():
                if ln_intermediate:
                    y = _layer_norm(x, lnf_g[...], lnf_b[...])
                else:
                    y = x
                inter_ref[...] = y.reshape(Bt, S, D)

        @pl.when(l == last)
        def _write_out():
            out_ref[...] = _layer_norm(x, lnf_g[...], lnf_b[...]).reshape(
                Bt, S, D)

    return kernel


# ---------------------------------------------------------------------------
# weight packing: stack layers on a leading L axis, pre-transpose to (in,out),
# fuse Q/K/V (with 1/sqrt(hd) folded into Q), cast matmul weights to bf16
# (biases / LN params stay f32).  Called ONCE at model-load time, outside jit.
# ---------------------------------------------------------------------------
def pack_encoder_params(params, num_heads):
    layers = params["layers"]
    bf = jnp.bfloat16
    D = params["final_ln_g"].shape[0]
    hd = D // num_heads
    scale = jnp.float32(1.0 / float(hd) ** 0.5)

    def stack(fn):
        return jnp.stack([fn(lp) for lp in layers], axis=0)

    return {
        "ln1_g": stack(lambda lp: lp["ln1_g"][None, :]),                 # (L,1,D)
        "ln1_b": stack(lambda lp: lp["ln1_b"][None, :]),
        "w_qkv": stack(lambda lp: jnp.concatenate(
            [lp["q_w"] * scale, lp["k_w"], lp["v_w"]],
            axis=0).T.astype(bf)),                                       # (L,D,3D)
        "b_qkv": stack(lambda lp: jnp.concatenate(
            [lp["q_b"] * scale, lp["k_b"], lp["v_b"]], axis=0)[None, :]),
        "w_o": stack(lambda lp: lp["o_w"].T.astype(bf)),                 # (L,D,D)
        "b_o": stack(lambda lp: lp["o_b"][None, :]),
        "ln2_g": stack(lambda lp: lp["ln2_g"][None, :]),
        "ln2_b": stack(lambda lp: lp["ln2_b"][None, :]),
        "w_fc1": stack(lambda lp: lp["fc1_w"].T.astype(bf)),             # (L,D,Hid)
        "b_fc1": stack(lambda lp: lp["fc1_b"][None, :]),
        "w_fc2": stack(lambda lp: lp["fc2_w"].T.astype(bf)),             # (L,Hid,D)
        "b_fc2": stack(lambda lp: lp["fc2_b"][None, :]),
        "lnf_g": params["final_ln_g"][None, :],                          # (1,D)
        "lnf_b": params["final_ln_b"][None, :],
    }


def prepare_model(params, num_heads):
    """One-time (outside jit) model preparation: pack + cast encoder weights."""
    return {
        "token_embedding": params["token_embedding"],
        "position_embedding": params["position_embedding"],
        "proj_w": params["proj_w"],
        "encoder": pack_encoder_params(params, num_heads),
    }


# ---------------------------------------------------------------------------
# encoder driver
# ---------------------------------------------------------------------------
def run_encoder(x, mask_bias, packed, *, num_heads, act_name, inter_idx,
                ln_intermediate, want_inter, batch_tile):
    B_pad, S_pad, D = x.shape
    Bt = batch_tile
    num_btiles = B_pad // Bt
    L = packed["w_qkv"].shape[0]
    Hid = packed["w_fc1"].shape[2]

    layer_names = ["ln1_g", "ln1_b", "w_qkv", "b_qkv", "w_o", "b_o",
                   "ln2_g", "ln2_b", "w_fc1", "b_fc1", "w_fc2", "b_fc2"]
    layer_args = [packed[n] for n in layer_names]

    in_specs = [pl.BlockSpec((Bt, S_pad, D), lambda bt, l: (bt, 0, 0)),
                pl.BlockSpec((S_pad, S_pad), lambda bt, l: (0, 0))]
    for a in layer_args:                                   # per-layer weights
        in_specs.append(
            pl.BlockSpec((1,) + a.shape[1:], lambda bt, l: (l, 0, 0)))
    in_specs += [pl.BlockSpec((1, D), lambda bt, l: (0, 0)),   # final LN gamma
                 pl.BlockSpec((1, D), lambda bt, l: (0, 0))]   # final LN beta

    out_block = pl.BlockSpec((Bt, S_pad, D), lambda bt, l: (bt, 0, 0))
    out_struct = jax.ShapeDtypeStruct((B_pad, S_pad, D), jnp.float32)
    if want_inter:
        out_specs = (out_block, out_block)
        out_shape = (out_struct, out_struct)
    else:
        out_specs = out_block
        out_shape = out_struct

    # advisory cost estimate for the XLA scheduler
    BtS = Bt * S_pad
    flops_step = (2 * BtS * D * 3 * D          # fused QKV
                  + 4 * Bt * S_pad * S_pad * D  # scores + p@v (all heads)
                  + 2 * BtS * D * D             # out-projection
                  + 4 * BtS * D * Hid)          # MLP
    weight_bytes = sum(int(a.size) * a.dtype.itemsize for a in layer_args)
    cost = pl.CostEstimate(
        flops=int(num_btiles * L * flops_step),
        transcendentals=int(num_btiles * L *
                            (num_heads * Bt * S_pad * S_pad + BtS * Hid)),
        bytes_accessed=int(num_btiles * weight_bytes
                           + (3 if want_inter else 2) * B_pad * S_pad * D * 4))

    kernel = _make_encoder_kernel(num_heads, act_name, inter_idx,
                                  ln_intermediate, want_inter)
    result = pl.pallas_call(
        kernel,
        grid=(num_btiles, L),
        in_specs=in_specs,
        out_specs=out_specs,
        out_shape=out_shape,
        scratch_shapes=[pltpu.VMEM((Bt * S_pad, D), jnp.float32),   # activation
                        pltpu.VMEM((Bt * S_pad, D), jnp.bfloat16)],  # head ctx
        compiler_params=pltpu.CompilerParams(
            dimension_semantics=("parallel", "arbitrary"),
            vmem_limit_bytes=48 * 1024 * 1024),
        cost_estimate=cost,
    )(x, mask_bias, *layer_args, packed["lnf_g"], packed["lnf_b"])

    if want_inter:
        return result[0], result[1]
    return result, None


# ---------------------------------------------------------------------------
# parameter init (deterministic, shapes per module __init__)
# ---------------------------------------------------------------------------
def init_params(key, config):
    D = config["hidden_size"]
    Hid = config["intermediate_size"]
    L = config["num_hidden_layers"]
    keys = jax.random.split(key, 2 + L)

    def lin(k, out_f, in_f):
        return jax.random.normal(k, (out_f, in_f), jnp.float32) * 0.02

    params = {
        "token_embedding": jax.random.normal(
            keys[0], (VOCAB_SIZE, D), jnp.float32) * 0.02,
        "position_embedding": jax.random.normal(
            keys[1], (MAX_SEQ, D), jnp.float32) * 0.01,
        "layers": [],
        "final_ln_g": jnp.ones((D,), jnp.float32),
        "final_ln_b": jnp.zeros((D,), jnp.float32),
        # text_projection: nn.Linear(D, D, bias=False) initialized to identity
        "proj_w": jnp.eye(D, dtype=jnp.float32),
    }
    for i in range(L):
        ks = jax.random.split(keys[2 + i], 6)
        params["layers"].append({
            "ln1_g": jnp.ones((D,), jnp.float32),
            "ln1_b": jnp.zeros((D,), jnp.float32),
            "q_w": lin(ks[0], D, D), "q_b": jnp.zeros((D,), jnp.float32),
            "k_w": lin(ks[1], D, D), "k_b": jnp.zeros((D,), jnp.float32),
            "v_w": lin(ks[2], D, D), "v_b": jnp.zeros((D,), jnp.float32),
            "o_w": lin(ks[3], D, D), "o_b": jnp.zeros((D,), jnp.float32),
            "ln2_g": jnp.ones((D,), jnp.float32),
            "ln2_b": jnp.zeros((D,), jnp.float32),
            "fc1_w": lin(ks[4], Hid, D), "fc1_b": jnp.zeros((Hid,), jnp.float32),
            "fc2_w": lin(ks[5], D, Hid), "fc2_b": jnp.zeros((D,), jnp.float32),
        })
    return params


# ---------------------------------------------------------------------------
# full forward (mirrors ClipTextModel.forward); takes the PRE-PACKED model
# ---------------------------------------------------------------------------
@functools.partial(jax.jit, static_argnames=(
    "num_heads", "num_layers", "act_name", "intermediate_output",
    "final_layer_norm_intermediate"))
def clip_text_forward(prepared, tokens, *, num_heads, num_layers, act_name,
                      intermediate_output=None,
                      final_layer_norm_intermediate=True):
    B, S = tokens.shape
    # embeddings (gather + broadcast add) — plain-JAX glue
    x = (prepared["token_embedding"][tokens]
         + prepared["position_embedding"][:S]).astype(jnp.float32)

    # pad the sequence to a multiple of 8 for (8,128) tiling; padded query
    # rows are discarded, padded key columns are masked inside the kernel.
    S_pad = ((S + 7) // 8) * 8
    if S_pad != S:
        x = jnp.pad(x, ((0, 0), (0, S_pad - S), (0, 0)))

    # batch tile: amortize the per-layer weight stream over Bt batch elements
    Bt = B if B <= 8 else 8
    B_pad = ((B + Bt - 1) // Bt) * Bt
    if B_pad != B:
        x = jnp.pad(x, ((0, B_pad - B), (0, 0), (0, 0)))

    # additive causal mask (0 keep / -1e30 drop); padded key columns sit
    # strictly above the diagonal for every real query row, so they're masked.
    row = jnp.arange(S_pad)[:, None]
    col = jnp.arange(S_pad)[None, :]
    mask_bias = jnp.where(col <= row, 0.0, -1e30).astype(jnp.float32)

    L = num_layers
    want_inter = intermediate_output is not None
    inter_idx = intermediate_output if want_inter else L - 1
    if inter_idx < 0:
        inter_idx += L

    out, inter = run_encoder(
        x, mask_bias, prepared["encoder"], num_heads=num_heads,
        act_name=act_name, inter_idx=inter_idx,
        ln_intermediate=final_layer_norm_intermediate,
        want_inter=want_inter, batch_tile=Bt)

    out = out[:B, :S]
    inter = inter[:B, :S] if want_inter else None

    # pooled output: token position with max id (first occurrence, like torch)
    pool_idx = jnp.argmax(tokens.astype(jnp.int32), axis=-1)
    pooled = out[jnp.arange(B), pool_idx]
    # text_projection: tiny (B,D)@(D,D) identity matmul — glue-sized, plain JAX
    proj = pooled @ prepared["proj_w"].T
    return out, inter, proj, pooled


# ---------------------------------------------------------------------------
# pure-JAX reference (same bf16-operand / f32-accumulate numerics)
# ---------------------------------------------------------------------------
def reference_forward(params, tokens, num_heads, act_name):
    bf, f32 = jnp.bfloat16, jnp.float32
    act = _act_fn(act_name)
    x = (params["token_embedding"][tokens]
         + params["position_embedding"]).astype(f32)
    B, S, D = x.shape
    hd = D // num_heads
    causal = jnp.arange(S)[None, :] <= jnp.arange(S)[:, None]
    neg = jnp.float32(-1e30)

    def mm(a, w_t):        # bf16 operands, f32 accumulation
        return jnp.dot(a.astype(bf), w_t.astype(bf), preferred_element_type=f32)

    for lp in params["layers"]:
        h = _layer_norm(x, lp["ln1_g"], lp["ln1_b"])
        q = mm(h, lp["q_w"].T) + lp["q_b"]
        k = mm(h, lp["k_w"].T) + lp["k_b"]
        v = mm(h, lp["v_w"].T) + lp["v_b"]
        q = q.reshape(B, S, num_heads, hd)
        k = k.reshape(B, S, num_heads, hd)
        v = v.reshape(B, S, num_heads, hd)
        s = jnp.einsum("bqhd,bkhd->bhqk", q.astype(bf), k.astype(bf),
                       preferred_element_type=f32) / jnp.sqrt(jnp.float32(hd))
        s = jnp.where(causal[None, None], s, neg)
        p = jax.nn.softmax(s, axis=-1)
        o = jnp.einsum("bhqk,bkhd->bqhd", p.astype(bf), v.astype(bf),
                       preferred_element_type=f32).reshape(B, S, D)
        o = mm(o, lp["o_w"].T) + lp["o_b"]
        x = x + o
        h = _layer_norm(x, lp["ln2_g"], lp["ln2_b"])
        h = mm(h, lp["fc1_w"].T) + lp["fc1_b"]
        h = act(h)
        h = mm(h, lp["fc2_w"].T) + lp["fc2_b"]
        x = x + h

    x = _layer_norm(x, params["final_ln_g"], params["final_ln_b"])
    idx = jnp.argmax(tokens.astype(jnp.int32), axis=-1)
    pooled = x[jnp.arange(B), idx]
    out = pooled @ params["proj_w"].T
    return x, out, pooled


# ---------------------------------------------------------------------------
if __name__ == "__main__":
    config = {
        "num_hidden_layers": 2,
        "hidden_size": 32,
        "num_attention_heads": 4,
        "intermediate_size": 64,
        "hidden_act": "quick_gelu",
    }
    key = jax.random.PRNGKey(0)
    kp, kt = jax.random.split(key)
    params = init_params(kp, config)
    # one-time weight packing (outside jit / outside the hot path)
    prepared = prepare_model(params, config["num_attention_heads"])

    # forward adds the full 77-entry position embedding -> seq length is 77
    B, S = 2, MAX_SEQ
    tokens = jax.random.randint(kt, (B, S), 0, VOCAB_SIZE, dtype=jnp.int32)

    x, intermediate, out, pooled = clip_text_forward(
        prepared, tokens,
        num_heads=config["num_attention_heads"],
        num_layers=config["num_hidden_layers"],
        act_name=config["hidden_act"],
        intermediate_output=-1,
        final_layer_norm_intermediate=True)
    jax.block_until_ready((x, intermediate, out, pooled))

    # also exercise the single-output (no intermediate) specialization
    x2, inter2, out2, pooled2 = clip_text_forward(
        prepared, tokens,
        num_heads=config["num_attention_heads"],
        num_layers=config["num_hidden_layers"],
        act_name=config["hidden_act"],
        intermediate_output=None,
        final_layer_norm_intermediate=True)
    jax.block_until_ready((x2, out2, pooled2))
    assert inter2 is None

    # numerical sanity check against a matching-precision pure-JAX reference
    xr, outr, pooledr = reference_forward(
        params, tokens, config["num_attention_heads"], config["hidden_act"])
    np.testing.assert_allclose(np.asarray(x), np.asarray(xr),
                               atol=1e-2, rtol=1e-2)
    np.testing.assert_allclose(np.asarray(intermediate), np.asarray(xr),
                               atol=1e-2, rtol=1e-2)
    np.testing.assert_allclose(np.asarray(x2), np.asarray(xr),
                               atol=1e-2, rtol=1e-2)
    np.testing.assert_allclose(np.asarray(pooled), np.asarray(pooledr),
                               atol=1e-2, rtol=1e-2)
    np.testing.assert_allclose(np.asarray(out), np.asarray(outr),
                               atol=1e-2, rtol=1e-2)

    print("KERNEL_OK")
</pallas_src>

<mosaic_0001>
module attributes {stable_mosaic.version = 11 : i64} {
  func.func @kernel(%arg0: i32, %arg1: i32, %arg2: memref<2x80x32xf32, #tpu.memory_space<vmem>>, %arg3: memref<80x80xf32, #tpu.memory_space<vmem>>, %arg4: memref<1x1x32xf32, #tpu.memory_space<vmem>>, %arg5: memref<1x1x32xf32, #tpu.memory_space<vmem>>, %arg6: memref<1x32x96xbf16, #tpu.memory_space<vmem>>, %arg7: memref<1x1x96xf32, #tpu.memory_space<vmem>>, %arg8: memref<1x32x32xbf16, #tpu.memory_space<vmem>>, %arg9: memref<1x1x32xf32, #tpu.memory_space<vmem>>, %arg10: memref<1x1x32xf32, #tpu.memory_space<vmem>>, %arg11: memref<1x1x32xf32, #tpu.memory_space<vmem>>, %arg12: memref<1x32x64xbf16, #tpu.memory_space<vmem>>, %arg13: memref<1x1x64xf32, #tpu.memory_space<vmem>>, %arg14: memref<1x64x32xbf16, #tpu.memory_space<vmem>>, %arg15: memref<1x1x32xf32, #tpu.memory_space<vmem>>, %arg16: memref<1x32xf32, #tpu.memory_space<vmem>>, %arg17: memref<1x32xf32, #tpu.memory_space<vmem>>, %arg18: memref<2x80x32xf32, #tpu.memory_space<vmem>>, %arg19: memref<2x80x32xf32, #tpu.memory_space<vmem>>, %arg20: memref<160x32xf32, #tpu.memory_space<vmem>>, %arg21: memref<160x32xbf16, #tpu.memory_space<vmem>>) attributes {dimension_semantics = [#tpu.dimension_semantics<parallel>, #tpu.dimension_semantics<arbitrary>], iteration_bounds = array<i64: 1, 2>, scalar_prefetch = 0 : i64, scratch_operands = 2 : i64, tpu.core_type = #tpu.core_type<tc>, window_params = [{transform_indices = @transform_0, window_bounds = array<i64: 2, 80, 32>}, {pipeline_mode = #tpu.pipeline_mode<synchronous>, transform_indices = @transform_1, window_bounds = array<i64: 80, 80>}, {transform_indices = @transform_2, window_bounds = array<i64: 1, 1, 32>}, {transform_indices = @transform_3, window_bounds = array<i64: 1, 1, 32>}, {transform_indices = @transform_4, window_bounds = array<i64: 1, 32, 96>}, {transform_indices = @transform_5, window_bounds = array<i64: 1, 1, 96>}, {transform_indices = @transform_6, window_bounds = array<i64: 1, 32, 32>}, {transform_indices = @transform_7, window_bounds = array<i64: 1, 1, 32>}, {transform_indices = @transform_8, window_bounds = array<i64: 1, 1, 32>}, {transform_indices = @transform_9, window_bounds = array<i64: 1, 1, 32>}, {transform_indices = @transform_10, window_bounds = array<i64: 1, 32, 64>}, {transform_indices = @transform_11, window_bounds = array<i64: 1, 1, 64>}, {transform_indices = @transform_12, window_bounds = array<i64: 1, 64, 32>}, {transform_indices = @transform_13, window_bounds = array<i64: 1, 1, 32>}, {pipeline_mode = #tpu.pipeline_mode<synchronous>, transform_indices = @transform_14, window_bounds = array<i64: 1, 32>}, {pipeline_mode = #tpu.pipeline_mode<synchronous>, transform_indices = @transform_15, window_bounds = array<i64: 1, 32>}, {transform_indices = @transform_16, window_bounds = array<i64: 2, 80, 32>}, {transform_indices = @transform_17, window_bounds = array<i64: 2, 80, 32>}]} {
    %c0_i32 = arith.constant 0 : i32
    %0 = arith.cmpi eq, %arg1, %c0_i32 : i32
    %1 = arith.extui %0 : i1 to i32
    %c0_i32_0 = arith.constant 0 : i32
    %2 = arith.cmpi ne, %1, %c0_i32_0 : i32
    scf.if %2 {
      %c0_106 = arith.constant 0 : index
      %c0_107 = arith.constant 0 : index
      %c0_108 = arith.constant 0 : index
      %259 = vector.load %arg2[%c0_106, %c0_107, %c0_108] : memref<2x80x32xf32, #tpu.memory_space<vmem>>, vector<2x80x32xf32>
      %260 = vector.shape_cast %259 : vector<2x80x32xf32> to vector<160x32xf32>
      %c0_109 = arith.constant 0 : index
      %c0_110 = arith.constant 0 : index
      %261 = vector.load %arg20[%c0_109, %c0_110] : memref<160x32xf32, #tpu.memory_space<vmem>>, vector<160x32xf32>
      tpu.vector_store %arg20[%c0_109, %c0_110], %260 {strides = array<i32>} : memref<160x32xf32, #tpu.memory_space<vmem>>, vector<160x32xf32>,
    } else {
    }
    %c0 = arith.constant 0 : index
    %c0_1 = arith.constant 0 : index
    %3 = vector.load %arg20[%c0, %c0_1] : memref<160x32xf32, #tpu.memory_space<vmem>>, vector<160x32xf32>
    %c0_2 = arith.constant 0 : index
    %c0_3 = arith.constant 0 : index
    %4 = vector.load %arg3[%c0_2, %c0_3] : memref<80x80xf32, #tpu.memory_space<vmem>>, vector<80x80xf32>
    %c0_4 = arith.constant 0 : index
    %c0_5 = arith.constant 0 : index
    %c0_6 = arith.constant 0 : index
    %5 = vector.load %arg4[%c0_4, %c0_5, %c0_6] : memref<1x1x32xf32, #tpu.memory_space<vmem>>, vector<1x1x32xf32>
    %6 = vector.shape_cast %5 : vector<1x1x32xf32> to vector<1x32xf32>
    %c0_7 = arith.constant 0 : index
    %c0_8 = arith.constant 0 : index
    %c0_9 = arith.constant 0 : index
    %7 = vector.load %arg5[%c0_7, %c0_8, %c0_9] : memref<1x1x32xf32, #tpu.memory_space<vmem>>, vector<1x1x32xf32>
    %8 = vector.shape_cast %7 : vector<1x1x32xf32> to vector<1x32xf32>
    %cst = arith.constant dense<0.000000e+00> : vector<160xf32>
    %9 = vector.multi_reduction <add>, %3, %cst [1] : vector<160x32xf32> to vector<160xf32>
    %10 = vector.shape_cast %9 : vector<160xf32> to vector<160x1xf32>
    %cst_10 = arith.constant 3.200000e+01 : f32
    %11 = vector.broadcast %cst_10 : f32 to vector<160x1xf32>
    %12 = arith.divf %10, %11 : vector<160x1xf32>
    %13 = vector.broadcast %12 : vector<160x1xf32> to vector<160x32xf32>
    %14 = arith.subf %3, %13 : vector<160x32xf32>
    %15 = arith.mulf %14, %14 : vector<160x32xf32>
    %cst_11 = arith.constant dense<0.000000e+00> : vector<160xf32>
    %16 = vector.multi_reduction <add>, %15, %cst_11 [1] : vector<160x32xf32> to vector<160xf32>
    %17 = vector.shape_cast %16 : vector<160xf32> to vector<160x1xf32>
    %cst_12 = arith.constant 3.200000e+01 : f32
    %18 = vector.broadcast %cst_12 : f32 to vector<160x1xf32>
    %19 = arith.divf %17, %18 : vector<160x1xf32>
    %20 = vector.broadcast %12 : vector<160x1xf32> to vector<160x32xf32>
    %21 = arith.subf %3, %20 : vector<160x32xf32>
    %cst_13 = arith.constant 9.99999974E-6 : f32
    %22 = vector.broadcast %cst_13 : f32 to vector<160x1xf32>
    %23 = arith.addf %19, %22 : vector<160x1xf32>
    %24 = math.rsqrt %23 : vector<160x1xf32>
    %25 = vector.broadcast %24 : vector<160x1xf32> to vector<160x32xf32>
    %26 = arith.mulf %21, %25 : vector<160x32xf32>
    %27 = vector.broadcast %6 : vector<1x32xf32> to vector<160x32xf32>
    %28 = arith.mulf %26, %27 : vector<160x32xf32>
    %29 = vector.broadcast %8 : vector<1x32xf32> to vector<160x32xf32>
    %30 = arith.addf %28, %29 : vector<160x32xf32>
    %31 = arith.truncf %30 : vector<160x32xf32> to vector<160x32xbf16>
    %c0_14 = arith.constant 0 : index
    %c0_15 = arith.constant 0 : index
    %c0_16 = arith.constant 0 : index
    %32 = vector.load %arg6[%c0_14, %c0_15, %c0_16] : memref<1x32x96xbf16, #tpu.memory_space<vmem>>, vector<1x32x96xbf16>
    %33 = vector.shape_cast %32 : vector<1x32x96xbf16> to vector<32x96xbf16>
    %cst_17 = arith.constant dense<0.000000e+00> : vector<160x96xf32>
    %34 = tpu.matmul %31, %33, %cst_17 {dimension_numbers = #tpu.dot_dimension_numbers<[1], [0], [0], [1], [0, 0, 1, 1], [], []>} : vector<160x32xbf16>, vector<32x96xbf16>, vector<160x96xf32> -> vector<160x96xf32>
    %c0_18 = arith.constant 0 : index
    %c0_19 = arith.constant 0 : index
    %c0_20 = arith.constant 0 : index
    %35 = vector.load %arg7[%c0_18, %c0_19, %c0_20] : memref<1x1x96xf32, #tpu.memory_space<vmem>>, vector<1x1x96xf32>
    %36 = vector.shape_cast %35 : vector<1x1x96xf32> to vector<1x96xf32>
    %37 = vector.broadcast %36 : vector<1x96xf32> to vector<160x96xf32>
    %38 = arith.addf %34, %37 : vector<160x96xf32>
    %39 = arith.truncf %38 : vector<160x96xf32> to vector<160x96xbf16>
    %40 = vector.extract_strided_slice %39 {offsets = [0, 0], sizes = [80, 8], strides = [1, 1]} : vector<160x96xbf16> to vector<80x8xbf16>
    %41 = vector.extract_strided_slice %39 {offsets = [0, 32], sizes = [80, 8], strides = [1, 1]} : vector<160x96xbf16> to vector<80x8xbf16>
    %42 = vector.extract_strided_slice %39 {offsets = [0, 64], sizes = [80, 8], strides = [1, 1]} : vector<160x96xbf16> to vector<80x8xbf16>
    %cst_21 = arith.constant dense<0.000000e+00> : vector<80x80xf32>
    %43 = tpu.matmul %40, %41, %cst_21 {dimension_numbers = #tpu.dot_dimension_numbers<[1], [1], [0], [0], [0, 0, 1, 0], [], []>} : vector<80x8xbf16>, vector<80x8xbf16>, vector<80x80xf32> -> vector<80x80xf32>
    %44 = arith.addf %43, %4 : vector<80x80xf32>
    %cst_22 = arith.constant dense<0xFF800000> : vector<80xf32>
    %45 = vector.multi_reduction <maximumf>, %44, %cst_22 [1] : vector<80x80xf32> to vector<80xf32>
    %46 = vector.shape_cast %45 : vector<80xf32> to vector<80x1xf32>
    %47 = vector.broadcast %46 : vector<80x1xf32> to vector<80x80xf32>
    %48 = arith.subf %44, %47 : vector<80x80xf32>
    %49 = math.exp %48 : vector<80x80xf32>
    %cst_23 = arith.constant dense<0.000000e+00> : vector<80xf32>
    %50 = vector.multi_reduction <add>, %49, %cst_23 [1] : vector<80x80xf32> to vector<80xf32>
    %51 = vector.shape_cast %50 : vector<80xf32> to vector<80x1xf32>
    %52 = tpu.reciprocal %51 {approx = true} : vector<80x1xf32> -> vector<80x1xf32>
    %53 = vector.broadcast %52 : vector<80x1xf32> to vector<80x80xf32>
    %54 = arith.mulf %49, %53 : vector<80x80xf32>
    %55 = arith.truncf %54 : vector<80x80xf32> to vector<80x80xbf16>
    %cst_24 = arith.constant dense<0.000000e+00> : vector<80x8xf32>
    %56 = tpu.matmul %55, %42, %cst_24 {dimension_numbers = #tpu.dot_dimension_numbers<[1], [0], [0], [1], [0, 0, 1, 1], [], []>} : vector<80x80xbf16>, vector<80x8xbf16>, vector<80x8xf32> -> vector<80x8xf32>
    %57 = arith.truncf %56 : vector<80x8xf32> to vector<80x8xbf16>
    %c0_25 = arith.constant 0 : index
    %c0_26 = arith.constant 0 : index
    %58 = vector.load %arg21[%c0_25, %c0_26] : memref<160x32xbf16, #tpu.memory_space<vmem>>, vector<80x8xbf16>
    tpu.vector_store %arg21[%c0_25, %c0_26], %57 {strides = array<i32>} : memref<160x32xbf16, #tpu.memory_space<vmem>>, vector<80x8xbf16>,
    %59 = vector.extract_strided_slice %39 {offsets = [0, 8], sizes = [80, 8], strides = [1, 1]} : vector<160x96xbf16> to vector<80x8xbf16>
    %60 = vector.extract_strided_slice %39 {offsets = [0, 40], sizes = [80, 8], strides = [1, 1]} : vector<160x96xbf16> to vector<80x8xbf16>
    %61 = vector.extract_strided_slice %39 {offsets = [0, 72], sizes = [80, 8], strides = [1, 1]} : vector<160x96xbf16> to vector<80x8xbf16>
    %cst_27 = arith.constant dense<0.000000e+00> : vector<80x80xf32>
    %62 = tpu.matmul %59, %60, %cst_27 {dimension_numbers = #tpu.dot_dimension_numbers<[1], [1], [0], [0], [0, 0, 1, 0], [], []>} : vector<80x8xbf16>, vector<80x8xbf16>, vector<80x80xf32> -> vector<80x80xf32>
    %63 = arith.addf %62, %4 : vector<80x80xf32>
    %cst_28 = arith.constant dense<0xFF800000> : vector<80xf32>
    %64 = vector.multi_reduction <maximumf>, %63, %cst_28 [1] : vector<80x80xf32> to vector<80xf32>
    %65 = vector.shape_cast %64 : vector<80xf32> to vector<80x1xf32>
    %66 = vector.broadcast %65 : vector<80x1xf32> to vector<80x80xf32>
    %67 = arith.subf %63, %66 : vector<80x80xf32>
    %68 = math.exp %67 : vector<80x80xf32>
    %cst_29 = arith.constant dense<0.000000e+00> : vector<80xf32>
    %69 = vector.multi_reduction <add>, %68, %cst_29 [1] : vector<80x80xf32> to vector<80xf32>
    %70 = vector.shape_cast %69 : vector<80xf32> to vector<80x1xf32>
    %71 = tpu.reciprocal %70 {approx = true} : vector<80x1xf32> -> vector<80x1xf32>
    %72 = vector.broadcast %71 : vector<80x1xf32> to vector<80x80xf32>
    %73 = arith.mulf %68, %72 : vector<80x80xf32>
    %74 = arith.truncf %73 : vector<80x80xf32> to vector<80x80xbf16>
    %cst_30 = arith.constant dense<0.000000e+00> : vector<80x8xf32>
    %75 = tpu.matmul %74, %61, %cst_30 {dimension_numbers = #tpu.dot_dimension_numbers<[1], [0], [0], [1], [0, 0, 1, 1], [], []>} : vector<80x80xbf16>, vector<80x8xbf16>, vector<80x8xf32> -> vector<80x8xf32>
    %76 = arith.truncf %75 : vector<80x8xf32> to vector<80x8xbf16>
    %c0_31 = arith.constant 0 : index
    %c8 = arith.constant 8 : index
    %77 = vector.load %arg21[%c0_31, %c8] : memref<160x32xbf16, #tpu.memory_space<vmem>>, vector<80x8xbf16>
    tpu.vector_store %arg21[%c0_31, %c8], %76 {strides = array<i32>} : memref<160x32xbf16, #tpu.memory_space<vmem>>, vector<80x8xbf16>,
    %78 = vector.extract_strided_slice %39 {offsets = [0, 16], sizes = [80, 8], strides = [1, 1]} : vector<160x96xbf16> to vector<80x8xbf16>
    %79 = vector.extract_strided_slice %39 {offsets = [0, 48], sizes = [80, 8], strides = [1, 1]} : vector<160x96xbf16> to vector<80x8xbf16>
    %80 = vector.extract_strided_slice %39 {offsets = [0, 80], sizes = [80, 8], strides = [1, 1]} : vector<160x96xbf16> to vector<80x8xbf16>
    %cst_32 = arith.constant dense<0.000000e+00> : vector<80x80xf32>
    %81 = tpu.matmul %78, %79, %cst_32 {dimension_numbers = #tpu.dot_dimension_numbers<[1], [1], [0], [0], [0, 0, 1, 0], [], []>} : vector<80x8xbf16>, vector<80x8xbf16>, vector<80x80xf32> -> vector<80x80xf32>
    %82 = arith.addf %81, %4 : vector<80x80xf32>
    %cst_33 = arith.constant dense<0xFF800000> : vector<80xf32>
    %83 = vector.multi_reduction <maximumf>, %82, %cst_33 [1] : vector<80x80xf32> to vector<80xf32>
    %84 = vector.shape_cast %83 : vector<80xf32> to vector<80x1xf32>
    %85 = vector.broadcast %84 : vector<80x1xf32> to vector<80x80xf32>
    %86 = arith.subf %82, %85 : vector<80x80xf32>
    %87 = math.exp %86 : vector<80x80xf32>
    %cst_34 = arith.constant dense<0.000000e+00> : vector<80xf32>
    %88 = vector.multi_reduction <add>, %87, %cst_34 [1] : vector<80x80xf32> to vector<80xf32>
    %89 = vector.shape_cast %88 : vector<80xf32> to vector<80x1xf32>
    %90 = tpu.reciprocal %89 {approx = true} : vector<80x1xf32> -> vector<80x1xf32>
    %91 = vector.broadcast %90 : vector<80x1xf32> to vector<80x80xf32>
    %92 = arith.mulf %87, %91 : vector<80x80xf32>
    %93 = arith.truncf %92 : vector<80x80xf32> to vector<80x80xbf16>
    %cst_35 = arith.constant dense<0.000000e+00> : vector<80x8xf32>
    %94 = tpu.matmul %93, %80, %cst_35 {dimension_numbers = #tpu.dot_dimension_numbers<[1], [0], [0], [1], [0, 0, 1, 1], [], []>} : vector<80x80xbf16>, vector<80x8xbf16>, vector<80x8xf32> -> vector<80x8xf32>
    %95 = arith.truncf %94 : vector<80x8xf32> to vector<80x8xbf16>
    %c0_36 = arith.constant 0 : index
    %c16 = arith.constant 16 : index
    %96 = vector.load %arg21[%c0_36, %c16] : memref<160x32xbf16, #tpu.memory_space<vmem>>, vector<80x8xbf16>
    tpu.vector_store %arg21[%c0_36, %c16], %95 {strides = array<i32>} : memref<160x32xbf16, #tpu.memory_space<vmem>>, vector<80x8xbf16>,
    %97 = vector.extract_strided_slice %39 {offsets = [0, 24], sizes = [80, 8], strides = [1, 1]} : vector<160x96xbf16> to vector<80x8xbf16>
    %98 = vector.extract_strided_slice %39 {offsets = [0, 56], sizes = [80, 8], strides = [1, 1]} : vector<160x96xbf16> to vector<80x8xbf16>
    %99 = vector.extract_strided_slice %39 {offsets = [0, 88], sizes = [80, 8], strides = [1, 1]} : vector<160x96xbf16> to vector<80x8xbf16>
    %cst_37 = arith.constant dense<0.000000e+00> : vector<80x80xf32>
    %100 = tpu.matmul %97, %98, %cst_37 {dimension_numbers = #tpu.dot_dimension_numbers<[1], [1], [0], [0], [0, 0, 1, 0], [], []>} : vector<80x8xbf16>, vector<80x8xbf16>, vector<80x80xf32> -> vector<80x80xf32>
    %101 = arith.addf %100, %4 : vector<80x80xf32>
    %cst_38 = arith.constant dense<0xFF800000> : vector<80xf32>
    %102 = vector.multi_reduction <maximumf>, %101, %cst_38 [1] : vector<80x80xf32> to vector<80xf32>
    %103 = vector.shape_cast %102 : vector<80xf32> to vector<80x1xf32>
    %104 = vector.broadcast %103 : vector<80x1xf32> to vector<80x80xf32>
    %105 = arith.subf %101, %104 : vector<80x80xf32>
    %106 = math.exp %105 : vector<80x80xf32>
    %cst_39 = arith.constant dense<0.000000e+00> : vector<80xf32>
    %107 = vector.multi_reduction <add>, %106, %cst_39 [1] : vector<80x80xf32> to vector<80xf32>
    %108 = vector.shape_cast %107 : vector<80xf32> to vector<80x1xf32>
    %109 = tpu.reciprocal %108 {approx = true} : vector<80x1xf32> -> vector<80x1xf32>
    %110 = vector.broadcast %109 : vector<80x1xf32> to vector<80x80xf32>
    %111 = arith.mulf %106, %110 : vector<80x80xf32>
    %112 = arith.truncf %111 : vector<80x80xf32> to vector<80x80xbf16>
    %cst_40 = arith.constant dense<0.000000e+00> : vector<80x8xf32>
    %113 = tpu.matmul %112, %99, %cst_40 {dimension_numbers = #tpu.dot_dimension_numbers<[1], [0], [0], [1], [0, 0, 1, 1], [], []>} : vector<80x80xbf16>, vector<80x8xbf16>, vector<80x8xf32> -> vector<80x8xf32>
    %114 = arith.truncf %113 : vector<80x8xf32> to vector<80x8xbf16>
    %c0_41 = arith.constant 0 : index
    %c24 = arith.constant 24 : index
    %115 = vector.load %arg21[%c0_41, %c24] : memref<160x32xbf16, #tpu.memory_space<vmem>>, vector<80x8xbf16>
    tpu.vector_store %arg21[%c0_41, %c24], %114 {strides = array<i32>} : memref<160x32xbf16, #tpu.memory_space<vmem>>, vector<80x8xbf16>,
    %116 = vector.extract_strided_slice %39 {offsets = [80, 0], sizes = [80, 8], strides = [1, 1]} : vector<160x96xbf16> to vector<80x8xbf16>
    %117 = vector.extract_strided_slice %39 {offsets = [80, 32], sizes = [80, 8], strides = [1, 1]} : vector<160x96xbf16> to vector<80x8xbf16>
    %118 = vector.extract_strided_slice %39 {offsets = [80, 64], sizes = [80, 8], strides = [1, 1]} : vector<160x96xbf16> to vector<80x8xbf16>
    %cst_42 = arith.constant dense<0.000000e+00> : vector<80x80xf32>
    %119 = tpu.matmul %116, %117, %cst_42 {dimension_numbers = #tpu.dot_dimension_numbers<[1], [1], [0], [0], [0, 0, 1, 0], [], []>} : vector<80x8xbf16>, vector<80x8xbf16>, vector<80x80xf32> -> vector<80x80xf32>
    %120 = arith.addf %119, %4 : vector<80x80xf32>
    %cst_43 = arith.constant dense<0xFF800000> : vector<80xf32>
    %121 = vector.multi_reduction <maximumf>, %120, %cst_43 [1] : vector<80x80xf32> to vector<80xf32>
    %122 = vector.shape_cast %121 : vector<80xf32> to vector<80x1xf32>
    %123 = vector.broadcast %122 : vector<80x1xf32> to vector<80x80xf32>
    %124 = arith.subf %120, %123 : vector<80x80xf32>
    %125 = math.exp %124 : vector<80x80xf32>
    %cst_44 = arith.constant dense<0.000000e+00> : vector<80xf32>
    %126 = vector.multi_reduction <add>, %125, %cst_44 [1] : vector<80x80xf32> to vector<80xf32>
    %127 = vector.shape_cast %126 : vector<80xf32> to vector<80x1xf32>
    %128 = tpu.reciprocal %127 {approx = true} : vector<80x1xf32> -> vector<80x1xf32>
    %129 = vector.broadcast %128 : vector<80x1xf32> to vector<80x80xf32>
    %130 = arith.mulf %125, %129 : vector<80x80xf32>
    %131 = arith.truncf %130 : vector<80x80xf32> to vector<80x80xbf16>
    %cst_45 = arith.constant dense<0.000000e+00> : vector<80x8xf32>
    %132 = tpu.matmul %131, %118, %cst_45 {dimension_numbers = #tpu.dot_dimension_numbers<[1], [0], [0], [1], [0, 0, 1, 1], [], []>} : vector<80x80xbf16>, vector<80x8xbf16>, vector<80x8xf32> -> vector<80x8xf32>
    %133 = arith.truncf %132 : vector<80x8xf32> to vector<80x8xbf16>
    %c80 = arith.constant 80 : index
    %c0_46 = arith.constant 0 : index
    %134 = vector.load %arg21[%c80, %c0_46] : memref<160x32xbf16, #tpu.memory_space<vmem>>, vector<80x8xbf16>
    tpu.vector_store %arg21[%c80, %c0_46], %133 {strides = array<i32>} : memref<160x32xbf16, #tpu.memory_space<vmem>>, vector<80x8xbf16>,
    %135 = vector.extract_strided_slice %39 {offsets = [80, 8], sizes = [80, 8], strides = [1, 1]} : vector<160x96xbf16> to vector<80x8xbf16>
    %136 = vector.extract_strided_slice %39 {offsets = [80, 40], sizes = [80, 8], strides = [1, 1]} : vector<160x96xbf16> to vector<80x8xbf16>
    %137 = vector.extract_strided_slice %39 {offsets = [80, 72], sizes = [80, 8], strides = [1, 1]} : vector<160x96xbf16> to vector<80x8xbf16>
    %cst_47 = arith.constant dense<0.000000e+00> : vector<80x80xf32>
    %138 = tpu.matmul %135, %136, %cst_47 {dimension_numbers = #tpu.dot_dimension_numbers<[1], [1], [0], [0], [0, 0, 1, 0], [], []>} : vector<80x8xbf16>, vector<80x8xbf16>, vector<80x80xf32> -> vector<80x80xf32>
    %139 = arith.addf %138, %4 : vector<80x80xf32>
    %cst_48 = arith.constant dense<0xFF800000> : vector<80xf32>
    %140 = vector.multi_reduction <maximumf>, %139, %cst_48 [1] : vector<80x80xf32> to vector<80xf32>
    %141 = vector.shape_cast %140 : vector<80xf32> to vector<80x1xf32>
    %142 = vector.broadcast %141 : vector<80x1xf32> to vector<80x80xf32>
    %143 = arith.subf %139, %142 : vector<80x80xf32>
    %144 = math.exp %143 : vector<80x80xf32>
    %cst_49 = arith.constant dense<0.000000e+00> : vector<80xf32>
    %145 = vector.multi_reduction <add>, %144, %cst_49 [1] : vector<80x80xf32> to vector<80xf32>
    %146 = vector.shape_cast %145 : vector<80xf32> to vector<80x1xf32>
    %147 = tpu.reciprocal %146 {approx = true} : vector<80x1xf32> -> vector<80x1xf32>
    %148 = vector.broadcast %147 : vector<80x1xf32> to vector<80x80xf32>
    %149 = arith.mulf %144, %148 : vector<80x80xf32>
    %150 = arith.truncf %149 : vector<80x80xf32> to vector<80x80xbf16>
    %cst_50 = arith.constant dense<0.000000e+00> : vector<80x8xf32>
    %151 = tpu.matmul %150, %137, %cst_50 {dimension_numbers = #tpu.dot_dimension_numbers<[1], [0], [0], [1], [0, 0, 1, 1], [], []>} : vector<80x80xbf16>, vector<80x8xbf16>, vector<80x8xf32> -> vector<80x8xf32>
    %152 = arith.truncf %151 : vector<80x8xf32> to vector<80x8xbf16>
    %c80_51 = arith.constant 80 : index
    %c8_52 = arith.constant 8 : index
    %153 = vector.load %arg21[%c80_51, %c8_52] : memref<160x32xbf16, #tpu.memory_space<vmem>>, vector<80x8xbf16>
    tpu.vector_store %arg21[%c80_51, %c8_52], %152 {strides = array<i32>} : memref<160x32xbf16, #tpu.memory_space<vmem>>, vector<80x8xbf16>,
    %154 = vector.extract_strided_slice %39 {offsets = [80, 16], sizes = [80, 8], strides = [1, 1]} : vector<160x96xbf16> to vector<80x8xbf16>
    %155 = vector.extract_strided_slice %39 {offsets = [80, 48], sizes = [80, 8], strides = [1, 1]} : vector<160x96xbf16> to vector<80x8xbf16>
    %156 = vector.extract_strided_slice %39 {offsets = [80, 80], sizes = [80, 8], strides = [1, 1]} : vector<160x96xbf16> to vector<80x8xbf16>
    %cst_53 = arith.constant dense<0.000000e+00> : vector<80x80xf32>
    %157 = tpu.matmul %154, %155, %cst_53 {dimension_numbers = #tpu.dot_dimension_numbers<[1], [1], [0], [0], [0, 0, 1, 0], [], []>} : vector<80x8xbf16>, vector<80x8xbf16>, vector<80x80xf32> -> vector<80x80xf32>
    %158 = arith.addf %157, %4 : vector<80x80xf32>
    %cst_54 = arith.constant dense<0xFF800000> : vector<80xf32>
    %159 = vector.multi_reduction <maximumf>, %158, %cst_54 [1] : vector<80x80xf32> to vector<80xf32>
    %160 = vector.shape_cast %159 : vector<80xf32> to vector<80x1xf32>
    %161 = vector.broadcast %160 : vector<80x1xf32> to vector<80x80xf32>
    %162 = arith.subf %158, %161 : vector<80x80xf32>
    %163 = math.exp %162 : vector<80x80xf32>
    %cst_55 = arith.constant dense<0.000000e+00> : vector<80xf32>
    %164 = vector.multi_reduction <add>, %163, %cst_55 [1] : vector<80x80xf32> to vector<80xf32>
    %165 = vector.shape_cast %164 : vector<80xf32> to vector<80x1xf32>
    %166 = tpu.reciprocal %165 {approx = true} : vector<80x1xf32> -> vector<80x1xf32>
    %167 = vector.broadcast %166 : vector<80x1xf32> to vector<80x80xf32>
    %168 = arith.mulf %163, %167 : vector<80x80xf32>
    %169 = arith.truncf %168 : vector<80x80xf32> to vector<80x80xbf16>
    %cst_56 = arith.constant dense<0.000000e+00> : vector<80x8xf32>
    %170 = tpu.matmul %169, %156, %cst_56 {dimension_numbers = #tpu.dot_dimension_numbers<[1], [0], [0], [1], [0, 0, 1, 1], [], []>} : vector<80x80xbf16>, vector<80x8xbf16>, vector<80x8xf32> -> vector<80x8xf32>
    %171 = arith.truncf %170 : vector<80x8xf32> to vector<80x8xbf16>
    %c80_57 = arith.constant 80 : index
    %c16_58 = arith.constant 16 : index
    %172 = vector.load %arg21[%c80_57, %c16_58] : memref<160x32xbf16, #tpu.memory_space<vmem>>, vector<80x8xbf16>
    tpu.vector_store %arg21[%c80_57, %c16_58], %171 {strides = array<i32>} : memref<160x32xbf16, #tpu.memory_space<vmem>>, vector<80x8xbf16>,
    %173 = vector.extract_strided_slice %39 {offsets = [80, 24], sizes = [80, 8], strides = [1, 1]} : vector<160x96xbf16> to vector<80x8xbf16>
    %174 = vector.extract_strided_slice %39 {offsets = [80, 56], sizes = [80, 8], strides = [1, 1]} : vector<160x96xbf16> to vector<80x8xbf16>
    %175 = vector.extract_strided_slice %39 {offsets = [80, 88], sizes = [80, 8], strides = [1, 1]} : vector<160x96xbf16> to vector<80x8xbf16>
    %cst_59 = arith.constant dense<0.000000e+00> : vector<80x80xf32>
    %176 = tpu.matmul %173, %174, %cst_59 {dimension_numbers = #tpu.dot_dimension_numbers<[1], [1], [0], [0], [0, 0, 1, 0], [], []>} : vector<80x8xbf16>, vector<80x8xbf16>, vector<80x80xf32> -> vector<80x80xf32>
    %177 = arith.addf %176, %4 : vector<80x80xf32>
    %cst_60 = arith.constant dense<0xFF800000> : vector<80xf32>
    %178 = vector.multi_reduction <maximumf>, %177, %cst_60 [1] : vector<80x80xf32> to vector<80xf32>
    %179 = vector.shape_cast %178 : vector<80xf32> to vector<80x1xf32>
    %180 = vector.broadcast %179 : vector<80x1xf32> to vector<80x80xf32>
    %181 = arith.subf %177, %180 : vector<80x80xf32>
    %182 = math.exp %181 : vector<80x80xf32>
    %cst_61 = arith.constant dense<0.000000e+00> : vector<80xf32>
    %183 = vector.multi_reduction <add>, %182, %cst_61 [1] : vector<80x80xf32> to vector<80xf32>
    %184 = vector.shape_cast %183 : vector<80xf32> to vector<80x1xf32>
    %185 = tpu.reciprocal %184 {approx = true} : vector<80x1xf32> -> vector<80x1xf32>
    %186 = vector.broadcast %185 : vector<80x1xf32> to vector<80x80xf32>
    %187 = arith.mulf %182, %186 : vector<80x80xf32>
    %188 = arith.truncf %187 : vector<80x80xf32> to vector<80x80xbf16>
    %cst_62 = arith.constant dense<0.000000e+00> : vector<80x8xf32>
    %189 = tpu.matmul %188, %175, %cst_62 {dimension_numbers = #tpu.dot_dimension_numbers<[1], [0], [0], [1], [0, 0, 1, 1], [], []>} : vector<80x80xbf16>, vector<80x8xbf16>, vector<80x8xf32> -> vector<80x8xf32>
    %190 = arith.truncf %189 : vector<80x8xf32> to vector<80x8xbf16>
    %c80_63 = arith.constant 80 : index
    %c24_64 = arith.constant 24 : index
    %191 = vector.load %arg21[%c80_63, %c24_64] : memref<160x32xbf16, #tpu.memory_space<vmem>>, vector<80x8xbf16>
    tpu.vector_store %arg21[%c80_63, %c24_64], %190 {strides = array<i32>} : memref<160x32xbf16, #tpu.memory_space<vmem>>, vector<80x8xbf16>,
    %c0_65 = arith.constant 0 : index
    %c0_66 = arith.constant 0 : index
    %192 = vector.load %arg21[%c0_65, %c0_66] : memref<160x32xbf16, #tpu.memory_space<vmem>>, vector<160x32xbf16>
    %c0_67 = arith.constant 0 : index
    %c0_68 = arith.constant 0 : index
    %c0_69 = arith.constant 0 : index
    %193 = vector.load %arg8[%c0_67, %c0_68, %c0_69] : memref<1x32x32xbf16, #tpu.memory_space<vmem>>, vector<1x32x32xbf16>
    %194 = vector.shape_cast %193 : vector<1x32x32xbf16> to vector<32x32xbf16>
    %cst_70 = arith.constant dense<0.000000e+00> : vector<160x32xf32>
    %195 = tpu.matmul %192, %194, %cst_70 {dimension_numbers = #tpu.dot_dimension_numbers<[1], [0], [0], [1], [0, 0, 1, 1], [], []>} : vector<160x32xbf16>, vector<32x32xbf16>, vector<160x32xf32> -> vector<160x32xf32>
    %c0_71 = arith.constant 0 : index
    %c0_72 = arith.constant 0 : index
    %c0_73 = arith.constant 0 : index
    %196 = vector.load %arg9[%c0_71, %c0_72, %c0_73] : memref<1x1x32xf32, #tpu.memory_space<vmem>>, vector<1x1x32xf32>
    %197 = vector.shape_cast %196 : vector<1x1x32xf32> to vector<1x32xf32>
    %198 = vector.broadcast %197 : vector<1x32xf32> to vector<160x32xf32>
    %199 = arith.addf %195, %198 : vector<160x32xf32>
    %200 = arith.addf %3, %199 : vector<160x32xf32>
    %c0_74 = arith.constant 0 : index
    %c0_75 = arith.constant 0 : index
    %c0_76 = arith.constant 0 : index
    %201 = vector.load %arg10[%c0_74, %c0_75, %c0_76] : memref<1x1x32xf32, #tpu.memory_space<vmem>>, vector<1x1x32xf32>
    %202 = vector.shape_cast %201 : vector<1x1x32xf32> to vector<1x32xf32>
    %c0_77 = arith.constant 0 : index
    %c0_78 = arith.constant 0 : index
    %c0_79 = arith.constant 0 : index
    %203 = vector.load %arg11[%c0_77, %c0_78, %c0_79] : memref<1x1x32xf32, #tpu.memory_space<vmem>>, vector<1x1x32xf32>
    %204 = vector.shape_cast %203 : vector<1x1x32xf32> to vector<1x32xf32>
    %cst_80 = arith.constant dense<0.000000e+00> : vector<160xf32>
    %205 = vector.multi_reduction <add>, %200, %cst_80 [1] : vector<160x32xf32> to vector<160xf32>
    %206 = vector.shape_cast %205 : vector<160xf32> to vector<160x1xf32>
    %cst_81 = arith.constant 3.200000e+01 : f32
    %207 = vector.broadcast %cst_81 : f32 to vector<160x1xf32>
    %208 = arith.divf %206, %207 : vector<160x1xf32>
    %209 = vector.broadcast %208 : vector<160x1xf32> to vector<160x32xf32>
    %210 = arith.subf %200, %209 : vector<160x32xf32>
    %211 = arith.mulf %210, %210 : vector<160x32xf32>
    %cst_82 = arith.constant dense<0.000000e+00> : vector<160xf32>
    %212 = vector.multi_reduction <add>, %211, %cst_82 [1] : vector<160x32xf32> to vector<160xf32>
    %213 = vector.shape_cast %212 : vector<160xf32> to vector<160x1xf32>
    %cst_83 = arith.constant 3.200000e+01 : f32
    %214 = vector.broadcast %cst_83 : f32 to vector<160x1xf32>
    %215 = arith.divf %213, %214 : vector<160x1xf32>
    %216 = vector.broadcast %208 : vector<160x1xf32> to vector<160x32xf32>
    %217 = arith.subf %200, %216 : vector<160x32xf32>
    %cst_84 = arith.constant 9.99999974E-6 : f32
    %218 = vector.broadcast %cst_84 : f32 to vector<160x1xf32>
    %219 = arith.addf %215, %218 : vector<160x1xf32>
    %220 = math.rsqrt %219 : vector<160x1xf32>
    %221 = vector.broadcast %220 : vector<160x1xf32> to vector<160x32xf32>
    %222 = arith.mulf %217, %221 : vector<160x32xf32>
    %223 = vector.broadcast %202 : vector<1x32xf32> to vector<160x32xf32>
    %224 = arith.mulf %222, %223 : vector<160x32xf32>
    %225 = vector.broadcast %204 : vector<1x32xf32> to vector<160x32xf32>
    %226 = arith.addf %224, %225 : vector<160x32xf32>
    %227 = arith.truncf %226 : vector<160x32xf32> to vector<160x32xbf16>
    %c0_85 = arith.constant 0 : index
    %c0_86 = arith.constant 0 : index
    %c0_87 = arith.constant 0 : index
    %228 = vector.load %arg12[%c0_85, %c0_86, %c0_87] : memref<1x32x64xbf16, #tpu.memory_space<vmem>>, vector<1x32x64xbf16>
    %229 = vector.shape_cast %228 : vector<1x32x64xbf16> to vector<32x64xbf16>
    %cst_88 = arith.constant dense<0.000000e+00> : vector<160x64xf32>
    %230 = tpu.matmul %227, %229, %cst_88 {dimension_numbers = #tpu.dot_dimension_numbers<[1], [0], [0], [1], [0, 0, 1, 1], [], []>} : vector<160x32xbf16>, vector<32x64xbf16>, vector<160x64xf32> -> vector<160x64xf32>
    %c0_89 = arith.constant 0 : index
    %c0_90 = arith.constant 0 : index
    %c0_91 = arith.constant 0 : index
    %231 = vector.load %arg13[%c0_89, %c0_90, %c0_91] : memref<1x1x64xf32, #tpu.memory_space<vmem>>, vector<1x1x64xf32>
    %232 = vector.shape_cast %231 : vector<1x1x64xf32> to vector<1x64xf32>
    %233 = vector.broadcast %232 : vector<1x64xf32> to vector<160x64xf32>
    %234 = arith.addf %230, %233 : vector<160x64xf32>
    %cst_92 = arith.constant 1.702000e+00 : f32
    %235 = vector.broadcast %cst_92 : f32 to vector<160x64xf32>
    %236 = arith.mulf %235, %234 : vector<160x64xf32>
    %237 = arith.negf %236 : vector<160x64xf32>
    %238 = math.exp %237 : vector<160x64xf32>
    %cst_93 = arith.constant 1.000000e+00 : f32
    %239 = vector.broadcast %cst_93 : f32 to vector<160x64xf32>
    %240 = arith.addf %239, %238 : vector<160x64xf32>
    %241 = arith.divf %239, %240 : vector<160x64xf32>
    %242 = arith.mulf %234, %241 : vector<160x64xf32>
    %243 = arith.truncf %242 : vector<160x64xf32> to vector<160x64xbf16>
    %c0_94 = arith.constant 0 : index
    %c0_95 = arith.constant 0 : index
    %c0_96 = arith.constant 0 : index
    %244 = vector.load %arg14[%c0_94, %c0_95, %c0_96] : memref<1x64x32xbf16, #tpu.memory_space<vmem>>, vector<1x64x32xbf16>
    %245 = vector.shape_cast %244 : vector<1x64x32xbf16> to vector<64x32xbf16>
    %cst_97 = arith.constant dense<0.000000e+00> : vector<160x32xf32>
    %246 = tpu.matmul %243, %245, %cst_97 {dimension_numbers = #tpu.dot_dimension_numbers<[1], [0], [0], [1], [0, 0, 1, 1], [], []>} : vector<160x64xbf16>, vector<64x32xbf16>, vector<160x32xf32> -> vector<160x32xf32>
    %c0_98 = arith.constant 0 : index
    %c0_99 = arith.constant 0 : index
    %c0_100 = arith.constant 0 : index
    %247 = vector.load %arg15[%c0_98, %c0_99, %c0_100] : memref<1x1x32xf32, #tpu.memory_space<vmem>>, vector<1x1x32xf32>
    %248 = vector.shape_cast %247 : vector<1x1x32xf32> to vector<1x32xf32>
    %249 = vector.broadcast %248 : vector<1x32xf32> to vector<160x32xf32>
    %250 = arith.addf %246, %249 : vector<160x32xf32>
    %251 = arith.addf %200, %250 : vector<160x32xf32>
    %c0_101 = arith.constant 0 : index
    %c0_102 = arith.constant 0 : index
    %252 = vector.load %arg20[%c0_101, %c0_102] : memref<160x32xf32, #tpu.memory_space<vmem>>, vector<160x32xf32>
    tpu.vector_store %arg20[%c0_101, %c0_102], %251 {strides = array<i32>} : memref<160x32xf32, #tpu.memory_space<vmem>>, vector<160x32xf32>,
    %c1_i32 = arith.constant 1 : i32
    %253 = arith.cmpi eq, %arg1, %c1_i32 : i32
    %254 = arith.extui %253 : i1 to i32
    %c0_i32_103 = arith.constant 0 : i32
    %255 = arith.cmpi ne, %254, %c0_i32_103 : i32
    scf.if %255 {
      %c0_106 = arith.constant 0 : index
      %c0_107 = arith.constant 0 : index
      %259 = vector.load %arg16[%c0_106, %c0_107] : memref<1x32xf32, #tpu.memory_space<vmem>>, vector<1x32xf32>
      %c0_108 = arith.constant 0 : index
      %c0_109 = arith.constant 0 : index
      %260 = vector.load %arg17[%c0_108, %c0_109] : memref<1x32xf32, #tpu.memory_space<vmem>>, vector<1x32xf32>
      %cst_110 = arith.constant dense<0.000000e+00> : vector<160xf32>
      %261 = vector.multi_reduction <add>, %251, %cst_110 [1] : vector<160x32xf32> to vector<160xf32>
      %262 = vector.shape_cast %261 : vector<160xf32> to vector<160x1xf32>
      %cst_111 = arith.constant 3.200000e+01 : f32
      %263 = vector.broadcast %cst_111 : f32 to vector<160x1xf32>
      %264 = arith.divf %262, %263 : vector<160x1xf32>
      %265 = vector.broadcast %264 : vector<160x1xf32> to vector<160x32xf32>
      %266 = arith.subf %251, %265 : vector<160x32xf32>
      %267 = arith.mulf %266, %266 : vector<160x32xf32>
      %cst_112 = arith.constant dense<0.000000e+00> : vector<160xf32>
      %268 = vector.multi_reduction <add>, %267, %cst_112 [1] : vector<160x32xf32> to vector<160xf32>
      %269 = vector.shape_cast %268 : vector<160xf32> to vector<160x1xf32>
      %cst_113 = arith.constant 3.200000e+01 : f32
      %270 = vector.broadcast %cst_113 : f32 to vector<160x1xf32>
      %271 = arith.divf %269, %270 : vector<160x1xf32>
      %272 = vector.broadcast %264 : vector<160x1xf32> to vector<160x32xf32>
      %273 = arith.subf %251, %272 : vector<160x32xf32>
      %cst_114 = arith.constant 9.99999974E-6 : f32
      %274 = vector.broadcast %cst_114 : f32 to vector<160x1xf32>
      %275 = arith.addf %271, %274 : vector<160x1xf32>
      %276 = math.rsqrt %275 : vector<160x1xf32>
      %277 = vector.broadcast %276 : vector<160x1xf32> to vector<160x32xf32>
      %278 = arith.mulf %273, %277 : vector<160x32xf32>
      %279 = vector.broadcast %259 : vector<1x32xf32> to vector<160x32xf32>
      %280 = arith.mulf %278, %279 : vector<160x32xf32>
      %281 = vector.broadcast %260 : vector<1x32xf32> to vector<160x32xf32>
      %282 = arith.addf %280, %281 : vector<160x32xf32>
      %283 = vector.shape_cast %282 : vector<160x32xf32> to vector<2x80x32xf32>
      %c0_115 = arith.constant 0 : index
      %c0_116 = arith.constant 0 : index
      %c0_117 = arith.constant 0 : index
      %284 = vector.load %arg19[%c0_115, %c0_116, %c0_117] : memref<2x80x32xf32, #tpu.memory_space<vmem>>, vector<2x80x32xf32>
      tpu.vector_store %arg19[%c0_115, %c0_116, %c0_117], %283 {strides = array<i32>} : memref<2x80x32xf32, #tpu.memory_space<vmem>>, vector<2x80x32xf32>,
    } else {
    }
    %c1_i32_104 = arith.constant 1 : i32
    %256 = arith.cmpi eq, %arg1, %c1_i32_104 : i32
    %257 = arith.extui %256 : i1 to i32
    %c0_i32_105 = arith.constant 0 : i32
    %258 = arith.cmpi ne, %257, %c0_i32_105 : i32
    scf.if %258 {
      %c0_106 = arith.constant 0 : index
      %c0_107 = arith.constant 0 : index
      %259 = vector.load %arg16[%c0_106, %c0_107] : memref<1x32xf32, #tpu.memory_space<vmem>>, vector<1x32xf32>
      %c0_108 = arith.constant 0 : index
      %c0_109 = arith.constant 0 : index
      %260 = vector.load %arg17[%c0_108, %c0_109] : memref<1x32xf32, #tpu.memory_space<vmem>>, vector<1x32xf32>
      %cst_110 = arith.constant dense<0.000000e+00> : vector<160xf32>
      %261 = vector.multi_reduction <add>, %251, %cst_110 [1] : vector<160x32xf32> to vector<160xf32>
      %262 = vector.shape_cast %261 : vector<160xf32> to vector<160x1xf32>
      %cst_111 = arith.constant 3.200000e+01 : f32
      %263 = vector.broadcast %cst_111 : f32 to vector<160x1xf32>
      %264 = arith.divf %262, %263 : vector<160x1xf32>
      %265 = vector.broadcast %264 : vector<160x1xf32> to vector<160x32xf32>
      %266 = arith.subf %251, %265 : vector<160x32xf32>
      %267 = arith.mulf %266, %266 : vector<160x32xf32>
      %cst_112 = arith.constant dense<0.000000e+00> : vector<160xf32>
      %268 = vector.multi_reduction <add>, %267, %cst_112 [1] : vector<160x32xf32> to vector<160xf32>
      %269 = vector.shape_cast %268 : vector<160xf32> to vector<160x1xf32>
      %cst_113 = arith.constant 3.200000e+01 : f32
      %270 = vector.broadcast %cst_113 : f32 to vector<160x1xf32>
      %271 = arith.divf %269, %270 : vector<160x1xf32>
      %272 = vector.broadcast %264 : vector<160x1xf32> to vector<160x32xf32>
      %273 = arith.subf %251, %272 : vector<160x32xf32>
      %cst_114 = arith.constant 9.99999974E-6 : f32
      %274 = vector.broadcast %cst_114 : f32 to vector<160x1xf32>
      %275 = arith.addf %271, %274 : vector<160x1xf32>
      %276 = math.rsqrt %275 : vector<160x1xf32>
      %277 = vector.broadcast %276 : vector<160x1xf32> to vector<160x32xf32>
      %278 = arith.mulf %273, %277 : vector<160x32xf32>
      %279 = vector.broadcast %259 : vector<1x32xf32> to vector<160x32xf32>
      %280 = arith.mulf %278, %279 : vector<160x32xf32>
      %281 = vector.broadcast %260 : vector<1x32xf32> to vector<160x32xf32>
      %282 = arith.addf %280, %281 : vector<160x32xf32>
      %283 = vector.shape_cast %282 : vector<160x32xf32> to vector<2x80x32xf32>
      %c0_115 = arith.constant 0 : index
      %c0_116 = arith.constant 0 : index
      %c0_117 = arith.constant 0 : index
      %284 = vector.load %arg18[%c0_115, %c0_116, %c0_117] : memref<2x80x32xf32, #tpu.memory_space<vmem>>, vector<2x80x32xf32>
      tpu.vector_store %arg18[%c0_115, %c0_116, %c0_117], %283 {strides = array<i32>} : memref<2x80x32xf32, #tpu.memory_space<vmem>>, vector<2x80x32xf32>,
    } else {
    }
    return
  }
  func.func @transform_0(%arg0: i32, %arg1: i32) -> (i32, i32, i32) {
    %c0_i32 = arith.constant 0 : i32
    %c0_i32_0 = arith.constant 0 : i32
    %c0_i32_1 = arith.constant 0 : i32
    return %arg0, %c0_i32, %c0_i32_0 : i32, i32, i32
  }
  func.func @transform_1(%arg0: i32, %arg1: i32) -> (i32, i32) {
    %c0_i32 = arith.constant 0 : i32
    %c0_i32_0 = arith.constant 0 : i32
    %c0_i32_1 = arith.constant 0 : i32
    return %c0_i32, %c0_i32_0 : i32, i32
  }
  func.func @transform_2(%arg0: i32, %arg1: i32) -> (i32, i32, i32) {
    %c0_i32 = arith.constant 0 : i32
    %c0_i32_0 = arith.constant 0 : i32
    %c0_i32_1 = arith.constant 0 : i32
    return %arg1, %c0_i32, %c0_i32_0 : i32, i32, i32
  }
  func.func @transform_3(%arg0: i32, %arg1: i32) -> (i32, i32, i32) {
    %c0_i32 = arith.constant 0 : i32
    %c0_i32_0 = arith.constant 0 : i32
    %c0_i32_1 = arith.constant 0 : i32
    return %arg1, %c0_i32, %c0_i32_0 : i32, i32, i32
  }
  func.func @transform_4(%arg0: i32, %arg1: i32) -> (i32, i32, i32) {
    %c0_i32 = arith.constant 0 : i32
    %c0_i32_0 = arith.constant 0 : i32
    %c0_i32_1 = arith.constant 0 : i32
    return %arg1, %c0_i32, %c0_i32_0 : i32, i32, i32
  }
  func.func @transform_5(%arg0: i32, %arg1: i32) -> (i32, i32, i32) {
    %c0_i32 = arith.constant 0 : i32
    %c0_i32_0 = arith.constant 0 : i32
    %c0_i32_1 = arith.constant 0 : i32
    return %arg1, %c0_i32, %c0_i32_0 : i32, i32, i32
  }
  func.func @transform_6(%arg0: i32, %arg1: i32) -> (i32, i32, i32) {
    %c0_i32 = arith.constant 0 : i32
    %c0_i32_0 = arith.constant 0 : i32
    %c0_i32_1 = arith.constant 0 : i32
    return %arg1, %c0_i32, %c0_i32_0 : i32, i32, i32
  }
  func.func @transform_7(%arg0: i32, %arg1: i32) -> (i32, i32, i32) {
    %c0_i32 = arith.constant 0 : i32
    %c0_i32_0 = arith.constant 0 : i32
    %c0_i32_1 = arith.constant 0 : i32
    return %arg1, %c0_i32, %c0_i32_0 : i32, i32, i32
  }
  func.func @transform_8(%arg0: i32, %arg1: i32) -> (i32, i32, i32) {
    %c0_i32 = arith.constant 0 : i32
    %c0_i32_0 = arith.constant 0 : i32
    %c0_i32_1 = arith.constant 0 : i32
    return %arg1, %c0_i32, %c0_i32_0 : i32, i32, i32
  }
  func.func @transform_9(%arg0: i32, %arg1: i32) -> (i32, i32, i32) {
    %c0_i32 = arith.constant 0 : i32
    %c0_i32_0 = arith.constant 0 : i32
    %c0_i32_1 = arith.constant 0 : i32
    return %arg1, %c0_i32, %c0_i32_0 : i32, i32, i32
  }
  func.func @transform_10(%arg0: i32, %arg1: i32) -> (i32, i32, i32) {
    %c0_i32 = arith.constant 0 : i32
    %c0_i32_0 = arith.constant 0 : i32
    %c0_i32_1 = arith.constant 0 : i32
    return %arg1, %c0_i32, %c0_i32_0 : i32, i32, i32
  }
  func.func @transform_11(%arg0: i32, %arg1: i32) -> (i32, i32, i32) {
    %c0_i32 = arith.constant 0 : i32
    %c0_i32_0 = arith.constant 0 : i32
    %c0_i32_1 = arith.constant 0 : i32
    return %arg1, %c0_i32, %c0_i32_0 : i32, i32, i32
  }
  func.func @transform_12(%arg0: i32, %arg1: i32) -> (i32, i32, i32) {
    %c0_i32 = arith.constant 0 : i32
    %c0_i32_0 = arith.constant 0 : i32
    %c0_i32_1 = arith.constant 0 : i32
    return %arg1, %c0_i32, %c0_i32_0 : i32, i32, i32
  }
  func.func @transform_13(%arg0: i32, %arg1: i32) -> (i32, i32, i32) {
    %c0_i32 = arith.constant 0 : i32
    %c0_i32_0 = arith.constant 0 : i32
    %c0_i32_1 = arith.constant 0 : i32
    return %arg1, %c0_i32, %c0_i32_0 : i32, i32, i32
  }
  func.func @transform_14(%arg0: i32, %arg1: i32) -> (i32, i32) {
    %c0_i32 = arith.constant 0 : i32
    %c0_i32_0 = arith.constant 0 : i32
    %c0_i32_1 = arith.constant 0 : i32
    return %c0_i32, %c0_i32_0 : i32, i32
  }
  func.func @transform_15(%arg0: i32, %arg1: i32) -> (i32, i32) {
    %c0_i32 = arith.constant 0 : i32
    %c0_i32_0 = arith.constant 0 : i32
    %c0_i32_1 = arith.constant 0 : i32
    return %c0_i32, %c0_i32_0 : i32, i32
  }
  func.func @transform_16(%arg0: i32, %arg1: i32) -> (i32, i32, i32) {
    %c0_i32 = arith.constant 0 : i32
    %c0_i32_0 = arith.constant 0 : i32
    %c0_i32_1 = arith.constant 0 : i32
    return %arg0, %c0_i32, %c0_i32_0 : i32, i32, i32
  }
  func.func @transform_17(%arg0: i32, %arg1: i32) -> (i32, i32, i32) {
    %c0_i32 = arith.constant 0 : i32
    %c0_i32_0 = arith.constant 0 : i32
    %c0_i32_1 = arith.constant 0 : i32
    return %arg0, %c0_i32, %c0_i32_0 : i32, i32, i32
  }
}

</mosaic_0001>

<llo_original>
// kernel: clip_text_forward.1
$region0: #{clip_text_forward.1}
  #allocation0 [shape = 'u32[]', space=smem, size = 0x4, offset = 0x4, fixed_abs, tag = 'smem constant byte address 0x4 - core index']
  #allocation1 [shape = 'u32[144,128]{1,0:T(1,128)}', space=vmem, size = 0x12000, scoped, tag = 'internal scratch']
  #allocation2 [shape = 'f32[160,32]{1,0:T(8,128)}', space=vmem, size = 0x14000, scoped, tag = 'scratch operand']
  #allocation3 [shape = 'bf16[160,32]{1,0:T(16,128)(2,1)}', space=vmem, size = 0xa000, scoped, tag = 'scratch operand']
  %s0 = inlined_call_operand.vmem [shape: f32[2,80,32], index: 0, kind: input, shape index: {}]
  %s1 = inlined_call_operand.vmem [shape: f32[80,80], index: 1, kind: input, shape index: {}]
  %s2 = inlined_call_operand.vmem [shape: f32[2,1,32], index: 2, kind: input, shape index: {}]
  %s3 = inlined_call_operand.vmem [shape: f32[2,1,32], index: 3, kind: input, shape index: {}]
  %s4 = inlined_call_operand.vmem [shape: bf16[2,32,96], index: 4, kind: input, shape index: {}]
  %s5 = inlined_call_operand.vmem [shape: f32[2,1,96], index: 5, kind: input, shape index: {}]
  %s6 = inlined_call_operand.vmem [shape: bf16[2,32,32], index: 6, kind: input, shape index: {}]
  %s7 = inlined_call_operand.vmem [shape: f32[2,1,32], index: 7, kind: input, shape index: {}]
  %s8 = inlined_call_operand.vmem [shape: f32[2,1,32], index: 8, kind: input, shape index: {}]
  %s9 = inlined_call_operand.vmem [shape: f32[2,1,32], index: 9, kind: input, shape index: {}]
  %s10 = inlined_call_operand.vmem [shape: bf16[2,32,64], index: 10, kind: input, shape index: {}]
  %s11 = inlined_call_operand.vmem [shape: f32[2,1,64], index: 11, kind: input, shape index: {}]
  %s12 = inlined_call_operand.vmem [shape: bf16[2,64,32], index: 12, kind: input, shape index: {}]
  %s13 = inlined_call_operand.vmem [shape: f32[2,1,32], index: 13, kind: input, shape index: {}]
  %s14 = inlined_call_operand.vmem [shape: f32[1,32], index: 14, kind: input, shape index: {}]
  %s15 = inlined_call_operand.vmem [shape: f32[1,32], index: 15, kind: input, shape index: {}]
  %s16 = inlined_call_operand.vmem [shape: f32[2,80,32], index: 16, kind: output, shape index: {0}]
  %s17 = inlined_call_operand.vmem [shape: f32[2,80,32], index: 17, kind: output, shape index: {1}]
  %18 = xla_tuple %s16, %s17
  %s19 = sld [smem:[#allocation0]]
  $region113: #{clip_text_forward.1} parent=0
    _
  %s21 = ssub.s32 1, %s19
  %s22 = scalar_select 0, %s21, %s19
  loop: start=0, step=1, limit=4
  $region2: #{clip_text_forward.1} parent=0 // loop_pre_header
    _
  $region3: #{clip_text_forward.1} parent=0 // loop_header
    %s24 = sphi 0, %s28
    %p25 = scmp.ge.s32.totalorder %s24, 4
    %s31 = sphi 0, %s43
    %s32 = sphi 0, %s39
    %s33 = sphi 0, %s31
    %s34 = sphi 0, %s32
    %s35 = sphi 0, %s33
    %s36 = sphi 0, %s34
    %s46 = sphi 0, %s48
    %s49 = sphi 0, %s46
    %s50 = sphi 0, %s49
    %s66 = sphi 0, %s50
    %s70 = sphi 0, %s70
    %s72 = sphi 0, %s70
    %s73 = sphi 0, %s72
    %s87 = sphi 0, %s73
    %s93 = sphi 0, %s95
    %s96 = sphi 0, %s93
    %s97 = sphi 0, %s96
    %s113 = sphi 0, %s97
    %s119 = sphi 0, %s121
    %s122 = sphi 0, %s119
    %s123 = sphi 0, %s122
    %s139 = sphi 0, %s123
    %s145 = sphi 0, %s147
    %s148 = sphi 0, %s145
    %s149 = sphi 0, %s148
    %s165 = sphi 0, %s149
    %s171 = sphi 0, %s173
    %s174 = sphi 0, %s171
    %s175 = sphi 0, %s174
    %s191 = sphi 0, %s175
    %s197 = sphi 0, %s199
    %s200 = sphi 0, %s197
    %s201 = sphi 0, %s200
    %s217 = sphi 0, %s201
    %s223 = sphi 0, %s225
    %s226 = sphi 0, %s223
    %s227 = sphi 0, %s226
    %s243 = sphi 0, %s227
    %s249 = sphi 0, %s251
    %s252 = sphi 0, %s249
    %s253 = sphi 0, %s252
    %s269 = sphi 0, %s253
    %s275 = sphi 0, %s277
    %s278 = sphi 0, %s275
    %s279 = sphi 0, %s278
    %s295 = sphi 0, %s279
    %s301 = sphi 0, %s303
    %s304 = sphi 0, %s301
    %s305 = sphi 0, %s304
    %s321 = sphi 0, %s305
    %s327 = sphi 0, %s329
    %s330 = sphi 0, %s327
    %s331 = sphi 0, %s330
    %s347 = sphi 0, %s331
    %s353 = sphi 0, %s355
    %s356 = sphi 0, %s353
    %s357 = sphi 0, %s356
    %s373 = sphi 0, %s357
    %s379 = sphi 0, %s381
    %s382 = sphi 0, %s379
    %s383 = sphi 0, %s382
    %s399 = sphi 0, %s383
    %s403 = sphi 0, %s403
    %s405 = sphi 0, %s403
    %s406 = sphi 0, %s405
    %s420 = sphi 0, %s406
    %s424 = sphi 0, %s424
    %s426 = sphi 0, %s424
    %s427 = sphi 0, %s426
    %s441 = sphi 0, %s427
    %s447 = sphi 0, %s449
    %s450 = sphi 0, %s447
    %s451 = sphi 0, %s450
    %s467 = sphi 0, %s451
    %s473 = sphi 0, %s475
    %s476 = sphi 0, %s473
    %s477 = sphi 0, %s476
    %s493 = sphi 0, %s477
  $region4: #{clip_text_forward.1} parent=0 // loop_header_branch
    %27 = sbr.rel (%p25) target = $region8
  $region5: #{clip_text_forward.1} parent=0 // loop_body
    %s29 = ssub.s32 %s24, 1
    %s30 = ssub.s32 %s24, 2
    %s37 = sadd.s32 1, %s32
    %p38 = scmp.ge.s32.totalorder %s37, 2
    %s39 = scalar_select %p38, 0, %s37
    %s40 = sadd.s32 1, %s31
    %s41 = scalar_select %p38, %s40, %s31
    %p42 = scmp.ge.s32.totalorder %s41, 1
    %s43 = scalar_select %p42, 0, %s41
    %s44 = ssub.s32 %s31, %s43
    %p45 = scmp.eq.s32.totalorder %s44, 0
    %s47 = sadd.s32 %s46, 1
    %s48 = scalar_select %p45, %s46, %s47
    %p51 = pneg %p45
    %p52 = scmp.eq.s32.totalorder %s24, 1
    %p53 = por %p51, %p52
    %p54 = scmp.ne.s32.totalorder %s46, %s49
    %p55 = scmp.eq.s32.totalorder %s24, 0
    %p56 = por %p54, %p55
    %p57 = scmp.ne.s32.totalorder %s46, %s49
    %p58 = scmp.eq.s32.totalorder %s29, 1
    %p59 = por %p57, %p58
    %p60 = scmp.ne.s32.totalorder %s49, %s50
    %p61 = scmp.eq.s32.totalorder %s29, 0
    %p62 = por %p60, %p61
    %p63 = scmp.ne.s32.totalorder %s49, %s50
    %p64 = scmp.eq.s32.totalorder %s30, 1
    %p65 = por %p63, %p64
    %p67 = scmp.ne.s32.totalorder %s50, %s66
    %p68 = scmp.eq.s32.totalorder %s30, 0
    %p69 = por %p67, %p68
    %s71 = sadd.s32 %s70, 1
    %p74 = scmp.eq.s32.totalorder %s24, 1
    %p75 = scmp.ne.s32.totalorder %s70, %s72
    %p76 = scmp.eq.s32.totalorder %s24, 0
    %p77 = por %p75, %p76
    %p78 = scmp.ne.s32.totalorder %s70, %s72
    %p79 = scmp.eq.s32.totalorder %s29, 1
    %p80 = por %p78, %p79
    %p81 = scmp.ne.s32.totalorder %s72, %s73
    %p82 = scmp.eq.s32.totalorder %s29, 0
    %p83 = por %p81, %p82
    %p84 = scmp.ne.s32.totalorder %s72, %s73
    %p85 = scmp.eq.s32.totalorder %s30, 1
    %p86 = por %p84, %p85
    %p88 = scmp.ne.s32.totalorder %s73, %s87
    %p89 = scmp.eq.s32.totalorder %s30, 0
    %p90 = por %p88, %p89
    %s91 = ssub.s32 %s32, %s39
    %p92 = scmp.eq.s32.totalorder %s91, 0
    %s94 = sadd.s32 %s93, 1
    %s95 = scalar_select %p92, %s93, %s94
    %p98 = pneg %p92
    %p99 = scmp.eq.s32.totalorder %s24, 1
    %p100 = por %p98, %p99
    %p101 = scmp.ne.s32.totalorder %s93, %s96
    %p102 = scmp.eq.s32.totalorder %s24, 0
    %p103 = por %p101, %p102
    %p104 = scmp.ne.s32.totalorder %s93, %s96
    %p105 = scmp.eq.s32.totalorder %s29, 1
    %p106 = por %p104, %p105
    %p107 = scmp.ne.s32.totalorder %s96, %s97
    %p108 = scmp.eq.s32.totalorder %s29, 0
    %p109 = por %p107, %p108
    %p110 = scmp.ne.s32.totalorder %s96, %s97
    %p111 = scmp.eq.s32.totalorder %s30, 1
    %p112 = por %p110, %p111
    %p114 = scmp.ne.s32.totalorder %s97, %s113
    %p115 = scmp.eq.s32.totalorder %s30, 0
    %p116 = por %p114, %p115
    %s117 = ssub.s32 %s32, %s39
    %p118 = scmp.eq.s32.totalorder %s117, 0
    %s120 = sadd.s32 %s119, 1
    %s121 = scalar_select %p118, %s119, %s120
    %p124 = pneg %p118
    %p125 = scmp.eq.s32.totalorder %s24, 1
    %p126 = por %p124, %p125
    %p127 = scmp.ne.s32.totalorder %s119, %s122
    %p128 = scmp.eq.s32.totalorder %s24, 0
    %p129 = por %p127, %p128
    %p130 = scmp.ne.s32.totalorder %s119, %s122
    %p131 = scmp.eq.s32.totalorder %s29, 1
    %p132 = por %p130, %p131
    %p133 = scmp.ne.s32.totalorder %s122, %s123
    %p134 = scmp.eq.s32.totalorder %s29, 0
    %p135 = por %p133, %p134
    %p136 = scmp.ne.s32.totalorder %s122, %s123
    %p137 = scmp.eq.s32.totalorder %s30, 1
    %p138 = por %p136, %p137
    %p140 = scmp.ne.s32.totalorder %s123, %s139
    %p141 = scmp.eq.s32.totalorder %s30, 0
    %p142 = por %p140, %p141
    %s143 = ssub.s32 %s32, %s39
    %p144 = scmp.eq.s32.totalorder %s143, 0
    %s146 = sadd.s32 %s145, 1
    %s147 = scalar_select %p144, %s145, %s146
    %p150 = pneg %p144
    %p151 = scmp.eq.s32.totalorder %s24, 1
    %p152 = por %p150, %p151
    %p153 = scmp.ne.s32.totalorder %s145, %s148
    %p154 = scmp.eq.s32.totalorder %s24, 0
    %p155 = por %p153, %p154
    %p156 = scmp.ne.s32.totalorder %s145, %s148
    %p157 = scmp.eq.s32.totalorder %s29, 1
    %p158 = por %p156, %p157
    %p159 = scmp.ne.s32.totalorder %s148, %s149
    %p160 = scmp.eq.s32.totalorder %s29, 0
    %p161 = por %p159, %p160
    %p162 = scmp.ne.s32.totalorder %s148, %s149
    %p163 = scmp.eq.s32.totalorder %s30, 1
    %p164 = por %p162, %p163
    %p166 = scmp.ne.s32.totalorder %s149, %s165
    %p167 = scmp.eq.s32.totalorder %s30, 0
    %p168 = por %p166, %p167
    %s169 = ssub.s32 %s32, %s39
    %p170 = scmp.eq.s32.totalorder %s169, 0
    %s172 = sadd.s32 %s171, 1
    %s173 = scalar_select %p170, %s171, %s172
    %p176 = pneg %p170
    %p177 = scmp.eq.s32.totalorder %s24, 1
    %p178 = por %p176, %p177
    %p179 = scmp.ne.s32.totalorder %s171, %s174
    %p180 = scmp.eq.s32.totalorder %s24, 0
    %p181 = por %p179, %p180
    %p182 = scmp.ne.s32.totalorder %s171, %s174
    %p183 = scmp.eq.s32.totalorder %s29, 1
    %p184 = por %p182, %p183
    %p185 = scmp.ne.s32.totalorder %s174, %s175
    %p186 = scmp.eq.s32.totalorder %s29, 0
    %p187 = por %p185, %p186
    %p188 = scmp.ne.s32.totalorder %s174, %s175
    %p189 = scmp.eq.s32.totalorder %s30, 1
    %p190 = por %p188, %p189
    %p192 = scmp.ne.s32.totalorder %s175, %s191
    %p193 = scmp.eq.s32.totalorder %s30, 0
    %p194 = por %p192, %p193
    %s195 = ssub.s32 %s32, %s39
    %p196 = scmp.eq.s32.totalorder %s195, 0
    %s198 = sadd.s32 %s197, 1
    %s199 = scalar_select %p196, %s197, %s198
    %p202 = pneg %p196
    %p203 = scmp.eq.s32.totalorder %s24, 1
    %p204 = por %p202, %p203
    %p205 = scmp.ne.s32.totalorder %s197, %s200
    %p206 = scmp.eq.s32.totalorder %s24, 0
    %p207 = por %p205, %p206
    %p208 = scmp.ne.s32.totalorder %s197, %s200
    %p209 = scmp.eq.s32.totalorder %s29, 1
    %p210 = por %p208, %p209
    %p211 = scmp.ne.s32.totalorder %s200, %s201
    %p212 = scmp.eq.s32.totalorder %s29, 0
    %p213 = por %p211, %p212
    %p214 = scmp.ne.s32.totalorder %s200, %s201
    %p215 = scmp.eq.s32.totalorder %s30, 1
    %p216 = por %p214, %p215
    %p218 = scmp.ne.s32.totalorder %s201, %s217
    %p219 = scmp.eq.s32.totalorder %s30, 0
    %p220 = por %p218, %p219
    %s221 = ssub.s32 %s32, %s39
    %p222 = scmp.eq.s32.totalorder %s221, 0
    %s224 = sadd.s32 %s223, 1
    %s225 = scalar_select %p222, %s223, %s224
    %p228 = pneg %p222
    %p229 = scmp.eq.s32.totalorder %s24, 1
    %p230 = por %p228, %p229
    %p231 = scmp.ne.s32.totalorder %s223, %s226
    %p232 = scmp.eq.s32.totalorder %s24, 0
    %p233 = por %p231, %p232
    %p234 = scmp.ne.s32.totalorder %s223, %s226
    %p235 = scmp.eq.s32.totalorder %s29, 1
    %p236 = por %p234, %p235
    %p237 = scmp.ne.s32.totalorder %s226, %s227
    %p238 = scmp.eq.s32.totalorder %s29, 0
    %p239 = por %p237, %p238
    %p240 = scmp.ne.s32.totalorder %s226, %s227
    %p241 = scmp.eq.s32.totalorder %s30, 1
    %p242 = por %p240, %p241
    %p244 = scmp.ne.s32.totalorder %s227, %s243
    %p245 = scmp.eq.s32.totalorder %s30, 0
    %p246 = por %p244, %p245
    %s247 = ssub.s32 %s32, %s39
    %p248 = scmp.eq.s32.totalorder %s247, 0
    %s250 = sadd.s32 %s249, 1
    %s251 = scalar_select %p248, %s249, %s250
    %p254 = pneg %p248
    %p255 = scmp.eq.s32.totalorder %s24, 1
    %p256 = por %p254, %p255
    %p257 = scmp.ne.s32.totalorder %s249, %s252
    %p258 = scmp.eq.s32.totalorder %s24, 0
    %p259 = por %p257, %p258
    %p260 = scmp.ne.s32.totalorder %s249, %s252
    %p261 = scmp.eq.s32.totalorder %s29, 1
    %p262 = por %p260, %p261
    %p263 = scmp.ne.s32.totalorder %s252, %s253
    %p264 = scmp.eq.s32.totalorder %s29, 0
    %p265 = por %p263, %p264
    %p266 = scmp.ne.s32.totalorder %s252, %s253
    %p267 = scmp.eq.s32.totalorder %s30, 1
    %p268 = por %p266, %p267
    %p270 = scmp.ne.s32.totalorder %s253, %s269
    %p271 = scmp.eq.s32.totalorder %s30, 0
    %p272 = por %p270, %p271
    %s273 = ssub.s32 %s32, %s39
    %p274 = scmp.eq.s32.totalorder %s273, 0
    %s276 = sadd.s32 %s275, 1
    %s277 = scalar_select %p274, %s275, %s276
    %p280 = pneg %p274
    %p281 = scmp.eq.s32.totalorder %s24, 1
    %p282 = por %p280, %p281
    %p283 = scmp.ne.s32.totalorder %s275, %s278
    %p284 = scmp.eq.s32.totalorder %s24, 0
    %p285 = por %p283, %p284
    %p286 = scmp.ne.s32.totalorder %s275, %s278
    %p287 = scmp.eq.s32.totalorder %s29, 1
    %p288 = por %p286, %p287
    %p289 = scmp.ne.s32.totalorder %s278, %s279
    %p290 = scmp.eq.s32.totalorder %s29, 0
    %p291 = por %p289, %p290
    %p292 = scmp.ne.s32.totalorder %s278, %s279
    %p293 = scmp.eq.s32.totalorder %s30, 1
    %p294 = por %p292, %p293
    %p296 = scmp.ne.s32.totalorder %s279, %s295
    %p297 = scmp.eq.s32.totalorder %s30, 0
    %p298 = por %p296, %p297
    %s299 = ssub.s32 %s32, %s39
    %p300 = scmp.eq.s32.totalorder %s299, 0
    %s302 = sadd.s32 %s301, 1
    %s303 = scalar_select %p300, %s301, %s302
    %p306 = pneg %p300
    %p307 = scmp.eq.s32.totalorder %s24, 1
    %p308 = por %p306, %p307
    %p309 = scmp.ne.s32.totalorder %s301, %s304
    %p310 = scmp.eq.s32.totalorder %s24, 0
    %p311 = por %p309, %p310
    %p312 = scmp.ne.s32.totalorder %s301, %s304
    %p313 = scmp.eq.s32.totalorder %s29, 1
    %p314 = por %p312, %p313
    %p315 = scmp.ne.s32.totalorder %s304, %s305
    %p316 = scmp.eq.s32.totalorder %s29, 0
    %p317 = por %p315, %p316
    %p318 = scmp.ne.s32.totalorder %s304, %s305
    %p319 = scmp.eq.s32.totalorder %s30, 1
    %p320 = por %p318, %p319
    %p322 = scmp.ne.s32.totalorder %s305, %s321
    %p323 = scmp.eq.s32.totalorder %s30, 0
    %p324 = por %p322, %p323
    %s325 = ssub.s32 %s32, %s39
    %p326 = scmp.eq.s32.totalorder %s325, 0
    %s328 = sadd.s32 %s327, 1
    %s329 = scalar_select %p326, %s327, %s328
    %p332 = pneg %p326
    %p333 = scmp.eq.s32.totalorder %s24, 1
    %p334 = por %p332, %p333
    %p335 = scmp.ne.s32.totalorder %s327, %s330
    %p336 = scmp.eq.s32.totalorder %s24, 0
    %p337 = por %p335, %p336
    %p338 = scmp.ne.s32.totalorder %s327, %s330
    %p339 = scmp.eq.s32.totalorder %s29, 1
    %p340 = por %p338, %p339
    %p341 = scmp.ne.s32.totalorder %s330, %s331
    %p342 = scmp.eq.s32.totalorder %s29, 0
    %p343 = por %p341, %p342
    %p344 = scmp.ne.s32.totalorder %s330, %s331
    %p345 = scmp.eq.s32.totalorder %s30, 1
    %p346 = por %p344, %p345
    %p348 = scmp.ne.s32.totalorder %s331, %s347
    %p349 = scmp.eq.s32.totalorder %s30, 0
    %p350 = por %p348, %p349
    %s351 = ssub.s32 %s32, %s39
    %p352 = scmp.eq.s32.totalorder %s351, 0
    %s354 = sadd.s32 %s353, 1
    %s355 = scalar_select %p352, %s353, %s354
    %p358 = pneg %p352
    %p359 = scmp.eq.s32.totalorder %s24, 1
    %p360 = por %p358, %p359
    %p361 = scmp.ne.s32.totalorder %s353, %s356
    %p362 = scmp.eq.s32.totalorder %s24, 0
    %p363 = por %p361, %p362
    %p364 = scmp.ne.s32.totalorder %s353, %s356
    %p365 = scmp.eq.s32.totalorder %s29, 1
    %p366 = por %p364, %p365
    %p367 = scmp.ne.s32.totalorder %s356, %s357
    %p368 = scmp.eq.s32.totalorder %s29, 0
    %p369 = por %p367, %p368
    %p370 = scmp.ne.s32.totalorder %s356, %s357
    %p371 = scmp.eq.s32.totalorder %s30, 1
    %p372 = por %p370, %p371
    %p374 = scmp.ne.s32.totalorder %s357, %s373
    %p375 = scmp.eq.s32.totalorder %s30, 0
    %p376 = por %p374, %p375
    %s377 = ssub.s32 %s32, %s39
    %p378 = scmp.eq.s32.totalorder %s377, 0
    %s380 = sadd.s32 %s379, 1
    %s381 = scalar_select %p378, %s379, %s380
    %p384 = pneg %p378
    %p385 = scmp.eq.s32.totalorder %s24, 1
    %p386 = por %p384, %p385
    %p387 = scmp.ne.s32.totalorder %s379, %s382
    %p388 = scmp.eq.s32.totalorder %s24, 0
    %p389 = por %p387, %p388
    %p390 = scmp.ne.s32.totalorder %s379, %s382
    %p391 = scmp.eq.s32.totalorder %s29, 1
    %p392 = por %p390, %p391
    %p393 = scmp.ne.s32.totalorder %s382, %s383
    %p394 = scmp.eq.s32.totalorder %s29, 0
    %p395 = por %p393, %p394
    %p396 = scmp.ne.s32.totalorder %s382, %s383
    %p397 = scmp.eq.s32.totalorder %s30, 1
    %p398 = por %p396, %p397
    %p400 = scmp.ne.s32.totalorder %s383, %s399
    %p401 = scmp.eq.s32.totalorder %s30, 0
    %p402 = por %p400, %p401
    %s404 = sadd.s32 %s403, 1
    %p407 = scmp.eq.s32.totalorder %s24, 1
    %p408 = scmp.ne.s32.totalorder %s403, %s405
    %p409 = scmp.eq.s32.totalorder %s24, 0
    %p410 = por %p408, %p409
    %p411 = scmp.ne.s32.totalorder %s403, %s405
    %p412 = scmp.eq.s32.totalorder %s29, 1
    %p413 = por %p411, %p412
    %p414 = scmp.ne.s32.totalorder %s405, %s406
    %p415 = scmp.eq.s32.totalorder %s29, 0
    %p416 = por %p414, %p415
    %p417 = scmp.ne.s32.totalorder %s405, %s406
    %p418 = scmp.eq.s32.totalorder %s30, 1
    %p419 = por %p417, %p418
    %p421 = scmp.ne.s32.totalorder %s406, %s420
    %p422 = scmp.eq.s32.totalorder %s30, 0
    %p423 = por %p421, %p422
    %s425 = sadd.s32 %s424, 1
    %p428 = scmp.eq.s32.totalorder %s24, 1
    %p429 = scmp.ne.s32.totalorder %s424, %s426
    %p430 = scmp.eq.s32.totalorder %s24, 0
    %p431 = por %p429, %p430
    %p432 = scmp.ne.s32.totalorder %s424, %s426
    %p433 = scmp.eq.s32.totalorder %s29, 1
    %p434 = por %p432, %p433
    %p435 = scmp.ne.s32.totalorder %s426, %s427
    %p436 = scmp.eq.s32.totalorder %s29, 0
    %p437 = por %p435, %p436
    %p438 = scmp.ne.s32.totalorder %s426, %s427
    %p439 = scmp.eq.s32.totalorder %s30, 1
    %p440 = por %p438, %p439
    %p442 = scmp.ne.s32.totalorder %s427, %s441
    %p443 = scmp.eq.s32.totalorder %s30, 0
    %p444 = por %p442, %p443
    %s445 = ssub.s32 %s31, %s43
    %p446 = scmp.eq.s32.totalorder %s445, 0
    %s448 = sadd.s32 %s447, 1
    %s449 = scalar_select %p446, %s447, %s448
    %p452 = pneg %p446
    %p453 = scmp.eq.s32.totalorder %s24, 1
    %p454 = por %p452, %p453
    %p455 = scmp.ne.s32.totalorder %s447, %s450
    %p456 = scmp.eq.s32.totalorder %s24, 0
    %p457 = por %p455, %p456
    %p458 = scmp.ne.s32.totalorder %s447, %s450
    %p459 = scmp.eq.s32.totalorder %s29, 1
    %p460 = por %p458, %p459
    %p461 = scmp.ne.s32.totalorder %s450, %s451
    %p462 = scmp.eq.s32.totalorder %s29, 0
    %p463 = por %p461, %p462
    %p464 = scmp.ne.s32.totalorder %s450, %s451
    %p465 = scmp.eq.s32.totalorder %s30, 1
    %p466 = por %p464, %p465
    %p468 = scmp.ne.s32.totalorder %s451, %s467
    %p469 = scmp.eq.s32.totalorder %s30, 0
    %p470 = por %p468, %p469
    %s471 = ssub.s32 %s31, %s43
    %p472 = scmp.eq.s32.totalorder %s471, 0
    %s474 = sadd.s32 %s473, 1
    %s475 = scalar_select %p472, %s473, %s474
    %p478 = pneg %p472
    %p479 = scmp.eq.s32.totalorder %s24, 1
    %p480 = por %p478, %p479
    %p481 = scmp.ne.s32.totalorder %s473, %s476
    %p482 = scmp.eq.s32.totalorder %s24, 0
    %p483 = por %p481, %p482
    %p484 = scmp.ne.s32.totalorder %s473, %s476
    %p485 = scmp.eq.s32.totalorder %s29, 1
    %p486 = por %p484, %p485
    %p487 = scmp.ne.s32.totalorder %s476, %s477
    %p488 = scmp.eq.s32.totalorder %s29, 0
    %p489 = por %p487, %p488
    %p490 = scmp.ne.s32.totalorder %s476, %s477
    %p491 = scmp.eq.s32.totalorder %s30, 1
    %p492 = por %p490, %p491
    %p494 = scmp.ne.s32.totalorder %s477, %s493
    %p495 = scmp.eq.s32.totalorder %s30, 0
    %p496 = por %p494, %p495
    %p497 = scmp.le.s32.totalorder 1, %s24
    %p498 = scmp.lt.s32.totalorder %s24, 3
    %p499 = pnand %p497, %p498
    %p500 = pneg %p499
    // Predicated region
    $region9: #{clip_text_forward.1} parent=5 // pred_check
      _
    $region10: #{clip_text_forward.1} parent=5 // pred_check_branch
      %502 = sbr.rel (%p499) target = $region12
    $region11: #{clip_text_forward.1} parent=5 // pred_region
      %s503 = ssub.s32 %s24, 1
      // Predicated region
      $region13: #{clip_text_forward.1} parent=11 // pred_check
        %p504 = pneg %p62
      $region14: #{clip_text_forward.1} parent=11 // pred_check_branch
        %506 = sbr.rel (%p504) target = $region16
      $region15: #{clip_text_forward.1} parent=11 // pred_region
        %s507 = smul.u32 2, %s33
        %p508 = scmp.lt.s32.totalorder %s507, 1
        %s509 = scalar_select %p508, %s507, 1
        %s510 = smul.addr %s509, 10
        %s511 = smul.addr %s510, 8
        %s512 = scalar_lea.vmem %s0, %s511
        %s513 = smul.u32 2, %s33
      $region16: #{clip_text_forward.1} parent=11 // pred_fallthru
        _
      // Predicated region
      $region17: #{clip_text_forward.1} parent=11 // pred_check
        %p514 = pneg %p83
      $region18: #{clip_text_forward.1} parent=11 // pred_check_branch
        %516 = sbr.rel (%p514) target = $region20
      $region19: #{clip_text_forward.1} parent=11 // pred_region
        _
      $region20: #{clip_text_forward.1} parent=11 // pred_fallthru
        _
      // Predicated region
      $region21: #{clip_text_forward.1} parent=11 // pred_check
        %p517 = pneg %p416
      $region22: #{clip_text_forward.1} parent=11 // pred_check_branch
        %519 = sbr.rel (%p517) target = $region24
      $region23: #{clip_text_forward.1} parent=11 // pred_region
        _
      $region24: #{clip_text_forward.1} parent=11 // pred_fallthru
        _
      // Predicated region
      $region25: #{clip_text_forward.1} parent=11 // pred_check
        %p520 = pneg %p437
      $region26: #{clip_text_forward.1} parent=11 // pred_check_branch
        %522 = sbr.rel (%p520) target = $region28
      $region27: #{clip_text_forward.1} parent=11 // pred_region
        _
      $region28: #{clip_text_forward.1} parent=11 // pred_fallthru
        _
    $region12: #{clip_text_forward.1} parent=5 // pred_fallthru
      _
    %p523 = scmp.lt.s32.totalorder %s24, 2
    // Predicated region
    $region29: #{clip_text_forward.1} parent=5 // pred_check
      %p524 = pneg %p523
    $region30: #{clip_text_forward.1} parent=5 // pred_check_branch
      %526 = sbr.rel (%p524) target = $region32
    $region31: #{clip_text_forward.1} parent=5 // pred_region
      // Predicated region
      $region33: #{clip_text_forward.1} parent=31 // pred_check
        %p527 = pneg %p103
      $region34: #{clip_text_forward.1} parent=31 // pred_check_branch
        %529 = sbr.rel (%p527) target = $region36
      $region35: #{clip_text_forward.1} parent=31 // pred_region
        %p530 = scmp.lt.s32.totalorder %s32, 1
        %s531 = scalar_select %p530, %s32, 1
        %s532 = scalar_lea.vmem %s2, %s531
      $region36: #{clip_text_forward.1} parent=31 // pred_fallthru
        _
      // Predicated region
      $region37: #{clip_text_forward.1} parent=31 // pred_check
        %p533 = pneg %p129
      $region38: #{clip_text_forward.1} parent=31 // pred_check_branch
        %535 = sbr.rel (%p533) target = $region40
      $region39: #{clip_text_forward.1} parent=31 // pred_region
        %p536 = scmp.lt.s32.totalorder %s32, 1
        %s537 = scalar_select %p536, %s32, 1
        %s538 = scalar_lea.vmem %s3, %s537
      $region40: #{clip_text_forward.1} parent=31 // pred_fallthru
        _
      // Predicated region
      $region41: #{clip_text_forward.1} parent=31 // pred_check
        %p539 = pneg %p155
      $region42: #{clip_text_forward.1} parent=31 // pred_check_branch
        %541 = sbr.rel (%p539) target = $region44
      $region43: #{clip_text_forward.1} parent=31 // pred_region
        %p542 = scmp.lt.s32.totalorder %s32, 1
        %s543 = scalar_select %p542, %s32, 1
        %s544 = smul.addr %s543, 4
        %s545 = smul.addr %s544, 4
        %s546 = scalar_lea.vmem %s4, %s545
      $region44: #{clip_text_forward.1} parent=31 // pred_fallthru
        _
      // Predicated region
      $region45: #{clip_text_forward.1} parent=31 // pred_check
        %p547 = pneg %p181
      $region46: #{clip_text_forward.1} parent=31 // pred_check_branch
        %549 = sbr.rel (%p547) target = $region48
      $region47: #{clip_text_forward.1} parent=31 // pred_region
        %p550 = scmp.lt.s32.totalorder %s32, 1
        %s551 = scalar_select %p550, %s32, 1
        %s552 = scalar_lea.vmem %s5, %s551
      $region48: #{clip_text_forward.1} parent=31 // pred_fallthru
        _
      // Predicated region
      $region49: #{clip_text_forward.1} parent=31 // pred_check
        %p553 = pneg %p207
      $region50: #{clip_text_forward.1} parent=31 // pred_check_branch
        %555 = sbr.rel (%p553) target = $region52
      $region51: #{clip_text_forward.1} parent=31 // pred_region
        %p556 = scmp.lt.s32.totalorder %s32, 1
        %s557 = scalar_select %p556, %s32, 1
        %s558 = smul.addr %s557, 4
        %s559 = smul.addr %s558, 4
        %s560 = scalar_lea.vmem %s6, %s559
      $region52: #{clip_text_forward.1} parent=31 // pred_fallthru
        _
      // Predicated region
      $region53: #{clip_text_forward.1} parent=31 // pred_check
        %p561 = pneg %p233
      $region54: #{clip_text_forward.1} parent=31 // pred_check_branch
        %563 = sbr.rel (%p561) target = $region56
      $region55: #{clip_text_forward.1} parent=31 // pred_region
        %p564 = scmp.lt.s32.totalorder %s32, 1
        %s565 = scalar_select %p564, %s32, 1
        %s566 = scalar_lea.vmem %s7, %s565
      $region56: #{clip_text_forward.1} parent=31 // pred_fallthru
        _
      // Predicated region
      $region57: #{clip_text_forward.1} parent=31 // pred_check
        %p567 = pneg %p259
      $region58: #{clip_text_forward.1} parent=31 // pred_check_branch
        %569 = sbr.rel (%p567) target = $region60
      $region59: #{clip_text_forward.1} parent=31 // pred_region
        %p570 = scmp.lt.s32.totalorder %s32, 1
        %s571 = scalar_select %p570, %s32, 1
        %s572 = scalar_lea.vmem %s8, %s571
      $region60: #{clip_text_forward.1} parent=31 // pred_fallthru
        _
      // Predicated region
      $region61: #{clip_text_forward.1} parent=31 // pred_check
        %p573 = pneg %p285
      $region62: #{clip_text_forward.1} parent=31 // pred_check_branch
        %575 = sbr.rel (%p573) target = $region64
      $region63: #{clip_text_forward.1} parent=31 // pred_region
        %p576 = scmp.lt.s32.totalorder %s32, 1
        %s577 = scalar_select %p576, %s32, 1
        %s578 = scalar_lea.vmem %s9, %s577
      $region64: #{clip_text_forward.1} parent=31 // pred_fallthru
        _
      // Predicated region
      $region65: #{clip_text_forward.1} parent=31 // pred_check
        %p579 = pneg %p311
      $region66: #{clip_text_forward.1} parent=31 // pred_check_branch
        %581 = sbr.rel (%p579) target = $region68
      $region67: #{clip_text_forward.1} parent=31 // pred_region
        %p582 = scmp.lt.s32.totalorder %s32, 1
        %s583 = scalar_select %p582, %s32, 1
        %s584 = smul.addr %s583, 4
        %s585 = smul.addr %s584, 4
        %s586 = scalar_lea.vmem %s10, %s585
      $region68: #{clip_text_forward.1} parent=31 // pred_fallthru
        _
      // Predicated region
      $region69: #{clip_text_forward.1} parent=31 // pred_check
        %p587 = pneg %p337
      $region70: #{clip_text_forward.1} parent=31 // pred_check_branch
        %589 = sbr.rel (%p587) target = $region72
      $region71: #{clip_text_forward.1} parent=31 // pred_region
        %p590 = scmp.lt.s32.totalorder %s32, 1
        %s591 = scalar_select %p590, %s32, 1
        %s592 = scalar_lea.vmem %s11, %s591
      $region72: #{clip_text_forward.1} parent=31 // pred_fallthru
        _
      // Predicated region
      $region73: #{clip_text_forward.1} parent=31 // pred_check
        %p593 = pneg %p363
      $region74: #{clip_text_forward.1} parent=31 // pred_check_branch
        %595 = sbr.rel (%p593) target = $region76
      $region75: #{clip_text_forward.1} parent=31 // pred_region
        %p596 = scmp.lt.s32.totalorder %s32, 1
        %s597 = scalar_select %p596, %s32, 1
        %s598 = smul.addr %s597, 8
        %s599 = smul.addr %s598, 4
        %s600 = scalar_lea.vmem %s12, %s599
      $region76: #{clip_text_forward.1} parent=31 // pred_fallthru
        _
      // Predicated region
      $region77: #{clip_text_forward.1} parent=31 // pred_check
        %p601 = pneg %p389
      $region78: #{clip_text_forward.1} parent=31 // pred_check_branch
        %603 = sbr.rel (%p601) target = $region80
      $region79: #{clip_text_forward.1} parent=31 // pred_region
        %p604 = scmp.lt.s32.totalorder %s32, 1
        %s605 = scalar_select %p604, %s32, 1
        %s606 = scalar_lea.vmem %s13, %s605
      $region80: #{clip_text_forward.1} parent=31 // pred_fallthru
        _
    $region32: #{clip_text_forward.1} parent=5 // pred_fallthru
      _
    %p607 = scmp.le.s32.totalorder 1, %s24
    %p608 = scmp.lt.s32.totalorder %s24, 3
    %p609 = pnand %p607, %p608
    %p610 = pneg %p609
    // Predicated region
    $region81: #{clip_text_forward.1} parent=5 // pred_check
      _
    $region82: #{clip_text_forward.1} parent=5 // pred_check_branch
      %612 = sbr.rel (%p609) target = $region84
    $region83: #{clip_text_forward.1} parent=5 // pred_region
      %s613 = ssub.s32 %s24, 1
      %s614 = smul.u32 2, %s33
      %p615 = scmp.lt.s32.totalorder %s614, 1
      %s616 = scalar_select %p615, %s614, 1
      %s617 = smul.addr %s616, 10
      %s618 = smul.addr %s617, 8
      %s619 = scalar_lea.vmem %s0, %s618
      %p620 = pneg %p62
      %p621 = pneg %p59
      %p622 = pneg %p83
      %p623 = pneg %p80
      %p624 = scmp.lt.s32.totalorder %s34, 1
      %s625 = scalar_select %p624, %s34, 1
      %s626 = scalar_lea.vmem %s2, %s625
      %p627 = pneg %p109
      %p628 = pneg %p106
      %p629 = scmp.lt.s32.totalorder %s34, 1
      %s630 = scalar_select %p629, %s34, 1
      %s631 = scalar_lea.vmem %s3, %s630
      %p632 = pneg %p135
      %p633 = pneg %p132
      %p634 = scmp.lt.s32.totalorder %s34, 1
      %s635 = scalar_select %p634, %s34, 1
      %s636 = smul.addr %s635, 4
      %s637 = smul.addr %s636, 4
      %s638 = scalar_lea.vmem %s4, %s637
      %p639 = pneg %p161
      %p640 = pneg %p158
      %p641 = scmp.lt.s32.totalorder %s34, 1
      %s642 = scalar_select %p641, %s34, 1
      %s643 = scalar_lea.vmem %s5, %s642
      %p644 = pneg %p187
      %p645 = pneg %p184
      %p646 = scmp.lt.s32.totalorder %s34, 1
      %s647 = scalar_select %p646, %s34, 1
      %s648 = smul.addr %s647, 4
      %s649 = smul.addr %s648, 4
      %s650 = scalar_lea.vmem %s6, %s649
      %p651 = pneg %p213
      %p652 = pneg %p210
      %p653 = scmp.lt.s32.totalorder %s34, 1
      %s654 = scalar_select %p653, %s34, 1
      %s655 = scalar_lea.vmem %s7, %s654
      %p656 = pneg %p239
      %p657 = pneg %p236
      %p658 = scmp.lt.s32.totalorder %s34, 1
      %s659 = scalar_select %p658, %s34, 1
      %s660 = scalar_lea.vmem %s8, %s659
      %p661 = pneg %p265
      %p662 = pneg %p262
      %p663 = scmp.lt.s32.totalorder %s34, 1
      %s664 = scalar_select %p663, %s34, 1
      %s665 = scalar_lea.vmem %s9, %s664
      %p666 = pneg %p291
      %p667 = pneg %p288
      %p668 = scmp.lt.s32.totalorder %s34, 1
      %s669 = scalar_select %p668, %s34, 1
      %s670 = smul.addr %s669, 4
      %s671 = smul.addr %s670, 4
      %s672 = scalar_lea.vmem %s10, %s671
      %p673 = pneg %p317
      %p674 = pneg %p314
      %p675 = scmp.lt.s32.totalorder %s34, 1
      %s676 = scalar_select %p675, %s34, 1
      %s677 = scalar_lea.vmem %s11, %s676
      %p678 = pneg %p343
      %p679 = pneg %p340
      %p680 = scmp.lt.s32.totalorder %s34, 1
      %s681 = scalar_select %p680, %s34, 1
      %s682 = smul.addr %s681, 8
      %s683 = smul.addr %s682, 4
      %s684 = scalar_lea.vmem %s12, %s683
      %p685 = pneg %p369
      %p686 = pneg %p366
      %p687 = scmp.lt.s32.totalorder %s34, 1
      %s688 = scalar_select %p687, %s34, 1
      %s689 = scalar_lea.vmem %s13, %s688
      %p690 = pneg %p395
      %p691 = pneg %p392
      %p692 = pneg %p416
      %p693 = pneg %p413
      %p694 = pneg %p437
      %p695 = pneg %p434
      %p696 = pneg %p463
      %p697 = pneg %p460
      %s698 = smul.u32 2, %s33
      %p699 = scmp.lt.s32.totalorder %s698, 1
      %s700 = scalar_select %p699, %s698, 1
      %s701 = smul.addr %s700, 10
      %s702 = smul.addr %s701, 8
      %s703 = scalar_lea.vmem %s16, %s702
      %p704 = pneg %p489
      %p705 = pneg %p486
      %s706 = smul.u32 2, %s33
      %p707 = scmp.lt.s32.totalorder %s706, 1
      %s708 = scalar_select %p707, %s706, 1
      %s709 = smul.addr %s708, 10
      %s710 = smul.addr %s709, 8
      %s711 = scalar_lea.vmem %s17, %s710
      %s712 = smul.u32 2, %s33
      %p713 = scmp.lt.s32.totalorder %s712, 1
      %s714 = scalar_select %p713, %s712, 1
      %s715 = smul.addr %s714, 10
      %s716 = smul.addr %s715, 8
      %s717 = scalar_lea.vmem %s0, %s716
      %s718 = smul.u32 2, %s33
      %p719 = scmp.lt.s32.totalorder %s34, 1
      %s720 = scalar_select %p719, %s34, 1
      %s721 = scalar_lea.vmem %s2, %s720
      %p722 = scmp.lt.s32.totalorder %s34, 1
      %s723 = scalar_select %p722, %s34, 1
      %s724 = scalar_lea.vmem %s3, %s723
      %p725 = scmp.lt.s32.totalorder %s34, 1
      %s726 = scalar_select %p725, %s34, 1
      %s727 = smul.addr %s726, 4
      %s728 = smul.addr %s727, 4
      %s729 = scalar_lea.vmem %s4, %s728
      %p730 = scmp.lt.s32.totalorder %s34, 1
      %s731 = scalar_select %p730, %s34, 1
      %s732 = scalar_lea.vmem %s5, %s731
      %p733 = scmp.lt.s32.totalorder %s34, 1
      %s734 = scalar_select %p733, %s34, 1
      %s735 = smul.addr %s734, 4
      %s736 = smul.addr %s735, 4
      %s737 = scalar_lea.vmem %s6, %s736
      %p738 = scmp.lt.s32.totalorder %s34, 1
      %s739 = scalar_select %p738, %s34, 1
      %s740 = scalar_lea.vmem %s7, %s739
      %p741 = scmp.lt.s32.totalorder %s34, 1
      %s742 = scalar_select %p741, %s34, 1
      %s743 = scalar_lea.vmem %s8, %s742
      %p744 = scmp.lt.s32.totalorder %s34, 1
      %s745 = scalar_select %p744, %s34, 1
      %s746 = scalar_lea.vmem %s9, %s745
      %p747 = scmp.lt.s32.totalorder %s34, 1
      %s748 = scalar_select %p747, %s34, 1
      %s749 = smul.addr %s748, 4
      %s750 = smul.addr %s749, 4
      %s751 = scalar_lea.vmem %s10, %s750
      %p752 = scmp.lt.s32.totalorder %s34, 1
      %s753 = scalar_select %p752, %s34, 1
      %s754 = scalar_lea.vmem %s11, %s753
      %p755 = scmp.lt.s32.totalorder %s34, 1
      %s756 = scalar_select %p755, %s34, 1
      %s757 = smul.addr %s756, 8
      %s758 = smul.addr %s757, 4
      %s759 = scalar_lea.vmem %s12, %s758
      %p760 = scmp.lt.s32.totalorder %s34, 1
      %s761 = scalar_select %p760, %s34, 1
      %s762 = scalar_lea.vmem %s13, %s761
      %s763 = smul.u32 2, %s33
      %p764 = scmp.lt.s32.totalorder %s763, 1
      %s765 = scalar_select %p764, %s763, 1
      %s766 = smul.addr %s765, 10
      %s767 = smul.addr %s766, 8
      %s768 = scalar_lea.vmem %s16, %s767
      %s769 = smul.u32 2, %s33
      %s770 = smul.u32 2, %s33
      %p771 = scmp.lt.s32.totalorder %s770, 1
      %s772 = scalar_select %p771, %s770, 1
      %s773 = smul.addr %s772, 10
      %s774 = smul.addr %s773, 8
      %s775 = scalar_lea.vmem %s17, %s774
      %s776 = smul.u32 2, %s33
      %p778 = scmp.eq.s32.totalorder %s34, 0
      // Predicated region
      $region85: #{clip_text_forward.1} parent=83 // pred_check
        %p779 = pneg %p778
      $region86: #{clip_text_forward.1} parent=83 // pred_check_branch
        %781 = sbr.rel (%p779) target = $region88
      $region87: #{clip_text_forward.1} parent=83 // pred_region
        %v782 = vld [vmem:[%s717] sm:$0xff]
        %v783 = vld [vmem:[%s717 + $0x8] sm:$0xff]
        %v784 = vld [vmem:[%s717 + $0x10] sm:$0xff]
        %v785 = vld [vmem:[%s717 + $0x18] sm:$0xff]
        %v786 = vld [vmem:[%s717 + $0x20] sm:$0xff]
        %v787 = vld [vmem:[%s717 + $0x28] sm:$0xff]
        %v788 = vld [vmem:[%s717 + $0x30] sm:$0xff]
        %v789 = vld [vmem:[%s717 + $0x38] sm:$0xff]
        %v790 = vld [vmem:[%s717 + $0x40] sm:$0xff]
        %v791 = vld [vmem:[%s717 + $0x48] sm:$0xff]
        %v792 = vld [vmem:[%s717 + $0x50] sm:$0xff]
        %v793 = vld [vmem:[%s717 + $0x58] sm:$0xff]
        %v794 = vld [vmem:[%s717 + $0x60] sm:$0xff]
        %v795 = vld [vmem:[%s717 + $0x68] sm:$0xff]
        %v796 = vld [vmem:[%s717 + $0x70] sm:$0xff]
        %v797 = vld [vmem:[%s717 + $0x78] sm:$0xff]
        %v798 = vld [vmem:[%s717 + $0x80] sm:$0xff]
        %v799 = vld [vmem:[%s717 + $0x88] sm:$0xff]
        %v800 = vld [vmem:[%s717 + $0x90] sm:$0xff]
        %v801 = vld [vmem:[%s717 + $0x98] sm:$0xff]
        %vm802 = vcmask 261120
        %803 = vst.msk [vmem:[#allocation2] sm:$0xff] %vm802, %v782
        %804 = vst.msk [vmem:[#allocation2 + $0x8] sm:$0xff] %vm802, %v783
        %805 = vst.msk [vmem:[#allocation2 + $0x10] sm:$0xff] %vm802, %v784
        %806 = vst.msk [vmem:[#allocation2 + $0x18] sm:$0xff] %vm802, %v785
        %807 = vst.msk [vmem:[#allocation2 + $0x20] sm:$0xff] %vm802, %v786
        %808 = vst.msk [vmem:[#allocation2 + $0x28] sm:$0xff] %vm802, %v787
        %809 = vst.msk [vmem:[#allocation2 + $0x30] sm:$0xff] %vm802, %v788
        %810 = vst.msk [vmem:[#allocation2 + $0x38] sm:$0xff] %vm802, %v789
        %811 = vst.msk [vmem:[#allocation2 + $0x40] sm:$0xff] %vm802, %v790
        %812 = vst.msk [vmem:[#allocation2 + $0x48] sm:$0xff] %vm802, %v791
        %813 = vst.msk [vmem:[#allocation2 + $0x50] sm:$0xff] %vm802, %v792
        %814 = vst.msk [vmem:[#allocation2 + $0x58] sm:$0xff] %vm802, %v793
        %815 = vst.msk [vmem:[#allocation2 + $0x60] sm:$0xff] %vm802, %v794
        %816 = vst.msk [vmem:[#allocation2 + $0x68] sm:$0xff] %vm802, %v795
        %817 = vst.msk [vmem:[#allocation2 + $0x70] sm:$0xff] %vm802, %v796
        %818 = vst.msk [vmem:[#allocation2 + $0x78] sm:$0xff] %vm802, %v797
        %819 = vst.msk [vmem:[#allocation2 + $0x80] sm:$0xff] %vm802, %v798
        %820 = vst.msk [vmem:[#allocation2 + $0x88] sm:$0xff] %vm802, %v799
        %821 = vst.msk [vmem:[#allocation2 + $0x90] sm:$0xff] %vm802, %v800
        %822 = vst.msk [vmem:[#allocation2 + $0x98] sm:$0xff] %vm802, %v801
      $region88: #{clip_text_forward.1} parent=83 // pred_fallthru
        _
      %v823 = vld [vmem:[#allocation2] sm:$0xff]
      %v824 = vld [vmem:[#allocation2 + $0x8] sm:$0xff]
      %v825 = vld [vmem:[#allocation2 + $0x10] sm:$0xff]
      %v826 = vld [vmem:[#allocation2 + $0x18] sm:$0xff]
      %v827 = vld [vmem:[#allocation2 + $0x20] sm:$0xff]
      %v828 = vld [vmem:[#allocation2 + $0x28] sm:$0xff]
      %v829 = vld [vmem:[#allocation2 + $0x30] sm:$0xff]
      %v830 = vld [vmem:[#allocation2 + $0x38] sm:$0xff]
      %v831 = vld [vmem:[#allocation2 + $0x40] sm:$0xff]
      %v832 = vld [vmem:[#allocation2 + $0x48] sm:$0xff]
      %v833 = vld [vmem:[#allocation2 + $0x50] sm:$0xff]
      %v834 = vld [vmem:[#allocation2 + $0x58] sm:$0xff]
      %v835 = vld [vmem:[#allocation2 + $0x60] sm:$0xff]
      %v836 = vld [vmem:[#allocation2 + $0x68] sm:$0xff]
      %v837 = vld [vmem:[#allocation2 + $0x70] sm:$0xff]
      %v838 = vld [vmem:[#allocation2 + $0x78] sm:$0xff]
      %v839 = vld [vmem:[#allocation2 + $0x80] sm:$0xff]
      %v840 = vld [vmem:[#allocation2 + $0x88] sm:$0xff]
      %v841 = vld [vmem:[#allocation2 + $0x90] sm:$0xff]
      %v842 = vld [vmem:[#allocation2 + $0x98] sm:$0xff]
      %v843 = vld [vmem:[%s1] sm:$0xff]
      %v844 = vld [vmem:[%s1 + $0x8] sm:$0xff]
      %v845 = vld [vmem:[%s1 + $0x10] sm:$0xff]
      %v846 = vld [vmem:[%s1 + $0x18] sm:$0xff]
      %v847 = vld [vmem:[%s1 + $0x20] sm:$0xff]
      %v848 = vld [vmem:[%s1 + $0x28] sm:$0xff]
      %v849 = vld [vmem:[%s1 + $0x30] sm:$0xff]
      %v850 = vld [vmem:[%s1 + $0x38] sm:$0xff]
      %v851 = vld [vmem:[%s1 + $0x40] sm:$0xff]
      %v852 = vld [vmem:[%s1 + $0x48] sm:$0xff]
      %v853 = vld [vmem:[%s721] sm:$0x1]
      %v854 = vld [vmem:[%s724] sm:$0x1]
      %vm855 = vcmask 261120
      %v856 = vsel %vm855, %v823, 0.0
      %857 = vadd.xlane.f32.xlu0 %v856
      %v858 = vpop.xlane.xlu0 %857
      %v859 = vsel %vm855, %v824, 0.0
      %860 = vadd.xlane.f32.xlu0 %v859
      %v861 = vpop.xlane.xlu0 %860
      %v862 = vsel %vm855, %v825, 0.0
      %863 = vadd.xlane.f32.xlu0 %v862
      %v864 = vpop.xlane.xlu0 %863
      %v865 = vsel %vm855, %v826, 0.0
      %866 = vadd.xlane.f32.xlu0 %v865
      %v867 = vpop.xlane.xlu0 %866
      %v868 = vsel %vm855, %v827, 0.0
      %869 = vadd.xlane.f32.xlu0 %v868
      %v870 = vpop.xlane.xlu0 %869
      %v871 = vsel %vm855, %v828, 0.0
      %872 = vadd.xlane.f32.xlu0 %v871
      %v873 = vpop.xlane.xlu0 %872
      %v874 = vsel %vm855, %v829, 0.0
      %875 = vadd.xlane.f32.xlu0 %v874
      %v876 = vpop.xlane.xlu0 %875
      %v877 = vsel %vm855, %v830, 0.0
      %878 = vadd.xlane.f32.xlu0 %v877
      %v879 = vpop.xlane.xlu0 %878
      %v880 = vsel %vm855, %v831, 0.0
      %881 = vadd.xlane.f32.xlu0 %v880
      %v882 = vpop.xlane.xlu0 %881
      %v883 = vsel %vm855, %v832, 0.0
      %884 = vadd.xlane.f32.xlu0 %v883
      %v885 = vpop.xlane.xlu0 %884
      %v886 = vsel %vm855, %v833, 0.0
      %887 = vadd.xlane.f32.xlu0 %v886
      %v888 = vpop.xlane.xlu0 %887
      %v889 = vsel %vm855, %v834, 0.0
      %890 = vadd.xlane.f32.xlu0 %v889
      %v891 = vpop.xlane.xlu0 %890
      %v892 = vsel %vm855, %v835, 0.0
      %893 = vadd.xlane.f32.xlu0 %v892
      %v894 = vpop.xlane.xlu0 %893
      %v895 = vsel %vm855, %v836, 0.0
      %896 = vadd.xlane.f32.xlu0 %v895
      %v897 = vpop.xlane.xlu0 %896
      %v898 = vsel %vm855, %v837, 0.0
      %899 = vadd.xlane.f32.xlu0 %v898
      %v900 = vpop.xlane.xlu0 %899
      %v901 = vsel %vm855, %v838, 0.0
      %902 = vadd.xlane.f32.xlu0 %v901
      %v903 = vpop.xlane.xlu0 %902
      %v904 = vsel %vm855, %v839, 0.0
      %905 = vadd.xlane.f32.xlu0 %v904
      %v906 = vpop.xlane.xlu0 %905
      %v907 = vsel %vm855, %v840, 0.0
      %908 = vadd.xlane.f32.xlu0 %v907
      %v909 = vpop.xlane.xlu0 %908
      %v910 = vsel %vm855, %v841, 0.0
      %911 = vadd.xlane.f32.xlu0 %v910
      %v912 = vpop.xlane.xlu0 %911
      %v913 = vsel %vm855, %v842, 0.0
      %914 = vadd.xlane.f32.xlu0 %v913
      %v915 = vpop.xlane.xlu0 %914
      %v916 = vrcp.pop 32.0
      %v917 = vmul.f32 %v858, %v916
      %v918 = vmul.f32 %v861, %v916
      %v919 = vmul.f32 %v864, %v916
      %v920 = vmul.f32 %v867, %v916
      %v921 = vmul.f32 %v870, %v916
      %v922 = vmul.f32 %v873, %v916
      %v923 = vmul.f32 %v876, %v916
      %v924 = vmul.f32 %v879, %v916
      %v925 = vmul.f32 %v882, %v916
      %v926 = vmul.f32 %v885, %v916
      %v927 = vmul.f32 %v888, %v916
      %v928 = vmul.f32 %v891, %v916
      %v929 = vmul.f32 %v894, %v916
      %v930 = vmul.f32 %v897, %v916
      %v931 = vmul.f32 %v900, %v916
      %v932 = vmul.f32 %v903, %v916
      %v933 = vmul.f32 %v906, %v916
      %v934 = vmul.f32 %v909, %v916
      %v935 = vmul.f32 %v912, %v916
      %v936 = vmul.f32 %v915, %v916
      %v937 = vsub.f32 %v823, %v917
      %v938 = vsub.f32 %v824, %v918
      %v939 = vsub.f32 %v825, %v919
      %v940 = vsub.f32 %v826, %v920
      %v941 = vsub.f32 %v827, %v921
      %v942 = vsub.f32 %v828, %v922
      %v943 = vsub.f32 %v829, %v923
      %v944 = vsub.f32 %v830, %v924
      %v945 = vsub.f32 %v831, %v925
      %v946 = vsub.f32 %v832, %v926
      %v947 = vsub.f32 %v833, %v927
      %v948 = vsub.f32 %v834, %v928
      %v949 = vsub.f32 %v835, %v929
      %v950 = vsub.f32 %v836, %v930
      %v951 = vsub.f32 %v837, %v931
      %v952 = vsub.f32 %v838, %v932
      %v953 = vsub.f32 %v839, %v933
      %v954 = vsub.f32 %v840, %v934
      %v955 = vsub.f32 %v841, %v935
      %v956 = vsub.f32 %v842, %v936
      %v957 = vmul.f32 %v937, %v937
      %v958 = vmul.f32 %v938, %v938
      %v959 = vmul.f32 %v939, %v939
      %v960 = vmul.f32 %v940, %v940
      %v961 = vmul.f32 %v941, %v941
      %v962 = vmul.f32 %v942, %v942
      %v963 = vmul.f32 %v943, %v943
      %v964 = vmul.f32 %v944, %v944
      %v965 = vmul.f32 %v945, %v945
      %v966 = vmul.f32 %v946, %v946
      %v967 = vmul.f32 %v947, %v947
      %v968 = vmul.f32 %v948, %v948
      %v969 = vmul.f32 %v949, %v949
      %v970 = vmul.f32 %v950, %v950
      %v971 = vmul.f32 %v951, %v951
      %v972 = vmul.f32 %v952, %v952
      %v973 = vmul.f32 %v953, %v953
      %v974 = vmul.f32 %v954, %v954
      %v975 = vmul.f32 %v955, %v955
      %v976 = vmul.f32 %v956, %v956
      %v977 = vsel %vm855, %v957, 0.0
      %978 = vadd.xlane.f32.xlu0 %v977
      %v979 = vpop.xlane.xlu0 %978
      %v980 = vsel %vm855, %v958, 0.0
      %981 = vadd.xlane.f32.xlu0 %v980
      %v982 = vpop.xlane.xlu0 %981
      %v983 = vsel %vm855, %v959, 0.0
      %984 = vadd.xlane.f32.xlu0 %v983
      %v985 = vpop.xlane.xlu0 %984
      %v986 = vsel %vm855, %v960, 0.0
      %987 = vadd.xlane.f32.xlu0 %v986
      %v988 = vpop.xlane.xlu0 %987
      %v989 = vsel %vm855, %v961, 0.0
      %990 = vadd.xlane.f32.xlu0 %v989
      %v991 = vpop.xlane.xlu0 %990
      %v992 = vsel %vm855, %v962, 0.0
      %993 = vadd.xlane.f32.xlu0 %v992
      %v994 = vpop.xlane.xlu0 %993
      %v995 = vsel %vm855, %v963, 0.0
      %996 = vadd.xlane.f32.xlu0 %v995
      %v997 = vpop.xlane.xlu0 %996
      %v998 = vsel %vm855, %v964, 0.0
      %999 = vadd.xlane.f32.xlu0 %v998
      %v1000 = vpop.xlane.xlu0 %999
      %v1001 = vsel %vm855, %v965, 0.0
      %1002 = vadd.xlane.f32.xlu0 %v1001
      %v1003 = vpop.xlane.xlu0 %1002
      %v1004 = vsel %vm855, %v966, 0.0
      %1005 = vadd.xlane.f32.xlu0 %v1004
      %v1006 = vpop.xlane.xlu0 %1005
      %v1007 = vsel %vm855, %v967, 0.0
      %1008 = vadd.xlane.f32.xlu0 %v1007
      %v1009 = vpop.xlane.xlu0 %1008
      %v1010 = vsel %vm855, %v968, 0.0
      %1011 = vadd.xlane.f32.xlu0 %v1010
      %v1012 = vpop.xlane.xlu0 %1011
      %v1013 = vsel %vm855, %v969, 0.0
      %1014 = vadd.xlane.f32.xlu0 %v1013
      %v1015 = vpop.xlane.xlu0 %1014
      %v1016 = vsel %vm855, %v970, 0.0
      %1017 = vadd.xlane.f32.xlu0 %v1016
      %v1018 = vpop.xlane.xlu0 %1017
      %v1019 = vsel %vm855, %v971, 0.0
      %1020 = vadd.xlane.f32.xlu0 %v1019
      %v1021 = vpop.xlane.xlu0 %1020
      %v1022 = vsel %vm855, %v972, 0.0
      %1023 = vadd.xlane.f32.xlu0 %v1022
      %v1024 = vpop.xlane.xlu0 %1023
      %v1025 = vsel %vm855, %v973, 0.0
      %1026 = vadd.xlane.f32.xlu0 %v1025
      %v1027 = vpop.xlane.xlu0 %1026
      %v1028 = vsel %vm855, %v974, 0.0
      %1029 = vadd.xlane.f32.xlu0 %v1028
      %v1030 = vpop.xlane.xlu0 %1029
      %v1031 = vsel %vm855, %v975, 0.0
      %1032 = vadd.xlane.f32.xlu0 %v1031
      %v1033 = vpop.xlane.xlu0 %1032
      %v1034 = vsel %vm855, %v976, 0.0
      %1035 = vadd.xlane.f32.xlu0 %v1034
      %v1036 = vpop.xlane.xlu0 %1035
      %v1037 = vmul.f32 %v979, %v916
      %v1038 = vmul.f32 %v982, %v916
      %v1039 = vmul.f32 %v985, %v916
      %v1040 = vmul.f32 %v988, %v916
      %v1041 = vmul.f32 %v991, %v916
      %v1042 = vmul.f32 %v994, %v916
      %v1043 = vmul.f32 %v997, %v916
      %v1044 = vmul.f32 %v1000, %v916
      %v1045 = vmul.f32 %v1003, %v916
      %v1046 = vmul.f32 %v1006, %v916
      %v1047 = vmul.f32 %v1009, %v916
      %v1048 = vmul.f32 %v1012, %v916
      %v1049 = vmul.f32 %v1015, %v916
      %v1050 = vmul.f32 %v1018, %v916
      %v1051 = vmul.f32 %v1021, %v916
      %v1052 = vmul.f32 %v1024, %v916
      %v1053 = vmul.f32 %v1027, %v916
      %v1054 = vmul.f32 %v1030, %v916
      %v1055 = vmul.f32 %v1033, %v916
      %v1056 = vmul.f32 %v1036, %v916
      %v1057 = vadd.f32 %v1037, 1e-05
      %v1058 = vadd.f32 %v1038, 1e-05
      %v1059 = vadd.f32 %v1039, 1e-05
      %v1060 = vadd.f32 %v1040, 1e-05
      %v1061 = vadd.f32 %v1041, 1e-05
      %v1062 = vadd.f32 %v1042, 1e-05
      %v1063 = vadd.f32 %v1043, 1e-05
      %v1064 = vadd.f32 %v1044, 1e-05
      %v1065 = vadd.f32 %v1045, 1e-05
      %v1066 = vadd.f32 %v1046, 1e-05
      %v1067 = vadd.f32 %v1047, 1e-05
      %v1068 = vadd.f32 %v1048, 1e-05
      %v1069 = vadd.f32 %v1049, 1e-05
      %v1070 = vadd.f32 %v1050, 1e-05
      %v1071 = vadd.f32 %v1051, 1e-05
      %v1072 = vadd.f32 %v1052, 1e-05
      %v1073 = vadd.f32 %v1053, 1e-05
      %v1074 = vadd.f32 %v1054, 1e-05
      %v1075 = vadd.f32 %v1055, 1e-05
      %v1076 = vadd.f32 %v1056, 1e-05
      %v1077 = vrsqrt.pop %v1057
      %v1078 = vrsqrt.pop %v1058
      %v1079 = vrsqrt.pop %v1059
      %v1080 = vrsqrt.pop %v1060
      %v1081 = vrsqrt.pop %v1061
      %v1082 = vrsqrt.pop %v1062
      %v1083 = vrsqrt.pop %v1063
      %v1084 = vrsqrt.pop %v1064
      %v1085 = vrsqrt.pop %v1065
      %v1086 = vrsqrt.pop %v1066
      %v1087 = vrsqrt.pop %v1067
      %v1088 = vrsqrt.pop %v1068
      %v1089 = vrsqrt.pop %v1069
      %v1090 = vrsqrt.pop %v1070
      %v1091 = vrsqrt.pop %v1071
      %v1092 = vrsqrt.pop %v1072
      %v1093 = vrsqrt.pop %v1073
      %v1094 = vrsqrt.pop %v1074
      %v1095 = vrsqrt.pop %v1075
      %v1096 = vrsqrt.pop %v1076
      %v1097 = vmul.f32 %v937, %v1077
      %v1098 = vmul.f32 %v938, %v1078
      %v1099 = vmul.f32 %v939, %v1079
      %v1100 = vmul.f32 %v940, %v1080
      %v1101 = vmul.f32 %v941, %v1081
      %v1102 = vmul.f32 %v942, %v1082
      %v1103 = vmul.f32 %v943, %v1083
      %v1104 = vmul.f32 %v944, %v1084
      %v1105 = vmul.f32 %v945, %v1085
      %v1106 = vmul.f32 %v946, %v1086
      %v1107 = vmul.f32 %v947, %v1087
      %v1108 = vmul.f32 %v948, %v1088
      %v1109 = vmul.f32 %v949, %v1089
      %v1110 = vmul.f32 %v950, %v1090
      %v1111 = vmul.f32 %v951, %v1091
      %v1112 = vmul.f32 %v952, %v1092
      %v1113 = vmul.f32 %v953, %v1093
      %v1114 = vmul.f32 %v954, %v1094
      %v1115 = vmul.f32 %v955, %v1095
      %v1116 = vmul.f32 %v956, %v1096
      %v1118 = vlaneseq
      %v1119 = vshrl.u32 %v1118, 7
      %v1120 = vsub.s32 0, %v1119
      %v1121 = vrot.slane %v853, %v1120
      %v1123 = vmul.f32 %v1097, %v1121
      %v1124 = vmul.f32 %v1098, %v1121
      %v1125 = vmul.f32 %v1099, %v1121
      %v1126 = vmul.f32 %v1100, %v1121
      %v1127 = vmul.f32 %v1101, %v1121
      %v1128 = vmul.f32 %v1102, %v1121
      %v1129 = vmul.f32 %v1103, %v1121
      %v1130 = vmul.f32 %v1104, %v1121
      %v1131 = vmul.f32 %v1105, %v1121
      %v1132 = vmul.f32 %v1106, %v1121
      %v1133 = vmul.f32 %v1107, %v1121
      %v1134 = vmul.f32 %v1108, %v1121
      %v1135 = vmul.f32 %v1109, %v1121
      %v1136 = vmul.f32 %v1110, %v1121
      %v1137 = vmul.f32 %v1111, %v1121
      %v1138 = vmul.f32 %v1112, %v1121
      %v1139 = vmul.f32 %v1113, %v1121
      %v1140 = vmul.f32 %v1114, %v1121
      %v1141 = vmul.f32 %v1115, %v1121
      %v1142 = vmul.f32 %v1116, %v1121
      %v1144 = vlaneseq
      %v1145 = vshrl.u32 %v1144, 7
      %v1146 = vsub.s32 0, %v1145
      %v1147 = vrot.slane %v854, %v1146
      %v1149 = vadd.f32 %v1123, %v1147
      %v1150 = vadd.f32 %v1124, %v1147
      %v1151 = vadd.f32 %v1125, %v1147
      %v1152 = vadd.f32 %v1126, %v1147
      %v1153 = vadd.f32 %v1127, %v1147
      %v1154 = vadd.f32 %v1128, %v1147
      %v1155 = vadd.f32 %v1129, %v1147
      %v1156 = vadd.f32 %v1130, %v1147
      %v1157 = vadd.f32 %v1131, %v1147
      %v1158 = vadd.f32 %v1132, %v1147
      %v1159 = vadd.f32 %v1133, %v1147
      %v1160 = vadd.f32 %v1134, %v1147
      %v1161 = vadd.f32 %v1135, %v1147
      %v1162 = vadd.f32 %v1136, %v1147
      %v1163 = vadd.f32 %v1137, %v1147
      %v1164 = vadd.f32 %v1138, %v1147
      %v1165 = vadd.f32 %v1139, %v1147
      %v1166 = vadd.f32 %v1140, %v1147
      %v1167 = vadd.f32 %v1141, %v1147
      %v1168 = vadd.f32 %v1142, %v1147
      %v1169 = vpack.c.bf16 %v1150, %v1149
      %v1170 = vpack.c.bf16 %v1152, %v1151
      %v1171 = vpack.c.bf16 %v1154, %v1153
      %v1172 = vpack.c.bf16 %v1156, %v1155
      %v1173 = vpack.c.bf16 %v1158, %v1157
      %v1174 = vpack.c.bf16 %v1160, %v1159
      %v1175 = vpack.c.bf16 %v1162, %v1161
      %v1176 = vpack.c.bf16 %v1164, %v1163
      %v1177 = vpack.c.bf16 %v1166, %v1165
      %v1178 = vpack.c.bf16 %v1168, %v1167
      %v1179 = vld [vmem:[%s729] sm:$0xf]
      %v1180 = vld [vmem:[%s729 + $0x4] sm:$0xf]
      %v1181 = vld [vmem:[%s729 + $0x8] sm:$0xf]
      %v1182 = vld [vmem:[%s729 + $0xc] sm:$0xf]
      %v1183 = vld [vmem:[%s732] sm:$0x1]
      %v1185 = vlaneseq
      %v1186 = vshrl.u32 %v1185, 7
      %v1187 = vsub.s32 0, %v1186
      %v1188 = vrot.slane %v1183, %v1187
      %v1194 = vunpack.c.l.b16 %v1179
      %v1195 = vunpack.c.l.b16 %v1180
      %v1196 = vunpack.c.l.b16 %v1181
      %v1197 = vunpack.c.l.b16 %v1182
      %v1198 = vpack.c.b16 %v1195, %v1194
      %v1199 = vpack.c.b16 %v1197, %v1196
      %v1203 = vsel %vm855, %v1169, 0
      %v1206 = vsel %vm855, %v1170, 0
      %v1209 = vsel %vm855, %v1171, 0
      %v1212 = vsel %vm855, %v1172, 0
      %v1215 = vsel %vm855, %v1173, 0
      %v1218 = vsel %vm855, %v1174, 0
      %v1221 = vsel %vm855, %v1175, 0
      %v1224 = vsel %vm855, %v1176, 0
      %v1227 = vsel %vm855, %v1177, 0
      %v1230 = vsel %vm855, %v1178, 0
      %1232 = vmatprep.subr.bf16.mxu0 0
      %1233 = vmatpush1.bf16.msra.mxu0 %v1198
      %1234 = vmatprep.subr.bf16.mxu0 0
      %1235 = vmatpush1.bf16.msra.mxu0 %v1199
      %1236 = vmatprep.subr.bf16.mxu0 0
      %1237 = vmatpush1.bf16.msra.mxu0 0
      %1238 = vmatprep.subr.bf16.mxu0 0
      %1239 = vmatpush1.bf16.msra.mxu0 0
      %1240 = vmatprep.subr.bf16.mxu0 0
      %1241 = vmatpush1.bf16.msra.mxu0 0
      %1242 = vmatprep.subr.bf16.mxu0 0
      %1243 = vmatpush1.bf16.msra.mxu0 0
      %1244 = vmatprep.subr.bf16.mxu0 0
      %1245 = vmatpush1.bf16.msra.mxu0 0
      %1246 = vmatprep.subr.bf16.mxu0 0
      %1247 = vmatpush1.bf16.msra.mxu0 0
      %1248 = vmatprep.subr.bf16.mxu0 0
      %1249 = vmatpush1.bf16.msra.mxu0 0
      %1250 = vmatprep.subr.bf16.mxu0 0
      %1251 = vmatpush1.bf16.msra.mxu0 0
      %1252 = vmatprep.subr.bf16.mxu0 0
      %1253 = vmatpush1.bf16.msra.mxu0 0
      %1254 = vmatprep.subr.bf16.mxu0 0
      %1255 = vmatpush1.bf16.msra.mxu0 0
      %1256 = vmatprep.subr.bf16.mxu0 0
      %1257 = vmatpush1.bf16.msra.mxu0 0
      %1258 = vmatprep.subr.bf16.mxu0 0
      %1259 = vmatpush1.bf16.msra.mxu0 0
      %1260 = vmatprep.subr.bf16.mxu0 0
      %1261 = vmatpush1.bf16.msra.mxu0 0
      %1262 = vmatprep.subr.bf16.mxu0 0
      %1263 = vmatpush1.bf16.msra.mxu0 0
      %1264 = vmatprep.mubr.bf16.mxu0 0
      %1265 = vmatmul.mubr.bf16.gmra.mrb[0].mxu0 %v1203
      %v1266 = vpop.f32.mrb[0].mxu0
      %v1267 = vadd.f32 %v1188, %v1266
      %v1268 = vpop.f32.mrb[0].mxu0
      %v1269 = vpop.f32.mrb[0].mxu0
      %v1270 = vadd.f32 %v1188, %v1269
      %v1271 = vpop.f32.mrb[0].mxu0
      %1272 = vmatprep.mubr.bf16.mxu0 0
      %1273 = vmatmul.mubr.bf16.gmra.mrb[0].mxu0 %v1206
      %v1274 = vpop.f32.mrb[0].mxu0
      %v1275 = vadd.f32 %v1188, %v1274
      %v1276 = vpop.f32.mrb[0].mxu0
      %v1277 = vpop.f32.mrb[0].mxu0
      %v1278 = vadd.f32 %v1188, %v1277
      %v1279 = vpop.f32.mrb[0].mxu0
      %1280 = vmatprep.mubr.bf16.mxu0 0
      %1281 = vmatmul.mubr.bf16.gmra.mrb[0].mxu0 %v1209
      %v1282 = vpop.f32.mrb[0].mxu0
      %v1283 = vadd.f32 %v1188, %v1282
      %v1284 = vpop.f32.mrb[0].mxu0
      %v1285 = vpop.f32.mrb[0].mxu0
      %v1286 = vadd.f32 %v1188, %v1285
      %v1287 = vpop.f32.mrb[0].mxu0
      %1288 = vmatprep.mubr.bf16.mxu0 0
      %1289 = vmatmul.mubr.bf16.gmra.mrb[0].mxu0 %v1212
      %v1290 = vpop.f32.mrb[0].mxu0
      %v1291 = vadd.f32 %v1188, %v1290
      %v1292 = vpop.f32.mrb[0].mxu0
      %v1293 = vpop.f32.mrb[0].mxu0
      %v1294 = vadd.f32 %v1188, %v1293
      %v1295 = vpop.f32.mrb[0].mxu0
      %1296 = vmatprep.mubr.bf16.mxu0 0
      %1297 = vmatmul.mubr.bf16.gmra.mrb[0].mxu0 %v1215
      %v1298 = vpop.f32.mrb[0].mxu0
      %v1299 = vadd.f32 %v1188, %v1298
      %v1300 = vpop.f32.mrb[0].mxu0
      %v1301 = vpop.f32.mrb[0].mxu0
      %v1302 = vadd.f32 %v1188, %v1301
      %v1303 = vpop.f32.mrb[0].mxu0
      %1304 = vmatprep.mubr.bf16.mxu0 0
      %1305 = vmatmul.mubr.bf16.gmra.mrb[0].mxu0 %v1218
      %v1306 = vpop.f32.mrb[0].mxu0
      %v1307 = vadd.f32 %v1188, %v1306
      %v1308 = vpop.f32.mrb[0].mxu0
      %v1309 = vpop.f32.mrb[0].mxu0
      %v1310 = vadd.f32 %v1188, %v1309
      %v1311 = vpop.f32.mrb[0].mxu0
      %1312 = vmatprep.mubr.bf16.mxu0 0
      %1313 = vmatmul.mubr.bf16.gmra.mrb[0].mxu0 %v1221
      %v1314 = vpop.f32.mrb[0].mxu0
      %v1315 = vadd.f32 %v1188, %v1314
      %v1316 = vpop.f32.mrb[0].mxu0
      %v1317 = vpop.f32.mrb[0].mxu0
      %v1318 = vadd.f32 %v1188, %v1317
      %v1319 = vpop.f32.mrb[0].mxu0
      %1320 = vmatprep.mubr.bf16.mxu0 0
      %1321 = vmatmul.mubr.bf16.gmra.mrb[0].mxu0 %v1224
      %v1322 = vpop.f32.mrb[0].mxu0
      %v1323 = vadd.f32 %v1188, %v1322
      %v1324 = vpop.f32.mrb[0].mxu0
      %v1325 = vpop.f32.mrb[0].mxu0
      %v1326 = vadd.f32 %v1188, %v1325
      %v1327 = vpop.f32.mrb[0].mxu0
      %1328 = vmatprep.mubr.bf16.mxu0 0
      %1329 = vmatmul.mubr.bf16.gmra.mrb[0].mxu0 %v1227
      %v1330 = vpop.f32.mrb[0].mxu0
      %v1331 = vadd.f32 %v1188, %v1330
      %v1332 = vpop.f32.mrb[0].mxu0
      %v1333 = vpop.f32.mrb[0].mxu0
      %v1334 = vadd.f32 %v1188, %v1333
      %v1335 = vpop.f32.mrb[0].mxu0
      %1336 = vmatprep.mubr.bf16.mxu0 0
      %1337 = vmatmul.mubr.bf16.gmra.mrb[0].mxu0 %v1230
      %v1338 = vpop.f32.mrb[0].mxu0
      %v1339 = vadd.f32 %v1188, %v1338
      %v1340 = vpop.f32.mrb[0].mxu0
      %v1341 = vpop.f32.mrb[0].mxu0
      %v1342 = vadd.f32 %v1188, %v1341
      %v1343 = vpop.f32.mrb[0].mxu0
      %1344 = vdwg.mxu0
      %v1345 = vpack.c.bf16 %v1270, %v1267
      %v1346 = vpack.c.bf16 %v1278, %v1275
      %v1347 = vpack.c.bf16 %v1286, %v1283
      %v1348 = vpack.c.bf16 %v1294, %v1291
      %v1349 = vpack.c.bf16 %v1302, %v1299
      %v1350 = vpack.c.bf16 %v1310, %v1307
      %v1351 = vpack.c.bf16 %v1318, %v1315
      %v1352 = vpack.c.bf16 %v1326, %v1323
      %v1353 = vpack.c.bf16 %v1334, %v1331
      %v1354 = vpack.c.bf16 %v1342, %v1339
      %1360 = vrot.lane.b32.xlu0 %v1345, 96
      %v1361 = vpop.permute.xlu0 %1360
      %1362 = vrot.lane.b32.xlu0 %v1346, 96
      %v1363 = vpop.permute.xlu0 %1362
      %1364 = vrot.lane.b32.xlu0 %v1347, 96
      %v1365 = vpop.permute.xlu0 %1364
      %1366 = vrot.lane.b32.xlu0 %v1348, 96
      %v1367 = vpop.permute.xlu0 %1366
      %1368 = vrot.lane.b32.xlu0 %v1349, 96
      %v1369 = vpop.permute.xlu0 %1368
      %vm1370 = vcmask 64512
      %v1372 = vsel %vm1370, %v1345, 0
      %v1375 = vsel %vm1370, %v1346, 0
      %v1378 = vsel %vm1370, %v1347, 0
      %v1381 = vsel %vm1370, %v1348, 0
      %v1384 = vsel %vm1370, %v1349, 0
      %v1387 = vsel %vm1370, %v1361, 0
      %v1390 = vsel %vm1370, %v1363, 0
      %v1393 = vsel %vm1370, %v1365, 0
      %v1396 = vsel %vm1370, %v1367, 0
      %v1399 = vsel %vm1370, %v1369, 0
      %1401 = vmatprep.subr.bf16.mxu0 0
      %1402 = vmatpush1.bf16.xpose.msra.mxu0 %v1387
      %1403 = vmatprep.subr.bf16.mxu0 0
      %1404 = vmatpush1.bf16.xpose.msra.mxu0 %v1390
      %1405 = vmatprep.subr.bf16.mxu0 0
      %1406 = vmatpush1.bf16.xpose.msra.mxu0 %v1393
      %1407 = vmatprep.subr.bf16.mxu0 0
      %1408 = vmatpush1.bf16.xpose.msra.mxu0 %v1396
      %1409 = vmatprep.subr.bf16.mxu0 0
      %1410 = vmatpush1.bf16.xpose.msra.mxu0 %v1399
      %1411 = vmatprep.subr.bf16.mxu0 0
      %1412 = vmatpush1.bf16.xpose.msra.mxu0 0
      %1413 = vmatprep.subr.bf16.mxu0 0
      %1414 = vmatpush1.bf16.xpose.msra.mxu0 0
      %1415 = vmatprep.subr.bf16.mxu0 0
      %1416 = vmatpush1.bf16.xpose.msra.mxu0 0
      %1417 = vmatprep.subr.bf16.mxu0 0
      %1418 = vmatpush1.bf16.xpose.msra.mxu0 0
      %1419 = vmatprep.subr.bf16.mxu0 0
      %1420 = vmatpush1.bf16.xpose.msra.mxu0 0
      %1421 = vmatprep.subr.bf16.mxu0 0
      %1422 = vmatpush1.bf16.xpose.msra.mxu0 0
      %1423 = vmatprep.subr.bf16.mxu0 0
      %1424 = vmatpush1.bf16.xpose.msra.mxu0 0
      %1425 = vmatprep.subr.bf16.mxu0 0
      %1426 = vmatpush1.bf16.xpose.msra.mxu0 0
      %1427 = vmatprep.subr.bf16.mxu0 0
      %1428 = vmatpush1.bf16.xpose.msra.mxu0 0
      %1429 = vmatprep.subr.bf16.mxu0 0
      %1430 = vmatpush1.bf16.xpose.msra.mxu0 0
      %1431 = vmatprep.subr.bf16.mxu0 0
      %1432 = vmatpush1.bf16.xpose.msra.mxu0 0
      %1433 = vmatprep.mubr.bf16.mxu0 0
      %1434 = vmatmul.mubr.bf16.gmra.mrb[0].mxu0 %v1372
      %v1435 = vpop.f32.mrb[0].mxu0
      %v1436 = vadd.f32 %v843, %v1435
      %v1437 = vpop.f32.mrb[0].mxu0
      %v1438 = vpop.f32.mrb[0].mxu0
      %v1439 = vadd.f32 %v844, %v1438
      %v1440 = vpop.f32.mrb[0].mxu0
      %1441 = vmatprep.mubr.bf16.mxu0 0
      %1442 = vmatmul.mubr.bf16.gmra.mrb[0].mxu0 %v1375
      %v1443 = vpop.f32.mrb[0].mxu0
      %v1444 = vadd.f32 %v845, %v1443
      %v1445 = vpop.f32.mrb[0].mxu0
      %v1446 = vpop.f32.mrb[0].mxu0
      %v1447 = vadd.f32 %v846, %v1446
      %v1448 = vpop.f32.mrb[0].mxu0
      %1449 = vmatprep.mubr.bf16.mxu0 0
      %1450 = vmatmul.mubr.bf16.gmra.mrb[0].mxu0 %v1378
      %v1451 = vpop.f32.mrb[0].mxu0
      %v1452 = vadd.f32 %v847, %v1451
      %v1453 = vpop.f32.mrb[0].mxu0
      %v1454 = vpop.f32.mrb[0].mxu0
      %v1455 = vadd.f32 %v848, %v1454
      %v1456 = vpop.f32.mrb[0].mxu0
      %1457 = vmatprep.mubr.bf16.mxu0 0
      %1458 = vmatmul.mubr.bf16.gmra.mrb[0].mxu0 %v1381
      %v1459 = vpop.f32.mrb[0].mxu0
      %v1460 = vadd.f32 %v849, %v1459
      %v1461 = vpop.f32.mrb[0].mxu0
      %v1462 = vpop.f32.mrb[0].mxu0
      %v1463 = vadd.f32 %v850, %v1462
      %v1464 = vpop.f32.mrb[0].mxu0
      %1465 = vmatprep.mubr.bf16.mxu0 0
      %1466 = vmatmul.mubr.bf16.gmra.mrb[0].mxu0 %v1384
      %v1467 = vpop.f32.mrb[0].mxu0
      %v1468 = vadd.f32 %v851, %v1467
      %v1469 = vpop.f32.mrb[0].mxu0
      %v1470 = vpop.f32.mrb[0].mxu0
      %v1471 = vadd.f32 %v852, %v1470
      %v1472 = vpop.f32.mrb[0].mxu0
      %1473 = vdwg.mxu0
      %vm1474 = vcmask 654336
      %v1475 = vsel %vm1474, %v1436, -inf
      %1476 = vmax.xlane.f32.xlu0 %v1475
      %v1477 = vpop.xlane.xlu0 %1476
      %v1478 = vsel %vm1474, %v1439, -inf
      %1479 = vmax.xlane.f32.xlu0 %v1478
      %v1480 = vpop.xlane.xlu0 %1479
      %v1481 = vsel %vm1474, %v1444, -inf
      %1482 = vmax.xlane.f32.xlu0 %v1481
      %v1483 = vpop.xlane.xlu0 %1482
      %v1484 = vsel %vm1474, %v1447, -inf
      %1485 = vmax.xlane.f32.xlu0 %v1484
      %v1486 = vpop.xlane.xlu0 %1485
      %v1487 = vsel %vm1474, %v1452, -inf
      %1488 = vmax.xlane.f32.xlu0 %v1487
      %v1489 = vpop.xlane.xlu0 %1488
      %v1490 = vsel %vm1474, %v1455, -inf
      %1491 = vmax.xlane.f32.xlu0 %v1490
      %v1492 = vpop.xlane.xlu0 %1491
      %v1493 = vsel %vm1474, %v1460, -inf
      %1494 = vmax.xlane.f32.xlu0 %v1493
      %v1495 = vpop.xlane.xlu0 %1494
      %v1496 = vsel %vm1474, %v1463, -inf
      %1497 = vmax.xlane.f32.xlu0 %v1496
      %v1498 = vpop.xlane.xlu0 %1497
      %v1499 = vsel %vm1474, %v1468, -inf
      %1500 = vmax.xlane.f32.xlu0 %v1499
      %v1501 = vpop.xlane.xlu0 %1500
      %v1502 = vsel %vm1474, %v1471, -inf
      %1503 = vmax.xlane.f32.xlu0 %v1502
      %v1504 = vpop.xlane.xlu0 %1503
      %v1505 = vsub.f32 %v1436, %v1477
      %v1506 = vsub.f32 %v1439, %v1480
      %v1507 = vsub.f32 %v1444, %v1483
      %v1508 = vsub.f32 %v1447, %v1486
      %v1509 = vsub.f32 %v1452, %v1489
      %v1510 = vsub.f32 %v1455, %v1492
      %v1511 = vsub.f32 %v1460, %v1495
      %v1512 = vsub.f32 %v1463, %v1498
      %v1513 = vsub.f32 %v1468, %v1501
      %v1514 = vsub.f32 %v1471, %v1504
      %v1515 = vmul.f32 %v1505, 1.442695
      %v1516 = vpow.pop %v1515
      %v1517 = vmul.f32 %v1506, 1.442695
      %v1518 = vpow.pop %v1517
      %v1519 = vmul.f32 %v1507, 1.442695
      %v1520 = vpow.pop %v1519
      %v1521 = vmul.f32 %v1508, 1.442695
      %v1522 = vpow.pop %v1521
      %v1523 = vmul.f32 %v1509, 1.442695
      %v1524 = vpow.pop %v1523
      %v1525 = vmul.f32 %v1510, 1.442695
      %v1526 = vpow.pop %v1525
      %v1527 = vmul.f32 %v1511, 1.442695
      %v1528 = vpow.pop %v1527
      %v1529 = vmul.f32 %v1512, 1.442695
      %v1530 = vpow.pop %v1529
      %v1531 = vmul.f32 %v1513, 1.442695
      %v1532 = vpow.pop %v1531
      %v1533 = vmul.f32 %v1514, 1.442695
      %v1534 = vpow.pop %v1533
      %v1535 = vsel %vm1474, %v1516, 0.0
      %1536 = vadd.xlane.f32.xlu0 %v1535
      %v1537 = vpop.xlane.xlu0 %1536
      %v1538 = vsel %vm1474, %v1518, 0.0
      %1539 = vadd.xlane.f32.xlu0 %v1538
      %v1540 = vpop.xlane.xlu0 %1539
      %v1541 = vsel %vm1474, %v1520, 0.0
      %1542 = vadd.xlane.f32.xlu0 %v1541
      %v1543 = vpop.xlane.xlu0 %1542
      %v1544 = vsel %vm1474, %v1522, 0.0
      %1545 = vadd.xlane.f32.xlu0 %v1544
      %v1546 = vpop.xlane.xlu0 %1545
      %v1547 = vsel %vm1474, %v1524, 0.0
      %1548 = vadd.xlane.f32.xlu0 %v1547
      %v1549 = vpop.xlane.xlu0 %1548
      %v1550 = vsel %vm1474, %v1526, 0.0
      %1551 = vadd.xlane.f32.xlu0 %v1550
      %v1552 = vpop.xlane.xlu0 %1551
      %v1553 = vsel %vm1474, %v1528, 0.0
      %1554 = vadd.xlane.f32.xlu0 %v1553
      %v1555 = vpop.xlane.xlu0 %1554
      %v1556 = vsel %vm1474, %v1530, 0.0
      %1557 = vadd.xlane.f32.xlu0 %v1556
      %v1558 = vpop.xlane.xlu0 %1557
      %v1559 = vsel %vm1474, %v1532, 0.0
      %1560 = vadd.xlane.f32.xlu0 %v1559
      %v1561 = vpop.xlane.xlu0 %1560
      %v1562 = vsel %vm1474, %v1534, 0.0
      %1563 = vadd.xlane.f32.xlu0 %v1562
      %v1564 = vpop.xlane.xlu0 %1563
      %v1565 = vrcp.pop %v1537
      %v1566 = vrcp.pop %v1540
      %v1567 = vrcp.pop %v1543
      %v1568 = vrcp.pop %v1546
      %v1569 = vrcp.pop %v1549
      %v1570 = vrcp.pop %v1552
      %v1571 = vrcp.pop %v1555
      %v1572 = vrcp.pop %v1558
      %v1573 = vrcp.pop %v1561
      %v1574 = vrcp.pop %v1564
      %v1575 = vmul.f32 %v1516, %v1565
      %v1576 = vmul.f32 %v1518, %v1566
      %v1577 = vmul.f32 %v1520, %v1567
      %v1578 = vmul.f32 %v1522, %v1568
      %v1579 = vmul.f32 %v1524, %v1569
      %v1580 = vmul.f32 %v1526, %v1570
      %v1581 = vmul.f32 %v1528, %v1571
      %v1582 = vmul.f32 %v1530, %v1572
      %v1583 = vmul.f32 %v1532, %v1573
      %v1584 = vmul.f32 %v1534, %v1574
      %v1585 = vpack.c.bf16 %v1576, %v1575
      %v1586 = vpack.c.bf16 %v1578, %v1577
      %v1587 = vpack.c.bf16 %v1580, %v1579
      %v1588 = vpack.c.bf16 %v1582, %v1581
      %v1589 = vpack.c.bf16 %v1584, %v1583
      %1590 = vrot.lane.b32.xlu0 %v1345, 64
      %v1591 = vpop.permute.xlu0 %1590
      %1592 = vrot.lane.b32.xlu0 %v1346, 64
      %v1593 = vpop.permute.xlu0 %1592
      %1594 = vrot.lane.b32.xlu0 %v1347, 64
      %v1595 = vpop.permute.xlu0 %1594
      %1596 = vrot.lane.b32.xlu0 %v1348, 64
      %v1597 = vpop.permute.xlu0 %1596
      %1598 = vrot.lane.b32.xlu0 %v1349, 64
      %v1599 = vpop.permute.xlu0 %1598
      %v1606 = vsel %vm1474, %v1585, 0
      %v1609 = vsel %vm1474, %v1586, 0
      %v1612 = vsel %vm1474, %v1587, 0
      %v1615 = vsel %vm1474, %v1588, 0
      %v1618 = vsel %vm1474, %v1589, 0
      %1620 = vmatprep.subr.bf16.mxu0 0
      %1621 = vmatpush1.bf16.msra.mxu0 %v1591
      %1622 = vmatprep.subr.bf16.mxu0 0
      %1623 = vmatpush1.bf16.msra.mxu0 %v1593
      %1624 = vmatprep.subr.bf16.mxu0 0
      %1625 = vmatpush1.bf16.msra.mxu0 %v1595
      %1626 = vmatprep.subr.bf16.mxu0 0
      %1627 = vmatpush1.bf16.msra.mxu0 %v1597
      %1628 = vmatprep.subr.bf16.mxu0 0
      %1629 = vmatpush1.bf16.msra.mxu0 %v1599
      %1630 = vmatprep.subr.bf16.mxu0 0
      %1631 = vmatpush1.bf16.msra.mxu0 0
      %1632 = vmatprep.subr.bf16.mxu0 0
      %1633 = vmatpush1.bf16.msra.mxu0 0
      %1634 = vmatprep.subr.bf16.mxu0 0
      %1635 = vmatpush1.bf16.msra.mxu0 0
      %1636 = vmatprep.subr.bf16.mxu0 0
      %1637 = vmatpush1.bf16.msra.mxu0 0
      %1638 = vmatprep.subr.bf16.mxu0 0
      %1639 = vmatpush1.bf16.msra.mxu0 0
      %1640 = vmatprep.subr.bf16.mxu0 0
      %1641 = vmatpush1.bf16.msra.mxu0 0
      %1642 = vmatprep.subr.bf16.mxu0 0
      %1643 = vmatpush1.bf16.msra.mxu0 0
      %1644 = vmatprep.subr.bf16.mxu0 0
      %1645 = vmatpush1.bf16.msra.mxu0 0
      %1646 = vmatprep.subr.bf16.mxu0 0
      %1647 = vmatpush1.bf16.msra.mxu0 0
      %1648 = vmatprep.subr.bf16.mxu0 0
      %1649 = vmatpush1.bf16.msra.mxu0 0
      %1650 = vmatprep.subr.bf16.mxu0 0
      %1651 = vmatpush1.bf16.msra.mxu0 0
      %1652 = vmatprep.mubr.bf16.mxu0 0
      %1653 = vmatmul.mubr.bf16.gmra.mrb[0].mxu0 %v1606
      %v1654 = vpop.f32.mrb[0].mxu0
      %v1655 = vadd.f32 0.0, %v1654
      %v1656 = vpop.f32.mrb[0].mxu0
      %v1657 = vpop.f32.mrb[0].mxu0
      %v1658 = vadd.f32 0.0, %v1657
      %v1659 = vpop.f32.mrb[0].mxu0
      %1660 = vmatprep.mubr.bf16.mxu0 0
      %1661 = vmatmul.mubr.bf16.gmra.mrb[0].mxu0 %v1609
      %v1662 = vpop.f32.mrb[0].mxu0
      %v1663 = vadd.f32 0.0, %v1662
      %v1664 = vpop.f32.mrb[0].mxu0
      %v1665 = vpop.f32.mrb[0].mxu0
      %v1666 = vadd.f32 0.0, %v1665
      %v1667 = vpop.f32.mrb[0].mxu0
      %1668 = vmatprep.mubr.bf16.mxu0 0
      %1669 = vmatmul.mubr.bf16.gmra.mrb[0].mxu0 %v1612
      %v1670 = vpop.f32.mrb[0].mxu0
      %v1671 = vadd.f32 0.0, %v1670
      %v1672 = vpop.f32.mrb[0].mxu0
      %v1673 = vpop.f32.mrb[0].mxu0
      %v1674 = vadd.f32 0.0, %v1673
      %v1675 = vpop.f32.mrb[0].mxu0
      %1676 = vmatprep.mubr.bf16.mxu0 0
      %1677 = vmatmul.mubr.bf16.gmra.mrb[0].mxu0 %v1615
      %v1678 = vpop.f32.mrb[0].mxu0
      %v1679 = vadd.f32 0.0, %v1678
      %v1680 = vpop.f32.mrb[0].mxu0
      %v1681 = vpop.f32.mrb[0].mxu0
      %v1682 = vadd.f32 0.0, %v1681
      %v1683 = vpop.f32.mrb[0].mxu0
      %1684 = vmatprep.mubr.bf16.mxu0 0
      %1685 = vmatmul.mubr.bf16.gmra.mrb[0].mxu0 %v1618
      %v1686 = vpop.f32.mrb[0].mxu0
      %v1687 = vadd.f32 0.0, %v1686
      %v1688 = vpop.f32.mrb[0].mxu0
      %v1689 = vpop.f32.mrb[0].mxu0
      %v1690 = vadd.f32 0.0, %v1689
      %v1691 = vpop.f32.mrb[0].mxu0
      %1692 = vdwg.mxu0
      %v1693 = vpack.c.bf16 %v1658, %v1655
      %v1694 = vpack.c.bf16 %v1666, %v1663
      %v1695 = vpack.c.bf16 %v1674, %v1671
      %v1696 = vpack.c.bf16 %v1682, %v1679
      %v1697 = vpack.c.bf16 %v1690, %v1687
      %1698 = vst.msk [vmem:[#allocation3] sm:$0xff] %vm1370, %v1693
      %1699 = vst.msk [vmem:[#allocation3 + $0x8] sm:$0xff] %vm1370, %v1694
      %1700 = vst.msk [vmem:[#allocation3 + $0x10] sm:$0xff] %vm1370, %v1695
      %1701 = vst.msk [vmem:[#allocation3 + $0x18] sm:$0xff] %vm1370, %v1696
      %1702 = vst.msk [vmem:[#allocation3 + $0x20] sm:$0xff] %vm1370, %v1697
      %1703 = vrot.lane.b32.xlu0 %v1345, 120
      %v1704 = vpop.permute.xlu0 %1703
      %1705 = vrot.lane.b32.xlu0 %v1346, 120
      %v1706 = vpop.permute.xlu0 %1705
      %1707 = vrot.lane.b32.xlu0 %v1347, 120
      %v1708 = vpop.permute.xlu0 %1707
      %1709 = vrot.lane.b32.xlu0 %v1348, 120
      %v1710 = vpop.permute.xlu0 %1709
      %1711 = vrot.lane.b32.xlu0 %v1349, 120
      %v1712 = vpop.permute.xlu0 %1711
      %1713 = vrot.lane.b32.xlu0 %v1345, 88
      %v1714 = vpop.permute.xlu0 %1713
      %1715 = vrot.lane.b32.xlu0 %v1346, 88
      %v1716 = vpop.permute.xlu0 %1715
      %1717 = vrot.lane.b32.xlu0 %v1347, 88
      %v1718 = vpop.permute.xlu0 %1717
      %1719 = vrot.lane.b32.xlu0 %v1348, 88
      %v1720 = vpop.permute.xlu0 %1719
      %1721 = vrot.lane.b32.xlu0 %v1349, 88
      %v1722 = vpop.permute.xlu0 %1721
      %v1724 = vsel %vm1370, %v1704, 0
      %v1727 = vsel %vm1370, %v1706, 0
      %v1730 = vsel %vm1370, %v1708, 0
      %v1733 = vsel %vm1370, %v1710, 0
      %v1736 = vsel %vm1370, %v1712, 0
      %v1739 = vsel %vm1370, %v1714, 0
      %v1742 = vsel %vm1370, %v1716, 0
      %v1745 = vsel %vm1370, %v1718, 0
      %v1748 = vsel %vm1370, %v1720, 0
      %v1751 = vsel %vm1370, %v1722, 0
      %1753 = vmatprep.subr.bf16.mxu0 0
      %1754 = vmatpush1.bf16.xpose.msra.mxu0 %v1739
      %1755 = vmatprep.subr.bf16.mxu0 0
      %1756 = vmatpush1.bf16.xpose.msra.mxu0 %v1742
      %1757 = vmatprep.subr.bf16.mxu0 0
      %1758 = vmatpush1.bf16.xpose.msra.mxu0 %v1745
      %1759 = vmatprep.subr.bf16.mxu0 0
      %1760 = vmatpush1.bf16.xpose.msra.mxu0 %v1748
      %1761 = vmatprep.subr.bf16.mxu0 0
      %1762 = vmatpush1.bf16.xpose.msra.mxu0 %v1751
      %1763 = vmatprep.subr.bf16.mxu0 0
      %1764 = vmatpush1.bf16.xpose.msra.mxu0 0
      %1765 = vmatprep.subr.bf16.mxu0 0
      %1766 = vmatpush1.bf16.xpose.msra.mxu0 0
      %1767 = vmatprep.subr.bf16.mxu0 0
      %1768 = vmatpush1.bf16.xpose.msra.mxu0 0
      %1769 = vmatprep.subr.bf16.mxu0 0
      %1770 = vmatpush1.bf16.xpose.msra.mxu0 0
      %1771 = vmatprep.subr.bf16.mxu0 0
      %1772 = vmatpush1.bf16.xpose.msra.mxu0 0
      %1773 = vmatprep.subr.bf16.mxu0 0
      %1774 = vmatpush1.bf16.xpose.msra.mxu0 0
      %1775 = vmatprep.subr.bf16.mxu0 0
      %1776 = vmatpush1.bf16.xpose.msra.mxu0 0
      %1777 = vmatprep.subr.bf16.mxu0 0
      %1778 = vmatpush1.bf16.xpose.msra.mxu0 0
      %1779 = vmatprep.subr.bf16.mxu0 0
      %1780 = vmatpush1.bf16.xpose.msra.mxu0 0
      %1781 = vmatprep.subr.bf16.mxu0 0
      %1782 = vmatpush1.bf16.xpose.msra.mxu0 0
      %1783 = vmatprep.subr.bf16.mxu0 0
      %1784 = vmatpush1.bf16.xpose.msra.mxu0 0
      %1785 = vmatprep.mubr.bf16.mxu0 0
      %1786 = vmatmul.mubr.bf16.gmra.mrb[0].mxu0 %v1724
      %v1787 = vpop.f32.mrb[0].mxu0
      %v1788 = vadd.f32 %v843, %v1787
      %v1789 = vpop.f32.mrb[0].mxu0
      %v1790 = vpop.f32.mrb[0].mxu0
      %v1791 = vadd.f32 %v844, %v1790
      %v1792 = vpop.f32.mrb[0].mxu0
      %1793 = vmatprep.mubr.bf16.mxu0 0
      %1794 = vmatmul.mubr.bf16.gmra.mrb[0].mxu0 %v1727
      %v1795 = vpop.f32.mrb[0].mxu0
      %v1796 = vadd.f32 %v845, %v1795
      %v1797 = vpop.f32.mrb[0].mxu0
      %v1798 = vpop.f32.mrb[0].mxu0
      %v1799 = vadd.f32 %v846, %v1798
      %v1800 = vpop.f32.mrb[0].mxu0
      %1801 = vmatprep.mubr.bf16.mxu0 0
      %1802 = vmatmul.mubr.bf16.gmra.mrb[0].mxu0 %v1730
      %v1803 = vpop.f32.mrb[0].mxu0
      %v1804 = vadd.f32 %v847, %v1803
      %v1805 = vpop.f32.mrb[0].mxu0
      %v1806 = vpop.f32.mrb[0].mxu0
      %v1807 = vadd.f32 %v848, %v1806
      %v1808 = vpop.f32.mrb[0].mxu0
      %1809 = vmatprep.mubr.bf16.mxu0 0
      %1810 = vmatmul.mubr.bf16.gmra.mrb[0].mxu0 %v1733
      %v1811 = vpop.f32.mrb[0].mxu0
      %v1812 = vadd.f32 %v849, %v1811
      %v1813 = vpop.f32.mrb[0].mxu0
      %v1814 = vpop.f32.mrb[0].mxu0
      %v1815 = vadd.f32 %v850, %v1814
      %v1816 = vpop.f32.mrb[0].mxu0
      %1817 = vmatprep.mubr.bf16.mxu0 0
      %1818 = vmatmul.mubr.bf16.gmra.mrb[0].mxu0 %v1736
      %v1819 = vpop.f32.mrb[0].mxu0
      %v1820 = vadd.f32 %v851, %v1819
      %v1821 = vpop.f32.mrb[0].mxu0
      %v1822 = vpop.f32.mrb[0].mxu0
      %v1823 = vadd.f32 %v852, %v1822
      %v1824 = vpop.f32.mrb[0].mxu0
      %1825 = vdwg.mxu0
      %v1826 = vsel %vm1474, %v1788, -inf
      %1827 = vmax.xlane.f32.xlu0 %v1826
      %v1828 = vpop.xlane.xlu0 %1827
      %v1829 = vsel %vm1474, %v1791, -inf
      %1830 = vmax.xlane.f32.xlu0 %v1829
      %v1831 = vpop.xlane.xlu0 %1830
      %v1832 = vsel %vm1474, %v1796, -inf
      %1833 = vmax.xlane.f32.xlu0 %v1832
      %v1834 = vpop.xlane.xlu0 %1833
      %v1835 = vsel %vm1474, %v1799, -inf
      %1836 = vmax.xlane.f32.xlu0 %v1835
      %v1837 = vpop.xlane.xlu0 %1836
      %v1838 = vsel %vm1474, %v1804, -inf
      %1839 = vmax.xlane.f32.xlu0 %v1838
      %v1840 = vpop.xlane.xlu0 %1839
      %v1841 = vsel %vm1474, %v1807, -inf
      %1842 = vmax.xlane.f32.xlu0 %v1841
      %v1843 = vpop.xlane.xlu0 %1842
      %v1844 = vsel %vm1474, %v1812, -inf
      %1845 = vmax.xlane.f32.xlu0 %v1844
      %v1846 = vpop.xlane.xlu0 %1845
      %v1847 = vsel %vm1474, %v1815, -inf
      %1848 = vmax.xlane.f32.xlu0 %v1847
      %v1849 = vpop.xlane.xlu0 %1848
      %v1850 = vsel %vm1474, %v1820, -inf
      %1851 = vmax.xlane.f32.xlu0 %v1850
      %v1852 = vpop.xlane.xlu0 %1851
      %v1853 = vsel %vm1474, %v1823, -inf
      %1854 = vmax.xlane.f32.xlu0 %v1853
      %v1855 = vpop.xlane.xlu0 %1854
      %v1856 = vsub.f32 %v1788, %v1828
      %v1857 = vsub.f32 %v1791, %v1831
      %v1858 = vsub.f32 %v1796, %v1834
      %v1859 = vsub.f32 %v1799, %v1837
      %v1860 = vsub.f32 %v1804, %v1840
      %v1861 = vsub.f32 %v1807, %v1843
      %v1862 = vsub.f32 %v1812, %v1846
      %v1863 = vsub.f32 %v1815, %v1849
      %v1864 = vsub.f32 %v1820, %v1852
      %v1865 = vsub.f32 %v1823, %v1855
      %v1866 = vmul.f32 %v1856, 1.442695
      %v1867 = vpow.pop %v1866
      %v1868 = vmul.f32 %v1857, 1.442695
      %v1869 = vpow.pop %v1868
      %v1870 = vmul.f32 %v1858, 1.442695
      %v1871 = vpow.pop %v1870
      %v1872 = vmul.f32 %v1859, 1.442695
      %v1873 = vpow.pop %v1872
      %v1874 = vmul.f32 %v1860, 1.442695
      %v1875 = vpow.pop %v1874
      %v1876 = vmul.f32 %v1861, 1.442695
      %v1877 = vpow.pop %v1876
      %v1878 = vmul.f32 %v1862, 1.442695
      %v1879 = vpow.pop %v1878
      %v1880 = vmul.f32 %v1863, 1.442695
      %v1881 = vpow.pop %v1880
      %v1882 = vmul.f32 %v1864, 1.442695
      %v1883 = vpow.pop %v1882
      %v1884 = vmul.f32 %v1865, 1.442695
      %v1885 = vpow.pop %v1884
      %v1886 = vsel %vm1474, %v1867, 0.0
      %1887 = vadd.xlane.f32.xlu0 %v1886
      %v1888 = vpop.xlane.xlu0 %1887
      %v1889 = vsel %vm1474, %v1869, 0.0
      %1890 = vadd.xlane.f32.xlu0 %v1889
      %v1891 = vpop.xlane.xlu0 %1890
      %v1892 = vsel %vm1474, %v1871, 0.0
      %1893 = vadd.xlane.f32.xlu0 %v1892
      %v1894 = vpop.xlane.xlu0 %1893
      %v1895 = vsel %vm1474, %v1873, 0.0
      %1896 = vadd.xlane.f32.xlu0 %v1895
      %v1897 = vpop.xlane.xlu0 %1896
      %v1898 = vsel %vm1474, %v1875, 0.0
      %1899 = vadd.xlane.f32.xlu0 %v1898
      %v1900 = vpop.xlane.xlu0 %1899
      %v1901 = vsel %vm1474, %v1877, 0.0
      %1902 = vadd.xlane.f32.xlu0 %v1901
      %v1903 = vpop.xlane.xlu0 %1902
      %v1904 = vsel %vm1474, %v1879, 0.0
      %1905 = vadd.xlane.f32.xlu0 %v1904
      %v1906 = vpop.xlane.xlu0 %1905
      %v1907 = vsel %vm1474, %v1881, 0.0
      %1908 = vadd.xlane.f32.xlu0 %v1907
      %v1909 = vpop.xlane.xlu0 %1908
      %v1910 = vsel %vm1474, %v1883, 0.0
      %1911 = vadd.xlane.f32.xlu0 %v1910
      %v1912 = vpop.xlane.xlu0 %1911
      %v1913 = vsel %vm1474, %v1885, 0.0
      %1914 = vadd.xlane.f32.xlu0 %v1913
      %v1915 = vpop.xlane.xlu0 %1914
      %v1916 = vrcp.pop %v1888
      %v1917 = vrcp.pop %v1891
      %v1918 = vrcp.pop %v1894
      %v1919 = vrcp.pop %v1897
      %v1920 = vrcp.pop %v1900
      %v1921 = vrcp.pop %v1903
      %v1922 = vrcp.pop %v1906
      %v1923 = vrcp.pop %v1909
      %v1924 = vrcp.pop %v1912
      %v1925 = vrcp.pop %v1915
      %v1926 = vmul.f32 %v1867, %v1916
      %v1927 = vmul.f32 %v1869, %v1917
      %v1928 = vmul.f32 %v1871, %v1918
      %v1929 = vmul.f32 %v1873, %v1919
      %v1930 = vmul.f32 %v1875, %v1920
      %v1931 = vmul.f32 %v1877, %v1921
      %v1932 = vmul.f32 %v1879, %v1922
      %v1933 = vmul.f32 %v1881, %v1923
      %v1934 = vmul.f32 %v1883, %v1924
      %v1935 = vmul.f32 %v1885, %v1925
      %v1936 = vpack.c.bf16 %v1927, %v1926
      %v1937 = vpack.c.bf16 %v1929, %v1928
      %v1938 = vpack.c.bf16 %v1931, %v1930
      %v1939 = vpack.c.bf16 %v1933, %v1932
      %v1940 = vpack.c.bf16 %v1935, %v1934
      %1941 = vrot.lane.b32.xlu0 %v1345, 56
      %v1942 = vpop.permute.xlu0 %1941
      %1943 = vrot.lane.b32.xlu0 %v1346, 56
      %v1944 = vpop.permute.xlu0 %1943
      %1945 = vrot.lane.b32.xlu0 %v1347, 56
      %v1946 = vpop.permute.xlu0 %1945
      %1947 = vrot.lane.b32.xlu0 %v1348, 56
      %v1948 = vpop.permute.xlu0 %1947
      %1949 = vrot.lane.b32.xlu0 %v1349, 56
      %v1950 = vpop.permute.xlu0 %1949
      %v1957 = vsel %vm1474, %v1936, 0
      %v1960 = vsel %vm1474, %v1937, 0
      %v1963 = vsel %vm1474, %v1938, 0
      %v1966 = vsel %vm1474, %v1939, 0
      %v1969 = vsel %vm1474, %v1940, 0
      %1971 = vmatprep.subr.bf16.mxu0 0
      %1972 = vmatpush1.bf16.msra.mxu0 %v1942
      %1973 = vmatprep.subr.bf16.mxu0 0
      %1974 = vmatpush1.bf16.msra.mxu0 %v1944
      %1975 = vmatprep.subr.bf16.mxu0 0
      %1976 = vmatpush1.bf16.msra.mxu0 %v1946
      %1977 = vmatprep.subr.bf16.mxu0 0
      %1978 = vmatpush1.bf16.msra.mxu0 %v1948
      %1979 = vmatprep.subr.bf16.mxu0 0
      %1980 = vmatpush1.bf16.msra.mxu0 %v1950
      %1981 = vmatprep.subr.bf16.mxu0 0
      %1982 = vmatpush1.bf16.msra.mxu0 0
      %1983 = vmatprep.subr.bf16.mxu0 0
      %1984 = vmatpush1.bf16.msra.mxu0 0
      %1985 = vmatprep.subr.bf16.mxu0 0
      %1986 = vmatpush1.bf16.msra.mxu0 0
      %1987 = vmatprep.subr.bf16.mxu0 0
      %1988 = vmatpush1.bf16.msra.mxu0 0
      %1989 = vmatprep.subr.bf16.mxu0 0
      %1990 = vmatpush1.bf16.msra.mxu0 0
      %1991 = vmatprep.subr.bf16.mxu0 0
      %1992 = vmatpush1.bf16.msra.mxu0 0
      %1993 = vmatprep.subr.bf16.mxu0 0
      %1994 = vmatpush1.bf16.msra.mxu0 0
      %1995 = vmatprep.subr.bf16.mxu0 0
      %1996 = vmatpush1.bf16.msra.mxu0 0
      %1997 = vmatprep.subr.bf16.mxu0 0
      %1998 = vmatpush1.bf16.msra.mxu0 0
      %1999 = vmatprep.subr.bf16.mxu0 0
      %2000 = vmatpush1.bf16.msra.mxu0 0
      %2001 = vmatprep.subr.bf16.mxu0 0
      %2002 = vmatpush1.bf16.msra.mxu0 0
      %2003 = vmatprep.mubr.bf16.mxu0 0
      %2004 = vmatmul.mubr.bf16.gmra.mrb[0].mxu0 %v1957
      %v2005 = vpop.f32.mrb[0].mxu0
      %v2006 = vadd.f32 0.0, %v2005
      %v2007 = vpop.f32.mrb[0].mxu0
      %v2008 = vpop.f32.mrb[0].mxu0
      %v2009 = vadd.f32 0.0, %v2008
      %v2010 = vpop.f32.mrb[0].mxu0
      %2011 = vmatprep.mubr.bf16.mxu0 0
      %2012 = vmatmul.mubr.bf16.gmra.mrb[0].mxu0 %v1960
      %v2013 = vpop.f32.mrb[0].mxu0
      %v2014 = vadd.f32 0.0, %v2013
      %v2015 = vpop.f32.mrb[0].mxu0
      %v2016 = vpop.f32.mrb[0].mxu0
      %v2017 = vadd.f32 0.0, %v2016
      %v2018 = vpop.f32.mrb[0].mxu0
      %2019 = vmatprep.mubr.bf16.mxu0 0
      %2020 = vmatmul.mubr.bf16.gmra.mrb[0].mxu0 %v1963
      %v2021 = vpop.f32.mrb[0].mxu0
      %v2022 = vadd.f32 0.0, %v2021
      %v2023 = vpop.f32.mrb[0].mxu0
      %v2024 = vpop.f32.mrb[0].mxu0
      %v2025 = vadd.f32 0.0, %v2024
      %v2026 = vpop.f32.mrb[0].mxu0
      %2027 = vmatprep.mubr.bf16.mxu0 0
      %2028 = vmatmul.mubr.bf16.gmra.mrb[0].mxu0 %v1966
      %v2029 = vpop.f32.mrb[0].mxu0
      %v2030 = vadd.f32 0.0, %v2029
      %v2031 = vpop.f32.mrb[0].mxu0
      %v2032 = vpop.f32.mrb[0].mxu0
      %v2033 = vadd.f32 0.0, %v2032
      %v2034 = vpop.f32.mrb[0].mxu0
      %2035 = vmatprep.mubr.bf16.mxu0 0
      %2036 = vmatmul.mubr.bf16.gmra.mrb[0].mxu0 %v1969
      %v2037 = vpop.f32.mrb[0].mxu0
      %v2038 = vadd.f32 0.0, %v2037
      %v2039 = vpop.f32.mrb[0].mxu0
      %v2040 = vpop.f32.mrb[0].mxu0
      %v2041 = vadd.f32 0.0, %v2040
      %v2042 = vpop.f32.mrb[0].mxu0
      %2043 = vdwg.mxu0
      %v2044 = vpack.c.bf16 %v2009, %v2006
      %v2045 = vpack.c.bf16 %v2017, %v2014
      %v2046 = vpack.c.bf16 %v2025, %v2022
      %v2047 = vpack.c.bf16 %v2033, %v2030
      %v2048 = vpack.c.bf16 %v2041, %v2038
      %2054 = vrot.lane.b32.xlu0 %v2044, 8
      %v2055 = vpop.permute.xlu0 %2054
      %2056 = vrot.lane.b32.xlu0 %v2045, 8
      %v2057 = vpop.permute.xlu0 %2056
      %2058 = vrot.lane.b32.xlu0 %v2046, 8
      %v2059 = vpop.permute.xlu0 %2058
      %2060 = vrot.lane.b32.xlu0 %v2047, 8
      %v2061 = vpop.permute.xlu0 %2060
      %2062 = vrot.lane.b32.xlu0 %v2048, 8
      %v2063 = vpop.permute.xlu0 %2062
      %vm2069 = vcmask 130112
      %2070 = vst.msk [vmem:[#allocation3] sm:$0xff] %vm2069, %v2055
      %2071 = vst.msk [vmem:[#allocation3 + $0x8] sm:$0xff] %vm2069, %v2057
      %2072 = vst.msk [vmem:[#allocation3 + $0x10] sm:$0xff] %vm2069, %v2059
      %2073 = vst.msk [vmem:[#allocation3 + $0x18] sm:$0xff] %vm2069, %v2061
      %2074 = vst.msk [vmem:[#allocation3 + $0x20] sm:$0xff] %vm2069, %v2063
      %2075 = vrot.lane.b32.xlu0 %v1345, 112
      %v2076 = vpop.permute.xlu0 %2075
      %2077 = vrot.lane.b32.xlu0 %v1346, 112
      %v2078 = vpop.permute.xlu0 %2077
      %2079 = vrot.lane.b32.xlu0 %v1347, 112
      %v2080 = vpop.permute.xlu0 %2079
      %2081 = vrot.lane.b32.xlu0 %v1348, 112
      %v2082 = vpop.permute.xlu0 %2081
      %2083 = vrot.lane.b32.xlu0 %v1349, 112
      %v2084 = vpop.permute.xlu0 %2083
      %2085 = vrot.lane.b32.xlu0 %v1345, 80
      %v2086 = vpop.permute.xlu0 %2085
      %2087 = vrot.lane.b32.xlu0 %v1346, 80
      %v2088 = vpop.permute.xlu0 %2087
      %2089 = vrot.lane.b32.xlu0 %v1347, 80
      %v2090 = vpop.permute.xlu0 %2089
      %2091 = vrot.lane.b32.xlu0 %v1348, 80
      %v2092 = vpop.permute.xlu0 %2091
      %2093 = vrot.lane.b32.xlu0 %v1349, 80
      %v2094 = vpop.permute.xlu0 %2093
      %v2096 = vsel %vm1370, %v2076, 0
      %v2099 = vsel %vm1370, %v2078, 0
      %v2102 = vsel %vm1370, %v2080, 0
      %v2105 = vsel %vm1370, %v2082, 0
      %v2108 = vsel %vm1370, %v2084, 0
      %v2111 = vsel %vm1370, %v2086, 0
      %v2114 = vsel %vm1370, %v2088, 0
      %v2117 = vsel %vm1370, %v2090, 0
      %v2120 = vsel %vm1370, %v2092, 0
      %v2123 = vsel %vm1370, %v2094, 0
      %2125 = vmatprep.subr.bf16.mxu0 0
      %2126 = vmatpush1.bf16.xpose.msra.mxu0 %v2111
      %2127 = vmatprep.subr.bf16.mxu0 0
      %2128 = vmatpush1.bf16.xpose.msra.mxu0 %v2114
      %2129 = vmatprep.subr.bf16.mxu0 0
      %2130 = vmatpush1.bf16.xpose.msra.mxu0 %v2117
      %2131 = vmatprep.subr.bf16.mxu0 0
      %2132 = vmatpush1.bf16.xpose.msra.mxu0 %v2120
      %2133 = vmatprep.subr.bf16.mxu0 0
      %2134 = vmatpush1.bf16.xpose.msra.mxu0 %v2123
      %2135 = vmatprep.subr.bf16.mxu0 0
      %2136 = vmatpush1.bf16.xpose.msra.mxu0 0
      %2137 = vmatprep.subr.bf16.mxu0 0
      %2138 = vmatpush1.bf16.xpose.msra.mxu0 0
      %2139 = vmatprep.subr.bf16.mxu0 0
      %2140 = vmatpush1.bf16.xpose.msra.mxu0 0
      %2141 = vmatprep.subr.bf16.mxu0 0
      %2142 = vmatpush1.bf16.xpose.msra.mxu0 0
      %2143 = vmatprep.subr.bf16.mxu0 0
      %2144 = vmatpush1.bf16.xpose.msra.mxu0 0
      %2145 = vmatprep.subr.bf16.mxu0 0
      %2146 = vmatpush1.bf16.xpose.msra.mxu0 0
      %2147 = vmatprep.subr.bf16.mxu0 0
      %2148 = vmatpush1.bf16.xpose.msra.mxu0 0
      %2149 = vmatprep.subr.bf16.mxu0 0
      %2150 = vmatpush1.bf16.xpose.msra.mxu0 0
      %2151 = vmatprep.subr.bf16.mxu0 0
      %2152 = vmatpush1.bf16.xpose.msra.mxu0 0
      %2153 = vmatprep.subr.bf16.mxu0 0
      %2154 = vmatpush1.bf16.xpose.msra.mxu0 0
      %2155 = vmatprep.subr.bf16.mxu0 0
      %2156 = vmatpush1.bf16.xpose.msra.mxu0 0
      %2157 = vmatprep.mubr.bf16.mxu0 0
      %2158 = vmatmul.mubr.bf16.gmra.mrb[0].mxu0 %v2096
      %v2159 = vpop.f32.mrb[0].mxu0
      %v2160 = vadd.f32 %v843, %v2159
      %v2161 = vpop.f32.mrb[0].mxu0
      %v2162 = vpop.f32.mrb[0].mxu0
      %v2163 = vadd.f32 %v844, %v2162
      %v2164 = vpop.f32.mrb[0].mxu0
      %2165 = vmatprep.mubr.bf16.mxu0 0
      %2166 = vmatmul.mubr.bf16.gmra.mrb[0].mxu0 %v2099
      %v2167 = vpop.f32.mrb[0].mxu0
      %v2168 = vadd.f32 %v845, %v2167
      %v2169 = vpop.f32.mrb[0].mxu0
      %v2170 = vpop.f32.mrb[0].mxu0
      %v2171 = vadd.f32 %v846, %v2170
      %v2172 = vpop.f32.mrb[0].mxu0
      %2173 = vmatprep.mubr.bf16.mxu0 0
      %2174 = vmatmul.mubr.bf16.gmra.mrb[0].mxu0 %v2102
      %v2175 = vpop.f32.mrb[0].mxu0
      %v2176 = vadd.f32 %v847, %v2175
      %v2177 = vpop.f32.mrb[0].mxu0
      %v2178 = vpop.f32.mrb[0].mxu0
      %v2179 = vadd.f32 %v848, %v2178
      %v2180 = vpop.f32.mrb[0].mxu0
      %2181 = vmatprep.mubr.bf16.mxu0 0
      %2182 = vmatmul.mubr.bf16.gmra.mrb[0].mxu0 %v2105
      %v2183 = vpop.f32.mrb[0].mxu0
      %v2184 = vadd.f32 %v849, %v2183
      %v2185 = vpop.f32.mrb[0].mxu0
      %v2186 = vpop.f32.mrb[0].mxu0
      %v2187 = vadd.f32 %v850, %v2186
      %v2188 = vpop.f32.mrb[0].mxu0
      %2189 = vmatprep.mubr.bf16.mxu0 0
      %2190 = vmatmul.mubr.bf16.gmra.mrb[0].mxu0 %v2108
      %v2191 = vpop.f32.mrb[0].mxu0
      %v2192 = vadd.f32 %v851, %v2191
      %v2193 = vpop.f32.mrb[0].mxu0
      %v2194 = vpop.f32.mrb[0].mxu0
      %v2195 = vadd.f32 %v852, %v2194
      %v2196 = vpop.f32.mrb[0].mxu0
      %2197 = vdwg.mxu0
      %v2198 = vsel %vm1474, %v2160, -inf
      %2199 = vmax.xlane.f32.xlu0 %v2198
      %v2200 = vpop.xlane.xlu0 %2199
      %v2201 = vsel %vm1474, %v2163, -inf
      %2202 = vmax.xlane.f32.xlu0 %v2201
      %v2203 = vpop.xlane.xlu0 %2202
      %v2204 = vsel %vm1474, %v2168, -inf
      %2205 = vmax.xlane.f32.xlu0 %v2204
      %v2206 = vpop.xlane.xlu0 %2205
      %v2207 = vsel %vm1474, %v2171, -inf
      %2208 = vmax.xlane.f32.xlu0 %v2207
      %v2209 = vpop.xlane.xlu0 %2208
      %v2210 = vsel %vm1474, %v2176, -inf
      %2211 = vmax.xlane.f32.xlu0 %v2210
      %v2212 = vpop.xlane.xlu0 %2211
      %v2213 = vsel %vm1474, %v2179, -inf
      %2214 = vmax.xlane.f32.xlu0 %v2213
      %v2215 = vpop.xlane.xlu0 %2214
      %v2216 = vsel %vm1474, %v2184, -inf
      %2217 = vmax.xlane.f32.xlu0 %v2216
      %v2218 = vpop.xlane.xlu0 %2217
      %v2219 = vsel %vm1474, %v2187, -inf
      %2220 = vmax.xlane.f32.xlu0 %v2219
      %v2221 = vpop.xlane.xlu0 %2220
      %v2222 = vsel %vm1474, %v2192, -inf
      %2223 = vmax.xlane.f32.xlu0 %v2222
      %v2224 = vpop.xlane.xlu0 %2223
      %v2225 = vsel %vm1474, %v2195, -inf
      %2226 = vmax.xlane.f32.xlu0 %v2225
      %v2227 = vpop.xlane.xlu0 %2226
      %v2228 = vsub.f32 %v2160, %v2200
      %v2229 = vsub.f32 %v2163, %v2203
      %v2230 = vsub.f32 %v2168, %v2206
      %v2231 = vsub.f32 %v2171, %v2209
      %v2232 = vsub.f32 %v2176, %v2212
      %v2233 = vsub.f32 %v2179, %v2215
      %v2234 = vsub.f32 %v2184, %v2218
      %v2235 = vsub.f32 %v2187, %v2221
      %v2236 = vsub.f32 %v2192, %v2224
      %v2237 = vsub.f32 %v2195, %v2227
      %v2238 = vmul.f32 %v2228, 1.442695
      %v2239 = vpow.pop %v2238
      %v2240 = vmul.f32 %v2229, 1.442695
      %v2241 = vpow.pop %v2240
      %v2242 = vmul.f32 %v2230, 1.442695
      %v2243 = vpow.pop %v2242
      %v2244 = vmul.f32 %v2231, 1.442695
      %v2245 = vpow.pop %v2244
      %v2246 = vmul.f32 %v2232, 1.442695
      %v2247 = vpow.pop %v2246
      %v2248 = vmul.f32 %v2233, 1.442695
      %v2249 = vpow.pop %v2248
      %v2250 = vmul.f32 %v2234, 1.442695
      %v2251 = vpow.pop %v2250
      %v2252 = vmul.f32 %v2235, 1.442695
      %v2253 = vpow.pop %v2252
      %v2254 = vmul.f32 %v2236, 1.442695
      %v2255 = vpow.pop %v2254
      %v2256 = vmul.f32 %v2237, 1.442695
      %v2257 = vpow.pop %v2256
      %v2258 = vsel %vm1474, %v2239, 0.0
      %2259 = vadd.xlane.f32.xlu0 %v2258
      %v2260 = vpop.xlane.xlu0 %2259
      %v2261 = vsel %vm1474, %v2241, 0.0
      %2262 = vadd.xlane.f32.xlu0 %v2261
      %v2263 = vpop.xlane.xlu0 %2262
      %v2264 = vsel %vm1474, %v2243, 0.0
      %2265 = vadd.xlane.f32.xlu0 %v2264
      %v2266 = vpop.xlane.xlu0 %2265
      %v2267 = vsel %vm1474, %v2245, 0.0
      %2268 = vadd.xlane.f32.xlu0 %v2267
      %v2269 = vpop.xlane.xlu0 %2268
      %v2270 = vsel %vm1474, %v2247, 0.0
      %2271 = vadd.xlane.f32.xlu0 %v2270
      %v2272 = vpop.xlane.xlu0 %2271
      %v2273 = vsel %vm1474, %v2249, 0.0
      %2274 = vadd.xlane.f32.xlu0 %v2273
      %v2275 = vpop.xlane.xlu0 %2274
      %v2276 = vsel %vm1474, %v2251, 0.0
      %2277 = vadd.xlane.f32.xlu0 %v2276
      %v2278 = vpop.xlane.xlu0 %2277
      %v2279 = vsel %vm1474, %v2253, 0.0
      %2280 = vadd.xlane.f32.xlu0 %v2279
      %v2281 = vpop.xlane.xlu0 %2280
      %v2282 = vsel %vm1474, %v2255, 0.0
      %2283 = vadd.xlane.f32.xlu0 %v2282
      %v2284 = vpop.xlane.xlu0 %2283
      %v2285 = vsel %vm1474, %v2257, 0.0
      %2286 = vadd.xlane.f32.xlu0 %v2285
      %v2287 = vpop.xlane.xlu0 %2286
      %v2288 = vrcp.pop %v2260
      %v2289 = vrcp.pop %v2263
      %v2290 = vrcp.pop %v2266
      %v2291 = vrcp.pop %v2269
      %v2292 = vrcp.pop %v2272
      %v2293 = vrcp.pop %v2275
      %v2294 = vrcp.pop %v2278
      %v2295 = vrcp.pop %v2281
      %v2296 = vrcp.pop %v2284
      %v2297 = vrcp.pop %v2287
      %v2298 = vmul.f32 %v2239, %v2288
      %v2299 = vmul.f32 %v2241, %v2289
      %v2300 = vmul.f32 %v2243, %v2290
      %v2301 = vmul.f32 %v2245, %v2291
      %v2302 = vmul.f32 %v2247, %v2292
      %v2303 = vmul.f32 %v2249, %v2293
      %v2304 = vmul.f32 %v2251, %v2294
      %v2305 = vmul.f32 %v2253, %v2295
      %v2306 = vmul.f32 %v2255, %v2296
      %v2307 = vmul.f32 %v2257, %v2297
      %v2308 = vpack.c.bf16 %v2299, %v2298
      %v2309 = vpack.c.bf16 %v2301, %v2300
      %v2310 = vpack.c.bf16 %v2303, %v2302
      %v2311 = vpack.c.bf16 %v2305, %v2304
      %v2312 = vpack.c.bf16 %v2307, %v2306
      %2313 = vrot.lane.b32.xlu0 %v1345, 48
      %v2314 = vpop.permute.xlu0 %2313
      %2315 = vrot.lane.b32.xlu0 %v1346, 48
      %v2316 = vpop.permute.xlu0 %2315
      %2317 = vrot.lane.b32.xlu0 %v1347, 48
      %v2318 = vpop.permute.xlu0 %2317
      %2319 = vrot.lane.b32.xlu0 %v1348, 48
      %v2320 = vpop.permute.xlu0 %2319
      %2321 = vrot.lane.b32.xlu0 %v1349, 48
      %v2322 = vpop.permute.xlu0 %2321
      %v2329 = vsel %vm1474, %v2308, 0
      %v2332 = vsel %vm1474, %v2309, 0
      %v2335 = vsel %vm1474, %v2310, 0
      %v2338 = vsel %vm1474, %v2311, 0
      %v2341 = vsel %vm1474, %v2312, 0
      %2343 = vmatprep.subr.bf16.mxu0 0
      %2344 = vmatpush1.bf16.msra.mxu0 %v2314
      %2345 = vmatprep.subr.bf16.mxu0 0
      %2346 = vmatpush1.bf16.msra.mxu0 %v2316
      %2347 = vmatprep.subr.bf16.mxu0 0
      %2348 = vmatpush1.bf16.msra.mxu0 %v2318
      %2349 = vmatprep.subr.bf16.mxu0 0
      %2350 = vmatpush1.bf16.msra.mxu0 %v2320
      %2351 = vmatprep.subr.bf16.mxu0 0
      %2352 = vmatpush1.bf16.msra.mxu0 %v2322
      %2353 = vmatprep.subr.bf16.mxu0 0
      %2354 = vmatpush1.bf16.msra.mxu0 0
      %2355 = vmatprep.subr.bf16.mxu0 0
      %2356 = vmatpush1.bf16.msra.mxu0 0
      %2357 = vmatprep.subr.bf16.mxu0 0
      %2358 = vmatpush1.bf16.msra.mxu0 0
      %2359 = vmatprep.subr.bf16.mxu0 0
      %2360 = vmatpush1.bf16.msra.mxu0 0
      %2361 = vmatprep.subr.bf16.mxu0 0
      %2362 = vmatpush1.bf16.msra.mxu0 0
      %2363 = vmatprep.subr.bf16.mxu0 0
      %2364 = vmatpush1.bf16.msra.mxu0 0
      %2365 = vmatprep.subr.bf16.mxu0 0
      %2366 = vmatpush1.bf16.msra.mxu0 0
      %2367 = vmatprep.subr.bf16.mxu0 0
      %2368 = vmatpush1.bf16.msra.mxu0 0
      %2369 = vmatprep.subr.bf16.mxu0 0
      %2370 = vmatpush1.bf16.msra.mxu0 0
      %2371 = vmatprep.subr.bf16.mxu0 0
      %2372 = vmatpush1.bf16.msra.mxu0 0
      %2373 = vmatprep.subr.bf16.mxu0 0
      %2374 = vmatpush1.bf16.msra.mxu0 0
      %2375 = vmatprep.mubr.bf16.mxu0 0
      %2376 = vmatmul.mubr.bf16.gmra.mrb[0].mxu0 %v2329
      %v2377 = vpop.f32.mrb[0].mxu0
      %v2378 = vadd.f32 0.0, %v2377
      %v2379 = vpop.f32.mrb[0].mxu0
      %v2380 = vpop.f32.mrb[0].mxu0
      %v2381 = vadd.f32 0.0, %v2380
      %v2382 = vpop.f32.mrb[0].mxu0
      %2383 = vmatprep.mubr.bf16.mxu0 0
      %2384 = vmatmul.mubr.bf16.gmra.mrb[0].mxu0 %v2332
      %v2385 = vpop.f32.mrb[0].mxu0
      %v2386 = vadd.f32 0.0, %v2385
      %v2387 = vpop.f32.mrb[0].mxu0
      %v2388 = vpop.f32.mrb[0].mxu0
      %v2389 = vadd.f32 0.0, %v2388
      %v2390 = vpop.f32.mrb[0].mxu0
      %2391 = vmatprep.mubr.bf16.mxu0 0
      %2392 = vmatmul.mubr.bf16.gmra.mrb[0].mxu0 %v2335
      %v2393 = vpop.f32.mrb[0].mxu0
      %v2394 = vadd.f32 0.0, %v2393
      %v2395 = vpop.f32.mrb[0].mxu0
      %v2396 = vpop.f32.mrb[0].mxu0
      %v2397 = vadd.f32 0.0, %v2396
      %v2398 = vpop.f32.mrb[0].mxu0
      %2399 = vmatprep.mubr.bf16.mxu0 0
      %2400 = vmatmul.mubr.bf16.gmra.mrb[0].mxu0 %v2338
      %v2401 = vpop.f32.mrb[0].mxu0
      %v2402 = vadd.f32 0.0, %v2401
      %v2403 = vpop.f32.mrb[0].mxu0
      %v2404 = vpop.f32.mrb[0].mxu0
      %v2405 = vadd.f32 0.0, %v2404
      %v2406 = vpop.f32.mrb[0].mxu0
      %2407 = vmatprep.mubr.bf16.mxu0 0
      %2408 = vmatmul.mubr.bf16.gmra.mrb[0].mxu0 %v2341
      %v2409 = vpop.f32.mrb[0].mxu0
      %v2410 = vadd.f32 0.0, %v2409
      %v2411 = vpop.f32.mrb[0].mxu0
      %v2412 = vpop.f32.mrb[0].mxu0
      %v2413 = vadd.f32 0.0, %v2412
      %v2414 = vpop.f32.mrb[0].mxu0
      %2415 = vdwg.mxu0
      %v2416 = vpack.c.bf16 %v2381, %v2378
      %v2417 = vpack.c.bf16 %v2389, %v2386
      %v2418 = vpack.c.bf16 %v2397, %v2394
      %v2419 = vpack.c.bf16 %v2405, %v2402
      %v2420 = vpack.c.bf16 %v2413, %v2410
      %2426 = vrot.lane.b32.xlu0 %v2416, 16
      %v2427 = vpop.permute.xlu0 %2426
      %2428 = vrot.lane.b32.xlu0 %v2417, 16
      %v2429 = vpop.permute.xlu0 %2428
      %2430 = vrot.lane.b32.xlu0 %v2418, 16
      %v2431 = vpop.permute.xlu0 %2430
      %2432 = vrot.lane.b32.xlu0 %v2419, 16
      %v2433 = vpop.permute.xlu0 %2432
      %2434 = vrot.lane.b32.xlu0 %v2420, 16
      %v2435 = vpop.permute.xlu0 %2434
      %vm2441 = vcmask 195712
      %2442 = vst.msk [vmem:[#allocation3] sm:$0xff] %vm2441, %v2427
      %2443 = vst.msk [vmem:[#allocation3 + $0x8] sm:$0xff] %vm2441, %v2429
      %2444 = vst.msk [vmem:[#allocation3 + $0x10] sm:$0xff] %vm2441, %v2431
      %2445 = vst.msk [vmem:[#allocation3 + $0x18] sm:$0xff] %vm2441, %v2433
      %2446 = vst.msk [vmem:[#allocation3 + $0x20] sm:$0xff] %vm2441, %v2435
      %2447 = vrot.lane.b32.xlu0 %v1345, 104
      %v2448 = vpop.permute.xlu0 %2447
      %2449 = vrot.lane.b32.xlu0 %v1346, 104
      %v2450 = vpop.permute.xlu0 %2449
      %2451 = vrot.lane.b32.xlu0 %v1347, 104
      %v2452 = vpop.permute.xlu0 %2451
      %2453 = vrot.lane.b32.xlu0 %v1348, 104
      %v2454 = vpop.permute.xlu0 %2453
      %2455 = vrot.lane.b32.xlu0 %v1349, 104
      %v2456 = vpop.permute.xlu0 %2455
      %2457 = vrot.lane.b32.xlu0 %v1345, 72
      %v2458 = vpop.permute.xlu0 %2457
      %2459 = vrot.lane.b32.xlu0 %v1346, 72
      %v2460 = vpop.permute.xlu0 %2459
      %2461 = vrot.lane.b32.xlu0 %v1347, 72
      %v2462 = vpop.permute.xlu0 %2461
      %2463 = vrot.lane.b32.xlu0 %v1348, 72
      %v2464 = vpop.permute.xlu0 %2463
      %2465 = vrot.lane.b32.xlu0 %v1349, 72
      %v2466 = vpop.permute.xlu0 %2465
      %v2468 = vsel %vm1370, %v2448, 0
      %v2471 = vsel %vm1370, %v2450, 0
      %v2474 = vsel %vm1370, %v2452, 0
      %v2477 = vsel %vm1370, %v2454, 0
      %v2480 = vsel %vm1370, %v2456, 0
      %v2483 = vsel %vm1370, %v2458, 0
      %v2486 = vsel %vm1370, %v2460, 0
      %v2489 = vsel %vm1370, %v2462, 0
      %v2492 = vsel %vm1370, %v2464, 0
      %v2495 = vsel %vm1370, %v2466, 0
      %2497 = vmatprep.subr.bf16.mxu0 0
      %2498 = vmatpush1.bf16.xpose.msra.mxu0 %v2483
      %2499 = vmatprep.subr.bf16.mxu0 0
      %2500 = vmatpush1.bf16.xpose.msra.mxu0 %v2486
      %2501 = vmatprep.subr.bf16.mxu0 0
      %2502 = vmatpush1.bf16.xpose.msra.mxu0 %v2489
      %2503 = vmatprep.subr.bf16.mxu0 0
      %2504 = vmatpush1.bf16.xpose.msra.mxu0 %v2492
      %2505 = vmatprep.subr.bf16.mxu0 0
      %2506 = vmatpush1.bf16.xpose.msra.mxu0 %v2495
      %2507 = vmatprep.subr.bf16.mxu0 0
      %2508 = vmatpush1.bf16.xpose.msra.mxu0 0
      %2509 = vmatprep.subr.bf16.mxu0 0
      %2510 = vmatpush1.bf16.xpose.msra.mxu0 0
      %2511 = vmatprep.subr.bf16.mxu0 0
      %2512 = vmatpush1.bf16.xpose.msra.mxu0 0
      %2513 = vmatprep.subr.bf16.mxu0 0
      %2514 = vmatpush1.bf16.xpose.msra.mxu0 0
      %2515 = vmatprep.subr.bf16.mxu0 0
      %2516 = vmatpush1.bf16.xpose.msra.mxu0 0
      %2517 = vmatprep.subr.bf16.mxu0 0
      %2518 = vmatpush1.bf16.xpose.msra.mxu0 0
      %2519 = vmatprep.subr.bf16.mxu0 0
      %2520 = vmatpush1.bf16.xpose.msra.mxu0 0
      %2521 = vmatprep.subr.bf16.mxu0 0
      %2522 = vmatpush1.bf16.xpose.msra.mxu0 0
      %2523 = vmatprep.subr.bf16.mxu0 0
      %2524 = vmatpush1.bf16.xpose.msra.mxu0 0
      %2525 = vmatprep.subr.bf16.mxu0 0
      %2526 = vmatpush1.bf16.xpose.msra.mxu0 0
      %2527 = vmatprep.subr.bf16.mxu0 0
      %2528 = vmatpush1.bf16.xpose.msra.mxu0 0
      %2529 = vmatprep.mubr.bf16.mxu0 0
      %2530 = vmatmul.mubr.bf16.gmra.mrb[0].mxu0 %v2468
      %v2531 = vpop.f32.mrb[0].mxu0
      %v2532 = vadd.f32 %v843, %v2531
      %v2533 = vpop.f32.mrb[0].mxu0
      %v2534 = vpop.f32.mrb[0].mxu0
      %v2535 = vadd.f32 %v844, %v2534
      %v2536 = vpop.f32.mrb[0].mxu0
      %2537 = vmatprep.mubr.bf16.mxu0 0
      %2538 = vmatmul.mubr.bf16.gmra.mrb[0].mxu0 %v2471
      %v2539 = vpop.f32.mrb[0].mxu0
      %v2540 = vadd.f32 %v845, %v2539
      %v2541 = vpop.f32.mrb[0].mxu0
      %v2542 = vpop.f32.mrb[0].mxu0
      %v2543 = vadd.f32 %v846, %v2542
      %v2544 = vpop.f32.mrb[0].mxu0
      %2545 = vmatprep.mubr.bf16.mxu0 0
      %2546 = vmatmul.mubr.bf16.gmra.mrb[0].mxu0 %v2474
      %v2547 = vpop.f32.mrb[0].mxu0
      %v2548 = vadd.f32 %v847, %v2547
      %v2549 = vpop.f32.mrb[0].mxu0
      %v2550 = vpop.f32.mrb[0].mxu0
      %v2551 = vadd.f32 %v848, %v2550
      %v2552 = vpop.f32.mrb[0].mxu0
      %2553 = vmatprep.mubr.bf16.mxu0 0
      %2554 = vmatmul.mubr.bf16.gmra.mrb[0].mxu0 %v2477
      %v2555 = vpop.f32.mrb[0].mxu0
      %v2556 = vadd.f32 %v849, %v2555
      %v2557 = vpop.f32.mrb[0].mxu0
      %v2558 = vpop.f32.mrb[0].mxu0
      %v2559 = vadd.f32 %v850, %v2558
      %v2560 = vpop.f32.mrb[0].mxu0
      %2561 = vmatprep.mubr.bf16.mxu0 0
      %2562 = vmatmul.mubr.bf16.gmra.mrb[0].mxu0 %v2480
      %v2563 = vpop.f32.mrb[0].mxu0
      %v2564 = vadd.f32 %v851, %v2563
      %v2565 = vpop.f32.mrb[0].mxu0
      %v2566 = vpop.f32.mrb[0].mxu0
      %v2567 = vadd.f32 %v852, %v2566
      %v2568 = vpop.f32.mrb[0].mxu0
      %2569 = vdwg.mxu0
      %v2570 = vsel %vm1474, %v2532, -inf
      %2571 = vmax.xlane.f32.xlu0 %v2570
      %v2572 = vpop.xlane.xlu0 %2571
      %v2573 = vsel %vm1474, %v2535, -inf
      %2574 = vmax.xlane.f32.xlu0 %v2573
      %v2575 = vpop.xlane.xlu0 %2574
      %v2576 = vsel %vm1474, %v2540, -inf
      %2577 = vmax.xlane.f32.xlu0 %v2576
      %v2578 = vpop.xlane.xlu0 %2577
      %v2579 = vsel %vm1474, %v2543, -inf
      %2580 = vmax.xlane.f32.xlu0 %v2579
      %v2581 = vpop.xlane.xlu0 %2580
      %v2582 = vsel %vm1474, %v2548, -inf
      %2583 = vmax.xlane.f32.xlu0 %v2582
      %v2584 = vpop.xlane.xlu0 %2583
      %v2585 = vsel %vm1474, %v2551, -inf
      %2586 = vmax.xlane.f32.xlu0 %v2585
      %v2587 = vpop.xlane.xlu0 %2586
      %v2588 = vsel %vm1474, %v2556, -inf
      %2589 = vmax.xlane.f32.xlu0 %v2588
      %v2590 = vpop.xlane.xlu0 %2589
      %v2591 = vsel %vm1474, %v2559, -inf
      %2592 = vmax.xlane.f32.xlu0 %v2591
      %v2593 = vpop.xlane.xlu0 %2592
      %v2594 = vsel %vm1474, %v2564, -inf
      %2595 = vmax.xlane.f32.xlu0 %v2594
      %v2596 = vpop.xlane.xlu0 %2595
      %v2597 = vsel %vm1474, %v2567, -inf
      %2598 = vmax.xlane.f32.xlu0 %v2597
      %v2599 = vpop.xlane.xlu0 %2598
      %v2600 = vsub.f32 %v2532, %v2572
      %v2601 = vsub.f32 %v2535, %v2575
      %v2602 = vsub.f32 %v2540, %v2578
      %v2603 = vsub.f32 %v2543, %v2581
      %v2604 = vsub.f32 %v2548, %v2584
      %v2605 = vsub.f32 %v2551, %v2587
      %v2606 = vsub.f32 %v2556, %v2590
      %v2607 = vsub.f32 %v2559, %v2593
      %v2608 = vsub.f32 %v2564, %v2596
      %v2609 = vsub.f32 %v2567, %v2599
      %v2610 = vmul.f32 %v2600, 1.442695
      %v2611 = vpow.pop %v2610
      %v2612 = vmul.f32 %v2601, 1.442695
      %v2613 = vpow.pop %v2612
      %v2614 = vmul.f32 %v2602, 1.442695
      %v2615 = vpow.pop %v2614
      %v2616 = vmul.f32 %v2603, 1.442695
      %v2617 = vpow.pop %v2616
      %v2618 = vmul.f32 %v2604, 1.442695
      %v2619 = vpow.pop %v2618
      %v2620 = vmul.f32 %v2605, 1.442695
      %v2621 = vpow.pop %v2620
      %v2622 = vmul.f32 %v2606, 1.442695
      %v2623 = vpow.pop %v2622
      %v2624 = vmul.f32 %v2607, 1.442695
      %v2625 = vpow.pop %v2624
      %v2626 = vmul.f32 %v2608, 1.442695
      %v2627 = vpow.pop %v2626
      %v2628 = vmul.f32 %v2609, 1.442695
      %v2629 = vpow.pop %v2628
      %v2630 = vsel %vm1474, %v2611, 0.0
      %2631 = vadd.xlane.f32.xlu0 %v2630
      %v2632 = vpop.xlane.xlu0 %2631
      %v2633 = vsel %vm1474, %v2613, 0.0
      %2634 = vadd.xlane.f32.xlu0 %v2633
      %v2635 = vpop.xlane.xlu0 %2634
      %v2636 = vsel %vm1474, %v2615, 0.0
      %2637 = vadd.xlane.f32.xlu0 %v2636
      %v2638 = vpop.xlane.xlu0 %2637
      %v2639 = vsel %vm1474, %v2617, 0.0
      %2640 = vadd.xlane.f32.xlu0 %v2639
      %v2641 = vpop.xlane.xlu0 %2640
      %v2642 = vsel %vm1474, %v2619, 0.0
      %2643 = vadd.xlane.f32.xlu0 %v2642
      %v2644 = vpop.xlane.xlu0 %2643
      %v2645 = vsel %vm1474, %v2621, 0.0
      %2646 = vadd.xlane.f32.xlu0 %v2645
      %v2647 = vpop.xlane.xlu0 %2646
      %v2648 = vsel %vm1474, %v2623, 0.0
      %2649 = vadd.xlane.f32.xlu0 %v2648
      %v2650 = vpop.xlane.xlu0 %2649
      %v2651 = vsel %vm1474, %v2625, 0.0
      %2652 = vadd.xlane.f32.xlu0 %v2651
      %v2653 = vpop.xlane.xlu0 %2652
      %v2654 = vsel %vm1474, %v2627, 0.0
      %2655 = vadd.xlane.f32.xlu0 %v2654
      %v2656 = vpop.xlane.xlu0 %2655
      %v2657 = vsel %vm1474, %v2629, 0.0
      %2658 = vadd.xlane.f32.xlu0 %v2657
      %v2659 = vpop.xlane.xlu0 %2658
      %v2660 = vrcp.pop %v2632
      %v2661 = vrcp.pop %v2635
      %v2662 = vrcp.pop %v2638
      %v2663 = vrcp.pop %v2641
      %v2664 = vrcp.pop %v2644
      %v2665 = vrcp.pop %v2647
      %v2666 = vrcp.pop %v2650
      %v2667 = vrcp.pop %v2653
      %v2668 = vrcp.pop %v2656
      %v2669 = vrcp.pop %v2659
      %v2670 = vmul.f32 %v2611, %v2660
      %v2671 = vmul.f32 %v2613, %v2661
      %v2672 = vmul.f32 %v2615, %v2662
      %v2673 = vmul.f32 %v2617, %v2663
      %v2674 = vmul.f32 %v2619, %v2664
      %v2675 = vmul.f32 %v2621, %v2665
      %v2676 = vmul.f32 %v2623, %v2666
      %v2677 = vmul.f32 %v2625, %v2667
      %v2678 = vmul.f32 %v2627, %v2668
      %v2679 = vmul.f32 %v2629, %v2669
      %v2680 = vpack.c.bf16 %v2671, %v2670
      %v2681 = vpack.c.bf16 %v2673, %v2672
      %v2682 = vpack.c.bf16 %v2675, %v2674
      %v2683 = vpack.c.bf16 %v2677, %v2676
      %v2684 = vpack.c.bf16 %v2679, %v2678
      %2685 = vrot.lane.b32.xlu0 %v1345, 40
      %v2686 = vpop.permute.xlu0 %2685
      %2687 = vrot.lane.b32.xlu0 %v1346, 40
      %v2688 = vpop.permute.xlu0 %2687
      %2689 = vrot.lane.b32.xlu0 %v1347, 40
      %v2690 = vpop.permute.xlu0 %2689
      %2691 = vrot.lane.b32.xlu0 %v1348, 40
      %v2692 = vpop.permute.xlu0 %2691
      %2693 = vrot.lane.b32.xlu0 %v1349, 40
      %v2694 = vpop.permute.xlu0 %2693
      %v2701 = vsel %vm1474, %v2680, 0
      %v2704 = vsel %vm1474, %v2681, 0
      %v2707 = vsel %vm1474, %v2682, 0
      %v2710 = vsel %vm1474, %v2683, 0
      %v2713 = vsel %vm1474, %v2684, 0
      %2715 = vmatprep.subr.bf16.mxu0 0
      %2716 = vmatpush1.bf16.msra.mxu0 %v2686
      %2717 = vmatprep.subr.bf16.mxu0 0
      %2718 = vmatpush1.bf16.msra.mxu0 %v2688
      %2719 = vmatprep.subr.bf16.mxu0 0
      %2720 = vmatpush1.bf16.msra.mxu0 %v2690
      %2721 = vmatprep.subr.bf16.mxu0 0
      %2722 = vmatpush1.bf16.msra.mxu0 %v2692
      %2723 = vmatprep.subr.bf16.mxu0 0
      %2724 = vmatpush1.bf16.msra.mxu0 %v2694
      %2725 = vmatprep.subr.bf16.mxu0 0
      %2726 = vmatpush1.bf16.msra.mxu0 0
      %2727 = vmatprep.subr.bf16.mxu0 0
      %2728 = vmatpush1.bf16.msra.mxu0 0
      %2729 = vmatprep.subr.bf16.mxu0 0
      %2730 = vmatpush1.bf16.msra.mxu0 0
      %2731 = vmatprep.subr.bf16.mxu0 0
      %2732 = vmatpush1.bf16.msra.mxu0 0
      %2733 = vmatprep.subr.bf16.mxu0 0
      %2734 = vmatpush1.bf16.msra.mxu0 0
      %2735 = vmatprep.subr.bf16.mxu0 0
      %2736 = vmatpush1.bf16.msra.mxu0 0
      %2737 = vmatprep.subr.bf16.mxu0 0
      %2738 = vmatpush1.bf16.msra.mxu0 0
      %2739 = vmatprep.subr.bf16.mxu0 0
      %2740 = vmatpush1.bf16.msra.mxu0 0
      %2741 = vmatprep.subr.bf16.mxu0 0
      %2742 = vmatpush1.bf16.msra.mxu0 0
      %2743 = vmatprep.subr.bf16.mxu0 0
      %2744 = vmatpush1.bf16.msra.mxu0 0
      %2745 = vmatprep.subr.bf16.mxu0 0
      %2746 = vmatpush1.bf16.msra.mxu0 0
      %2747 = vmatprep.mubr.bf16.mxu0 0
      %2748 = vmatmul.mubr.bf16.gmra.mrb[0].mxu0 %v2701
      %v2749 = vpop.f32.mrb[0].mxu0
      %v2750 = vadd.f32 0.0, %v2749
      %v2751 = vpop.f32.mrb[0].mxu0
      %v2752 = vpop.f32.mrb[0].mxu0
      %v2753 = vadd.f32 0.0, %v2752
      %v2754 = vpop.f32.mrb[0].mxu0
      %2755 = vmatprep.mubr.bf16.mxu0 0
      %2756 = vmatmul.mubr.bf16.gmra.mrb[0].mxu0 %v2704
      %v2757 = vpop.f32.mrb[0].mxu0
      %v2758 = vadd.f32 0.0, %v2757
      %v2759 = vpop.f32.mrb[0].mxu0
      %v2760 = vpop.f32.mrb[0].mxu0
      %v2761 = vadd.f32 0.0, %v2760
      %v2762 = vpop.f32.mrb[0].mxu0
      %2763 = vmatprep.mubr.bf16.mxu0 0
      %2764 = vmatmul.mubr.bf16.gmra.mrb[0].mxu0 %v2707
      %v2765 = vpop.f32.mrb[0].mxu0
      %v2766 = vadd.f32 0.0, %v2765
      %v2767 = vpop.f32.mrb[0].mxu0
      %v2768 = vpop.f32.mrb[0].mxu0
      %v2769 = vadd.f32 0.0, %v2768
      %v2770 = vpop.f32.mrb[0].mxu0
      %2771 = vmatprep.mubr.bf16.mxu0 0
      %2772 = vmatmul.mubr.bf16.gmra.mrb[0].mxu0 %v2710
      %v2773 = vpop.f32.mrb[0].mxu0
      %v2774 = vadd.f32 0.0, %v2773
      %v2775 = vpop.f32.mrb[0].mxu0
      %v2776 = vpop.f32.mrb[0].mxu0
      %v2777 = vadd.f32 0.0, %v2776
      %v2778 = vpop.f32.mrb[0].mxu0
      %2779 = vmatprep.mubr.bf16.mxu0 0
      %2780 = vmatmul.mubr.bf16.gmra.mrb[0].mxu0 %v2713
      %v2781 = vpop.f32.mrb[0].mxu0
      %v2782 = vadd.f32 0.0, %v2781
      %v2783 = vpop.f32.mrb[0].mxu0
      %v2784 = vpop.f32.mrb[0].mxu0
      %v2785 = vadd.f32 0.0, %v2784
      %v2786 = vpop.f32.mrb[0].mxu0
      %2787 = vdwg.mxu0
      %v2788 = vpack.c.bf16 %v2753, %v2750
      %v2789 = vpack.c.bf16 %v2761, %v2758
      %v2790 = vpack.c.bf16 %v2769, %v2766
      %v2791 = vpack.c.bf16 %v2777, %v2774
      %v2792 = vpack.c.bf16 %v2785, %v2782
      %2798 = vrot.lane.b32.xlu0 %v2788, 24
      %v2799 = vpop.permute.xlu0 %2798
      %2800 = vrot.lane.b32.xlu0 %v2789, 24
      %v2801 = vpop.permute.xlu0 %2800
      %2802 = vrot.lane.b32.xlu0 %v2790, 24
      %v2803 = vpop.permute.xlu0 %2802
      %2804 = vrot.lane.b32.xlu0 %v2791, 24
      %v2805 = vpop.permute.xlu0 %2804
      %2806 = vrot.lane.b32.xlu0 %v2792, 24
      %v2807 = vpop.permute.xlu0 %2806
      %vm2813 = vcmask 261312
      %2814 = vst.msk [vmem:[#allocation3] sm:$0xff] %vm2813, %v2799
      %2815 = vst.msk [vmem:[#allocation3 + $0x8] sm:$0xff] %vm2813, %v2801
      %2816 = vst.msk [vmem:[#allocation3 + $0x10] sm:$0xff] %vm2813, %v2803
      %2817 = vst.msk [vmem:[#allocation3 + $0x18] sm:$0xff] %vm2813, %v2805
      %2818 = vst.msk [vmem:[#allocation3 + $0x20] sm:$0xff] %vm2813, %v2807
      %2824 = vrot.lane.b32.xlu0 %v1350, 96
      %v2825 = vpop.permute.xlu0 %2824
      %2826 = vrot.lane.b32.xlu0 %v1351, 96
      %v2827 = vpop.permute.xlu0 %2826
      %2828 = vrot.lane.b32.xlu0 %v1352, 96
      %v2829 = vpop.permute.xlu0 %2828
      %2830 = vrot.lane.b32.xlu0 %v1353, 96
      %v2831 = vpop.permute.xlu0 %2830
      %2832 = vrot.lane.b32.xlu0 %v1354, 96
      %v2833 = vpop.permute.xlu0 %2832
      %v2835 = vsel %vm1370, %v1350, 0
      %v2838 = vsel %vm1370, %v1351, 0
      %v2841 = vsel %vm1370, %v1352, 0
      %v2844 = vsel %vm1370, %v1353, 0
      %v2847 = vsel %vm1370, %v1354, 0
      %v2850 = vsel %vm1370, %v2825, 0
      %v2853 = vsel %vm1370, %v2827, 0
      %v2856 = vsel %vm1370, %v2829, 0
      %v2859 = vsel %vm1370, %v2831, 0
      %v2862 = vsel %vm1370, %v2833, 0
      %2864 = vmatprep.subr.bf16.mxu0 0
      %2865 = vmatpush1.bf16.xpose.msra.mxu0 %v2850
      %2866 = vmatprep.subr.bf16.mxu0 0
      %2867 = vmatpush1.bf16.xpose.msra.mxu0 %v2853
      %2868 = vmatprep.subr.bf16.mxu0 0
      %2869 = vmatpush1.bf16.xpose.msra.mxu0 %v2856
      %2870 = vmatprep.subr.bf16.mxu0 0
      %2871 = vmatpush1.bf16.xpose.msra.mxu0 %v2859
      %2872 = vmatprep.subr.bf16.mxu0 0
      %2873 = vmatpush1.bf16.xpose.msra.mxu0 %v2862
      %2874 = vmatprep.subr.bf16.mxu0 0
      %2875 = vmatpush1.bf16.xpose.msra.mxu0 0
      %2876 = vmatprep.subr.bf16.mxu0 0
      %2877 = vmatpush1.bf16.xpose.msra.mxu0 0
      %2878 = vmatprep.subr.bf16.mxu0 0
      %2879 = vmatpush1.bf16.xpose.msra.mxu0 0
      %2880 = vmatprep.subr.bf16.mxu0 0
      %2881 = vmatpush1.bf16.xpose.msra.mxu0 0
      %2882 = vmatprep.subr.bf16.mxu0 0
      %2883 = vmatpush1.bf16.xpose.msra.mxu0 0
      %2884 = vmatprep.subr.bf16.mxu0 0
      %2885 = vmatpush1.bf16.xpose.msra.mxu0 0
      %2886 = vmatprep.subr.bf16.mxu0 0
      %2887 = vmatpush1.bf16.xpose.msra.mxu0 0
      %2888 = vmatprep.subr.bf16.mxu0 0
      %2889 = vmatpush1.bf16.xpose.msra.mxu0 0
      %2890 = vmatprep.subr.bf16.mxu0 0
      %2891 = vmatpush1.bf16.xpose.msra.mxu0 0
      %2892 = vmatprep.subr.bf16.mxu0 0
      %2893 = vmatpush1.bf16.xpose.msra.mxu0 0
      %2894 = vmatprep.subr.bf16.mxu0 0
      %2895 = vmatpush1.bf16.xpose.msra.mxu0 0
      %2896 = vmatprep.mubr.bf16.mxu0 0
      %2897 = vmatmul.mubr.bf16.gmra.mrb[0].mxu0 %v2835
      %v2898 = vpop.f32.mrb[0].mxu0
      %v2899 = vadd.f32 %v843, %v2898
      %v2900 = vpop.f32.mrb[0].mxu0
      %v2901 = vpop.f32.mrb[0].mxu0
      %v2902 = vadd.f32 %v844, %v2901
      %v2903 = vpop.f32.mrb[0].mxu0
      %2904 = vmatprep.mubr.bf16.mxu0 0
      %2905 = vmatmul.mubr.bf16.gmra.mrb[0].mxu0 %v2838
      %v2906 = vpop.f32.mrb[0].mxu0
      %v2907 = vadd.f32 %v845, %v2906
      %v2908 = vpop.f32.mrb[0].mxu0
      %v2909 = vpop.f32.mrb[0].mxu0
      %v2910 = vadd.f32 %v846, %v2909
      %v2911 = vpop.f32.mrb[0].mxu0
      %2912 = vmatprep.mubr.bf16.mxu0 0
      %2913 = vmatmul.mubr.bf16.gmra.mrb[0].mxu0 %v2841
      %v2914 = vpop.f32.mrb[0].mxu0
      %v2915 = vadd.f32 %v847, %v2914
      %v2916 = vpop.f32.mrb[0].mxu0
      %v2917 = vpop.f32.mrb[0].mxu0
      %v2918 = vadd.f32 %v848, %v2917
      %v2919 = vpop.f32.mrb[0].mxu0
      %2920 = vmatprep.mubr.bf16.mxu0 0
      %2921 = vmatmul.mubr.bf16.gmra.mrb[0].mxu0 %v2844
      %v2922 = vpop.f32.mrb[0].mxu0
      %v2923 = vadd.f32 %v849, %v2922
      %v2924 = vpop.f32.mrb[0].mxu0
      %v2925 = vpop.f32.mrb[0].mxu0
      %v2926 = vadd.f32 %v850, %v2925
      %v2927 = vpop.f32.mrb[0].mxu0
      %2928 = vmatprep.mubr.bf16.mxu0 0
      %2929 = vmatmul.mubr.bf16.gmra.mrb[0].mxu0 %v2847
      %v2930 = vpop.f32.mrb[0].mxu0
      %v2931 = vadd.f32 %v851, %v2930
      %v2932 = vpop.f32.mrb[0].mxu0
      %v2933 = vpop.f32.mrb[0].mxu0
      %v2934 = vadd.f32 %v852, %v2933
      %v2935 = vpop.f32.mrb[0].mxu0
      %2936 = vdwg.mxu0
      %v2937 = vsel %vm1474, %v2899, -inf
      %2938 = vmax.xlane.f32.xlu0 %v2937
      %v2939 = vpop.xlane.xlu0 %2938
      %v2940 = vsel %vm1474, %v2902, -inf
      %2941 = vmax.xlane.f32.xlu0 %v2940
      %v2942 = vpop.xlane.xlu0 %2941
      %v2943 = vsel %vm1474, %v2907, -inf
      %2944 = vmax.xlane.f32.xlu0 %v2943
      %v2945 = vpop.xlane.xlu0 %2944
      %v2946 = vsel %vm1474, %v2910, -inf
      %2947 = vmax.xlane.f32.xlu0 %v2946
      %v2948 = vpop.xlane.xlu0 %2947
      %v2949 = vsel %vm1474, %v2915, -inf
      %2950 = vmax.xlane.f32.xlu0 %v2949
      %v2951 = vpop.xlane.xlu0 %2950
      %v2952 = vsel %vm1474, %v2918, -inf
      %2953 = vmax.xlane.f32.xlu0 %v2952
      %v2954 = vpop.xlane.xlu0 %2953
      %v2955 = vsel %vm1474, %v2923, -inf
      %2956 = vmax.xlane.f32.xlu0 %v2955
      %v2957 = vpop.xlane.xlu0 %2956
      %v2958 = vsel %vm1474, %v2926, -inf
      %2959 = vmax.xlane.f32.xlu0 %v2958
      %v2960 = vpop.xlane.xlu0 %2959
      %v2961 = vsel %vm1474, %v2931, -inf
      %2962 = vmax.xlane.f32.xlu0 %v2961
      %v2963 = vpop.xlane.xlu0 %2962
      %v2964 = vsel %vm1474, %v2934, -inf
      %2965 = vmax.xlane.f32.xlu0 %v2964
      %v2966 = vpop.xlane.xlu0 %2965
      %v2967 = vsub.f32 %v2899, %v2939
      %v2968 = vsub.f32 %v2902, %v2942
      %v2969 = vsub.f32 %v2907, %v2945
      %v2970 = vsub.f32 %v2910, %v2948
      %v2971 = vsub.f32 %v2915, %v2951
      %v2972 = vsub.f32 %v2918, %v2954
      %v2973 = vsub.f32 %v2923, %v2957
      %v2974 = vsub.f32 %v2926, %v2960
      %v2975 = vsub.f32 %v2931, %v2963
      %v2976 = vsub.f32 %v2934, %v2966
      %v2977 = vmul.f32 %v2967, 1.442695
      %v2978 = vpow.pop %v2977
      %v2979 = vmul.f32 %v2968, 1.442695
      %v2980 = vpow.pop %v2979
      %v2981 = vmul.f32 %v2969, 1.442695
      %v2982 = vpow.pop %v2981
      %v2983 = vmul.f32 %v2970, 1.442695
      %v2984 = vpow.pop %v2983
      %v2985 = vmul.f32 %v2971, 1.442695
      %v2986 = vpow.pop %v2985
      %v2987 = vmul.f32 %v2972, 1.442695
      %v2988 = vpow.pop %v2987
      %v2989 = vmul.f32 %v2973, 1.442695
      %v2990 = vpow.pop %v2989
      %v2991 = vmul.f32 %v2974, 1.442695
      %v2992 = vpow.pop %v2991
      %v2993 = vmul.f32 %v2975, 1.442695
      %v2994 = vpow.pop %v2993
      %v2995 = vmul.f32 %v2976, 1.442695
      %v2996 = vpow.pop %v2995
      %v2997 = vsel %vm1474, %v2978, 0.0
      %2998 = vadd.xlane.f32.xlu0 %v2997
      %v2999 = vpop.xlane.xlu0 %2998
      %v3000 = vsel %vm1474, %v2980, 0.0
      %3001 = vadd.xlane.f32.xlu0 %v3000
      %v3002 = vpop.xlane.xlu0 %3001
      %v3003 = vsel %vm1474, %v2982, 0.0
      %3004 = vadd.xlane.f32.xlu0 %v3003
      %v3005 = vpop.xlane.xlu0 %3004
      %v3006 = vsel %vm1474, %v2984, 0.0
      %3007 = vadd.xlane.f32.xlu0 %v3006
      %v3008 = vpop.xlane.xlu0 %3007
      %v3009 = vsel %vm1474, %v2986, 0.0
      %3010 = vadd.xlane.f32.xlu0 %v3009
      %v3011 = vpop.xlane.xlu0 %3010
      %v3012 = vsel %vm1474, %v2988, 0.0
      %3013 = vadd.xlane.f32.xlu0 %v3012
      %v3014 = vpop.xlane.xlu0 %3013
      %v3015 = vsel %vm1474, %v2990, 0.0
      %3016 = vadd.xlane.f32.xlu0 %v3015
      %v3017 = vpop.xlane.xlu0 %3016
      %v3018 = vsel %vm1474, %v2992, 0.0
      %3019 = vadd.xlane.f32.xlu0 %v3018
      %v3020 = vpop.xlane.xlu0 %3019
      %v3021 = vsel %vm1474, %v2994, 0.0
      %3022 = vadd.xlane.f32.xlu0 %v3021
      %v3023 = vpop.xlane.xlu0 %3022
      %v3024 = vsel %vm1474, %v2996, 0.0
      %3025 = vadd.xlane.f32.xlu0 %v3024
      %v3026 = vpop.xlane.xlu0 %3025
      %v3027 = vrcp.pop %v2999
      %v3028 = vrcp.pop %v3002
      %v3029 = vrcp.pop %v3005
      %v3030 = vrcp.pop %v3008
      %v3031 = vrcp.pop %v3011
      %v3032 = vrcp.pop %v3014
      %v3033 = vrcp.pop %v3017
      %v3034 = vrcp.pop %v3020
      %v3035 = vrcp.pop %v3023
      %v3036 = vrcp.pop %v3026
      %v3037 = vmul.f32 %v2978, %v3027
      %v3038 = vmul.f32 %v2980, %v3028
      %v3039 = vmul.f32 %v2982, %v3029
      %v3040 = vmul.f32 %v2984, %v3030
      %v3041 = vmul.f32 %v2986, %v3031
      %v3042 = vmul.f32 %v2988, %v3032
      %v3043 = vmul.f32 %v2990, %v3033
      %v3044 = vmul.f32 %v2992, %v3034
      %v3045 = vmul.f32 %v2994, %v3035
      %v3046 = vmul.f32 %v2996, %v3036
      %v3047 = vpack.c.bf16 %v3038, %v3037
      %v3048 = vpack.c.bf16 %v3040, %v3039
      %v3049 = vpack.c.bf16 %v3042, %v3041
      %v3050 = vpack.c.bf16 %v3044, %v3043
      %v3051 = vpack.c.bf16 %v3046, %v3045
      %3052 = vrot.lane.b32.xlu0 %v1350, 64
      %v3053 = vpop.permute.xlu0 %3052
      %3054 = vrot.lane.b32.xlu0 %v1351, 64
      %v3055 = vpop.permute.xlu0 %3054
      %3056 = vrot.lane.b32.xlu0 %v1352, 64
      %v3057 = vpop.permute.xlu0 %3056
      %3058 = vrot.lane.b32.xlu0 %v1353, 64
      %v3059 = vpop.permute.xlu0 %3058
      %3060 = vrot.lane.b32.xlu0 %v1354, 64
      %v3061 = vpop.permute.xlu0 %3060
      %v3068 = vsel %vm1474, %v3047, 0
      %v3071 = vsel %vm1474, %v3048, 0
      %v3074 = vsel %vm1474, %v3049, 0
      %v3077 = vsel %vm1474, %v3050, 0
      %v3080 = vsel %vm1474, %v3051, 0
      %3082 = vmatprep.subr.bf16.mxu0 0
      %3083 = vmatpush1.bf16.msra.mxu0 %v3053
      %3084 = vmatprep.subr.bf16.mxu0 0
      %3085 = vmatpush1.bf16.msra.mxu0 %v3055
      %3086 = vmatprep.subr.bf16.mxu0 0
      %3087 = vmatpush1.bf16.msra.mxu0 %v3057
      %3088 = vmatprep.subr.bf16.mxu0 0
      %3089 = vmatpush1.bf16.msra.mxu0 %v3059
      %3090 = vmatprep.subr.bf16.mxu0 0
      %3091 = vmatpush1.bf16.msra.mxu0 %v3061
      %3092 = vmatprep.subr.bf16.mxu0 0
      %3093 = vmatpush1.bf16.msra.mxu0 0
      %3094 = vmatprep.subr.bf16.mxu0 0
      %3095 = vmatpush1.bf16.msra.mxu0 0
      %3096 = vmatprep.subr.bf16.mxu0 0
      %3097 = vmatpush1.bf16.msra.mxu0 0
      %3098 = vmatprep.subr.bf16.mxu0 0
      %3099 = vmatpush1.bf16.msra.mxu0 0
      %3100 = vmatprep.subr.bf16.mxu0 0
      %3101 = vmatpush1.bf16.msra.mxu0 0
      %3102 = vmatprep.subr.bf16.mxu0 0
      %3103 = vmatpush1.bf16.msra.mxu0 0
      %3104 = vmatprep.subr.bf16.mxu0 0
      %3105 = vmatpush1.bf16.msra.mxu0 0
      %3106 = vmatprep.subr.bf16.mxu0 0
      %3107 = vmatpush1.bf16.msra.mxu0 0
      %3108 = vmatprep.subr.bf16.mxu0 0
      %3109 = vmatpush1.bf16.msra.mxu0 0
      %3110 = vmatprep.subr.bf16.mxu0 0
      %3111 = vmatpush1.bf16.msra.mxu0 0
      %3112 = vmatprep.subr.bf16.mxu0 0
      %3113 = vmatpush1.bf16.msra.mxu0 0
      %3114 = vmatprep.mubr.bf16.mxu0 0
      %3115 = vmatmul.mubr.bf16.gmra.mrb[0].mxu0 %v3068
      %v3116 = vpop.f32.mrb[0].mxu0
      %v3117 = vadd.f32 0.0, %v3116
      %v3118 = vpop.f32.mrb[0].mxu0
      %v3119 = vpop.f32.mrb[0].mxu0
      %v3120 = vadd.f32 0.0, %v3119
      %v3121 = vpop.f32.mrb[0].mxu0
      %3122 = vmatprep.mubr.bf16.mxu0 0
      %3123 = vmatmul.mubr.bf16.gmra.mrb[0].mxu0 %v3071
      %v3124 = vpop.f32.mrb[0].mxu0
      %v3125 = vadd.f32 0.0, %v3124
      %v3126 = vpop.f32.mrb[0].mxu0
      %v3127 = vpop.f32.mrb[0].mxu0
      %v3128 = vadd.f32 0.0, %v3127
      %v3129 = vpop.f32.mrb[0].mxu0
      %3130 = vmatprep.mubr.bf16.mxu0 0
      %3131 = vmatmul.mubr.bf16.gmra.mrb[0].mxu0 %v3074
      %v3132 = vpop.f32.mrb[0].mxu0
      %v3133 = vadd.f32 0.0, %v3132
      %v3134 = vpop.f32.mrb[0].mxu0
      %v3135 = vpop.f32.mrb[0].mxu0
      %v3136 = vadd.f32 0.0, %v3135
      %v3137 = vpop.f32.mrb[0].mxu0
      %3138 = vmatprep.mubr.bf16.mxu0 0
      %3139 = vmatmul.mubr.bf16.gmra.mrb[0].mxu0 %v3077
      %v3140 = vpop.f32.mrb[0].mxu0
      %v3141 = vadd.f32 0.0, %v3140
      %v3142 = vpop.f32.mrb[0].mxu0
      %v3143 = vpop.f32.mrb[0].mxu0
      %v3144 = vadd.f32 0.0, %v3143
      %v3145 = vpop.f32.mrb[0].mxu0
      %3146 = vmatprep.mubr.bf16.mxu0 0
      %3147 = vmatmul.mubr.bf16.gmra.mrb[0].mxu0 %v3080
      %v3148 = vpop.f32.mrb[0].mxu0
      %v3149 = vadd.f32 0.0, %v3148
      %v3150 = vpop.f32.mrb[0].mxu0
      %v3151 = vpop.f32.mrb[0].mxu0
      %v3152 = vadd.f32 0.0, %v3151
      %v3153 = vpop.f32.mrb[0].mxu0
      %3154 = vdwg.mxu0
      %v3155 = vpack.c.bf16 %v3120, %v3117
      %v3156 = vpack.c.bf16 %v3128, %v3125
      %v3157 = vpack.c.bf16 %v3136, %v3133
      %v3158 = vpack.c.bf16 %v3144, %v3141
      %v3159 = vpack.c.bf16 %v3152, %v3149
      %3160 = vst.msk [vmem:[#allocation3 + $0x28] sm:$0xff] %vm1370, %v3155
      %3161 = vst.msk [vmem:[#allocation3 + $0x30] sm:$0xff] %vm1370, %v3156
      %3162 = vst.msk [vmem:[#allocation3 + $0x38] sm:$0xff] %vm1370, %v3157
      %3163 = vst.msk [vmem:[#allocation3 + $0x40] sm:$0xff] %vm1370, %v3158
      %3164 = vst.msk [vmem:[#allocation3 + $0x48] sm:$0xff] %vm1370, %v3159
      %3165 = vrot.lane.b32.xlu0 %v1350, 120
      %v3166 = vpop.permute.xlu0 %3165
      %3167 = vrot.lane.b32.xlu0 %v1351, 120
      %v3168 = vpop.permute.xlu0 %3167
      %3169 = vrot.lane.b32.xlu0 %v1352, 120
      %v3170 = vpop.permute.xlu0 %3169
      %3171 = vrot.lane.b32.xlu0 %v1353, 120
      %v3172 = vpop.permute.xlu0 %3171
      %3173 = vrot.lane.b32.xlu0 %v1354, 120
      %v3174 = vpop.permute.xlu0 %3173
      %3175 = vrot.lane.b32.xlu0 %v1350, 88
      %v3176 = vpop.permute.xlu0 %3175
      %3177 = vrot.lane.b32.xlu0 %v1351, 88
      %v3178 = vpop.permute.xlu0 %3177
      %3179 = vrot.lane.b32.xlu0 %v1352, 88
      %v3180 = vpop.permute.xlu0 %3179
      %3181 = vrot.lane.b32.xlu0 %v1353, 88
      %v3182 = vpop.permute.xlu0 %3181
      %3183 = vrot.lane.b32.xlu0 %v1354, 88
      %v3184 = vpop.permute.xlu0 %3183
      %v3186 = vsel %vm1370, %v3166, 0
      %v3189 = vsel %vm1370, %v3168, 0
      %v3192 = vsel %vm1370, %v3170, 0
      %v3195 = vsel %vm1370, %v3172, 0
      %v3198 = vsel %vm1370, %v3174, 0
      %v3201 = vsel %vm1370, %v3176, 0
      %v3204 = vsel %vm1370, %v3178, 0
      %v3207 = vsel %vm1370, %v3180, 0
      %v3210 = vsel %vm1370, %v3182, 0
      %v3213 = vsel %vm1370, %v3184, 0
      %3215 = vmatprep.subr.bf16.mxu0 0
      %3216 = vmatpush1.bf16.xpose.msra.mxu0 %v3201
      %3217 = vmatprep.subr.bf16.mxu0 0
      %3218 = vmatpush1.bf16.xpose.msra.mxu0 %v3204
      %3219 = vmatprep.subr.bf16.mxu0 0
      %3220 = vmatpush1.bf16.xpose.msra.mxu0 %v3207
      %3221 = vmatprep.subr.bf16.mxu0 0
      %3222 = vmatpush1.bf16.xpose.msra.mxu0 %v3210
      %3223 = vmatprep.subr.bf16.mxu0 0
      %3224 = vmatpush1.bf16.xpose.msra.mxu0 %v3213
      %3225 = vmatprep.subr.bf16.mxu0 0
      %3226 = vmatpush1.bf16.xpose.msra.mxu0 0
      %3227 = vmatprep.subr.bf16.mxu0 0
      %3228 = vmatpush1.bf16.xpose.msra.mxu0 0
      %3229 = vmatprep.subr.bf16.mxu0 0
      %3230 = vmatpush1.bf16.xpose.msra.mxu0 0
      %3231 = vmatprep.subr.bf16.mxu0 0
      %3232 = vmatpush1.bf16.xpose.msra.mxu0 0
      %3233 = vmatprep.subr.bf16.mxu0 0
      %3234 = vmatpush1.bf16.xpose.msra.mxu0 0
      %3235 = vmatprep.subr.bf16.mxu0 0
      %3236 = vmatpush1.bf16.xpose.msra.mxu0 0
      %3237 = vmatprep.subr.bf16.mxu0 0
      %3238 = vmatpush1.bf16.xpose.msra.mxu0 0
      %3239 = vmatprep.subr.bf16.mxu0 0
      %3240 = vmatpush1.bf16.xpose.msra.mxu0 0
      %3241 = vmatprep.subr.bf16.mxu0 0
      %3242 = vmatpush1.bf16.xpose.msra.mxu0 0
      %3243 = vmatprep.subr.bf16.mxu0 0
      %3244 = vmatpush1.bf16.xpose.msra.mxu0 0
      %3245 = vmatprep.subr.bf16.mxu0 0
      %3246 = vmatpush1.bf16.xpose.msra.mxu0 0
      %3247 = vmatprep.mubr.bf16.mxu0 0
      %3248 = vmatmul.mubr.bf16.gmra.mrb[0].mxu0 %v3186
      %v3249 = vpop.f32.mrb[0].mxu0
      %v3250 = vadd.f32 %v843, %v3249
      %v3251 = vpop.f32.mrb[0].mxu0
      %v3252 = vpop.f32.mrb[0].mxu0
      %v3253 = vadd.f32 %v844, %v3252
      %v3254 = vpop.f32.mrb[0].mxu0
      %3255 = vmatprep.mubr.bf16.mxu0 0
      %3256 = vmatmul.mubr.bf16.gmra.mrb[0].mxu0 %v3189
      %v3257 = vpop.f32.mrb[0].mxu0
      %v3258 = vadd.f32 %v845, %v3257
      %v3259 = vpop.f32.mrb[0].mxu0
      %v3260 = vpop.f32.mrb[0].mxu0
      %v3261 = vadd.f32 %v846, %v3260
      %v3262 = vpop.f32.mrb[0].mxu0
      %3263 = vmatprep.mubr.bf16.mxu0 0
      %3264 = vmatmul.mubr.bf16.gmra.mrb[0].mxu0 %v3192
      %v3265 = vpop.f32.mrb[0].mxu0
      %v3266 = vadd.f32 %v847, %v3265
      %v3267 = vpop.f32.mrb[0].mxu0
      %v3268 = vpop.f32.mrb[0].mxu0
      %v3269 = vadd.f32 %v848, %v3268
      %v3270 = vpop.f32.mrb[0].mxu0
      %3271 = vmatprep.mubr.bf16.mxu0 0
      %3272 = vmatmul.mubr.bf16.gmra.mrb[0].mxu0 %v3195
      %v3273 = vpop.f32.mrb[0].mxu0
      %v3274 = vadd.f32 %v849, %v3273
      %v3275 = vpop.f32.mrb[0].mxu0
      %v3276 = vpop.f32.mrb[0].mxu0
      %v3277 = vadd.f32 %v850, %v3276
      %v3278 = vpop.f32.mrb[0].mxu0
      %3279 = vmatprep.mubr.bf16.mxu0 0
      %3280 = vmatmul.mubr.bf16.gmra.mrb[0].mxu0 %v3198
      %v3281 = vpop.f32.mrb[0].mxu0
      %v3282 = vadd.f32 %v851, %v3281
      %v3283 = vpop.f32.mrb[0].mxu0
      %v3284 = vpop.f32.mrb[0].mxu0
      %v3285 = vadd.f32 %v852, %v3284
      %v3286 = vpop.f32.mrb[0].mxu0
      %3287 = vdwg.mxu0
      %v3288 = vsel %vm1474, %v3250, -inf
      %3289 = vmax.xlane.f32.xlu0 %v3288
      %v3290 = vpop.xlane.xlu0 %3289
      %v3291 = vsel %vm1474, %v3253, -inf
      %3292 = vmax.xlane.f32.xlu0 %v3291
      %v3293 = vpop.xlane.xlu0 %3292
      %v3294 = vsel %vm1474, %v3258, -inf
      %3295 = vmax.xlane.f32.xlu0 %v3294
      %v3296 = vpop.xlane.xlu0 %3295
      %v3297 = vsel %vm1474, %v3261, -inf
      %3298 = vmax.xlane.f32.xlu0 %v3297
      %v3299 = vpop.xlane.xlu0 %3298
      %v3300 = vsel %vm1474, %v3266, -inf
      %3301 = vmax.xlane.f32.xlu0 %v3300
      %v3302 = vpop.xlane.xlu0 %3301
      %v3303 = vsel %vm1474, %v3269, -inf
      %3304 = vmax.xlane.f32.xlu0 %v3303
      %v3305 = vpop.xlane.xlu0 %3304
      %v3306 = vsel %vm1474, %v3274, -inf
      %3307 = vmax.xlane.f32.xlu0 %v3306
      %v3308 = vpop.xlane.xlu0 %3307
      %v3309 = vsel %vm1474, %v3277, -inf
      %3310 = vmax.xlane.f32.xlu0 %v3309
      %v3311 = vpop.xlane.xlu0 %3310
      %v3312 = vsel %vm1474, %v3282, -inf
      %3313 = vmax.xlane.f32.xlu0 %v3312
      %v3314 = vpop.xlane.xlu0 %3313
      %v3315 = vsel %vm1474, %v3285, -inf
      %3316 = vmax.xlane.f32.xlu0 %v3315
      %v3317 = vpop.xlane.xlu0 %3316
      %v3318 = vsub.f32 %v3250, %v3290
      %v3319 = vsub.f32 %v3253, %v3293
      %v3320 = vsub.f32 %v3258, %v3296
      %v3321 = vsub.f32 %v3261, %v3299
      %v3322 = vsub.f32 %v3266, %v3302
      %v3323 = vsub.f32 %v3269, %v3305
      %v3324 = vsub.f32 %v3274, %v3308
      %v3325 = vsub.f32 %v3277, %v3311
      %v3326 = vsub.f32 %v3282, %v3314
      %v3327 = vsub.f32 %v3285, %v3317
      %v3328 = vmul.f32 %v3318, 1.442695
      %v3329 = vpow.pop %v3328
      %v3330 = vmul.f32 %v3319, 1.442695
      %v3331 = vpow.pop %v3330
      %v3332 = vmul.f32 %v3320, 1.442695
      %v3333 = vpow.pop %v3332
      %v3334 = vmul.f32 %v3321, 1.442695
      %v3335 = vpow.pop %v3334
      %v3336 = vmul.f32 %v3322, 1.442695
      %v3337 = vpow.pop %v3336
      %v3338 = vmul.f32 %v3323, 1.442695
      %v3339 = vpow.pop %v3338
      %v3340 = vmul.f32 %v3324, 1.442695
      %v3341 = vpow.pop %v3340
      %v3342 = vmul.f32 %v3325, 1.442695
      %v3343 = vpow.pop %v3342
      %v3344 = vmul.f32 %v3326, 1.442695
      %v3345 = vpow.pop %v3344
      %v3346 = vmul.f32 %v3327, 1.442695
      %v3347 = vpow.pop %v3346
      %v3348 = vsel %vm1474, %v3329, 0.0
      %3349 = vadd.xlane.f32.xlu0 %v3348
      %v3350 = vpop.xlane.xlu0 %3349
      %v3351 = vsel %vm1474, %v3331, 0.0
      %3352 = vadd.xlane.f32.xlu0 %v3351
      %v3353 = vpop.xlane.xlu0 %3352
      %v3354 = vsel %vm1474, %v3333, 0.0
      %3355 = vadd.xlane.f32.xlu0 %v3354
      %v3356 = vpop.xlane.xlu0 %3355
      %v3357 = vsel %vm1474, %v3335, 0.0
      %3358 = vadd.xlane.f32.xlu0 %v3357
      %v3359 = vpop.xlane.xlu0 %3358
      %v3360 = vsel %vm1474, %v3337, 0.0
      %3361 = vadd.xlane.f32.xlu0 %v3360
      %v3362 = vpop.xlane.xlu0 %3361
      %v3363 = vsel %vm1474, %v3339, 0.0
      %3364 = vadd.xlane.f32.xlu0 %v3363
      %v3365 = vpop.xlane.xlu0 %3364
      %v3366 = vsel %vm1474, %v3341, 0.0
      %3367 = vadd.xlane.f32.xlu0 %v3366
      %v3368 = vpop.xlane.xlu0 %3367
      %v3369 = vsel %vm1474, %v3343, 0.0
      %3370 = vadd.xlane.f32.xlu0 %v3369
      %v3371 = vpop.xlane.xlu0 %3370
      %v3372 = vsel %vm1474, %v3345, 0.0
      %3373 = vadd.xlane.f32.xlu0 %v3372
      %v3374 = vpop.xlane.xlu0 %3373
      %v3375 = vsel %vm1474, %v3347, 0.0
      %3376 = vadd.xlane.f32.xlu0 %v3375
      %v3377 = vpop.xlane.xlu0 %3376
      %v3378 = vrcp.pop %v3350
      %v3379 = vrcp.pop %v3353
      %v3380 = vrcp.pop %v3356
      %v3381 = vrcp.pop %v3359
      %v3382 = vrcp.pop %v3362
      %v3383 = vrcp.pop %v3365
      %v3384 = vrcp.pop %v3368
      %v3385 = vrcp.pop %v3371
      %v3386 = vrcp.pop %v3374
      %v3387 = vrcp.pop %v3377
      %v3388 = vmul.f32 %v3329, %v3378
      %v3389 = vmul.f32 %v3331, %v3379
      %v3390 = vmul.f32 %v3333, %v3380
      %v3391 = vmul.f32 %v3335, %v3381
      %v3392 = vmul.f32 %v3337, %v3382
      %v3393 = vmul.f32 %v3339, %v3383
      %v3394 = vmul.f32 %v3341, %v3384
      %v3395 = vmul.f32 %v3343, %v3385
      %v3396 = vmul.f32 %v3345, %v3386
      %v3397 = vmul.f32 %v3347, %v3387
      %v3398 = vpack.c.bf16 %v3389, %v3388
      %v3399 = vpack.c.bf16 %v3391, %v3390
      %v3400 = vpack.c.bf16 %v3393, %v3392
      %v3401 = vpack.c.bf16 %v3395, %v3394
      %v3402 = vpack.c.bf16 %v3397, %v3396
      %3403 = vrot.lane.b32.xlu0 %v1350, 56
      %v3404 = vpop.permute.xlu0 %3403
      %3405 = vrot.lane.b32.xlu0 %v1351, 56
      %v3406 = vpop.permute.xlu0 %3405
      %3407 = vrot.lane.b32.xlu0 %v1352, 56
      %v3408 = vpop.permute.xlu0 %3407
      %3409 = vrot.lane.b32.xlu0 %v1353, 56
      %v3410 = vpop.permute.xlu0 %3409
      %3411 = vrot.lane.b32.xlu0 %v1354, 56
      %v3412 = vpop.permute.xlu0 %3411
      %v3419 = vsel %vm1474, %v3398, 0
      %v3422 = vsel %vm1474, %v3399, 0
      %v3425 = vsel %vm1474, %v3400, 0
      %v3428 = vsel %vm1474, %v3401, 0
      %v3431 = vsel %vm1474, %v3402, 0
      %3433 = vmatprep.subr.bf16.mxu0 0
      %3434 = vmatpush1.bf16.msra.mxu0 %v3404
      %3435 = vmatprep.subr.bf16.mxu0 0
      %3436 = vmatpush1.bf16.msra.mxu0 %v3406
      %3437 = vmatprep.subr.bf16.mxu0 0
      %3438 = vmatpush1.bf16.msra.mxu0 %v3408
      %3439 = vmatprep.subr.bf16.mxu0 0
      %3440 = vmatpush1.bf16.msra.mxu0 %v3410
      %3441 = vmatprep.subr.bf16.mxu0 0
      %3442 = vmatpush1.bf16.msra.mxu0 %v3412
      %3443 = vmatprep.subr.bf16.mxu0 0
      %3444 = vmatpush1.bf16.msra.mxu0 0
      %3445 = vmatprep.subr.bf16.mxu0 0
      %3446 = vmatpush1.bf16.msra.mxu0 0
      %3447 = vmatprep.subr.bf16.mxu0 0
      %3448 = vmatpush1.bf16.msra.mxu0 0
      %3449 = vmatprep.subr.bf16.mxu0 0
      %3450 = vmatpush1.bf16.msra.mxu0 0
      %3451 = vmatprep.subr.bf16.mxu0 0
      %3452 = vmatpush1.bf16.msra.mxu0 0
      %3453 = vmatprep.subr.bf16.mxu0 0
      %3454 = vmatpush1.bf16.msra.mxu0 0
      %3455 = vmatprep.subr.bf16.mxu0 0
      %3456 = vmatpush1.bf16.msra.mxu0 0
      %3457 = vmatprep.subr.bf16.mxu0 0
      %3458 = vmatpush1.bf16.msra.mxu0 0
      %3459 = vmatprep.subr.bf16.mxu0 0
      %3460 = vmatpush1.bf16.msra.mxu0 0
      %3461 = vmatprep.subr.bf16.mxu0 0
      %3462 = vmatpush1.bf16.msra.mxu0 0
      %3463 = vmatprep.subr.bf16.mxu0 0
      %3464 = vmatpush1.bf16.msra.mxu0 0
      %3465 = vmatprep.mubr.bf16.mxu0 0
      %3466 = vmatmul.mubr.bf16.gmra.mrb[0].mxu0 %v3419
      %v3467 = vpop.f32.mrb[0].mxu0
      %v3468 = vadd.f32 0.0, %v3467
      %v3469 = vpop.f32.mrb[0].mxu0
      %v3470 = vpop.f32.mrb[0].mxu0
      %v3471 = vadd.f32 0.0, %v3470
      %v3472 = vpop.f32.mrb[0].mxu0
      %3473 = vmatprep.mubr.bf16.mxu0 0
      %3474 = vmatmul.mubr.bf16.gmra.mrb[0].mxu0 %v3422
      %v3475 = vpop.f32.mrb[0].mxu0
      %v3476 = vadd.f32 0.0, %v3475
      %v3477 = vpop.f32.mrb[0].mxu0
      %v3478 = vpop.f32.mrb[0].mxu0
      %v3479 = vadd.f32 0.0, %v3478
      %v3480 = vpop.f32.mrb[0].mxu0
      %3481 = vmatprep.mubr.bf16.mxu0 0
      %3482 = vmatmul.mubr.bf16.gmra.mrb[0].mxu0 %v3425
      %v3483 = vpop.f32.mrb[0].mxu0
      %v3484 = vadd.f32 0.0, %v3483
      %v3485 = vpop.f32.mrb[0].mxu0
      %v3486 = vpop.f32.mrb[0].mxu0
      %v3487 = vadd.f32 0.0, %v3486
      %v3488 = vpop.f32.mrb[0].mxu0
      %3489 = vmatprep.mubr.bf16.mxu0 0
      %3490 = vmatmul.mubr.bf16.gmra.mrb[0].mxu0 %v3428
      %v3491 = vpop.f32.mrb[0].mxu0
      %v3492 = vadd.f32 0.0, %v3491
      %v3493 = vpop.f32.mrb[0].mxu0
      %v3494 = vpop.f32.mrb[0].mxu0
      %v3495 = vadd.f32 0.0, %v3494
      %v3496 = vpop.f32.mrb[0].mxu0
      %3497 = vmatprep.mubr.bf16.mxu0 0
      %3498 = vmatmul.mubr.bf16.gmra.mrb[0].mxu0 %v3431
      %v3499 = vpop.f32.mrb[0].mxu0
      %v3500 = vadd.f32 0.0, %v3499
      %v3501 = vpop.f32.mrb[0].mxu0
      %v3502 = vpop.f32.mrb[0].mxu0
      %v3503 = vadd.f32 0.0, %v3502
      %v3504 = vpop.f32.mrb[0].mxu0
      %3505 = vdwg.mxu0
      %v3506 = vpack.c.bf16 %v3471, %v3468
      %v3507 = vpack.c.bf16 %v3479, %v3476
      %v3508 = vpack.c.bf16 %v3487, %v3484
      %v3509 = vpack.c.bf16 %v3495, %v3492
      %v3510 = vpack.c.bf16 %v3503, %v3500
      %3516 = vrot.lane.b32.xlu0 %v3506, 8
      %v3517 = vpop.permute.xlu0 %3516
      %3518 = vrot.lane.b32.xlu0 %v3507, 8
      %v3519 = vpop.permute.xlu0 %3518
      %3520 = vrot.lane.b32.xlu0 %v3508, 8
      %v3521 = vpop.permute.xlu0 %3520
      %3522 = vrot.lane.b32.xlu0 %v3509, 8
      %v3523 = vpop.permute.xlu0 %3522
      %3524 = vrot.lane.b32.xlu0 %v3510, 8
      %v3525 = vpop.permute.xlu0 %3524
      %3531 = vst.msk [vmem:[#allocation3 + $0x28] sm:$0xff] %vm2069, %v3517
      %3532 = vst.msk [vmem:[#allocation3 + $0x30] sm:$0xff] %vm2069, %v3519
      %3533 = vst.msk [vmem:[#allocation3 + $0x38] sm:$0xff] %vm2069, %v3521
      %3534 = vst.msk [vmem:[#allocation3 + $0x40] sm:$0xff] %vm2069, %v3523
      %3535 = vst.msk [vmem:[#allocation3 + $0x48] sm:$0xff] %vm2069, %v3525
      %3536 = vrot.lane.b32.xlu0 %v1350, 112
      %v3537 = vpop.permute.xlu0 %3536
      %3538 = vrot.lane.b32.xlu0 %v1351, 112
      %v3539 = vpop.permute.xlu0 %3538
      %3540 = vrot.lane.b32.xlu0 %v1352, 112
      %v3541 = vpop.permute.xlu0 %3540
      %3542 = vrot.lane.b32.xlu0 %v1353, 112
      %v3543 = vpop.permute.xlu0 %3542
      %3544 = vrot.lane.b32.xlu0 %v1354, 112
      %v3545 = vpop.permute.xlu0 %3544
      %3546 = vrot.lane.b32.xlu0 %v1350, 80
      %v3547 = vpop.permute.xlu0 %3546
      %3548 = vrot.lane.b32.xlu0 %v1351, 80
      %v3549 = vpop.permute.xlu0 %3548
      %3550 = vrot.lane.b32.xlu0 %v1352, 80
      %v3551 = vpop.permute.xlu0 %3550
      %3552 = vrot.lane.b32.xlu0 %v1353, 80
      %v3553 = vpop.permute.xlu0 %3552
      %3554 = vrot.lane.b32.xlu0 %v1354, 80
      %v3555 = vpop.permute.xlu0 %3554
      %v3557 = vsel %vm1370, %v3537, 0
      %v3560 = vsel %vm1370, %v3539, 0
      %v3563 = vsel %vm1370, %v3541, 0
      %v3566 = vsel %vm1370, %v3543, 0
      %v3569 = vsel %vm1370, %v3545, 0
      %v3572 = vsel %vm1370, %v3547, 0
      %v3575 = vsel %vm1370, %v3549, 0
      %v3578 = vsel %vm1370, %v3551, 0
      %v3581 = vsel %vm1370, %v3553, 0
      %v3584 = vsel %vm1370, %v3555, 0
      %3586 = vmatprep.subr.bf16.mxu0 0
      %3587 = vmatpush1.bf16.xpose.msra.mxu0 %v3572
      %3588 = vmatprep.subr.bf16.mxu0 0
      %3589 = vmatpush1.bf16.xpose.msra.mxu0 %v3575
      %3590 = vmatprep.subr.bf16.mxu0 0
      %3591 = vmatpush1.bf16.xpose.msra.mxu0 %v3578
      %3592 = vmatprep.subr.bf16.mxu0 0
      %3593 = vmatpush1.bf16.xpose.msra.mxu0 %v3581
      %3594 = vmatprep.subr.bf16.mxu0 0
      %3595 = vmatpush1.bf16.xpose.msra.mxu0 %v3584
      %3596 = vmatprep.subr.bf16.mxu0 0
      %3597 = vmatpush1.bf16.xpose.msra.mxu0 0
      %3598 = vmatprep.subr.bf16.mxu0 0
      %3599 = vmatpush1.bf16.xpose.msra.mxu0 0
      %3600 = vmatprep.subr.bf16.mxu0 0
      %3601 = vmatpush1.bf16.xpose.msra.mxu0 0
      %3602 = vmatprep.subr.bf16.mxu0 0
      %3603 = vmatpush1.bf16.xpose.msra.mxu0 0
      %3604 = vmatprep.subr.bf16.mxu0 0
      %3605 = vmatpush1.bf16.xpose.msra.mxu0 0
      %3606 = vmatprep.subr.bf16.mxu0 0
      %3607 = vmatpush1.bf16.xpose.msra.mxu0 0
      %3608 = vmatprep.subr.bf16.mxu0 0
      %3609 = vmatpush1.bf16.xpose.msra.mxu0 0
      %3610 = vmatprep.subr.bf16.mxu0 0
      %3611 = vmatpush1.bf16.xpose.msra.mxu0 0
      %3612 = vmatprep.subr.bf16.mxu0 0
      %3613 = vmatpush1.bf16.xpose.msra.mxu0 0
      %3614 = vmatprep.subr.bf16.mxu0 0
      %3615 = vmatpush1.bf16.xpose.msra.mxu0 0
      %3616 = vmatprep.subr.bf16.mxu0 0
      %3617 = vmatpush1.bf16.xpose.msra.mxu0 0
      %3618 = vmatprep.mubr.bf16.mxu0 0
      %3619 = vmatmul.mubr.bf16.gmra.mrb[0].mxu0 %v3557
      %v3620 = vpop.f32.mrb[0].mxu0
      %v3621 = vadd.f32 %v843, %v3620
      %v3622 = vpop.f32.mrb[0].mxu0
      %v3623 = vpop.f32.mrb[0].mxu0
      %v3624 = vadd.f32 %v844, %v3623
      %v3625 = vpop.f32.mrb[0].mxu0
      %3626 = vmatprep.mubr.bf16.mxu0 0
      %3627 = vmatmul.mubr.bf16.gmra.mrb[0].mxu0 %v3560
      %v3628 = vpop.f32.mrb[0].mxu0
      %v3629 = vadd.f32 %v845, %v3628
      %v3630 = vpop.f32.mrb[0].mxu0
      %v3631 = vpop.f32.mrb[0].mxu0
      %v3632 = vadd.f32 %v846, %v3631
      %v3633 = vpop.f32.mrb[0].mxu0
      %3634 = vmatprep.mubr.bf16.mxu0 0
      %3635 = vmatmul.mubr.bf16.gmra.mrb[0].mxu0 %v3563
      %v3636 = vpop.f32.mrb[0].mxu0
      %v3637 = vadd.f32 %v847, %v3636
      %v3638 = vpop.f32.mrb[0].mxu0
      %v3639 = vpop.f32.mrb[0].mxu0
      %v3640 = vadd.f32 %v848, %v3639
      %v3641 = vpop.f32.mrb[0].mxu0
      %3642 = vmatprep.mubr.bf16.mxu0 0
      %3643 = vmatmul.mubr.bf16.gmra.mrb[0].mxu0 %v3566
      %v3644 = vpop.f32.mrb[0].mxu0
      %v3645 = vadd.f32 %v849, %v3644
      %v3646 = vpop.f32.mrb[0].mxu0
      %v3647 = vpop.f32.mrb[0].mxu0
      %v3648 = vadd.f32 %v850, %v3647
      %v3649 = vpop.f32.mrb[0].mxu0
      %3650 = vmatprep.mubr.bf16.mxu0 0
      %3651 = vmatmul.mubr.bf16.gmra.mrb[0].mxu0 %v3569
      %v3652 = vpop.f32.mrb[0].mxu0
      %v3653 = vadd.f32 %v851, %v3652
      %v3654 = vpop.f32.mrb[0].mxu0
      %v3655 = vpop.f32.mrb[0].mxu0
      %v3656 = vadd.f32 %v852, %v3655
      %v3657 = vpop.f32.mrb[0].mxu0
      %3658 = vdwg.mxu0
      %v3659 = vsel %vm1474, %v3621, -inf
      %3660 = vmax.xlane.f32.xlu0 %v3659
      %v3661 = vpop.xlane.xlu0 %3660
      %v3662 = vsel %vm1474, %v3624, -inf
      %3663 = vmax.xlane.f32.xlu0 %v3662
      %v3664 = vpop.xlane.xlu0 %3663
      %v3665 = vsel %vm1474, %v3629, -inf
      %3666 = vmax.xlane.f32.xlu0 %v3665
      %v3667 = vpop.xlane.xlu0 %3666
      %v3668 = vsel %vm1474, %v3632, -inf
      %3669 = vmax.xlane.f32.xlu0 %v3668
      %v3670 = vpop.xlane.xlu0 %3669
      %v3671 = vsel %vm1474, %v3637, -inf
      %3672 = vmax.xlane.f32.xlu0 %v3671
      %v3673 = vpop.xlane.xlu0 %3672
      %v3674 = vsel %vm1474, %v3640, -inf
      %3675 = vmax.xlane.f32.xlu0 %v3674
      %v3676 = vpop.xlane.xlu0 %3675
      %v3677 = vsel %vm1474, %v3645, -inf
      %3678 = vmax.xlane.f32.xlu0 %v3677
      %v3679 = vpop.xlane.xlu0 %3678
      %v3680 = vsel %vm1474, %v3648, -inf
      %3681 = vmax.xlane.f32.xlu0 %v3680
      %v3682 = vpop.xlane.xlu0 %3681
      %v3683 = vsel %vm1474, %v3653, -inf
      %3684 = vmax.xlane.f32.xlu0 %v3683
      %v3685 = vpop.xlane.xlu0 %3684
      %v3686 = vsel %vm1474, %v3656, -inf
      %3687 = vmax.xlane.f32.xlu0 %v3686
      %v3688 = vpop.xlane.xlu0 %3687
      %v3689 = vsub.f32 %v3621, %v3661
      %v3690 = vsub.f32 %v3624, %v3664
      %v3691 = vsub.f32 %v3629, %v3667
      %v3692 = vsub.f32 %v3632, %v3670
      %v3693 = vsub.f32 %v3637, %v3673
      %v3694 = vsub.f32 %v3640, %v3676
      %v3695 = vsub.f32 %v3645, %v3679
      %v3696 = vsub.f32 %v3648, %v3682
      %v3697 = vsub.f32 %v3653, %v3685
      %v3698 = vsub.f32 %v3656, %v3688
      %v3699 = vmul.f32 %v3689, 1.442695
      %v3700 = vpow.pop %v3699
      %v3701 = vmul.f32 %v3690, 1.442695
      %v3702 = vpow.pop %v3701
      %v3703 = vmul.f32 %v3691, 1.442695
      %v3704 = vpow.pop %v3703
      %v3705 = vmul.f32 %v3692, 1.442695
      %v3706 = vpow.pop %v3705
      %v3707 = vmul.f32 %v3693, 1.442695
      %v3708 = vpow.pop %v3707
      %v3709 = vmul.f32 %v3694, 1.442695
      %v3710 = vpow.pop %v3709
      %v3711 = vmul.f32 %v3695, 1.442695
      %v3712 = vpow.pop %v3711
      %v3713 = vmul.f32 %v3696, 1.442695
      %v3714 = vpow.pop %v3713
      %v3715 = vmul.f32 %v3697, 1.442695
      %v3716 = vpow.pop %v3715
      %v3717 = vmul.f32 %v3698, 1.442695
      %v3718 = vpow.pop %v3717
      %v3719 = vsel %vm1474, %v3700, 0.0
      %3720 = vadd.xlane.f32.xlu0 %v3719
      %v3721 = vpop.xlane.xlu0 %3720
      %v3722 = vsel %vm1474, %v3702, 0.0
      %3723 = vadd.xlane.f32.xlu0 %v3722
      %v3724 = vpop.xlane.xlu0 %3723
      %v3725 = vsel %vm1474, %v3704, 0.0
      %3726 = vadd.xlane.f32.xlu0 %v3725
      %v3727 = vpop.xlane.xlu0 %3726
      %v3728 = vsel %vm1474, %v3706, 0.0
      %3729 = vadd.xlane.f32.xlu0 %v3728
      %v3730 = vpop.xlane.xlu0 %3729
      %v3731 = vsel %vm1474, %v3708, 0.0
      %3732 = vadd.xlane.f32.xlu0 %v3731
      %v3733 = vpop.xlane.xlu0 %3732
      %v3734 = vsel %vm1474, %v3710, 0.0
      %3735 = vadd.xlane.f32.xlu0 %v3734
      %v3736 = vpop.xlane.xlu0 %3735
      %v3737 = vsel %vm1474, %v3712, 0.0
      %3738 = vadd.xlane.f32.xlu0 %v3737
      %v3739 = vpop.xlane.xlu0 %3738
      %v3740 = vsel %vm1474, %v3714, 0.0
      %3741 = vadd.xlane.f32.xlu0 %v3740
      %v3742 = vpop.xlane.xlu0 %3741
      %v3743 = vsel %vm1474, %v3716, 0.0
      %3744 = vadd.xlane.f32.xlu0 %v3743
      %v3745 = vpop.xlane.xlu0 %3744
      %v3746 = vsel %vm1474, %v3718, 0.0
      %3747 = vadd.xlane.f32.xlu0 %v3746
      %v3748 = vpop.xlane.xlu0 %3747
      %v3749 = vrcp.pop %v3721
      %v3750 = vrcp.pop %v3724
      %v3751 = vrcp.pop %v3727
      %v3752 = vrcp.pop %v3730
      %v3753 = vrcp.pop %v3733
      %v3754 = vrcp.pop %v3736
      %v3755 = vrcp.pop %v3739
      %v3756 = vrcp.pop %v3742
      %v3757 = vrcp.pop %v3745
      %v3758 = vrcp.pop %v3748
      %v3759 = vmul.f32 %v3700, %v3749
      %v3760 = vmul.f32 %v3702, %v3750
      %v3761 = vmul.f32 %v3704, %v3751
      %v3762 = vmul.f32 %v3706, %v3752
      %v3763 = vmul.f32 %v3708, %v3753
      %v3764 = vmul.f32 %v3710, %v3754
      %v3765 = vmul.f32 %v3712, %v3755
      %v3766 = vmul.f32 %v3714, %v3756
      %v3767 = vmul.f32 %v3716, %v3757
      %v3768 = vmul.f32 %v3718, %v3758
      %v3769 = vpack.c.bf16 %v3760, %v3759
      %v3770 = vpack.c.bf16 %v3762, %v3761
      %v3771 = vpack.c.bf16 %v3764, %v3763
      %v3772 = vpack.c.bf16 %v3766, %v3765
      %v3773 = vpack.c.bf16 %v3768, %v3767
      %3774 = vrot.lane.b32.xlu0 %v1350, 48
      %v3775 = vpop.permute.xlu0 %3774
      %3776 = vrot.lane.b32.xlu0 %v1351, 48
      %v3777 = vpop.permute.xlu0 %3776
      %3778 = vrot.lane.b32.xlu0 %v1352, 48
      %v3779 = vpop.permute.xlu0 %3778
      %3780 = vrot.lane.b32.xlu0 %v1353, 48
      %v3781 = vpop.permute.xlu0 %3780
      %3782 = vrot.lane.b32.xlu0 %v1354, 48
      %v3783 = vpop.permute.xlu0 %3782
      %v3790 = vsel %vm1474, %v3769, 0
      %v3793 = vsel %vm1474, %v3770, 0
      %v3796 = vsel %vm1474, %v3771, 0
      %v3799 = vsel %vm1474, %v3772, 0
      %v3802 = vsel %vm1474, %v3773, 0
      %3804 = vmatprep.subr.bf16.mxu0 0
      %3805 = vmatpush1.bf16.msra.mxu0 %v3775
      %3806 = vmatprep.subr.bf16.mxu0 0
      %3807 = vmatpush1.bf16.msra.mxu0 %v3777
      %3808 = vmatprep.subr.bf16.mxu0 0
      %3809 = vmatpush1.bf16.msra.mxu0 %v3779
      %3810 = vmatprep.subr.bf16.mxu0 0
      %3811 = vmatpush1.bf16.msra.mxu0 %v3781
      %3812 = vmatprep.subr.bf16.mxu0 0
      %3813 = vmatpush1.bf16.msra.mxu0 %v3783
      %3814 = vmatprep.subr.bf16.mxu0 0
      %3815 = vmatpush1.bf16.msra.mxu0 0
      %3816 = vmatprep.subr.bf16.mxu0 0
      %3817 = vmatpush1.bf16.msra.mxu0 0
      %3818 = vmatprep.subr.bf16.mxu0 0
      %3819 = vmatpush1.bf16.msra.mxu0 0
      %3820 = vmatprep.subr.bf16.mxu0 0
      %3821 = vmatpush1.bf16.msra.mxu0 0
      %3822 = vmatprep.subr.bf16.mxu0 0
      %3823 = vmatpush1.bf16.msra.mxu0 0
      %3824 = vmatprep.subr.bf16.mxu0 0
      %3825 = vmatpush1.bf16.msra.mxu0 0
      %3826 = vmatprep.subr.bf16.mxu0 0
      %3827 = vmatpush1.bf16.msra.mxu0 0
      %3828 = vmatprep.subr.bf16.mxu0 0
      %3829 = vmatpush1.bf16.msra.mxu0 0
      %3830 = vmatprep.subr.bf16.mxu0 0
      %3831 = vmatpush1.bf16.msra.mxu0 0
      %3832 = vmatprep.subr.bf16.mxu0 0
      %3833 = vmatpush1.bf16.msra.mxu0 0
      %3834 = vmatprep.subr.bf16.mxu0 0
      %3835 = vmatpush1.bf16.msra.mxu0 0
      %3836 = vmatprep.mubr.bf16.mxu0 0
      %3837 = vmatmul.mubr.bf16.gmra.mrb[0].mxu0 %v3790
      %v3838 = vpop.f32.mrb[0].mxu0
      %v3839 = vadd.f32 0.0, %v3838
      %v3840 = vpop.f32.mrb[0].mxu0
      %v3841 = vpop.f32.mrb[0].mxu0
      %v3842 = vadd.f32 0.0, %v3841
      %v3843 = vpop.f32.mrb[0].mxu0
      %3844 = vmatprep.mubr.bf16.mxu0 0
      %3845 = vmatmul.mubr.bf16.gmra.mrb[0].mxu0 %v3793
      %v3846 = vpop.f32.mrb[0].mxu0
      %v3847 = vadd.f32 0.0, %v3846
      %v3848 = vpop.f32.mrb[0].mxu0
      %v3849 = vpop.f32.mrb[0].mxu0
      %v3850 = vadd.f32 0.0, %v3849
      %v3851 = vpop.f32.mrb[0].mxu0
      %3852 = vmatprep.mubr.bf16.mxu0 0
      %3853 = vmatmul.mubr.bf16.gmra.mrb[0].mxu0 %v3796
      %v3854 = vpop.f32.mrb[0].mxu0
      %v3855 = vadd.f32 0.0, %v3854
      %v3856 = vpop.f32.mrb[0].mxu0
      %v3857 = vpop.f32.mrb[0].mxu0
      %v3858 = vadd.f32 0.0, %v3857
      %v3859 = vpop.f32.mrb[0].mxu0
      %3860 = vmatprep.mubr.bf16.mxu0 0
      %3861 = vmatmul.mubr.bf16.gmra.mrb[0].mxu0 %v3799
      %v3862 = vpop.f32.mrb[0].mxu0
      %v3863 = vadd.f32 0.0, %v3862
      %v3864 = vpop.f32.mrb[0].mxu0
      %v3865 = vpop.f32.mrb[0].mxu0
      %v3866 = vadd.f32 0.0, %v3865
      %v3867 = vpop.f32.mrb[0].mxu0
      %3868 = vmatprep.mubr.bf16.mxu0 0
      %3869 = vmatmul.mubr.bf16.gmra.mrb[0].mxu0 %v3802
      %v3870 = vpop.f32.mrb[0].mxu0
      %v3871 = vadd.f32 0.0, %v3870
      %v3872 = vpop.f32.mrb[0].mxu0
      %v3873 = vpop.f32.mrb[0].mxu0
      %v3874 = vadd.f32 0.0, %v3873
      %v3875 = vpop.f32.mrb[0].mxu0
      %3876 = vdwg.mxu0
      %v3877 = vpack.c.bf16 %v3842, %v3839
      %v3878 = vpack.c.bf16 %v3850, %v3847
      %v3879 = vpack.c.bf16 %v3858, %v3855
      %v3880 = vpack.c.bf16 %v3866, %v3863
      %v3881 = vpack.c.bf16 %v3874, %v3871
      %3887 = vrot.lane.b32.xlu0 %v3877, 16
      %v3888 = vpop.permute.xlu0 %3887
      %3889 = vrot.lane.b32.xlu0 %v3878, 16
      %v3890 = vpop.permute.xlu0 %3889
      %3891 = vrot.lane.b32.xlu0 %v3879, 16
      %v3892 = vpop.permute.xlu0 %3891
      %3893 = vrot.lane.b32.xlu0 %v3880, 16
      %v3894 = vpop.permute.xlu0 %3893
      %3895 = vrot.lane.b32.xlu0 %v3881, 16
      %v3896 = vpop.permute.xlu0 %3895
      %3902 = vst.msk [vmem:[#allocation3 + $0x28] sm:$0xff] %vm2441, %v3888
      %3903 = vst.msk [vmem:[#allocation3 + $0x30] sm:$0xff] %vm2441, %v3890
      %3904 = vst.msk [vmem:[#allocation3 + $0x38] sm:$0xff] %vm2441, %v3892
      %3905 = vst.msk [vmem:[#allocation3 + $0x40] sm:$0xff] %vm2441, %v3894
      %3906 = vst.msk [vmem:[#allocation3 + $0x48] sm:$0xff] %vm2441, %v3896
      %3907 = vrot.lane.b32.xlu0 %v1350, 104
      %v3908 = vpop.permute.xlu0 %3907
      %3909 = vrot.lane.b32.xlu0 %v1351, 104
      %v3910 = vpop.permute.xlu0 %3909
      %3911 = vrot.lane.b32.xlu0 %v1352, 104
      %v3912 = vpop.permute.xlu0 %3911
      %3913 = vrot.lane.b32.xlu0 %v1353, 104
      %v3914 = vpop.permute.xlu0 %3913
      %3915 = vrot.lane.b32.xlu0 %v1354, 104
      %v3916 = vpop.permute.xlu0 %3915
      %3917 = vrot.lane.b32.xlu0 %v1350, 72
      %v3918 = vpop.permute.xlu0 %3917
      %3919 = vrot.lane.b32.xlu0 %v1351, 72
      %v3920 = vpop.permute.xlu0 %3919
      %3921 = vrot.lane.b32.xlu0 %v1352, 72
      %v3922 = vpop.permute.xlu0 %3921
      %3923 = vrot.lane.b32.xlu0 %v1353, 72
      %v3924 = vpop.permute.xlu0 %3923
      %3925 = vrot.lane.b32.xlu0 %v1354, 72
      %v3926 = vpop.permute.xlu0 %3925
      %v3928 = vsel %vm1370, %v3908, 0
      %v3931 = vsel %vm1370, %v3910, 0
      %v3934 = vsel %vm1370, %v3912, 0
      %v3937 = vsel %vm1370, %v3914, 0
      %v3940 = vsel %vm1370, %v3916, 0
      %v3943 = vsel %vm1370, %v3918, 0
      %v3946 = vsel %vm1370, %v3920, 0
      %v3949 = vsel %vm1370, %v3922, 0
      %v3952 = vsel %vm1370, %v3924, 0
      %v3955 = vsel %vm1370, %v3926, 0
      %3957 = vmatprep.subr.bf16.mxu0 0
      %3958 = vmatpush1.bf16.xpose.msra.mxu0 %v3943
      %3959 = vmatprep.subr.bf16.mxu0 0
      %3960 = vmatpush1.bf16.xpose.msra.mxu0 %v3946
      %3961 = vmatprep.subr.bf16.mxu0 0
      %3962 = vmatpush1.bf16.xpose.msra.mxu0 %v3949
      %3963 = vmatprep.subr.bf16.mxu0 0
      %3964 = vmatpush1.bf16.xpose.msra.mxu0 %v3952
      %3965 = vmatprep.subr.bf16.mxu0 0
      %3966 = vmatpush1.bf16.xpose.msra.mxu0 %v3955
      %3967 = vmatprep.subr.bf16.mxu0 0
      %3968 = vmatpush1.bf16.xpose.msra.mxu0 0
      %3969 = vmatprep.subr.bf16.mxu0 0
      %3970 = vmatpush1.bf16.xpose.msra.mxu0 0
      %3971 = vmatprep.subr.bf16.mxu0 0
      %3972 = vmatpush1.bf16.xpose.msra.mxu0 0
      %3973 = vmatprep.subr.bf16.mxu0 0
      %3974 = vmatpush1.bf16.xpose.msra.mxu0 0
      %3975 = vmatprep.subr.bf16.mxu0 0
      %3976 = vmatpush1.bf16.xpose.msra.mxu0 0
      %3977 = vmatprep.subr.bf16.mxu0 0
      %3978 = vmatpush1.bf16.xpose.msra.mxu0 0
      %3979 = vmatprep.subr.bf16.mxu0 0
      %3980 = vmatpush1.bf16.xpose.msra.mxu0 0
      %3981 = vmatprep.subr.bf16.mxu0 0
      %3982 = vmatpush1.bf16.xpose.msra.mxu0 0
      %3983 = vmatprep.subr.bf16.mxu0 0
      %3984 = vmatpush1.bf16.xpose.msra.mxu0 0
      %3985 = vmatprep.subr.bf16.mxu0 0
      %3986 = vmatpush1.bf16.xpose.msra.mxu0 0
      %3987 = vmatprep.subr.bf16.mxu0 0
      %3988 = vmatpush1.bf16.xpose.msra.mxu0 0
      %3989 = vmatprep.mubr.bf16.mxu0 0
      %3990 = vmatmul.mubr.bf16.gmra.mrb[0].mxu0 %v3928
      %v3991 = vpop.f32.mrb[0].mxu0
      %v3992 = vadd.f32 %v843, %v3991
      %v3993 = vpop.f32.mrb[0].mxu0
      %v3994 = vpop.f32.mrb[0].mxu0
      %v3995 = vadd.f32 %v844, %v3994
      %v3996 = vpop.f32.mrb[0].mxu0
      %3997 = vmatprep.mubr.bf16.mxu0 0
      %3998 = vmatmul.mubr.bf16.gmra.mrb[0].mxu0 %v3931
      %v3999 = vpop.f32.mrb[0].mxu0
      %v4000 = vadd.f32 %v845, %v3999
      %v4001 = vpop.f32.mrb[0].mxu0
      %v4002 = vpop.f32.mrb[0].mxu0
      %v4003 = vadd.f32 %v846, %v4002
      %v4004 = vpop.f32.mrb[0].mxu0
      %4005 = vmatprep.mubr.bf16.mxu0 0
      %4006 = vmatmul.mubr.bf16.gmra.mrb[0].mxu0 %v3934
      %v4007 = vpop.f32.mrb[0].mxu0
      %v4008 = vadd.f32 %v847, %v4007
      %v4009 = vpop.f32.mrb[0].mxu0
      %v4010 = vpop.f32.mrb[0].mxu0
      %v4011 = vadd.f32 %v848, %v4010
      %v4012 = vpop.f32.mrb[0].mxu0
      %4013 = vmatprep.mubr.bf16.mxu0 0
      %4014 = vmatmul.mubr.bf16.gmra.mrb[0].mxu0 %v3937
      %v4015 = vpop.f32.mrb[0].mxu0
      %v4016 = vadd.f32 %v849, %v4015
      %v4017 = vpop.f32.mrb[0].mxu0
      %v4018 = vpop.f32.mrb[0].mxu0
      %v4019 = vadd.f32 %v850, %v4018
      %v4020 = vpop.f32.mrb[0].mxu0
      %4021 = vmatprep.mubr.bf16.mxu0 0
      %4022 = vmatmul.mubr.bf16.gmra.mrb[0].mxu0 %v3940
      %v4023 = vpop.f32.mrb[0].mxu0
      %v4024 = vadd.f32 %v851, %v4023
      %v4025 = vpop.f32.mrb[0].mxu0
      %v4026 = vpop.f32.mrb[0].mxu0
      %v4027 = vadd.f32 %v852, %v4026
      %v4028 = vpop.f32.mrb[0].mxu0
      %4029 = vdwg.mxu0
      %v4030 = vsel %vm1474, %v3992, -inf
      %4031 = vmax.xlane.f32.xlu0 %v4030
      %v4032 = vpop.xlane.xlu0 %4031
      %v4033 = vsel %vm1474, %v3995, -inf
      %4034 = vmax.xlane.f32.xlu0 %v4033
      %v4035 = vpop.xlane.xlu0 %4034
      %v4036 = vsel %vm1474, %v4000, -inf
      %4037 = vmax.xlane.f32.xlu0 %v4036
      %v4038 = vpop.xlane.xlu0 %4037
      %v4039 = vsel %vm1474, %v4003, -inf
      %4040 = vmax.xlane.f32.xlu0 %v4039
      %v4041 = vpop.xlane.xlu0 %4040
      %v4042 = vsel %vm1474, %v4008, -inf
      %4043 = vmax.xlane.f32.xlu0 %v4042
      %v4044 = vpop.xlane.xlu0 %4043
      %v4045 = vsel %vm1474, %v4011, -inf
      %4046 = vmax.xlane.f32.xlu0 %v4045
      %v4047 = vpop.xlane.xlu0 %4046
      %v4048 = vsel %vm1474, %v4016, -inf
      %4049 = vmax.xlane.f32.xlu0 %v4048
      %v4050 = vpop.xlane.xlu0 %4049
      %v4051 = vsel %vm1474, %v4019, -inf
      %4052 = vmax.xlane.f32.xlu0 %v4051
      %v4053 = vpop.xlane.xlu0 %4052
      %v4054 = vsel %vm1474, %v4024, -inf
      %4055 = vmax.xlane.f32.xlu0 %v4054
      %v4056 = vpop.xlane.xlu0 %4055
      %v4057 = vsel %vm1474, %v4027, -inf
      %4058 = vmax.xlane.f32.xlu0 %v4057
      %v4059 = vpop.xlane.xlu0 %4058
      %v4060 = vsub.f32 %v3992, %v4032
      %v4061 = vsub.f32 %v3995, %v4035
      %v4062 = vsub.f32 %v4000, %v4038
      %v4063 = vsub.f32 %v4003, %v4041
      %v4064 = vsub.f32 %v4008, %v4044
      %v4065 = vsub.f32 %v4011, %v4047
      %v4066 = vsub.f32 %v4016, %v4050
      %v4067 = vsub.f32 %v4019, %v4053
      %v4068 = vsub.f32 %v4024, %v4056
      %v4069 = vsub.f32 %v4027, %v4059
      %v4070 = vmul.f32 %v4060, 1.442695
      %v4071 = vpow.pop %v4070
      %v4072 = vmul.f32 %v4061, 1.442695
      %v4073 = vpow.pop %v4072
      %v4074 = vmul.f32 %v4062, 1.442695
      %v4075 = vpow.pop %v4074
      %v4076 = vmul.f32 %v4063, 1.442695
      %v4077 = vpow.pop %v4076
      %v4078 = vmul.f32 %v4064, 1.442695
      %v4079 = vpow.pop %v4078
      %v4080 = vmul.f32 %v4065, 1.442695
      %v4081 = vpow.pop %v4080
      %v4082 = vmul.f32 %v4066, 1.442695
      %v4083 = vpow.pop %v4082
      %v4084 = vmul.f32 %v4067, 1.442695
      %v4085 = vpow.pop %v4084
      %v4086 = vmul.f32 %v4068, 1.442695
      %v4087 = vpow.pop %v4086
      %v4088 = vmul.f32 %v4069, 1.442695
      %v4089 = vpow.pop %v4088
      %v4090 = vsel %vm1474, %v4071, 0.0
      %4091 = vadd.xlane.f32.xlu0 %v4090
      %v4092 = vpop.xlane.xlu0 %4091
      %v4093 = vsel %vm1474, %v4073, 0.0
      %4094 = vadd.xlane.f32.xlu0 %v4093
      %v4095 = vpop.xlane.xlu0 %4094
      %v4096 = vsel %vm1474, %v4075, 0.0
      %4097 = vadd.xlane.f32.xlu0 %v4096
      %v4098 = vpop.xlane.xlu0 %4097
      %v4099 = vsel %vm1474, %v4077, 0.0
      %4100 = vadd.xlane.f32.xlu0 %v4099
      %v4101 = vpop.xlane.xlu0 %4100
      %v4102 = vsel %vm1474, %v4079, 0.0
      %4103 = vadd.xlane.f32.xlu0 %v4102
      %v4104 = vpop.xlane.xlu0 %4103
      %v4105 = vsel %vm1474, %v4081, 0.0
      %4106 = vadd.xlane.f32.xlu0 %v4105
      %v4107 = vpop.xlane.xlu0 %4106
      %v4108 = vsel %vm1474, %v4083, 0.0
      %4109 = vadd.xlane.f32.xlu0 %v4108
      %v4110 = vpop.xlane.xlu0 %4109
      %v4111 = vsel %vm1474, %v4085, 0.0
      %4112 = vadd.xlane.f32.xlu0 %v4111
      %v4113 = vpop.xlane.xlu0 %4112
      %v4114 = vsel %vm1474, %v4087, 0.0
      %4115 = vadd.xlane.f32.xlu0 %v4114
      %v4116 = vpop.xlane.xlu0 %4115
      %v4117 = vsel %vm1474, %v4089, 0.0
      %4118 = vadd.xlane.f32.xlu0 %v4117
      %v4119 = vpop.xlane.xlu0 %4118
      %v4120 = vrcp.pop %v4092
      %v4121 = vrcp.pop %v4095
      %v4122 = vrcp.pop %v4098
      %v4123 = vrcp.pop %v4101
      %v4124 = vrcp.pop %v4104
      %v4125 = vrcp.pop %v4107
      %v4126 = vrcp.pop %v4110
      %v4127 = vrcp.pop %v4113
      %v4128 = vrcp.pop %v4116
      %v4129 = vrcp.pop %v4119
      %v4130 = vmul.f32 %v4071, %v4120
      %v4131 = vmul.f32 %v4073, %v4121
      %v4132 = vmul.f32 %v4075, %v4122
      %v4133 = vmul.f32 %v4077, %v4123
      %v4134 = vmul.f32 %v4079, %v4124
      %v4135 = vmul.f32 %v4081, %v4125
      %v4136 = vmul.f32 %v4083, %v4126
      %v4137 = vmul.f32 %v4085, %v4127
      %v4138 = vmul.f32 %v4087, %v4128
      %v4139 = vmul.f32 %v4089, %v4129
      %v4140 = vpack.c.bf16 %v4131, %v4130
      %v4141 = vpack.c.bf16 %v4133, %v4132
      %v4142 = vpack.c.bf16 %v4135, %v4134
      %v4143 = vpack.c.bf16 %v4137, %v4136
      %v4144 = vpack.c.bf16 %v4139, %v4138
      %4145 = vrot.lane.b32.xlu0 %v1350, 40
      %v4146 = vpop.permute.xlu0 %4145
      %4147 = vrot.lane.b32.xlu0 %v1351, 40
      %v4148 = vpop.permute.xlu0 %4147
      %4149 = vrot.lane.b32.xlu0 %v1352, 40
      %v4150 = vpop.permute.xlu0 %4149
      %4151 = vrot.lane.b32.xlu0 %v1353, 40
      %v4152 = vpop.permute.xlu0 %4151
      %4153 = vrot.lane.b32.xlu0 %v1354, 40
      %v4154 = vpop.permute.xlu0 %4153
      %v4161 = vsel %vm1474, %v4140, 0
      %v4164 = vsel %vm1474, %v4141, 0
      %v4167 = vsel %vm1474, %v4142, 0
      %v4170 = vsel %vm1474, %v4143, 0
      %v4173 = vsel %vm1474, %v4144, 0
      %4175 = vmatprep.subr.bf16.mxu0 0
      %4176 = vmatpush1.bf16.msra.mxu0 %v4146
      %4177 = vmatprep.subr.bf16.mxu0 0
      %4178 = vmatpush1.bf16.msra.mxu0 %v4148
      %4179 = vmatprep.subr.bf16.mxu0 0
      %4180 = vmatpush1.bf16.msra.mxu0 %v4150
      %4181 = vmatprep.subr.bf16.mxu0 0
      %4182 = vmatpush1.bf16.msra.mxu0 %v4152
      %4183 = vmatprep.subr.bf16.mxu0 0
      %4184 = vmatpush1.bf16.msra.mxu0 %v4154
      %4185 = vmatprep.subr.bf16.mxu0 0
      %4186 = vmatpush1.bf16.msra.mxu0 0
      %4187 = vmatprep.subr.bf16.mxu0 0
      %4188 = vmatpush1.bf16.msra.mxu0 0
      %4189 = vmatprep.subr.bf16.mxu0 0
      %4190 = vmatpush1.bf16.msra.mxu0 0
      %4191 = vmatprep.subr.bf16.mxu0 0
      %4192 = vmatpush1.bf16.msra.mxu0 0
      %4193 = vmatprep.subr.bf16.mxu0 0
      %4194 = vmatpush1.bf16.msra.mxu0 0
      %4195 = vmatprep.subr.bf16.mxu0 0
      %4196 = vmatpush1.bf16.msra.mxu0 0
      %4197 = vmatprep.subr.bf16.mxu0 0
      %4198 = vmatpush1.bf16.msra.mxu0 0
      %4199 = vmatprep.subr.bf16.mxu0 0
      %4200 = vmatpush1.bf16.msra.mxu0 0
      %4201 = vmatprep.subr.bf16.mxu0 0
      %4202 = vmatpush1.bf16.msra.mxu0 0
      %4203 = vmatprep.subr.bf16.mxu0 0
      %4204 = vmatpush1.bf16.msra.mxu0 0
      %4205 = vmatprep.subr.bf16.mxu0 0
      %4206 = vmatpush1.bf16.msra.mxu0 0
      %4207 = vmatprep.mubr.bf16.mxu0 0
      %4208 = vmatmul.mubr.bf16.gmra.mrb[0].mxu0 %v4161
      %v4209 = vpop.f32.mrb[0].mxu0
      %v4210 = vadd.f32 0.0, %v4209
      %v4211 = vpop.f32.mrb[0].mxu0
      %v4212 = vpop.f32.mrb[0].mxu0
      %v4213 = vadd.f32 0.0, %v4212
      %v4214 = vpop.f32.mrb[0].mxu0
      %4215 = vmatprep.mubr.bf16.mxu0 0
      %4216 = vmatmul.mubr.bf16.gmra.mrb[0].mxu0 %v4164
      %v4217 = vpop.f32.mrb[0].mxu0
      %v4218 = vadd.f32 0.0, %v4217
      %v4219 = vpop.f32.mrb[0].mxu0
      %v4220 = vpop.f32.mrb[0].mxu0
      %v4221 = vadd.f32 0.0, %v4220
      %v4222 = vpop.f32.mrb[0].mxu0
      %4223 = vmatprep.mubr.bf16.mxu0 0
      %4224 = vmatmul.mubr.bf16.gmra.mrb[0].mxu0 %v4167
      %v4225 = vpop.f32.mrb[0].mxu0
      %v4226 = vadd.f32 0.0, %v4225
      %v4227 = vpop.f32.mrb[0].mxu0
      %v4228 = vpop.f32.mrb[0].mxu0
      %v4229 = vadd.f32 0.0, %v4228
      %v4230 = vpop.f32.mrb[0].mxu0
      %4231 = vmatprep.mubr.bf16.mxu0 0
      %4232 = vmatmul.mubr.bf16.gmra.mrb[0].mxu0 %v4170
      %v4233 = vpop.f32.mrb[0].mxu0
      %v4234 = vadd.f32 0.0, %v4233
      %v4235 = vpop.f32.mrb[0].mxu0
      %v4236 = vpop.f32.mrb[0].mxu0
      %v4237 = vadd.f32 0.0, %v4236
      %v4238 = vpop.f32.mrb[0].mxu0
      %4239 = vmatprep.mubr.bf16.mxu0 0
      %4240 = vmatmul.mubr.bf16.gmra.mrb[0].mxu0 %v4173
      %v4241 = vpop.f32.mrb[0].mxu0
      %v4242 = vadd.f32 0.0, %v4241
      %v4243 = vpop.f32.mrb[0].mxu0
      %v4244 = vpop.f32.mrb[0].mxu0
      %v4245 = vadd.f32 0.0, %v4244
      %v4246 = vpop.f32.mrb[0].mxu0
      %4247 = vdwg.mxu0
      %v4248 = vpack.c.bf16 %v4213, %v4210
      %v4249 = vpack.c.bf16 %v4221, %v4218
      %v4250 = vpack.c.bf16 %v4229, %v4226
      %v4251 = vpack.c.bf16 %v4237, %v4234
      %v4252 = vpack.c.bf16 %v4245, %v4242
      %4258 = vrot.lane.b32.xlu0 %v4248, 24
      %v4259 = vpop.permute.xlu0 %4258
      %4260 = vrot.lane.b32.xlu0 %v4249, 24
      %v4261 = vpop.permute.xlu0 %4260
      %4262 = vrot.lane.b32.xlu0 %v4250, 24
      %v4263 = vpop.permute.xlu0 %4262
      %4264 = vrot.lane.b32.xlu0 %v4251, 24
      %v4265 = vpop.permute.xlu0 %4264
      %4266 = vrot.lane.b32.xlu0 %v4252, 24
      %v4267 = vpop.permute.xlu0 %4266
      %4273 = vst.msk [vmem:[#allocation3 + $0x28] sm:$0xff] %vm2813, %v4259
      %4274 = vst.msk [vmem:[#allocation3 + $0x30] sm:$0xff] %vm2813, %v4261
      %4275 = vst.msk [vmem:[#allocation3 + $0x38] sm:$0xff] %vm2813, %v4263
      %4276 = vst.msk [vmem:[#allocation3 + $0x40] sm:$0xff] %vm2813, %v4265
      %4277 = vst.msk [vmem:[#allocation3 + $0x48] sm:$0xff] %vm2813, %v4267
      %v4278 = vld [vmem:[#allocation3] sm:$0xff]
      %v4279 = vld [vmem:[#allocation3 + $0x8] sm:$0xff]
      %v4280 = vld [vmem:[#allocation3 + $0x10] sm:$0xff]
      %v4281 = vld [vmem:[#allocation3 + $0x18] sm:$0xff]
      %v4282 = vld [vmem:[#allocation3 + $0x20] sm:$0xff]
      %v4283 = vld [vmem:[#allocation3 + $0x28] sm:$0xff]
      %v4284 = vld [vmem:[#allocation3 + $0x30] sm:$0xff]
      %v4285 = vld [vmem:[#allocation3 + $0x38] sm:$0xff]
      %v4286 = vld [vmem:[#allocation3 + $0x40] sm:$0xff]
      %v4287 = vld [vmem:[#allocation3 + $0x48] sm:$0xff]
      %v4288 = vld [vmem:[%s737] sm:$0xf]
      %v4289 = vld [vmem:[%s737 + $0x4] sm:$0xf]
      %v4290 = vld [vmem:[%s737 + $0x8] sm:$0xf]
      %v4291 = vld [vmem:[%s737 + $0xc] sm:$0xf]
      %v4292 = vld [vmem:[%s740] sm:$0x1]
      %v4294 = vlaneseq
      %v4295 = vshrl.u32 %v4294, 7
      %v4296 = vsub.s32 0, %v4295
      %v4297 = vrot.slane %v4292, %v4296
      %v4303 = vunpack.c.l.b16 %v4288
      %v4304 = vunpack.c.l.b16 %v4289
      %v4305 = vunpack.c.l.b16 %v4290
      %v4306 = vunpack.c.l.b16 %v4291
      %v4307 = vpack.c.b16 %v4304, %v4303
      %v4308 = vpack.c.b16 %v4306, %v4305
      %v4312 = vsel %vm855, %v4278, 0
      %v4315 = vsel %vm855, %v4279, 0
      %v4318 = vsel %vm855, %v4280, 0
      %v4321 = vsel %vm855, %v4281, 0
      %v4324 = vsel %vm855, %v4282, 0
      %v4327 = vsel %vm855, %v4283, 0
      %v4330 = vsel %vm855, %v4284, 0
      %v4333 = vsel %vm855, %v4285, 0
      %v4336 = vsel %vm855, %v4286, 0
      %v4339 = vsel %vm855, %v4287, 0
      %4341 = vmatprep.subr.bf16.mxu0 0
      %4342 = vmatpush1.bf16.msra.mxu0 %v4307
      %4343 = vmatprep.subr.bf16.mxu0 0
      %4344 = vmatpush1.bf16.msra.mxu0 %v4308
      %4345 = vmatprep.subr.bf16.mxu0 0
      %4346 = vmatpush1.bf16.msra.mxu0 0
      %4347 = vmatprep.subr.bf16.mxu0 0
      %4348 = vmatpush1.bf16.msra.mxu0 0
      %4349 = vmatprep.subr.bf16.mxu0 0
      %4350 = vmatpush1.bf16.msra.mxu0 0
      %4351 = vmatprep.subr.bf16.mxu0 0
      %4352 = vmatpush1.bf16.msra.mxu0 0
      %4353 = vmatprep.subr.bf16.mxu0 0
      %4354 = vmatpush1.bf16.msra.mxu0 0
      %4355 = vmatprep.subr.bf16.mxu0 0
      %4356 = vmatpush1.bf16.msra.mxu0 0
      %4357 = vmatprep.subr.bf16.mxu0 0
      %4358 = vmatpush1.bf16.msra.mxu0 0
      %4359 = vmatprep.subr.bf16.mxu0 0
      %4360 = vmatpush1.bf16.msra.mxu0 0
      %4361 = vmatprep.subr.bf16.mxu0 0
      %4362 = vmatpush1.bf16.msra.mxu0 0
      %4363 = vmatprep.subr.bf16.mxu0 0
      %4364 = vmatpush1.bf16.msra.mxu0 0
      %4365 = vmatprep.subr.bf16.mxu0 0
      %4366 = vmatpush1.bf16.msra.mxu0 0
      %4367 = vmatprep.subr.bf16.mxu0 0
      %4368 = vmatpush1.bf16.msra.mxu0 0
      %4369 = vmatprep.subr.bf16.mxu0 0
      %4370 = vmatpush1.bf16.msra.mxu0 0
      %4371 = vmatprep.subr.bf16.mxu0 0
      %4372 = vmatpush1.bf16.msra.mxu0 0
      %4373 = vmatprep.mubr.bf16.mxu0 0
      %4374 = vmatmul.mubr.bf16.gmra.mrb[0].mxu0 %v4312
      %v4375 = vpop.f32.mrb[0].mxu0
      %v4376 = vadd.f32 %v4297, %v4375
      %v4377 = vpop.f32.mrb[0].mxu0
      %v4378 = vpop.f32.mrb[0].mxu0
      %v4379 = vadd.f32 %v4297, %v4378
      %v4380 = vpop.f32.mrb[0].mxu0
      %4381 = vmatprep.mubr.bf16.mxu0 0
      %4382 = vmatmul.mubr.bf16.gmra.mrb[0].mxu0 %v4315
      %v4383 = vpop.f32.mrb[0].mxu0
      %v4384 = vadd.f32 %v4297, %v4383
      %v4385 = vpop.f32.mrb[0].mxu0
      %v4386 = vpop.f32.mrb[0].mxu0
      %v4387 = vadd.f32 %v4297, %v4386
      %v4388 = vpop.f32.mrb[0].mxu0
      %4389 = vmatprep.mubr.bf16.mxu0 0
      %4390 = vmatmul.mubr.bf16.gmra.mrb[0].mxu0 %v4318
      %v4391 = vpop.f32.mrb[0].mxu0
      %v4392 = vadd.f32 %v4297, %v4391
      %v4393 = vpop.f32.mrb[0].mxu0
      %v4394 = vpop.f32.mrb[0].mxu0
      %v4395 = vadd.f32 %v4297, %v4394
      %v4396 = vpop.f32.mrb[0].mxu0
      %4397 = vmatprep.mubr.bf16.mxu0 0
      %4398 = vmatmul.mubr.bf16.gmra.mrb[0].mxu0 %v4321
      %v4399 = vpop.f32.mrb[0].mxu0
      %v4400 = vadd.f32 %v4297, %v4399
      %v4401 = vpop.f32.mrb[0].mxu0
      %v4402 = vpop.f32.mrb[0].mxu0
      %v4403 = vadd.f32 %v4297, %v4402
      %v4404 = vpop.f32.mrb[0].mxu0
      %4405 = vmatprep.mubr.bf16.mxu0 0
      %4406 = vmatmul.mubr.bf16.gmra.mrb[0].mxu0 %v4324
      %v4407 = vpop.f32.mrb[0].mxu0
      %v4408 = vadd.f32 %v4297, %v4407
      %v4409 = vpop.f32.mrb[0].mxu0
      %v4410 = vpop.f32.mrb[0].mxu0
      %v4411 = vadd.f32 %v4297, %v4410
      %v4412 = vpop.f32.mrb[0].mxu0
      %4413 = vmatprep.mubr.bf16.mxu0 0
      %4414 = vmatmul.mubr.bf16.gmra.mrb[0].mxu0 %v4327
      %v4415 = vpop.f32.mrb[0].mxu0
      %v4416 = vadd.f32 %v4297, %v4415
      %v4417 = vpop.f32.mrb[0].mxu0
      %v4418 = vpop.f32.mrb[0].mxu0
      %v4419 = vadd.f32 %v4297, %v4418
      %v4420 = vpop.f32.mrb[0].mxu0
      %4421 = vmatprep.mubr.bf16.mxu0 0
      %4422 = vmatmul.mubr.bf16.gmra.mrb[0].mxu0 %v4330
      %v4423 = vpop.f32.mrb[0].mxu0
      %v4424 = vadd.f32 %v4297, %v4423
      %v4425 = vpop.f32.mrb[0].mxu0
      %v4426 = vpop.f32.mrb[0].mxu0
      %v4427 = vadd.f32 %v4297, %v4426
      %v4428 = vpop.f32.mrb[0].mxu0
      %4429 = vmatprep.mubr.bf16.mxu0 0
      %4430 = vmatmul.mubr.bf16.gmra.mrb[0].mxu0 %v4333
      %v4431 = vpop.f32.mrb[0].mxu0
      %v4432 = vadd.f32 %v4297, %v4431
      %v4433 = vpop.f32.mrb[0].mxu0
      %v4434 = vpop.f32.mrb[0].mxu0
      %v4435 = vadd.f32 %v4297, %v4434
      %v4436 = vpop.f32.mrb[0].mxu0
      %4437 = vmatprep.mubr.bf16.mxu0 0
      %4438 = vmatmul.mubr.bf16.gmra.mrb[0].mxu0 %v4336
      %v4439 = vpop.f32.mrb[0].mxu0
      %v4440 = vadd.f32 %v4297, %v4439
      %v4441 = vpop.f32.mrb[0].mxu0
      %v4442 = vpop.f32.mrb[0].mxu0
      %v4443 = vadd.f32 %v4297, %v4442
      %v4444 = vpop.f32.mrb[0].mxu0
      %4445 = vmatprep.mubr.bf16.mxu0 0
      %4446 = vmatmul.mubr.bf16.gmra.mrb[0].mxu0 %v4339
      %v4447 = vpop.f32.mrb[0].mxu0
      %v4448 = vadd.f32 %v4297, %v4447
      %v4449 = vpop.f32.mrb[0].mxu0
      %v4450 = vpop.f32.mrb[0].mxu0
      %v4451 = vadd.f32 %v4297, %v4450
      %v4452 = vpop.f32.mrb[0].mxu0
      %4453 = vdwg.mxu0
      %v4454 = vadd.f32 %v823, %v4376
      %v4455 = vadd.f32 %v824, %v4379
      %v4456 = vadd.f32 %v825, %v4384
      %v4457 = vadd.f32 %v826, %v4387
      %v4458 = vadd.f32 %v827, %v4392
      %v4459 = vadd.f32 %v828, %v4395
      %v4460 = vadd.f32 %v829, %v4400
      %v4461 = vadd.f32 %v830, %v4403
      %v4462 = vadd.f32 %v831, %v4408
      %v4463 = vadd.f32 %v832, %v4411
      %v4464 = vadd.f32 %v833, %v4416
      %v4465 = vadd.f32 %v834, %v4419
      %v4466 = vadd.f32 %v835, %v4424
      %v4467 = vadd.f32 %v836, %v4427
      %v4468 = vadd.f32 %v837, %v4432
      %v4469 = vadd.f32 %v838, %v4435
      %v4470 = vadd.f32 %v839, %v4440
      %v4471 = vadd.f32 %v840, %v4443
      %v4472 = vadd.f32 %v841, %v4448
      %v4473 = vadd.f32 %v842, %v4451
      %v4474 = vld [vmem:[%s743] sm:$0x1]
      %v4475 = vld [vmem:[%s746] sm:$0x1]
      %v4476 = vsel %vm855, %v4454, 0.0
      %4477 = vadd.xlane.f32.xlu0 %v4476
      %v4478 = vpop.xlane.xlu0 %4477
      %v4479 = vsel %vm855, %v4455, 0.0
      %4480 = vadd.xlane.f32.xlu0 %v4479
      %v4481 = vpop.xlane.xlu0 %4480
      %v4482 = vsel %vm855, %v4456, 0.0
      %4483 = vadd.xlane.f32.xlu0 %v4482
      %v4484 = vpop.xlane.xlu0 %4483
      %v4485 = vsel %vm855, %v4457, 0.0
      %4486 = vadd.xlane.f32.xlu0 %v4485
      %v4487 = vpop.xlane.xlu0 %4486
      %v4488 = vsel %vm855, %v4458, 0.0
      %4489 = vadd.xlane.f32.xlu0 %v4488
      %v4490 = vpop.xlane.xlu0 %4489
      %v4491 = vsel %vm855, %v4459, 0.0
      %4492 = vadd.xlane.f32.xlu0 %v4491
      %v4493 = vpop.xlane.xlu0 %4492
      %v4494 = vsel %vm855, %v4460, 0.0
      %4495 = vadd.xlane.f32.xlu0 %v4494
      %v4496 = vpop.xlane.xlu0 %4495
      %v4497 = vsel %vm855, %v4461, 0.0
      %4498 = vadd.xlane.f32.xlu0 %v4497
      %v4499 = vpop.xlane.xlu0 %4498
      %v4500 = vsel %vm855, %v4462, 0.0
      %4501 = vadd.xlane.f32.xlu0 %v4500
      %v4502 = vpop.xlane.xlu0 %4501
      %v4503 = vsel %vm855, %v4463, 0.0
      %4504 = vadd.xlane.f32.xlu0 %v4503
      %v4505 = vpop.xlane.xlu0 %4504
      %v4506 = vsel %vm855, %v4464, 0.0
      %4507 = vadd.xlane.f32.xlu0 %v4506
      %v4508 = vpop.xlane.xlu0 %4507
      %v4509 = vsel %vm855, %v4465, 0.0
      %4510 = vadd.xlane.f32.xlu0 %v4509
      %v4511 = vpop.xlane.xlu0 %4510
      %v4512 = vsel %vm855, %v4466, 0.0
      %4513 = vadd.xlane.f32.xlu0 %v4512
      %v4514 = vpop.xlane.xlu0 %4513
      %v4515 = vsel %vm855, %v4467, 0.0
      %4516 = vadd.xlane.f32.xlu0 %v4515
      %v4517 = vpop.xlane.xlu0 %4516
      %v4518 = vsel %vm855, %v4468, 0.0
      %4519 = vadd.xlane.f32.xlu0 %v4518
      %v4520 = vpop.xlane.xlu0 %4519
      %v4521 = vsel %vm855, %v4469, 0.0
      %4522 = vadd.xlane.f32.xlu0 %v4521
      %v4523 = vpop.xlane.xlu0 %4522
      %v4524 = vsel %vm855, %v4470, 0.0
      %4525 = vadd.xlane.f32.xlu0 %v4524
      %v4526 = vpop.xlane.xlu0 %4525
      %v4527 = vsel %vm855, %v4471, 0.0
      %4528 = vadd.xlane.f32.xlu0 %v4527
      %v4529 = vpop.xlane.xlu0 %4528
      %v4530 = vsel %vm855, %v4472, 0.0
      %4531 = vadd.xlane.f32.xlu0 %v4530
      %v4532 = vpop.xlane.xlu0 %4531
      %v4533 = vsel %vm855, %v4473, 0.0
      %4534 = vadd.xlane.f32.xlu0 %v4533
      %v4535 = vpop.xlane.xlu0 %4534
      %v4536 = vmul.f32 %v4478, %v916
      %v4537 = vmul.f32 %v4481, %v916
      %v4538 = vmul.f32 %v4484, %v916
      %v4539 = vmul.f32 %v4487, %v916
      %v4540 = vmul.f32 %v4490, %v916
      %v4541 = vmul.f32 %v4493, %v916
      %v4542 = vmul.f32 %v4496, %v916
      %v4543 = vmul.f32 %v4499, %v916
      %v4544 = vmul.f32 %v4502, %v916
      %v4545 = vmul.f32 %v4505, %v916
      %v4546 = vmul.f32 %v4508, %v916
      %v4547 = vmul.f32 %v4511, %v916
      %v4548 = vmul.f32 %v4514, %v916
      %v4549 = vmul.f32 %v4517, %v916
      %v4550 = vmul.f32 %v4520, %v916
      %v4551 = vmul.f32 %v4523, %v916
      %v4552 = vmul.f32 %v4526, %v916
      %v4553 = vmul.f32 %v4529, %v916
      %v4554 = vmul.f32 %v4532, %v916
      %v4555 = vmul.f32 %v4535, %v916
      %v4556 = vsub.f32 %v4454, %v4536
      %v4557 = vsub.f32 %v4455, %v4537
      %v4558 = vsub.f32 %v4456, %v4538
      %v4559 = vsub.f32 %v4457, %v4539
      %v4560 = vsub.f32 %v4458, %v4540
      %v4561 = vsub.f32 %v4459, %v4541
      %v4562 = vsub.f32 %v4460, %v4542
      %v4563 = vsub.f32 %v4461, %v4543
      %v4564 = vsub.f32 %v4462, %v4544
      %v4565 = vsub.f32 %v4463, %v4545
      %v4566 = vsub.f32 %v4464, %v4546
      %v4567 = vsub.f32 %v4465, %v4547
      %v4568 = vsub.f32 %v4466, %v4548
      %v4569 = vsub.f32 %v4467, %v4549
      %v4570 = vsub.f32 %v4468, %v4550
      %v4571 = vsub.f32 %v4469, %v4551
      %v4572 = vsub.f32 %v4470, %v4552
      %v4573 = vsub.f32 %v4471, %v4553
      %v4574 = vsub.f32 %v4472, %v4554
      %v4575 = vsub.f32 %v4473, %v4555
      %v4576 = vmul.f32 %v4556, %v4556
      %v4577 = vmul.f32 %v4557, %v4557
      %v4578 = vmul.f32 %v4558, %v4558
      %v4579 = vmul.f32 %v4559, %v4559
      %v4580 = vmul.f32 %v4560, %v4560
      %v4581 = vmul.f32 %v4561, %v4561
      %v4582 = vmul.f32 %v4562, %v4562
      %v4583 = vmul.f32 %v4563, %v4563
      %v4584 = vmul.f32 %v4564, %v4564
      %v4585 = vmul.f32 %v4565, %v4565
      %v4586 = vmul.f32 %v4566, %v4566
      %v4587 = vmul.f32 %v4567, %v4567
      %v4588 = vmul.f32 %v4568, %v4568
      %v4589 = vmul.f32 %v4569, %v4569
      %v4590 = vmul.f32 %v4570, %v4570
      %v4591 = vmul.f32 %v4571, %v4571
      %v4592 = vmul.f32 %v4572, %v4572
      %v4593 = vmul.f32 %v4573, %v4573
      %v4594 = vmul.f32 %v4574, %v4574
      %v4595 = vmul.f32 %v4575, %v4575
      %v4596 = vsel %vm855, %v4576, 0.0
      %4597 = vadd.xlane.f32.xlu0 %v4596
      %v4598 = vpop.xlane.xlu0 %4597
      %v4599 = vsel %vm855, %v4577, 0.0
      %4600 = vadd.xlane.f32.xlu0 %v4599
      %v4601 = vpop.xlane.xlu0 %4600
      %v4602 = vsel %vm855, %v4578, 0.0
      %4603 = vadd.xlane.f32.xlu0 %v4602
      %v4604 = vpop.xlane.xlu0 %4603
      %v4605 = vsel %vm855, %v4579, 0.0
      %4606 = vadd.xlane.f32.xlu0 %v4605
      %v4607 = vpop.xlane.xlu0 %4606
      %v4608 = vsel %vm855, %v4580, 0.0
      %4609 = vadd.xlane.f32.xlu0 %v4608
      %v4610 = vpop.xlane.xlu0 %4609
      %v4611 = vsel %vm855, %v4581, 0.0
      %4612 = vadd.xlane.f32.xlu0 %v4611
      %v4613 = vpop.xlane.xlu0 %4612
      %v4614 = vsel %vm855, %v4582, 0.0
      %4615 = vadd.xlane.f32.xlu0 %v4614
      %v4616 = vpop.xlane.xlu0 %4615
      %v4617 = vsel %vm855, %v4583, 0.0
      %4618 = vadd.xlane.f32.xlu0 %v4617
      %v4619 = vpop.xlane.xlu0 %4618
      %v4620 = vsel %vm855, %v4584, 0.0
      %4621 = vadd.xlane.f32.xlu0 %v4620
      %v4622 = vpop.xlane.xlu0 %4621
      %v4623 = vsel %vm855, %v4585, 0.0
      %4624 = vadd.xlane.f32.xlu0 %v4623
      %v4625 = vpop.xlane.xlu0 %4624
      %v4626 = vsel %vm855, %v4586, 0.0
      %4627 = vadd.xlane.f32.xlu0 %v4626
      %v4628 = vpop.xlane.xlu0 %4627
      %v4629 = vsel %vm855, %v4587, 0.0
      %4630 = vadd.xlane.f32.xlu0 %v4629
      %v4631 = vpop.xlane.xlu0 %4630
      %v4632 = vsel %vm855, %v4588, 0.0
      %4633 = vadd.xlane.f32.xlu0 %v4632
      %v4634 = vpop.xlane.xlu0 %4633
      %v4635 = vsel %vm855, %v4589, 0.0
      %4636 = vadd.xlane.f32.xlu0 %v4635
      %v4637 = vpop.xlane.xlu0 %4636
      %v4638 = vsel %vm855, %v4590, 0.0
      %4639 = vadd.xlane.f32.xlu0 %v4638
      %v4640 = vpop.xlane.xlu0 %4639
      %v4641 = vsel %vm855, %v4591, 0.0
      %4642 = vadd.xlane.f32.xlu0 %v4641
      %v4643 = vpop.xlane.xlu0 %4642
      %v4644 = vsel %vm855, %v4592, 0.0
      %4645 = vadd.xlane.f32.xlu0 %v4644
      %v4646 = vpop.xlane.xlu0 %4645
      %v4647 = vsel %vm855, %v4593, 0.0
      %4648 = vadd.xlane.f32.xlu0 %v4647
      %v4649 = vpop.xlane.xlu0 %4648
      %v4650 = vsel %vm855, %v4594, 0.0
      %4651 = vadd.xlane.f32.xlu0 %v4650
      %v4652 = vpop.xlane.xlu0 %4651
      %v4653 = vsel %vm855, %v4595, 0.0
      %4654 = vadd.xlane.f32.xlu0 %v4653
      %v4655 = vpop.xlane.xlu0 %4654
      %v4656 = vmul.f32 %v4598, %v916
      %v4657 = vmul.f32 %v4601, %v916
      %v4658 = vmul.f32 %v4604, %v916
      %v4659 = vmul.f32 %v4607, %v916
      %v4660 = vmul.f32 %v4610, %v916
      %v4661 = vmul.f32 %v4613, %v916
      %v4662 = vmul.f32 %v4616, %v916
      %v4663 = vmul.f32 %v4619, %v916
      %v4664 = vmul.f32 %v4622, %v916
      %v4665 = vmul.f32 %v4625, %v916
      %v4666 = vmul.f32 %v4628, %v916
      %v4667 = vmul.f32 %v4631, %v916
      %v4668 = vmul.f32 %v4634, %v916
      %v4669 = vmul.f32 %v4637, %v916
      %v4670 = vmul.f32 %v4640, %v916
      %v4671 = vmul.f32 %v4643, %v916
      %v4672 = vmul.f32 %v4646, %v916
      %v4673 = vmul.f32 %v4649, %v916
      %v4674 = vmul.f32 %v4652, %v916
      %v4675 = vmul.f32 %v4655, %v916
      %v4676 = vadd.f32 %v4656, 1e-05
      %v4677 = vadd.f32 %v4657, 1e-05
      %v4678 = vadd.f32 %v4658, 1e-05
      %v4679 = vadd.f32 %v4659, 1e-05
      %v4680 = vadd.f32 %v4660, 1e-05
      %v4681 = vadd.f32 %v4661, 1e-05
      %v4682 = vadd.f32 %v4662, 1e-05
      %v4683 = vadd.f32 %v4663, 1e-05
      %v4684 = vadd.f32 %v4664, 1e-05
      %v4685 = vadd.f32 %v4665, 1e-05
      %v4686 = vadd.f32 %v4666, 1e-05
      %v4687 = vadd.f32 %v4667, 1e-05
      %v4688 = vadd.f32 %v4668, 1e-05
      %v4689 = vadd.f32 %v4669, 1e-05
      %v4690 = vadd.f32 %v4670, 1e-05
      %v4691 = vadd.f32 %v4671, 1e-05
      %v4692 = vadd.f32 %v4672, 1e-05
      %v4693 = vadd.f32 %v4673, 1e-05
      %v4694 = vadd.f32 %v4674, 1e-05
      %v4695 = vadd.f32 %v4675, 1e-05
      %v4696 = vrsqrt.pop %v4676
      %v4697 = vrsqrt.pop %v4677
      %v4698 = vrsqrt.pop %v4678
      %v4699 = vrsqrt.pop %v4679
      %v4700 = vrsqrt.pop %v4680
      %v4701 = vrsqrt.pop %v4681
      %v4702 = vrsqrt.pop %v4682
      %v4703 = vrsqrt.pop %v4683
      %v4704 = vrsqrt.pop %v4684
      %v4705 = vrsqrt.pop %v4685
      %v4706 = vrsqrt.pop %v4686
      %v4707 = vrsqrt.pop %v4687
      %v4708 = vrsqrt.pop %v4688
      %v4709 = vrsqrt.pop %v4689
      %v4710 = vrsqrt.pop %v4690
      %v4711 = vrsqrt.pop %v4691
      %v4712 = vrsqrt.pop %v4692
      %v4713 = vrsqrt.pop %v4693
      %v4714 = vrsqrt.pop %v4694
      %v4715 = vrsqrt.pop %v4695
      %v4716 = vmul.f32 %v4556, %v4696
      %v4717 = vmul.f32 %v4557, %v4697
      %v4718 = vmul.f32 %v4558, %v4698
      %v4719 = vmul.f32 %v4559, %v4699
      %v4720 = vmul.f32 %v4560, %v4700
      %v4721 = vmul.f32 %v4561, %v4701
      %v4722 = vmul.f32 %v4562, %v4702
      %v4723 = vmul.f32 %v4563, %v4703
      %v4724 = vmul.f32 %v4564, %v4704
      %v4725 = vmul.f32 %v4565, %v4705
      %v4726 = vmul.f32 %v4566, %v4706
      %v4727 = vmul.f32 %v4567, %v4707
      %v4728 = vmul.f32 %v4568, %v4708
      %v4729 = vmul.f32 %v4569, %v4709
      %v4730 = vmul.f32 %v4570, %v4710
      %v4731 = vmul.f32 %v4571, %v4711
      %v4732 = vmul.f32 %v4572, %v4712
      %v4733 = vmul.f32 %v4573, %v4713
      %v4734 = vmul.f32 %v4574, %v4714
      %v4735 = vmul.f32 %v4575, %v4715
      %v4737 = vlaneseq
      %v4738 = vshrl.u32 %v4737, 7
      %v4739 = vsub.s32 0, %v4738
      %v4740 = vrot.slane %v4474, %v4739
      %v4742 = vmul.f32 %v4716, %v4740
      %v4743 = vmul.f32 %v4717, %v4740
      %v4744 = vmul.f32 %v4718, %v4740
      %v4745 = vmul.f32 %v4719, %v4740
      %v4746 = vmul.f32 %v4720, %v4740
      %v4747 = vmul.f32 %v4721, %v4740
      %v4748 = vmul.f32 %v4722, %v4740
      %v4749 = vmul.f32 %v4723, %v4740
      %v4750 = vmul.f32 %v4724, %v4740
      %v4751 = vmul.f32 %v4725, %v4740
      %v4752 = vmul.f32 %v4726, %v4740
      %v4753 = vmul.f32 %v4727, %v4740
      %v4754 = vmul.f32 %v4728, %v4740
      %v4755 = vmul.f32 %v4729, %v4740
      %v4756 = vmul.f32 %v4730, %v4740
      %v4757 = vmul.f32 %v4731, %v4740
      %v4758 = vmul.f32 %v4732, %v4740
      %v4759 = vmul.f32 %v4733, %v4740
      %v4760 = vmul.f32 %v4734, %v4740
      %v4761 = vmul.f32 %v4735, %v4740
      %v4763 = vlaneseq
      %v4764 = vshrl.u32 %v4763, 7
      %v4765 = vsub.s32 0, %v4764
      %v4766 = vrot.slane %v4475, %v4765
      %v4768 = vadd.f32 %v4742, %v4766
      %v4769 = vadd.f32 %v4743, %v4766
      %v4770 = vadd.f32 %v4744, %v4766
      %v4771 = vadd.f32 %v4745, %v4766
      %v4772 = vadd.f32 %v4746, %v4766
      %v4773 = vadd.f32 %v4747, %v4766
      %v4774 = vadd.f32 %v4748, %v4766
      %v4775 = vadd.f32 %v4749, %v4766
      %v4776 = vadd.f32 %v4750, %v4766
      %v4777 = vadd.f32 %v4751, %v4766
      %v4778 = vadd.f32 %v4752, %v4766
      %v4779 = vadd.f32 %v4753, %v4766
      %v4780 = vadd.f32 %v4754, %v4766
      %v4781 = vadd.f32 %v4755, %v4766
      %v4782 = vadd.f32 %v4756, %v4766
      %v4783 = vadd.f32 %v4757, %v4766
      %v4784 = vadd.f32 %v4758, %v4766
      %v4785 = vadd.f32 %v4759, %v4766
      %v4786 = vadd.f32 %v4760, %v4766
      %v4787 = vadd.f32 %v4761, %v4766
      %v4788 = vpack.c.bf16 %v4769, %v4768
      %v4789 = vpack.c.bf16 %v4771, %v4770
      %v4790 = vpack.c.bf16 %v4773, %v4772
      %v4791 = vpack.c.bf16 %v4775, %v4774
      %v4792 = vpack.c.bf16 %v4777, %v4776
      %v4793 = vpack.c.bf16 %v4779, %v4778
      %v4794 = vpack.c.bf16 %v4781, %v4780
      %v4795 = vpack.c.bf16 %v4783, %v4782
      %v4796 = vpack.c.bf16 %v4785, %v4784
      %v4797 = vpack.c.bf16 %v4787, %v4786
      %v4798 = vld [vmem:[%s751] sm:$0xf]
      %v4799 = vld [vmem:[%s751 + $0x4] sm:$0xf]
      %v4800 = vld [vmem:[%s751 + $0x8] sm:$0xf]
      %v4801 = vld [vmem:[%s751 + $0xc] sm:$0xf]
      %v4802 = vld [vmem:[%s754] sm:$0x1]
      %v4804 = vlaneseq
      %v4805 = vshrl.u32 %v4804, 7
      %v4806 = vsub.s32 0, %v4805
      %v4807 = vrot.slane %v4802, %v4806
      %v4813 = vunpack.c.l.b16 %v4798
      %v4814 = vunpack.c.l.b16 %v4799
      %v4815 = vunpack.c.l.b16 %v4800
      %v4816 = vunpack.c.l.b16 %v4801
      %v4817 = vpack.c.b16 %v4814, %v4813
      %v4818 = vpack.c.b16 %v4816, %v4815
      %v4822 = vsel %vm855, %v4788, 0
      %v4825 = vsel %vm855, %v4789, 0
      %v4828 = vsel %vm855, %v4790, 0
      %v4831 = vsel %vm855, %v4791, 0
      %v4834 = vsel %vm855, %v4792, 0
      %v4837 = vsel %vm855, %v4793, 0
      %v4840 = vsel %vm855, %v4794, 0
      %v4843 = vsel %vm855, %v4795, 0
      %v4846 = vsel %vm855, %v4796, 0
      %v4849 = vsel %vm855, %v4797, 0
      %4851 = vmatprep.subr.bf16.mxu0 0
      %4852 = vmatpush1.bf16.msra.mxu0 %v4817
      %4853 = vmatprep.subr.bf16.mxu0 0
      %4854 = vmatpush1.bf16.msra.mxu0 %v4818
      %4855 = vmatprep.subr.bf16.mxu0 0
      %4856 = vmatpush1.bf16.msra.mxu0 0
      %4857 = vmatprep.subr.bf16.mxu0 0
      %4858 = vmatpush1.bf16.msra.mxu0 0
      %4859 = vmatprep.subr.bf16.mxu0 0
      %4860 = vmatpush1.bf16.msra.mxu0 0
      %4861 = vmatprep.subr.bf16.mxu0 0
      %4862 = vmatpush1.bf16.msra.mxu0 0
      %4863 = vmatprep.subr.bf16.mxu0 0
      %4864 = vmatpush1.bf16.msra.mxu0 0
      %4865 = vmatprep.subr.bf16.mxu0 0
      %4866 = vmatpush1.bf16.msra.mxu0 0
      %4867 = vmatprep.subr.bf16.mxu0 0
      %4868 = vmatpush1.bf16.msra.mxu0 0
      %4869 = vmatprep.subr.bf16.mxu0 0
      %4870 = vmatpush1.bf16.msra.mxu0 0
      %4871 = vmatprep.subr.bf16.mxu0 0
      %4872 = vmatpush1.bf16.msra.mxu0 0
      %4873 = vmatprep.subr.bf16.mxu0 0
      %4874 = vmatpush1.bf16.msra.mxu0 0
      %4875 = vmatprep.subr.bf16.mxu0 0
      %4876 = vmatpush1.bf16.msra.mxu0 0
      %4877 = vmatprep.subr.bf16.mxu0 0
      %4878 = vmatpush1.bf16.msra.mxu0 0
      %4879 = vmatprep.subr.bf16.mxu0 0
      %4880 = vmatpush1.bf16.msra.mxu0 0
      %4881 = vmatprep.subr.bf16.mxu0 0
      %4882 = vmatpush1.bf16.msra.mxu0 0
      %4883 = vmatprep.mubr.bf16.mxu0 0
      %4884 = vmatmul.mubr.bf16.gmra.mrb[0].mxu0 %v4822
      %v4885 = vpop.f32.mrb[0].mxu0
      %v4886 = vadd.f32 %v4807, %v4885
      %v4887 = vpop.f32.mrb[0].mxu0
      %v4888 = vpop.f32.mrb[0].mxu0
      %v4889 = vadd.f32 %v4807, %v4888
      %v4890 = vpop.f32.mrb[0].mxu0
      %4891 = vmatprep.mubr.bf16.mxu0 0
      %4892 = vmatmul.mubr.bf16.gmra.mrb[0].mxu0 %v4825
      %v4893 = vpop.f32.mrb[0].mxu0
      %v4894 = vadd.f32 %v4807, %v4893
      %v4895 = vpop.f32.mrb[0].mxu0
      %v4896 = vpop.f32.mrb[0].mxu0
      %v4897 = vadd.f32 %v4807, %v4896
      %v4898 = vpop.f32.mrb[0].mxu0
      %4899 = vmatprep.mubr.bf16.mxu0 0
      %4900 = vmatmul.mubr.bf16.gmra.mrb[0].mxu0 %v4828
      %v4901 = vpop.f32.mrb[0].mxu0
      %v4902 = vadd.f32 %v4807, %v4901
      %v4903 = vpop.f32.mrb[0].mxu0
      %v4904 = vpop.f32.mrb[0].mxu0
      %v4905 = vadd.f32 %v4807, %v4904
      %v4906 = vpop.f32.mrb[0].mxu0
      %4907 = vmatprep.mubr.bf16.mxu0 0
      %4908 = vmatmul.mubr.bf16.gmra.mrb[0].mxu0 %v4831
      %v4909 = vpop.f32.mrb[0].mxu0
      %v4910 = vadd.f32 %v4807, %v4909
      %v4911 = vpop.f32.mrb[0].mxu0
      %v4912 = vpop.f32.mrb[0].mxu0
      %v4913 = vadd.f32 %v4807, %v4912
      %v4914 = vpop.f32.mrb[0].mxu0
      %4915 = vmatprep.mubr.bf16.mxu0 0
      %4916 = vmatmul.mubr.bf16.gmra.mrb[0].mxu0 %v4834
      %v4917 = vpop.f32.mrb[0].mxu0
      %v4918 = vadd.f32 %v4807, %v4917
      %v4919 = vpop.f32.mrb[0].mxu0
      %v4920 = vpop.f32.mrb[0].mxu0
      %v4921 = vadd.f32 %v4807, %v4920
      %v4922 = vpop.f32.mrb[0].mxu0
      %4923 = vmatprep.mubr.bf16.mxu0 0
      %4924 = vmatmul.mubr.bf16.gmra.mrb[0].mxu0 %v4837
      %v4925 = vpop.f32.mrb[0].mxu0
      %v4926 = vadd.f32 %v4807, %v4925
      %v4927 = vpop.f32.mrb[0].mxu0
      %v4928 = vpop.f32.mrb[0].mxu0
      %v4929 = vadd.f32 %v4807, %v4928
      %v4930 = vpop.f32.mrb[0].mxu0
      %4931 = vmatprep.mubr.bf16.mxu0 0
      %4932 = vmatmul.mubr.bf16.gmra.mrb[0].mxu0 %v4840
      %v4933 = vpop.f32.mrb[0].mxu0
      %v4934 = vadd.f32 %v4807, %v4933
      %v4935 = vpop.f32.mrb[0].mxu0
      %v4936 = vpop.f32.mrb[0].mxu0
      %v4937 = vadd.f32 %v4807, %v4936
      %v4938 = vpop.f32.mrb[0].mxu0
      %4939 = vmatprep.mubr.bf16.mxu0 0
      %4940 = vmatmul.mubr.bf16.gmra.mrb[0].mxu0 %v4843
      %v4941 = vpop.f32.mrb[0].mxu0
      %v4942 = vadd.f32 %v4807, %v4941
      %v4943 = vpop.f32.mrb[0].mxu0
      %v4944 = vpop.f32.mrb[0].mxu0
      %v4945 = vadd.f32 %v4807, %v4944
      %v4946 = vpop.f32.mrb[0].mxu0
      %4947 = vmatprep.mubr.bf16.mxu0 0
      %4948 = vmatmul.mubr.bf16.gmra.mrb[0].mxu0 %v4846
      %v4949 = vpop.f32.mrb[0].mxu0
      %v4950 = vadd.f32 %v4807, %v4949
      %v4951 = vpop.f32.mrb[0].mxu0
      %v4952 = vpop.f32.mrb[0].mxu0
      %v4953 = vadd.f32 %v4807, %v4952
      %v4954 = vpop.f32.mrb[0].mxu0
      %4955 = vmatprep.mubr.bf16.mxu0 0
      %4956 = vmatmul.mubr.bf16.gmra.mrb[0].mxu0 %v4849
      %v4957 = vpop.f32.mrb[0].mxu0
      %v4958 = vadd.f32 %v4807, %v4957
      %v4959 = vpop.f32.mrb[0].mxu0
      %v4960 = vpop.f32.mrb[0].mxu0
      %v4961 = vadd.f32 %v4807, %v4960
      %v4962 = vpop.f32.mrb[0].mxu0
      %4963 = vdwg.mxu0
      %v4964 = vmul.f32 %v4886, 1.702
      %v4965 = vmul.f32 %v4889, 1.702
      %v4966 = vmul.f32 %v4894, 1.702
      %v4967 = vmul.f32 %v4897, 1.702
      %v4968 = vmul.f32 %v4902, 1.702
      %v4969 = vmul.f32 %v4905, 1.702
      %v4970 = vmul.f32 %v4910, 1.702
      %v4971 = vmul.f32 %v4913, 1.702
      %v4972 = vmul.f32 %v4918, 1.702
      %v4973 = vmul.f32 %v4921, 1.702
      %v4974 = vmul.f32 %v4926, 1.702
      %v4975 = vmul.f32 %v4929, 1.702
      %v4976 = vmul.f32 %v4934, 1.702
      %v4977 = vmul.f32 %v4937, 1.702
      %v4978 = vmul.f32 %v4942, 1.702
      %v4979 = vmul.f32 %v4945, 1.702
      %v4980 = vmul.f32 %v4950, 1.702
      %v4981 = vmul.f32 %v4953, 1.702
      %v4982 = vmul.f32 %v4958, 1.702
      %v4983 = vmul.f32 %v4961, 1.702
      %v4984 = vxor.u32 %v4964, 2147483648
      %v4985 = vxor.u32 %v4965, 2147483648
      %v4986 = vxor.u32 %v4966, 2147483648
      %v4987 = vxor.u32 %v4967, 2147483648
      %v4988 = vxor.u32 %v4968, 2147483648
      %v4989 = vxor.u32 %v4969, 2147483648
      %v4990 = vxor.u32 %v4970, 2147483648
      %v4991 = vxor.u32 %v4971, 2147483648
      %v4992 = vxor.u32 %v4972, 2147483648
      %v4993 = vxor.u32 %v4973, 2147483648
      %v4994 = vxor.u32 %v4974, 2147483648
      %v4995 = vxor.u32 %v4975, 2147483648
      %v4996 = vxor.u32 %v4976, 2147483648
      %v4997 = vxor.u32 %v4977, 2147483648
      %v4998 = vxor.u32 %v4978, 2147483648
      %v4999 = vxor.u32 %v4979, 2147483648
      %v5000 = vxor.u32 %v4980, 2147483648
      %v5001 = vxor.u32 %v4981, 2147483648
      %v5002 = vxor.u32 %v4982, 2147483648
      %v5003 = vxor.u32 %v4983, 2147483648
      %v5004 = vmul.f32 %v4984, 1.442695
      %v5005 = vpow.pop %v5004
      %v5006 = vmul.f32 %v4985, 1.442695
      %v5007 = vpow.pop %v5006
      %v5008 = vmul.f32 %v4986, 1.442695
      %v5009 = vpow.pop %v5008
      %v5010 = vmul.f32 %v4987, 1.442695
      %v5011 = vpow.pop %v5010
      %v5012 = vmul.f32 %v4988, 1.442695
      %v5013 = vpow.pop %v5012
      %v5014 = vmul.f32 %v4989, 1.442695
      %v5015 = vpow.pop %v5014
      %v5016 = vmul.f32 %v4990, 1.442695
      %v5017 = vpow.pop %v5016
      %v5018 = vmul.f32 %v4991, 1.442695
      %v5019 = vpow.pop %v5018
      %v5020 = vmul.f32 %v4992, 1.442695
      %v5021 = vpow.pop %v5020
      %v5022 = vmul.f32 %v4993, 1.442695
      %v5023 = vpow.pop %v5022
      %v5024 = vmul.f32 %v4994, 1.442695
      %v5025 = vpow.pop %v5024
      %v5026 = vmul.f32 %v4995, 1.442695
      %v5027 = vpow.pop %v5026
      %v5028 = vmul.f32 %v4996, 1.442695
      %v5029 = vpow.pop %v5028
      %v5030 = vmul.f32 %v4997, 1.442695
      %v5031 = vpow.pop %v5030
      %v5032 = vmul.f32 %v4998, 1.442695
      %v5033 = vpow.pop %v5032
      %v5034 = vmul.f32 %v4999, 1.442695
      %v5035 = vpow.pop %v5034
      %v5036 = vmul.f32 %v5000, 1.442695
      %v5037 = vpow.pop %v5036
      %v5038 = vmul.f32 %v5001, 1.442695
      %v5039 = vpow.pop %v5038
      %v5040 = vmul.f32 %v5002, 1.442695
      %v5041 = vpow.pop %v5040
      %v5042 = vmul.f32 %v5003, 1.442695
      %v5043 = vpow.pop %v5042
      %v5044 = vadd.f32 %v5005, 1.0
      %v5045 = vadd.f32 %v5007, 1.0
      %v5046 = vadd.f32 %v5009, 1.0
      %v5047 = vadd.f32 %v5011, 1.0
      %v5048 = vadd.f32 %v5013, 1.0
      %v5049 = vadd.f32 %v5015, 1.0
      %v5050 = vadd.f32 %v5017, 1.0
      %v5051 = vadd.f32 %v5019, 1.0
      %v5052 = vadd.f32 %v5021, 1.0
      %v5053 = vadd.f32 %v5023, 1.0
      %v5054 = vadd.f32 %v5025, 1.0
      %v5055 = vadd.f32 %v5027, 1.0
      %v5056 = vadd.f32 %v5029, 1.0
      %v5057 = vadd.f32 %v5031, 1.0
      %v5058 = vadd.f32 %v5033, 1.0
      %v5059 = vadd.f32 %v5035, 1.0
      %v5060 = vadd.f32 %v5037, 1.0
      %v5061 = vadd.f32 %v5039, 1.0
      %v5062 = vadd.f32 %v5041, 1.0
      %v5063 = vadd.f32 %v5043, 1.0
      %v5064 = vrcp.pop %v5044
      %v5065 = vmul.f32 1.0, %v5064
      %v5066 = vrcp.pop %v5045
      %v5067 = vmul.f32 1.0, %v5066
      %v5068 = vrcp.pop %v5046
      %v5069 = vmul.f32 1.0, %v5068
      %v5070 = vrcp.pop %v5047
      %v5071 = vmul.f32 1.0, %v5070
      %v5072 = vrcp.pop %v5048
      %v5073 = vmul.f32 1.0, %v5072
      %v5074 = vrcp.pop %v5049
      %v5075 = vmul.f32 1.0, %v5074
      %v5076 = vrcp.pop %v5050
      %v5077 = vmul.f32 1.0, %v5076
      %v5078 = vrcp.pop %v5051
      %v5079 = vmul.f32 1.0, %v5078
      %v5080 = vrcp.pop %v5052
      %v5081 = vmul.f32 1.0, %v5080
      %v5082 = vrcp.pop %v5053
      %v5083 = vmul.f32 1.0, %v5082
      %v5084 = vrcp.pop %v5054
      %v5085 = vmul.f32 1.0, %v5084
      %v5086 = vrcp.pop %v5055
      %v5087 = vmul.f32 1.0, %v5086
      %v5088 = vrcp.pop %v5056
      %v5089 = vmul.f32 1.0, %v5088
      %v5090 = vrcp.pop %v5057
      %v5091 = vmul.f32 1.0, %v5090
      %v5092 = vrcp.pop %v5058
      %v5093 = vmul.f32 1.0, %v5092
      %v5094 = vrcp.pop %v5059
      %v5095 = vmul.f32 1.0, %v5094
      %v5096 = vrcp.pop %v5060
      %v5097 = vmul.f32 1.0, %v5096
      %v5098 = vrcp.pop %v5061
      %v5099 = vmul.f32 1.0, %v5098
      %v5100 = vrcp.pop %v5062
      %v5101 = vmul.f32 1.0, %v5100
      %v5102 = vrcp.pop %v5063
      %v5103 = vmul.f32 1.0, %v5102
      %v5104 = vmul.f32 %v4886, %v5065
      %v5105 = vmul.f32 %v4889, %v5067
      %v5106 = vmul.f32 %v4894, %v5069
      %v5107 = vmul.f32 %v4897, %v5071
      %v5108 = vmul.f32 %v4902, %v5073
      %v5109 = vmul.f32 %v4905, %v5075
      %v5110 = vmul.f32 %v4910, %v5077
      %v5111 = vmul.f32 %v4913, %v5079
      %v5112 = vmul.f32 %v4918, %v5081
      %v5113 = vmul.f32 %v4921, %v5083
      %v5114 = vmul.f32 %v4926, %v5085
      %v5115 = vmul.f32 %v4929, %v5087
      %v5116 = vmul.f32 %v4934, %v5089
      %v5117 = vmul.f32 %v4937, %v5091
      %v5118 = vmul.f32 %v4942, %v5093
      %v5119 = vmul.f32 %v4945, %v5095
      %v5120 = vmul.f32 %v4950, %v5097
      %v5121 = vmul.f32 %v4953, %v5099
      %v5122 = vmul.f32 %v4958, %v5101
      %v5123 = vmul.f32 %v4961, %v5103
      %v5124 = vpack.c.bf16 %v5105, %v5104
      %v5125 = vpack.c.bf16 %v5107, %v5106
      %v5126 = vpack.c.bf16 %v5109, %v5108
      %v5127 = vpack.c.bf16 %v5111, %v5110
      %v5128 = vpack.c.bf16 %v5113, %v5112
      %v5129 = vpack.c.bf16 %v5115, %v5114
      %v5130 = vpack.c.bf16 %v5117, %v5116
      %v5131 = vpack.c.bf16 %v5119, %v5118
      %v5132 = vpack.c.bf16 %v5121, %v5120
      %v5133 = vpack.c.bf16 %v5123, %v5122
      %v5134 = vld [vmem:[%s759] sm:$0xf]
      %v5135 = vld [vmem:[%s759 + $0x4] sm:$0xf]
      %v5136 = vld [vmem:[%s759 + $0x8] sm:$0xf]
      %v5137 = vld [vmem:[%s759 + $0xc] sm:$0xf]
      %v5138 = vld [vmem:[%s759 + $0x10] sm:$0xf]
      %v5139 = vld [vmem:[%s759 + $0x14] sm:$0xf]
      %v5140 = vld [vmem:[%s759 + $0x18] sm:$0xf]
      %v5141 = vld [vmem:[%s759 + $0x1c] sm:$0xf]
      %v5142 = vld [vmem:[%s762] sm:$0x1]
      %v5144 = vlaneseq
      %v5145 = vshrl.u32 %v5144, 7
      %v5146 = vsub.s32 0, %v5145
      %v5147 = vrot.slane %v5142, %v5146
      %v5157 = vunpack.c.l.b16 %v5134
      %v5158 = vunpack.c.l.b16 %v5135
      %v5159 = vunpack.c.l.b16 %v5136
      %v5160 = vunpack.c.l.b16 %v5137
      %v5161 = vunpack.c.l.b16 %v5138
      %v5162 = vunpack.c.l.b16 %v5139
      %v5163 = vunpack.c.l.b16 %v5140
      %v5164 = vunpack.c.l.b16 %v5141
      %v5165 = vpack.c.b16 %v5158, %v5157
      %v5166 = vpack.c.b16 %v5160, %v5159
      %v5167 = vpack.c.b16 %v5162, %v5161
      %v5168 = vpack.c.b16 %v5164, %v5163
      %vm5173 = vcmask 523264
      %v5175 = vsel %vm5173, %v5124, 0
      %v5178 = vsel %vm5173, %v5125, 0
      %v5181 = vsel %vm5173, %v5126, 0
      %v5184 = vsel %vm5173, %v5127, 0
      %v5187 = vsel %vm5173, %v5128, 0
      %v5190 = vsel %vm5173, %v5129, 0
      %v5193 = vsel %vm5173, %v5130, 0
      %v5196 = vsel %vm5173, %v5131, 0
      %v5199 = vsel %vm5173, %v5132, 0
      %v5202 = vsel %vm5173, %v5133, 0
      %5204 = vmatprep.subr.bf16.mxu0 0
      %5205 = vmatpush1.bf16.msra.mxu0 %v5165
      %5206 = vmatprep.subr.bf16.mxu0 0
      %5207 = vmatpush1.bf16.msra.mxu0 %v5166
      %5208 = vmatprep.subr.bf16.mxu0 0
      %5209 = vmatpush1.bf16.msra.mxu0 %v5167
      %5210 = vmatprep.subr.bf16.mxu0 0
      %5211 = vmatpush1.bf16.msra.mxu0 %v5168
      %5212 = vmatprep.subr.bf16.mxu0 0
      %5213 = vmatpush1.bf16.msra.mxu0 0
      %5214 = vmatprep.subr.bf16.mxu0 0
      %5215 = vmatpush1.bf16.msra.mxu0 0
      %5216 = vmatprep.subr.bf16.mxu0 0
      %5217 = vmatpush1.bf16.msra.mxu0 0
      %5218 = vmatprep.subr.bf16.mxu0 0
      %5219 = vmatpush1.bf16.msra.mxu0 0
      %5220 = vmatprep.subr.bf16.mxu0 0
      %5221 = vmatpush1.bf16.msra.mxu0 0
      %5222 = vmatprep.subr.bf16.mxu0 0
      %5223 = vmatpush1.bf16.msra.mxu0 0
      %5224 = vmatprep.subr.bf16.mxu0 0
      %5225 = vmatpush1.bf16.msra.mxu0 0
      %5226 = vmatprep.subr.bf16.mxu0 0
      %5227 = vmatpush1.bf16.msra.mxu0 0
      %5228 = vmatprep.subr.bf16.mxu0 0
      %5229 = vmatpush1.bf16.msra.mxu0 0
      %5230 = vmatprep.subr.bf16.mxu0 0
      %5231 = vmatpush1.bf16.msra.mxu0 0
      %5232 = vmatprep.subr.bf16.mxu0 0
      %5233 = vmatpush1.bf16.msra.mxu0 0
      %5234 = vmatprep.subr.bf16.mxu0 0
      %5235 = vmatpush1.bf16.msra.mxu0 0
      %5236 = vmatprep.mubr.bf16.mxu0 0
      %5237 = vmatmul.mubr.bf16.gmra.mrb[0].mxu0 %v5175
      %v5238 = vpop.f32.mrb[0].mxu0
      %v5239 = vadd.f32 %v5147, %v5238
      %v5240 = vpop.f32.mrb[0].mxu0
      %v5241 = vpop.f32.mrb[0].mxu0
      %v5242 = vadd.f32 %v5147, %v5241
      %v5243 = vpop.f32.mrb[0].mxu0
      %5244 = vmatprep.mubr.bf16.mxu0 0
      %5245 = vmatmul.mubr.bf16.gmra.mrb[0].mxu0 %v5178
      %v5246 = vpop.f32.mrb[0].mxu0
      %v5247 = vadd.f32 %v5147, %v5246
      %v5248 = vpop.f32.mrb[0].mxu0
      %v5249 = vpop.f32.mrb[0].mxu0
      %v5250 = vadd.f32 %v5147, %v5249
      %v5251 = vpop.f32.mrb[0].mxu0
      %5252 = vmatprep.mubr.bf16.mxu0 0
      %5253 = vmatmul.mubr.bf16.gmra.mrb[0].mxu0 %v5181
      %v5254 = vpop.f32.mrb[0].mxu0
      %v5255 = vadd.f32 %v5147, %v5254
      %v5256 = vpop.f32.mrb[0].mxu0
      %v5257 = vpop.f32.mrb[0].mxu0
      %v5258 = vadd.f32 %v5147, %v5257
      %v5259 = vpop.f32.mrb[0].mxu0
      %5260 = vmatprep.mubr.bf16.mxu0 0
      %5261 = vmatmul.mubr.bf16.gmra.mrb[0].mxu0 %v5184
      %v5262 = vpop.f32.mrb[0].mxu0
      %v5263 = vadd.f32 %v5147, %v5262
      %v5264 = vpop.f32.mrb[0].mxu0
      %v5265 = vpop.f32.mrb[0].mxu0
      %v5266 = vadd.f32 %v5147, %v5265
      %v5267 = vpop.f32.mrb[0].mxu0
      %5268 = vmatprep.mubr.bf16.mxu0 0
      %5269 = vmatmul.mubr.bf16.gmra.mrb[0].mxu0 %v5187
      %v5270 = vpop.f32.mrb[0].mxu0
      %v5271 = vadd.f32 %v5147, %v5270
      %v5272 = vpop.f32.mrb[0].mxu0
      %v5273 = vpop.f32.mrb[0].mxu0
      %v5274 = vadd.f32 %v5147, %v5273
      %v5275 = vpop.f32.mrb[0].mxu0
      %5276 = vmatprep.mubr.bf16.mxu0 0
      %5277 = vmatmul.mubr.bf16.gmra.mrb[0].mxu0 %v5190
      %v5278 = vpop.f32.mrb[0].mxu0
      %v5279 = vadd.f32 %v5147, %v5278
      %v5280 = vpop.f32.mrb[0].mxu0
      %v5281 = vpop.f32.mrb[0].mxu0
      %v5282 = vadd.f32 %v5147, %v5281
      %v5283 = vpop.f32.mrb[0].mxu0
      %5284 = vmatprep.mubr.bf16.mxu0 0
      %5285 = vmatmul.mubr.bf16.gmra.mrb[0].mxu0 %v5193
      %v5286 = vpop.f32.mrb[0].mxu0
      %v5287 = vadd.f32 %v5147, %v5286
      %v5288 = vpop.f32.mrb[0].mxu0
      %v5289 = vpop.f32.mrb[0].mxu0
      %v5290 = vadd.f32 %v5147, %v5289
      %v5291 = vpop.f32.mrb[0].mxu0
      %5292 = vmatprep.mubr.bf16.mxu0 0
      %5293 = vmatmul.mubr.bf16.gmra.mrb[0].mxu0 %v5196
      %v5294 = vpop.f32.mrb[0].mxu0
      %v5295 = vadd.f32 %v5147, %v5294
      %v5296 = vpop.f32.mrb[0].mxu0
      %v5297 = vpop.f32.mrb[0].mxu0
      %v5298 = vadd.f32 %v5147, %v5297
      %v5299 = vpop.f32.mrb[0].mxu0
      %5300 = vmatprep.mubr.bf16.mxu0 0
      %5301 = vmatmul.mubr.bf16.gmra.mrb[0].mxu0 %v5199
      %v5302 = vpop.f32.mrb[0].mxu0
      %v5303 = vadd.f32 %v5147, %v5302
      %v5304 = vpop.f32.mrb[0].mxu0
      %v5305 = vpop.f32.mrb[0].mxu0
      %v5306 = vadd.f32 %v5147, %v5305
      %v5307 = vpop.f32.mrb[0].mxu0
      %5308 = vmatprep.mubr.bf16.mxu0 0
      %5309 = vmatmul.mubr.bf16.gmra.mrb[0].mxu0 %v5202
      %v5310 = vpop.f32.mrb[0].mxu0
      %v5311 = vadd.f32 %v5147, %v5310
      %v5312 = vpop.f32.mrb[0].mxu0
      %v5313 = vpop.f32.mrb[0].mxu0
      %v5314 = vadd.f32 %v5147, %v5313
      %v5315 = vpop.f32.mrb[0].mxu0
      %5316 = vdwg.mxu0
      %v5317 = vadd.f32 %v4454, %v5239
      %v5318 = vadd.f32 %v4455, %v5242
      %v5319 = vadd.f32 %v4456, %v5247
      %v5320 = vadd.f32 %v4457, %v5250
      %v5321 = vadd.f32 %v4458, %v5255
      %v5322 = vadd.f32 %v4459, %v5258
      %v5323 = vadd.f32 %v4460, %v5263
      %v5324 = vadd.f32 %v4461, %v5266
      %v5325 = vadd.f32 %v4462, %v5271
      %v5326 = vadd.f32 %v4463, %v5274
      %v5327 = vadd.f32 %v4464, %v5279
      %v5328 = vadd.f32 %v4465, %v5282
      %v5329 = vadd.f32 %v4466, %v5287
      %v5330 = vadd.f32 %v4467, %v5290
      %v5331 = vadd.f32 %v4468, %v5295
      %v5332 = vadd.f32 %v4469, %v5298
      %v5333 = vadd.f32 %v4470, %v5303
      %v5334 = vadd.f32 %v4471, %v5306
      %v5335 = vadd.f32 %v4472, %v5311
      %v5336 = vadd.f32 %v4473, %v5314
      %5337 = vst.msk [vmem:[#allocation2] sm:$0xff] %vm855, %v5317
      %5338 = vst.msk [vmem:[#allocation2 + $0x8] sm:$0xff] %vm855, %v5318
      %5339 = vst.msk [vmem:[#allocation2 + $0x10] sm:$0xff] %vm855, %v5319
      %5340 = vst.msk [vmem:[#allocation2 + $0x18] sm:$0xff] %vm855, %v5320
      %5341 = vst.msk [vmem:[#allocation2 + $0x20] sm:$0xff] %vm855, %v5321
      %5342 = vst.msk [vmem:[#allocation2 + $0x28] sm:$0xff] %vm855, %v5322
      %5343 = vst.msk [vmem:[#allocation2 + $0x30] sm:$0xff] %vm855, %v5323
      %5344 = vst.msk [vmem:[#allocation2 + $0x38] sm:$0xff] %vm855, %v5324
      %5345 = vst.msk [vmem:[#allocation2 + $0x40] sm:$0xff] %vm855, %v5325
      %5346 = vst.msk [vmem:[#allocation2 + $0x48] sm:$0xff] %vm855, %v5326
      %5347 = vst.msk [vmem:[#allocation2 + $0x50] sm:$0xff] %vm855, %v5327
      %5348 = vst.msk [vmem:[#allocation2 + $0x58] sm:$0xff] %vm855, %v5328
      %5349 = vst.msk [vmem:[#allocation2 + $0x60] sm:$0xff] %vm855, %v5329
      %5350 = vst.msk [vmem:[#allocation2 + $0x68] sm:$0xff] %vm855, %v5330
      %5351 = vst.msk [vmem:[#allocation2 + $0x70] sm:$0xff] %vm855, %v5331
      %5352 = vst.msk [vmem:[#allocation2 + $0x78] sm:$0xff] %vm855, %v5332
      %5353 = vst.msk [vmem:[#allocation2 + $0x80] sm:$0xff] %vm855, %v5333
      %5354 = vst.msk [vmem:[#allocation2 + $0x88] sm:$0xff] %vm855, %v5334
      %5355 = vst.msk [vmem:[#allocation2 + $0x90] sm:$0xff] %vm855, %v5335
      %5356 = vst.msk [vmem:[#allocation2 + $0x98] sm:$0xff] %vm855, %v5336
      %p5357 = scmp.eq.s32.totalorder %s34, 1
      // Predicated region
      $region89: #{clip_text_forward.1} parent=83 // pred_check
        %p5358 = pneg %p5357
      $region90: #{clip_text_forward.1} parent=83 // pred_check_branch
        %5360 = sbr.rel (%p5358) target = $region92
      $region91: #{clip_text_forward.1} parent=83 // pred_region
        %v5361 = vld [vmem:[%s14] sm:$0x1]
        %v5362 = vld [vmem:[%s15] sm:$0x1]
        %v5363 = vsel %vm855, %v5317, 0.0
        %5364 = vadd.xlane.f32.xlu0 %v5363
        %v5365 = vpop.xlane.xlu0 %5364
        %v5366 = vsel %vm855, %v5318, 0.0
        %5367 = vadd.xlane.f32.xlu0 %v5366
        %v5368 = vpop.xlane.xlu0 %5367
        %v5369 = vsel %vm855, %v5319, 0.0
        %5370 = vadd.xlane.f32.xlu0 %v5369
        %v5371 = vpop.xlane.xlu0 %5370
        %v5372 = vsel %vm855, %v5320, 0.0
        %5373 = vadd.xlane.f32.xlu0 %v5372
        %v5374 = vpop.xlane.xlu0 %5373
        %v5375 = vsel %vm855, %v5321, 0.0
        %5376 = vadd.xlane.f32.xlu0 %v5375
        %v5377 = vpop.xlane.xlu0 %5376
        %v5378 = vsel %vm855, %v5322, 0.0
        %5379 = vadd.xlane.f32.xlu0 %v5378
        %v5380 = vpop.xlane.xlu0 %5379
        %v5381 = vsel %vm855, %v5323, 0.0
        %5382 = vadd.xlane.f32.xlu0 %v5381
        %v5383 = vpop.xlane.xlu0 %5382
        %v5384 = vsel %vm855, %v5324, 0.0
        %5385 = vadd.xlane.f32.xlu0 %v5384
        %v5386 = vpop.xlane.xlu0 %5385
        %v5387 = vsel %vm855, %v5325, 0.0
        %5388 = vadd.xlane.f32.xlu0 %v5387
        %v5389 = vpop.xlane.xlu0 %5388
        %v5390 = vsel %vm855, %v5326, 0.0
        %5391 = vadd.xlane.f32.xlu0 %v5390
        %v5392 = vpop.xlane.xlu0 %5391
        %v5393 = vsel %vm855, %v5327, 0.0
        %5394 = vadd.xlane.f32.xlu0 %v5393
        %v5395 = vpop.xlane.xlu0 %5394
        %v5396 = vsel %vm855, %v5328, 0.0
        %5397 = vadd.xlane.f32.xlu0 %v5396
        %v5398 = vpop.xlane.xlu0 %5397
        %v5399 = vsel %vm855, %v5329, 0.0
        %5400 = vadd.xlane.f32.xlu0 %v5399
        %v5401 = vpop.xlane.xlu0 %5400
        %v5402 = vsel %vm855, %v5330, 0.0
        %5403 = vadd.xlane.f32.xlu0 %v5402
        %v5404 = vpop.xlane.xlu0 %5403
        %v5405 = vsel %vm855, %v5331, 0.0
        %5406 = vadd.xlane.f32.xlu0 %v5405
        %v5407 = vpop.xlane.xlu0 %5406
        %v5408 = vsel %vm855, %v5332, 0.0
        %5409 = vadd.xlane.f32.xlu0 %v5408
        %v5410 = vpop.xlane.xlu0 %5409
        %v5411 = vsel %vm855, %v5333, 0.0
        %5412 = vadd.xlane.f32.xlu0 %v5411
        %v5413 = vpop.xlane.xlu0 %5412
        %v5414 = vsel %vm855, %v5334, 0.0
        %5415 = vadd.xlane.f32.xlu0 %v5414
        %v5416 = vpop.xlane.xlu0 %5415
        %v5417 = vsel %vm855, %v5335, 0.0
        %5418 = vadd.xlane.f32.xlu0 %v5417
        %v5419 = vpop.xlane.xlu0 %5418
        %v5420 = vsel %vm855, %v5336, 0.0
        %5421 = vadd.xlane.f32.xlu0 %v5420
        %v5422 = vpop.xlane.xlu0 %5421
        %v5423 = vmul.f32 %v5365, %v916
        %v5424 = vmul.f32 %v5368, %v916
        %v5425 = vmul.f32 %v5371, %v916
        %v5426 = vmul.f32 %v5374, %v916
        %v5427 = vmul.f32 %v5377, %v916
        %v5428 = vmul.f32 %v5380, %v916
        %v5429 = vmul.f32 %v5383, %v916
        %v5430 = vmul.f32 %v5386, %v916
        %v5431 = vmul.f32 %v5389, %v916
        %v5432 = vmul.f32 %v5392, %v916
        %v5433 = vmul.f32 %v5395, %v916
        %v5434 = vmul.f32 %v5398, %v916
        %v5435 = vmul.f32 %v5401, %v916
        %v5436 = vmul.f32 %v5404, %v916
        %v5437 = vmul.f32 %v5407, %v916
        %v5438 = vmul.f32 %v5410, %v916
        %v5439 = vmul.f32 %v5413, %v916
        %v5440 = vmul.f32 %v5416, %v916
        %v5441 = vmul.f32 %v5419, %v916
        %v5442 = vmul.f32 %v5422, %v916
        %v5443 = vsub.f32 %v5317, %v5423
        %v5444 = vsub.f32 %v5318, %v5424
        %v5445 = vsub.f32 %v5319, %v5425
        %v5446 = vsub.f32 %v5320, %v5426
        %v5447 = vsub.f32 %v5321, %v5427
        %v5448 = vsub.f32 %v5322, %v5428
        %v5449 = vsub.f32 %v5323, %v5429
        %v5450 = vsub.f32 %v5324, %v5430
        %v5451 = vsub.f32 %v5325, %v5431
        %v5452 = vsub.f32 %v5326, %v5432
        %v5453 = vsub.f32 %v5327, %v5433
        %v5454 = vsub.f32 %v5328, %v5434
        %v5455 = vsub.f32 %v5329, %v5435
        %v5456 = vsub.f32 %v5330, %v5436
        %v5457 = vsub.f32 %v5331, %v5437
        %v5458 = vsub.f32 %v5332, %v5438
        %v5459 = vsub.f32 %v5333, %v5439
        %v5460 = vsub.f32 %v5334, %v5440
        %v5461 = vsub.f32 %v5335, %v5441
        %v5462 = vsub.f32 %v5336, %v5442
        %v5463 = vmul.f32 %v5443, %v5443
        %v5464 = vmul.f32 %v5444, %v5444
        %v5465 = vmul.f32 %v5445, %v5445
        %v5466 = vmul.f32 %v5446, %v5446
        %v5467 = vmul.f32 %v5447, %v5447
        %v5468 = vmul.f32 %v5448, %v5448
        %v5469 = vmul.f32 %v5449, %v5449
        %v5470 = vmul.f32 %v5450, %v5450
        %v5471 = vmul.f32 %v5451, %v5451
        %v5472 = vmul.f32 %v5452, %v5452
        %v5473 = vmul.f32 %v5453, %v5453
        %v5474 = vmul.f32 %v5454, %v5454
        %v5475 = vmul.f32 %v5455, %v5455
        %v5476 = vmul.f32 %v5456, %v5456
        %v5477 = vmul.f32 %v5457, %v5457
        %v5478 = vmul.f32 %v5458, %v5458
        %v5479 = vmul.f32 %v5459, %v5459
        %v5480 = vmul.f32 %v5460, %v5460
        %v5481 = vmul.f32 %v5461, %v5461
        %v5482 = vmul.f32 %v5462, %v5462
        %v5483 = vsel %vm855, %v5463, 0.0
        %5484 = vadd.xlane.f32.xlu0 %v5483
        %v5485 = vpop.xlane.xlu0 %5484
        %v5486 = vsel %vm855, %v5464, 0.0
        %5487 = vadd.xlane.f32.xlu0 %v5486
        %v5488 = vpop.xlane.xlu0 %5487
        %v5489 = vsel %vm855, %v5465, 0.0
        %5490 = vadd.xlane.f32.xlu0 %v5489
        %v5491 = vpop.xlane.xlu0 %5490
        %v5492 = vsel %vm855, %v5466, 0.0
        %5493 = vadd.xlane.f32.xlu0 %v5492
        %v5494 = vpop.xlane.xlu0 %5493
        %v5495 = vsel %vm855, %v5467, 0.0
        %5496 = vadd.xlane.f32.xlu0 %v5495
        %v5497 = vpop.xlane.xlu0 %5496
        %v5498 = vsel %vm855, %v5468, 0.0
        %5499 = vadd.xlane.f32.xlu0 %v5498
        %v5500 = vpop.xlane.xlu0 %5499
        %v5501 = vsel %vm855, %v5469, 0.0
        %5502 = vadd.xlane.f32.xlu0 %v5501
        %v5503 = vpop.xlane.xlu0 %5502
        %v5504 = vsel %vm855, %v5470, 0.0
        %5505 = vadd.xlane.f32.xlu0 %v5504
        %v5506 = vpop.xlane.xlu0 %5505
        %v5507 = vsel %vm855, %v5471, 0.0
        %5508 = vadd.xlane.f32.xlu0 %v5507
        %v5509 = vpop.xlane.xlu0 %5508
        %v5510 = vsel %vm855, %v5472, 0.0
        %5511 = vadd.xlane.f32.xlu0 %v5510
        %v5512 = vpop.xlane.xlu0 %5511
        %v5513 = vsel %vm855, %v5473, 0.0
        %5514 = vadd.xlane.f32.xlu0 %v5513
        %v5515 = vpop.xlane.xlu0 %5514
        %v5516 = vsel %vm855, %v5474, 0.0
        %5517 = vadd.xlane.f32.xlu0 %v5516
        %v5518 = vpop.xlane.xlu0 %5517
        %v5519 = vsel %vm855, %v5475, 0.0
        %5520 = vadd.xlane.f32.xlu0 %v5519
        %v5521 = vpop.xlane.xlu0 %5520
        %v5522 = vsel %vm855, %v5476, 0.0
        %5523 = vadd.xlane.f32.xlu0 %v5522
        %v5524 = vpop.xlane.xlu0 %5523
        %v5525 = vsel %vm855, %v5477, 0.0
        %5526 = vadd.xlane.f32.xlu0 %v5525
        %v5527 = vpop.xlane.xlu0 %5526
        %v5528 = vsel %vm855, %v5478, 0.0
        %5529 = vadd.xlane.f32.xlu0 %v5528
        %v5530 = vpop.xlane.xlu0 %5529
        %v5531 = vsel %vm855, %v5479, 0.0
        %5532 = vadd.xlane.f32.xlu0 %v5531
        %v5533 = vpop.xlane.xlu0 %5532
        %v5534 = vsel %vm855, %v5480, 0.0
        %5535 = vadd.xlane.f32.xlu0 %v5534
        %v5536 = vpop.xlane.xlu0 %5535
        %v5537 = vsel %vm855, %v5481, 0.0
        %5538 = vadd.xlane.f32.xlu0 %v5537
        %v5539 = vpop.xlane.xlu0 %5538
        %v5540 = vsel %vm855, %v5482, 0.0
        %5541 = vadd.xlane.f32.xlu0 %v5540
        %v5542 = vpop.xlane.xlu0 %5541
        %v5543 = vmul.f32 %v5485, %v916
        %v5544 = vmul.f32 %v5488, %v916
        %v5545 = vmul.f32 %v5491, %v916
        %v5546 = vmul.f32 %v5494, %v916
        %v5547 = vmul.f32 %v5497, %v916
        %v5548 = vmul.f32 %v5500, %v916
        %v5549 = vmul.f32 %v5503, %v916
        %v5550 = vmul.f32 %v5506, %v916
        %v5551 = vmul.f32 %v5509, %v916
        %v5552 = vmul.f32 %v5512, %v916
        %v5553 = vmul.f32 %v5515, %v916
        %v5554 = vmul.f32 %v5518, %v916
        %v5555 = vmul.f32 %v5521, %v916
        %v5556 = vmul.f32 %v5524, %v916
        %v5557 = vmul.f32 %v5527, %v916
        %v5558 = vmul.f32 %v5530, %v916
        %v5559 = vmul.f32 %v5533, %v916
        %v5560 = vmul.f32 %v5536, %v916
        %v5561 = vmul.f32 %v5539, %v916
        %v5562 = vmul.f32 %v5542, %v916
        %v5563 = vadd.f32 %v5543, 1e-05
        %v5564 = vadd.f32 %v5544, 1e-05
        %v5565 = vadd.f32 %v5545, 1e-05
        %v5566 = vadd.f32 %v5546, 1e-05
        %v5567 = vadd.f32 %v5547, 1e-05
        %v5568 = vadd.f32 %v5548, 1e-05
        %v5569 = vadd.f32 %v5549, 1e-05
        %v5570 = vadd.f32 %v5550, 1e-05
        %v5571 = vadd.f32 %v5551, 1e-05
        %v5572 = vadd.f32 %v5552, 1e-05
        %v5573 = vadd.f32 %v5553, 1e-05
        %v5574 = vadd.f32 %v5554, 1e-05
        %v5575 = vadd.f32 %v5555, 1e-05
        %v5576 = vadd.f32 %v5556, 1e-05
        %v5577 = vadd.f32 %v5557, 1e-05
        %v5578 = vadd.f32 %v5558, 1e-05
        %v5579 = vadd.f32 %v5559, 1e-05
        %v5580 = vadd.f32 %v5560, 1e-05
        %v5581 = vadd.f32 %v5561, 1e-05
        %v5582 = vadd.f32 %v5562, 1e-05
        %v5583 = vrsqrt.pop %v5563
        %v5584 = vrsqrt.pop %v5564
        %v5585 = vrsqrt.pop %v5565
        %v5586 = vrsqrt.pop %v5566
        %v5587 = vrsqrt.pop %v5567
        %v5588 = vrsqrt.pop %v5568
        %v5589 = vrsqrt.pop %v5569
        %v5590 = vrsqrt.pop %v5570
        %v5591 = vrsqrt.pop %v5571
        %v5592 = vrsqrt.pop %v5572
        %v5593 = vrsqrt.pop %v5573
        %v5594 = vrsqrt.pop %v5574
        %v5595 = vrsqrt.pop %v5575
        %v5596 = vrsqrt.pop %v5576
        %v5597 = vrsqrt.pop %v5577
        %v5598 = vrsqrt.pop %v5578
        %v5599 = vrsqrt.pop %v5579
        %v5600 = vrsqrt.pop %v5580
        %v5601 = vrsqrt.pop %v5581
        %v5602 = vrsqrt.pop %v5582
        %v5603 = vmul.f32 %v5443, %v5583
        %v5604 = vmul.f32 %v5444, %v5584
        %v5605 = vmul.f32 %v5445, %v5585
        %v5606 = vmul.f32 %v5446, %v5586
        %v5607 = vmul.f32 %v5447, %v5587
        %v5608 = vmul.f32 %v5448, %v5588
        %v5609 = vmul.f32 %v5449, %v5589
        %v5610 = vmul.f32 %v5450, %v5590
        %v5611 = vmul.f32 %v5451, %v5591
        %v5612 = vmul.f32 %v5452, %v5592
        %v5613 = vmul.f32 %v5453, %v5593
        %v5614 = vmul.f32 %v5454, %v5594
        %v5615 = vmul.f32 %v5455, %v5595
        %v5616 = vmul.f32 %v5456, %v5596
        %v5617 = vmul.f32 %v5457, %v5597
        %v5618 = vmul.f32 %v5458, %v5598
        %v5619 = vmul.f32 %v5459, %v5599
        %v5620 = vmul.f32 %v5460, %v5600
        %v5621 = vmul.f32 %v5461, %v5601
        %v5622 = vmul.f32 %v5462, %v5602
        %v5624 = vlaneseq
        %v5625 = vshrl.u32 %v5624, 7
        %v5626 = vsub.s32 0, %v5625
        %v5627 = vrot.slane %v5361, %v5626
        %v5629 = vmul.f32 %v5603, %v5627
        %v5630 = vmul.f32 %v5604, %v5627
        %v5631 = vmul.f32 %v5605, %v5627
        %v5632 = vmul.f32 %v5606, %v5627
        %v5633 = vmul.f32 %v5607, %v5627
        %v5634 = vmul.f32 %v5608, %v5627
        %v5635 = vmul.f32 %v5609, %v5627
        %v5636 = vmul.f32 %v5610, %v5627
        %v5637 = vmul.f32 %v5611, %v5627
        %v5638 = vmul.f32 %v5612, %v5627
        %v5639 = vmul.f32 %v5613, %v5627
        %v5640 = vmul.f32 %v5614, %v5627
        %v5641 = vmul.f32 %v5615, %v5627
        %v5642 = vmul.f32 %v5616, %v5627
        %v5643 = vmul.f32 %v5617, %v5627
        %v5644 = vmul.f32 %v5618, %v5627
        %v5645 = vmul.f32 %v5619, %v5627
        %v5646 = vmul.f32 %v5620, %v5627
        %v5647 = vmul.f32 %v5621, %v5627
        %v5648 = vmul.f32 %v5622, %v5627
        %v5650 = vlaneseq
        %v5651 = vshrl.u32 %v5650, 7
        %v5652 = vsub.s32 0, %v5651
        %v5653 = vrot.slane %v5362, %v5652
        %v5655 = vadd.f32 %v5629, %v5653
        %v5656 = vadd.f32 %v5630, %v5653
        %v5657 = vadd.f32 %v5631, %v5653
        %v5658 = vadd.f32 %v5632, %v5653
        %v5659 = vadd.f32 %v5633, %v5653
        %v5660 = vadd.f32 %v5634, %v5653
        %v5661 = vadd.f32 %v5635, %v5653
        %v5662 = vadd.f32 %v5636, %v5653
        %v5663 = vadd.f32 %v5637, %v5653
        %v5664 = vadd.f32 %v5638, %v5653
        %v5665 = vadd.f32 %v5639, %v5653
        %v5666 = vadd.f32 %v5640, %v5653
        %v5667 = vadd.f32 %v5641, %v5653
        %v5668 = vadd.f32 %v5642, %v5653
        %v5669 = vadd.f32 %v5643, %v5653
        %v5670 = vadd.f32 %v5644, %v5653
        %v5671 = vadd.f32 %v5645, %v5653
        %v5672 = vadd.f32 %v5646, %v5653
        %v5673 = vadd.f32 %v5647, %v5653
        %v5674 = vadd.f32 %v5648, %v5653
        %5675 = vst.msk [vmem:[%s775] sm:$0xff] %vm855, %v5655
        %5676 = vst.msk [vmem:[%s775 + $0x8] sm:$0xff] %vm855, %v5656
        %5677 = vst.msk [vmem:[%s775 + $0x10] sm:$0xff] %vm855, %v5657
        %5678 = vst.msk [vmem:[%s775 + $0x18] sm:$0xff] %vm855, %v5658
        %5679 = vst.msk [vmem:[%s775 + $0x20] sm:$0xff] %vm855, %v5659
        %5680 = vst.msk [vmem:[%s775 + $0x28] sm:$0xff] %vm855, %v5660
        %5681 = vst.msk [vmem:[%s775 + $0x30] sm:$0xff] %vm855, %v5661
        %5682 = vst.msk [vmem:[%s775 + $0x38] sm:$0xff] %vm855, %v5662
        %5683 = vst.msk [vmem:[%s775 + $0x40] sm:$0xff] %vm855, %v5663
        %5684 = vst.msk [vmem:[%s775 + $0x48] sm:$0xff] %vm855, %v5664
        %5685 = vst.msk [vmem:[%s775 + $0x50] sm:$0xff] %vm855, %v5665
        %5686 = vst.msk [vmem:[%s775 + $0x58] sm:$0xff] %vm855, %v5666
        %5687 = vst.msk [vmem:[%s775 + $0x60] sm:$0xff] %vm855, %v5667
        %5688 = vst.msk [vmem:[%s775 + $0x68] sm:$0xff] %vm855, %v5668
        %5689 = vst.msk [vmem:[%s775 + $0x70] sm:$0xff] %vm855, %v5669
        %5690 = vst.msk [vmem:[%s775 + $0x78] sm:$0xff] %vm855, %v5670
        %5691 = vst.msk [vmem:[%s775 + $0x80] sm:$0xff] %vm855, %v5671
        %5692 = vst.msk [vmem:[%s775 + $0x88] sm:$0xff] %vm855, %v5672
        %5693 = vst.msk [vmem:[%s775 + $0x90] sm:$0xff] %vm855, %v5673
        %5694 = vst.msk [vmem:[%s775 + $0x98] sm:$0xff] %vm855, %v5674
        %v5695 = vld [vmem:[%s14] sm:$0x1]
        %v5696 = vld [vmem:[%s15] sm:$0x1]
        %v5698 = vlaneseq
        %v5699 = vshrl.u32 %v5698, 7
        %v5700 = vsub.s32 0, %v5699
        %v5701 = vrot.slane %v5695, %v5700
        %v5703 = vmul.f32 %v5603, %v5701
        %v5704 = vmul.f32 %v5604, %v5701
        %v5705 = vmul.f32 %v5605, %v5701
        %v5706 = vmul.f32 %v5606, %v5701
        %v5707 = vmul.f32 %v5607, %v5701
        %v5708 = vmul.f32 %v5608, %v5701
        %v5709 = vmul.f32 %v5609, %v5701
        %v5710 = vmul.f32 %v5610, %v5701
        %v5711 = vmul.f32 %v5611, %v5701
        %v5712 = vmul.f32 %v5612, %v5701
        %v5713 = vmul.f32 %v5613, %v5701
        %v5714 = vmul.f32 %v5614, %v5701
        %v5715 = vmul.f32 %v5615, %v5701
        %v5716 = vmul.f32 %v5616, %v5701
        %v5717 = vmul.f32 %v5617, %v5701
        %v5718 = vmul.f32 %v5618, %v5701
        %v5719 = vmul.f32 %v5619, %v5701
        %v5720 = vmul.f32 %v5620, %v5701
        %v5721 = vmul.f32 %v5621, %v5701
        %v5722 = vmul.f32 %v5622, %v5701
        %v5724 = vlaneseq
        %v5725 = vshrl.u32 %v5724, 7
        %v5726 = vsub.s32 0, %v5725
        %v5727 = vrot.slane %v5696, %v5726
        %v5729 = vadd.f32 %v5703, %v5727
        %v5730 = vadd.f32 %v5704, %v5727
        %v5731 = vadd.f32 %v5705, %v5727
        %v5732 = vadd.f32 %v5706, %v5727
        %v5733 = vadd.f32 %v5707, %v5727
        %v5734 = vadd.f32 %v5708, %v5727
        %v5735 = vadd.f32 %v5709, %v5727
        %v5736 = vadd.f32 %v5710, %v5727
        %v5737 = vadd.f32 %v5711, %v5727
        %v5738 = vadd.f32 %v5712, %v5727
        %v5739 = vadd.f32 %v5713, %v5727
        %v5740 = vadd.f32 %v5714, %v5727
        %v5741 = vadd.f32 %v5715, %v5727
        %v5742 = vadd.f32 %v5716, %v5727
        %v5743 = vadd.f32 %v5717, %v5727
        %v5744 = vadd.f32 %v5718, %v5727
        %v5745 = vadd.f32 %v5719, %v5727
        %v5746 = vadd.f32 %v5720, %v5727
        %v5747 = vadd.f32 %v5721, %v5727
        %v5748 = vadd.f32 %v5722, %v5727
        %5749 = vst.msk [vmem:[%s768] sm:$0xff] %vm855, %v5729
        %5750 = vst.msk [vmem:[%s768 + $0x8] sm:$0xff] %vm855, %v5730
        %5751 = vst.msk [vmem:[%s768 + $0x10] sm:$0xff] %vm855, %v5731
        %5752 = vst.msk [vmem:[%s768 + $0x18] sm:$0xff] %vm855, %v5732
        %5753 = vst.msk [vmem:[%s768 + $0x20] sm:$0xff] %vm855, %v5733
        %5754 = vst.msk [vmem:[%s768 + $0x28] sm:$0xff] %vm855, %v5734
        %5755 = vst.msk [vmem:[%s768 + $0x30] sm:$0xff] %vm855, %v5735
        %5756 = vst.msk [vmem:[%s768 + $0x38] sm:$0xff] %vm855, %v5736
        %5757 = vst.msk [vmem:[%s768 + $0x40] sm:$0xff] %vm855, %v5737
        %5758 = vst.msk [vmem:[%s768 + $0x48] sm:$0xff] %vm855, %v5738
        %5759 = vst.msk [vmem:[%s768 + $0x50] sm:$0xff] %vm855, %v5739
        %5760 = vst.msk [vmem:[%s768 + $0x58] sm:$0xff] %vm855, %v5740
        %5761 = vst.msk [vmem:[%s768 + $0x60] sm:$0xff] %vm855, %v5741
        %5762 = vst.msk [vmem:[%s768 + $0x68] sm:$0xff] %vm855, %v5742
        %5763 = vst.msk [vmem:[%s768 + $0x70] sm:$0xff] %vm855, %v5743
        %5764 = vst.msk [vmem:[%s768 + $0x78] sm:$0xff] %vm855, %v5744
        %5765 = vst.msk [vmem:[%s768 + $0x80] sm:$0xff] %vm855, %v5745
        %5766 = vst.msk [vmem:[%s768 + $0x88] sm:$0xff] %vm855, %v5746
        %5767 = vst.msk [vmem:[%s768 + $0x90] sm:$0xff] %vm855, %v5747
        %5768 = vst.msk [vmem:[%s768 + $0x98] sm:$0xff] %vm855, %v5748
      $region92: #{clip_text_forward.1} parent=83 // pred_fallthru
        _
      %s5769 = smul.u32 2, %s33
      %p5770 = scmp.lt.s32.totalorder %s5769, 1
      %s5771 = scalar_select %p5770, %s5769, 1
      %s5772 = smul.addr %s5771, 10
      %s5773 = smul.addr %s5772, 8
      %s5774 = scalar_lea.vmem %s16, %s5773
      %s5775 = smul.u32 2, %s33
      %p5776 = scmp.lt.s32.totalorder %s5775, 1
      %s5777 = scalar_select %p5776, %s5775, 1
      %s5778 = smul.addr %s5777, 10
      %s5779 = smul.addr %s5778, 8
      %s5780 = scalar_lea.vmem %s17, %s5779
      // Predicated region
      $region93: #{clip_text_forward.1} parent=83 // pred_check
        %p5781 = pneg %p460
      $region94: #{clip_text_forward.1} parent=83 // pred_check_branch
        %5783 = sbr.rel (%p5781) target = $region96
      $region95: #{clip_text_forward.1} parent=83 // pred_region
        %s5784 = smul.u32 2, %s33
      $region96: #{clip_text_forward.1} parent=83 // pred_fallthru
        _
      // Predicated region
      $region97: #{clip_text_forward.1} parent=83 // pred_check
        %p5785 = pneg %p486
      $region98: #{clip_text_forward.1} parent=83 // pred_check_branch
        %5787 = sbr.rel (%p5785) target = $region100
      $region99: #{clip_text_forward.1} parent=83 // pred_region
        %s5788 = smul.u32 2, %s33
      $region100: #{clip_text_forward.1} parent=83 // pred_fallthru
        _
      // Predicated region
      $region101: #{clip_text_forward.1} parent=83 // pred_check
        %p5789 = pneg %p460
      $region102: #{clip_text_forward.1} parent=83 // pred_check_branch
        %5791 = sbr.rel (%p5789) target = $region104
      $region103: #{clip_text_forward.1} parent=83 // pred_region
        %s5792 = smul.u32 2, %s33
        %p5793 = scmp.lt.s32.totalorder %s5792, 1
        %s5794 = scalar_select %p5793, %s5792, 1
        %s5795 = smul.addr %s5794, 10
        %s5796 = smul.addr %s5795, 8
        %s5797 = scalar_lea.vmem %s16, %s5796
      $region104: #{clip_text_forward.1} parent=83 // pred_fallthru
        _
      // Predicated region
      $region105: #{clip_text_forward.1} parent=83 // pred_check
        %p5798 = pneg %p486
      $region106: #{clip_text_forward.1} parent=83 // pred_check_branch
        %5800 = sbr.rel (%p5798) target = $region108
      $region107: #{clip_text_forward.1} parent=83 // pred_region
        %s5801 = smul.u32 2, %s33
        %p5802 = scmp.lt.s32.totalorder %s5801, 1
        %s5803 = scalar_select %p5802, %s5801, 1
        %s5804 = smul.addr %s5803, 10
        %s5805 = smul.addr %s5804, 8
        %s5806 = scalar_lea.vmem %s17, %s5805
      $region108: #{clip_text_forward.1} parent=83 // pred_fallthru
        _
    $region84: #{clip_text_forward.1} parent=5 // pred_fallthru
      _
    %p5807 = scmp.le.s32.totalorder 2, %s24
    // Predicated region
    $region109: #{clip_text_forward.1} parent=5 // pred_check
      %p5808 = pneg %p5807
    $region110: #{clip_text_forward.1} parent=5 // pred_check_branch
      %5810 = sbr.rel (%p5808) target = $region112
    $region111: #{clip_text_forward.1} parent=5 // pred_region
      %s5811 = ssub.s32 %s24, 2
    $region112: #{clip_text_forward.1} parent=5 // pred_fallthru
      _
  $region6: #{clip_text_forward.1} parent=0 // loop_footer
    %s28 = sadd.s32 1, %s24
  $region7: #{clip_text_forward.1} parent=0 // loop_footer_branch
    %23 = sbr.rel target = $region3
  $region8: #{clip_text_forward.1} parent=0 // loop_exit
    _

</llo_original>
